<compile_context>
chip_gen: v6e
topology: v6e:2x2x1
jax: 0.10.0
libtpu: 0.0.40
codegen_flags: <defaults>
</compile_context>

<pallas_src>
import jax
import jax.numpy as jnp
from jax import lax
from jax.experimental import pallas as pl
from jax.experimental.pallas import tpu as pltpu


def _round_up(x, m):
    return ((x + m - 1) // m) * m


# ---------------------------------------------------------------------------
# Fused dense-block kernel: init concat buffer, then L x (BN -> ReLU -> conv3x3)
# accumulated in place into the resident (lane-dense) channel buffer.
# ---------------------------------------------------------------------------
def _dense_block_kernel(x_ref, embed_ref, scale_ref, shift_ref, w_ref, o_ref):
    # x_ref:     (1, H, W, Cin)       f32   one input image
    # embed_ref: (Cin, C_pad)         f32   one-hot channel-placement matrix
    # scale_ref: (L, 1, 1, C_pad)     f32   folded BN scale (0 outside layer-i input channels)
    # shift_ref: (L, 1, 1, C_pad)     f32   folded BN shift (0 outside)
    # w_ref:     (L, 9*C_pad, C_pad)  f32/bf16  zero-embedded conv weights
    # o_ref:     (1, H, W, C_pad)     f32   resident concat buffer == output tile
    _, H, W, Cin = x_ref.shape
    L = w_ref.shape[0]
    C_pad = o_ref.shape[-1]

    # Init: place the input into its channel slot (last Cin valid channels)
    # with a tiny one-hot matmul; every other channel starts at exactly 0.
    x2d = x_ref[...].reshape(H * W, Cin)
    o_ref[...] = jnp.dot(
        x2d, embed_ref[...], preferred_element_type=jnp.float32
    ).reshape(1, H, W, C_pad)

    for i in range(L):                       # static unroll over dense layers
        feat = o_ref[...]                    # (1, H, W, C_pad) f32, already in VMEM
        # BN (folded scale/shift) + ReLU, full lane-dense width, f32 on the VPU.
        a = jnp.maximum(feat * scale_ref[i] + shift_ref[i], 0.0)
        a = a.astype(w_ref.dtype)            # optional bf16 only at the matmul
        # padding=1 halo of zeros (PyTorch pads AFTER BN+ReLU).
        ap = jnp.pad(a, ((0, 0), (1, 1), (1, 1), (0, 0)))
        # im2col: lane-dense [H*W, 9*C_pad] patch matrix -> ONE MXU matmul.
        patches = jnp.concatenate(
            [ap[:, dy:dy + H, dx:dx + W, :]
             for dy in range(3) for dx in range(3)],
            axis=-1).reshape(H * W, 9 * C_pad)
        conv = jnp.dot(patches, w_ref[i],
                       preferred_element_type=jnp.float32)   # (H*W, C_pad) f32
        # Weight columns are zero outside layer i's output channel slice, so a
        # full-width lane-dense add IS the channel concat (other channels += 0).
        o_ref[...] = feat + conv.reshape(1, H, W, C_pad)


def dense_block_forward(x_nchw, params, eps=1e-5, matmul_dtype=jnp.float32):
    """Full dense_block forward. Input/output are NCHW (PyTorch layout)."""
    N, Cin, H, W = x_nchw.shape
    L = len(params)
    G = params[0]["w"].shape[0]
    C_final = Cin + G * L
    C_pad = max(128, _round_up(C_final, 128))   # lane-dense channel width
    in_start = C_final - Cin                    # original input's slot (PyTorch order)

    # One-hot placement: input channel j -> buffer channel in_start + j.
    embed = jnp.zeros((Cin, C_pad), jnp.float32)
    embed = embed.at[:, in_start:in_start + Cin].set(jnp.eye(Cin, dtype=jnp.float32))

    scales, shifts, weights = [], [], []
    for i, p in enumerate(params):
        cin_i = Cin + i * G                     # layer-i input width
        in_off = C_final - Cin - i * G          # layer-i input channel slice start
        out_off = in_off - G                    # layer-i output channel slice start
        s = (p["gamma"] / jnp.sqrt(p["var"] + eps)).astype(jnp.float32)
        b = (p["beta"] - p["mean"] * s).astype(jnp.float32)
        s_full = jnp.zeros((C_pad,), jnp.float32).at[in_off:in_off + cin_i].set(s)
        b_full = jnp.zeros((C_pad,), jnp.float32).at[in_off:in_off + cin_i].set(b)
        # PyTorch OIHW -> HWIO, zero-embedded into the padded channel space so
        # its output columns land directly at this layer's concat slice.
        w_hwio = jnp.transpose(p["w"], (2, 3, 1, 0)).astype(jnp.float32)
        w_full = jnp.zeros((3, 3, C_pad, C_pad), jnp.float32)
        w_full = w_full.at[:, :, in_off:in_off + cin_i,
                           out_off:out_off + G].set(w_hwio)
        scales.append(s_full.reshape(1, 1, C_pad))
        shifts.append(b_full.reshape(1, 1, C_pad))
        weights.append(w_full.reshape(9 * C_pad, C_pad))
    scales = jnp.stack(scales)                            # (L, 1, 1, C_pad)
    shifts = jnp.stack(shifts)                            # (L, 1, 1, C_pad)
    weights = jnp.stack(weights).astype(matmul_dtype)     # (L, 9*C_pad, C_pad)

    x_nhwc = jnp.transpose(x_nchw, (0, 2, 3, 1)).astype(jnp.float32)

    out = pl.pallas_call(
        _dense_block_kernel,
        out_shape=jax.ShapeDtypeStruct((N, H, W, C_pad), jnp.float32),
        grid_spec=pltpu.PrefetchScalarGridSpec(
            num_scalar_prefetch=0,
            grid=(N,),
            in_specs=[
                pl.BlockSpec((1, H, W, Cin), lambda n: (n, 0, 0, 0)),
                pl.BlockSpec((Cin, C_pad), lambda n: (0, 0)),
                pl.BlockSpec((L, 1, 1, C_pad), lambda n: (0, 0, 0, 0)),
                pl.BlockSpec((L, 1, 1, C_pad), lambda n: (0, 0, 0, 0)),
                pl.BlockSpec((L, 9 * C_pad, C_pad), lambda n: (0, 0, 0)),
            ],
            out_specs=pl.BlockSpec((1, H, W, C_pad), lambda n: (n, 0, 0, 0)),
        ),
        compiler_params=pltpu.CompilerParams(
            dimension_semantics=("parallel",)),
    )(x_nhwc, embed, scales, shifts, weights)

    out = out[..., :C_final]                  # drop lane-padding channels
    return jnp.transpose(out, (0, 3, 1, 2))   # NHWC -> NCHW


# ---------------------------------------------------------------------------
# Deterministic parameter construction (shapes from dense_block.__init__)
# ---------------------------------------------------------------------------
def make_params(key, in_channel, growth_rate, num_layers):
    params = []
    channel = in_channel
    for _ in range(num_layers):
        key, k1, k2, k3, k4, k5 = jax.random.split(key, 6)
        params.append(dict(
            gamma=jax.random.uniform(k1, (channel,), jnp.float32, 0.5, 1.5),
            beta=0.1 * jax.random.normal(k2, (channel,), jnp.float32),
            mean=0.1 * jax.random.normal(k3, (channel,), jnp.float32),
            var=jax.random.uniform(k4, (channel,), jnp.float32, 0.5, 1.5),
            # PyTorch Conv2d weight layout: (Cout, Cin, kH, kW)
            w=jax.random.normal(k5, (growth_rate, channel, 3, 3), jnp.float32)
              * (1.0 / jnp.sqrt(9.0 * channel)),
        ))
        channel += growth_rate
    return params


# ---------------------------------------------------------------------------
# Pure-JAX reference (NCHW, lax.conv) for correctness checking
# ---------------------------------------------------------------------------
def ref_forward(x_nchw, params, eps=1e-5):
    x = x_nchw.astype(jnp.float32)
    for p in params:
        scale = p["gamma"] / jnp.sqrt(p["var"] + eps)
        shift = p["beta"] - p["mean"] * scale
        a = jnp.maximum(x * scale[None, :, None, None]
                        + shift[None, :, None, None], 0.0)
        out = lax.conv_general_dilated(
            a, p["w"], window_strides=(1, 1), padding=((1, 1), (1, 1)),
            dimension_numbers=("NCHW", "OIHW", "NCHW"))
        x = jnp.concatenate([out, x], axis=1)
    return x


if __name__ == "__main__":
    in_channel, growth_rate, num_layers = 4, 8, 3
    N, H, W = 2, 16, 16

    key = jax.random.PRNGKey(0)
    key, kx = jax.random.split(key)
    x = jax.random.normal(kx, (N, in_channel, H, W), jnp.float32)  # NCHW

    params = make_params(key, in_channel, growth_rate, num_layers)

    # f32 matmul path: must match the reference tightly.
    y = jax.block_until_ready(dense_block_forward(x, params))
    expected_channels = in_channel + growth_rate * num_layers
    assert y.shape == (N, expected_channels, H, W), y.shape

    y_ref = jax.block_until_ready(ref_forward(x, params))
    assert jnp.allclose(y, y_ref, atol=1e-4, rtol=1e-4), float(
        jnp.max(jnp.abs(y - y_ref)))

    # bf16-at-the-matmul path (MXU-friendly on v5e/v6e/v7x); loose tolerance
    # only accounts for bf16 rounding of matmul inputs (accumulation is f32).
    y16 = jax.block_until_ready(
        dense_block_forward(x, params, matmul_dtype=jnp.bfloat16))
    assert y16.shape == (N, expected_channels, H, W), y16.shape
    assert jnp.allclose(y16, y_ref, atol=0.5, rtol=0.1), float(
        jnp.max(jnp.abs(y16 - y_ref)))

    print("KERNEL_OK")
</pallas_src>

<mosaic_0001>
module attributes {stable_mosaic.version = 11 : i64} {
  func.func @_dense_block_kernel(%arg0: i32, %arg1: memref<1x16x16x4xf32, #tpu.memory_space<vmem>>, %arg2: memref<4x128xf32, #tpu.memory_space<vmem>>, %arg3: memref<3x1x1x128xf32, #tpu.memory_space<vmem>>, %arg4: memref<3x1x1x128xf32, #tpu.memory_space<vmem>>, %arg5: memref<3x1152x128xf32, #tpu.memory_space<vmem>>, %arg6: memref<1x16x16x128xf32, #tpu.memory_space<vmem>>) attributes {dimension_semantics = [#tpu.dimension_semantics<parallel>], iteration_bounds = array<i64: 2>, scalar_prefetch = 0 : i64, scratch_operands = 0 : i64, tpu.core_type = #tpu.core_type<tc>, window_params = [{transform_indices = @transform_0, window_bounds = array<i64: 1, 16, 16, 4>}, {pipeline_mode = #tpu.pipeline_mode<synchronous>, transform_indices = @transform_1, window_bounds = array<i64: 4, 128>}, {pipeline_mode = #tpu.pipeline_mode<synchronous>, transform_indices = @transform_2, window_bounds = array<i64: 3, 1, 1, 128>}, {pipeline_mode = #tpu.pipeline_mode<synchronous>, transform_indices = @transform_3, window_bounds = array<i64: 3, 1, 1, 128>}, {pipeline_mode = #tpu.pipeline_mode<synchronous>, transform_indices = @transform_4, window_bounds = array<i64: 3, 1152, 128>}, {transform_indices = @transform_5, window_bounds = array<i64: 1, 16, 16, 128>}]} {
    %c0 = arith.constant 0 : index
    %c0_0 = arith.constant 0 : index
    %c0_1 = arith.constant 0 : index
    %c0_2 = arith.constant 0 : index
    %0 = vector.load %arg1[%c0, %c0_0, %c0_1, %c0_2] : memref<1x16x16x4xf32, #tpu.memory_space<vmem>>, vector<1x16x16x4xf32>
    %1 = vector.shape_cast %0 : vector<1x16x16x4xf32> to vector<256x4xf32>
    %c0_3 = arith.constant 0 : index
    %c0_4 = arith.constant 0 : index
    %2 = vector.load %arg2[%c0_3, %c0_4] : memref<4x128xf32, #tpu.memory_space<vmem>>, vector<4x128xf32>
    %cst = arith.constant dense<0.000000e+00> : vector<256x128xf32>
    %3 = tpu.matmul %1, %2, %cst {dimension_numbers = #tpu.dot_dimension_numbers<[1], [0], [0], [1], [0, 0, 1, 1], [], []>} : vector<256x4xf32>, vector<4x128xf32>, vector<256x128xf32> -> vector<256x128xf32>
    %4 = vector.shape_cast %3 : vector<256x128xf32> to vector<1x16x16x128xf32>
    %c0_5 = arith.constant 0 : index
    %c0_6 = arith.constant 0 : index
    %c0_7 = arith.constant 0 : index
    %c0_8 = arith.constant 0 : index
    %5 = vector.load %arg6[%c0_5, %c0_6, %c0_7, %c0_8] : memref<1x16x16x128xf32, #tpu.memory_space<vmem>>, vector<1x16x16x128xf32>
    tpu.vector_store %arg6[%c0_5, %c0_6, %c0_7, %c0_8], %4 {strides = array<i32>} : memref<1x16x16x128xf32, #tpu.memory_space<vmem>>, vector<1x16x16x128xf32>,
    %c0_9 = arith.constant 0 : index
    %c0_10 = arith.constant 0 : index
    %c0_11 = arith.constant 0 : index
    %c0_12 = arith.constant 0 : index
    %6 = vector.load %arg6[%c0_9, %c0_10, %c0_11, %c0_12] : memref<1x16x16x128xf32, #tpu.memory_space<vmem>>, vector<1x16x16x128xf32>
    %c0_13 = arith.constant 0 : index
    %c0_14 = arith.constant 0 : index
    %c0_15 = arith.constant 0 : index
    %c0_16 = arith.constant 0 : index
    %7 = vector.load %arg3[%c0_13, %c0_14, %c0_15, %c0_16] : memref<3x1x1x128xf32, #tpu.memory_space<vmem>>, vector<1x1x1x128xf32>
    %8 = vector.shape_cast %7 : vector<1x1x1x128xf32> to vector<1x1x128xf32>
    %9 = vector.shape_cast %8 : vector<1x1x128xf32> to vector<1x1x1x128xf32>
    %10 = vector.broadcast %9 : vector<1x1x1x128xf32> to vector<1x16x16x128xf32>
    %11 = arith.mulf %6, %10 : vector<1x16x16x128xf32>
    %c0_17 = arith.constant 0 : index
    %c0_18 = arith.constant 0 : index
    %c0_19 = arith.constant 0 : index
    %c0_20 = arith.constant 0 : index
    %12 = vector.load %arg4[%c0_17, %c0_18, %c0_19, %c0_20] : memref<3x1x1x128xf32, #tpu.memory_space<vmem>>, vector<1x1x1x128xf32>
    %13 = vector.shape_cast %12 : vector<1x1x1x128xf32> to vector<1x1x128xf32>
    %14 = vector.shape_cast %13 : vector<1x1x128xf32> to vector<1x1x1x128xf32>
    %15 = vector.broadcast %14 : vector<1x1x1x128xf32> to vector<1x16x16x128xf32>
    %16 = arith.addf %11, %15 : vector<1x16x16x128xf32>
    %cst_21 = arith.constant 0.000000e+00 : f32
    %17 = vector.broadcast %cst_21 : f32 to vector<1x16x16x128xf32>
    %18 = arith.maximumf %16, %17 : vector<1x16x16x128xf32>
    %c0_i32 = arith.constant 0 : i32
    %19 = arith.sitofp %c0_i32 : i32 to f32
    %20 = vector.broadcast %19 : f32 to vector<1x1x16x128xf32>
    %21 = tpu.concatenate %20, %18 in 1 : vector<1x1x16x128xf32>, vector<1x16x16x128xf32> -> vector<1x17x16x128xf32>
    %22 = vector.broadcast %19 : f32 to vector<1x1x16x128xf32>
    %23 = tpu.concatenate %21, %22 in 1 : vector<1x17x16x128xf32>, vector<1x1x16x128xf32> -> vector<1x18x16x128xf32>
    %24 = vector.broadcast %19 : f32 to vector<1x18x1x128xf32>
    %25 = tpu.concatenate %24, %23 in 2 : vector<1x18x1x128xf32>, vector<1x18x16x128xf32> -> vector<1x18x17x128xf32>
    %26 = vector.broadcast %19 : f32 to vector<1x18x1x128xf32>
    %27 = tpu.concatenate %25, %26 in 2 : vector<1x18x17x128xf32>, vector<1x18x1x128xf32> -> vector<1x18x18x128xf32>
    %28 = vector.extract_strided_slice %27 {offsets = [0, 0, 0, 0], sizes = [1, 16, 16, 128], strides = [1, 1, 1, 1]} : vector<1x18x18x128xf32> to vector<1x16x16x128xf32>
    %29 = vector.extract_strided_slice %27 {offsets = [0, 0, 1, 0], sizes = [1, 16, 16, 128], strides = [1, 1, 1, 1]} : vector<1x18x18x128xf32> to vector<1x16x16x128xf32>
    %30 = vector.extract_strided_slice %27 {offsets = [0, 0, 2, 0], sizes = [1, 16, 16, 128], strides = [1, 1, 1, 1]} : vector<1x18x18x128xf32> to vector<1x16x16x128xf32>
    %31 = vector.extract_strided_slice %27 {offsets = [0, 1, 0, 0], sizes = [1, 16, 16, 128], strides = [1, 1, 1, 1]} : vector<1x18x18x128xf32> to vector<1x16x16x128xf32>
    %32 = vector.extract_strided_slice %27 {offsets = [0, 1, 1, 0], sizes = [1, 16, 16, 128], strides = [1, 1, 1, 1]} : vector<1x18x18x128xf32> to vector<1x16x16x128xf32>
    %33 = vector.extract_strided_slice %27 {offsets = [0, 1, 2, 0], sizes = [1, 16, 16, 128], strides = [1, 1, 1, 1]} : vector<1x18x18x128xf32> to vector<1x16x16x128xf32>
    %34 = vector.extract_strided_slice %27 {offsets = [0, 2, 0, 0], sizes = [1, 16, 16, 128], strides = [1, 1, 1, 1]} : vector<1x18x18x128xf32> to vector<1x16x16x128xf32>
    %35 = vector.extract_strided_slice %27 {offsets = [0, 2, 1, 0], sizes = [1, 16, 16, 128], strides = [1, 1, 1, 1]} : vector<1x18x18x128xf32> to vector<1x16x16x128xf32>
    %36 = vector.extract_strided_slice %27 {offsets = [0, 2, 2, 0], sizes = [1, 16, 16, 128], strides = [1, 1, 1, 1]} : vector<1x18x18x128xf32> to vector<1x16x16x128xf32>
    %37 = tpu.concatenate %28, %29, %30, %31, %32, %33, %34, %35, %36 in 3 : vector<1x16x16x128xf32>, vector<1x16x16x128xf32>, vector<1x16x16x128xf32>, vector<1x16x16x128xf32>, vector<1x16x16x128xf32>, vector<1x16x16x128xf32>, vector<1x16x16x128xf32>, vector<1x16x16x128xf32>, vector<1x16x16x128xf32> -> vector<1x16x16x1152xf32>
    %38 = vector.shape_cast %37 : vector<1x16x16x1152xf32> to vector<256x1152xf32>
    %c0_22 = arith.constant 0 : index
    %c0_23 = arith.constant 0 : index
    %c0_24 = arith.constant 0 : index
    %39 = vector.load %arg5[%c0_22, %c0_23, %c0_24] : memref<3x1152x128xf32, #tpu.memory_space<vmem>>, vector<1x1152x128xf32>
    %40 = vector.shape_cast %39 : vector<1x1152x128xf32> to vector<1152x128xf32>
    %cst_25 = arith.constant dense<0.000000e+00> : vector<256x128xf32>
    %41 = tpu.matmul %38, %40, %cst_25 {dimension_numbers = #tpu.dot_dimension_numbers<[1], [0], [0], [1], [0, 0, 1, 1], [], []>} : vector<256x1152xf32>, vector<1152x128xf32>, vector<256x128xf32> -> vector<256x128xf32>
    %42 = vector.shape_cast %41 : vector<256x128xf32> to vector<1x16x16x128xf32>
    %43 = arith.addf %6, %42 : vector<1x16x16x128xf32>
    %c0_26 = arith.constant 0 : index
    %c0_27 = arith.constant 0 : index
    %c0_28 = arith.constant 0 : index
    %c0_29 = arith.constant 0 : index
    %44 = vector.load %arg6[%c0_26, %c0_27, %c0_28, %c0_29] : memref<1x16x16x128xf32, #tpu.memory_space<vmem>>, vector<1x16x16x128xf32>
    tpu.vector_store %arg6[%c0_26, %c0_27, %c0_28, %c0_29], %43 {strides = array<i32>} : memref<1x16x16x128xf32, #tpu.memory_space<vmem>>, vector<1x16x16x128xf32>,
    %c0_30 = arith.constant 0 : index
    %c0_31 = arith.constant 0 : index
    %c0_32 = arith.constant 0 : index
    %c0_33 = arith.constant 0 : index
    %45 = vector.load %arg6[%c0_30, %c0_31, %c0_32, %c0_33] : memref<1x16x16x128xf32, #tpu.memory_space<vmem>>, vector<1x16x16x128xf32>
    %c1 = arith.constant 1 : index
    %c0_34 = arith.constant 0 : index
    %c0_35 = arith.constant 0 : index
    %c0_36 = arith.constant 0 : index
    %46 = vector.load %arg3[%c1, %c0_34, %c0_35, %c0_36] : memref<3x1x1x128xf32, #tpu.memory_space<vmem>>, vector<1x1x1x128xf32>
    %47 = vector.shape_cast %46 : vector<1x1x1x128xf32> to vector<1x1x128xf32>
    %48 = vector.shape_cast %47 : vector<1x1x128xf32> to vector<1x1x1x128xf32>
    %49 = vector.broadcast %48 : vector<1x1x1x128xf32> to vector<1x16x16x128xf32>
    %50 = arith.mulf %45, %49 : vector<1x16x16x128xf32>
    %c1_37 = arith.constant 1 : index
    %c0_38 = arith.constant 0 : index
    %c0_39 = arith.constant 0 : index
    %c0_40 = arith.constant 0 : index
    %51 = vector.load %arg4[%c1_37, %c0_38, %c0_39, %c0_40] : memref<3x1x1x128xf32, #tpu.memory_space<vmem>>, vector<1x1x1x128xf32>
    %52 = vector.shape_cast %51 : vector<1x1x1x128xf32> to vector<1x1x128xf32>
    %53 = vector.shape_cast %52 : vector<1x1x128xf32> to vector<1x1x1x128xf32>
    %54 = vector.broadcast %53 : vector<1x1x1x128xf32> to vector<1x16x16x128xf32>
    %55 = arith.addf %50, %54 : vector<1x16x16x128xf32>
    %cst_41 = arith.constant 0.000000e+00 : f32
    %56 = vector.broadcast %cst_41 : f32 to vector<1x16x16x128xf32>
    %57 = arith.maximumf %55, %56 : vector<1x16x16x128xf32>
    %c0_i32_42 = arith.constant 0 : i32
    %58 = arith.sitofp %c0_i32_42 : i32 to f32
    %59 = vector.broadcast %58 : f32 to vector<1x1x16x128xf32>
    %60 = tpu.concatenate %59, %57 in 1 : vector<1x1x16x128xf32>, vector<1x16x16x128xf32> -> vector<1x17x16x128xf32>
    %61 = vector.broadcast %58 : f32 to vector<1x1x16x128xf32>
    %62 = tpu.concatenate %60, %61 in 1 : vector<1x17x16x128xf32>, vector<1x1x16x128xf32> -> vector<1x18x16x128xf32>
    %63 = vector.broadcast %58 : f32 to vector<1x18x1x128xf32>
    %64 = tpu.concatenate %63, %62 in 2 : vector<1x18x1x128xf32>, vector<1x18x16x128xf32> -> vector<1x18x17x128xf32>
    %65 = vector.broadcast %58 : f32 to vector<1x18x1x128xf32>
    %66 = tpu.concatenate %64, %65 in 2 : vector<1x18x17x128xf32>, vector<1x18x1x128xf32> -> vector<1x18x18x128xf32>
    %67 = vector.extract_strided_slice %66 {offsets = [0, 0, 0, 0], sizes = [1, 16, 16, 128], strides = [1, 1, 1, 1]} : vector<1x18x18x128xf32> to vector<1x16x16x128xf32>
    %68 = vector.extract_strided_slice %66 {offsets = [0, 0, 1, 0], sizes = [1, 16, 16, 128], strides = [1, 1, 1, 1]} : vector<1x18x18x128xf32> to vector<1x16x16x128xf32>
    %69 = vector.extract_strided_slice %66 {offsets = [0, 0, 2, 0], sizes = [1, 16, 16, 128], strides = [1, 1, 1, 1]} : vector<1x18x18x128xf32> to vector<1x16x16x128xf32>
    %70 = vector.extract_strided_slice %66 {offsets = [0, 1, 0, 0], sizes = [1, 16, 16, 128], strides = [1, 1, 1, 1]} : vector<1x18x18x128xf32> to vector<1x16x16x128xf32>
    %71 = vector.extract_strided_slice %66 {offsets = [0, 1, 1, 0], sizes = [1, 16, 16, 128], strides = [1, 1, 1, 1]} : vector<1x18x18x128xf32> to vector<1x16x16x128xf32>
    %72 = vector.extract_strided_slice %66 {offsets = [0, 1, 2, 0], sizes = [1, 16, 16, 128], strides = [1, 1, 1, 1]} : vector<1x18x18x128xf32> to vector<1x16x16x128xf32>
    %73 = vector.extract_strided_slice %66 {offsets = [0, 2, 0, 0], sizes = [1, 16, 16, 128], strides = [1, 1, 1, 1]} : vector<1x18x18x128xf32> to vector<1x16x16x128xf32>
    %74 = vector.extract_strided_slice %66 {offsets = [0, 2, 1, 0], sizes = [1, 16, 16, 128], strides = [1, 1, 1, 1]} : vector<1x18x18x128xf32> to vector<1x16x16x128xf32>
    %75 = vector.extract_strided_slice %66 {offsets = [0, 2, 2, 0], sizes = [1, 16, 16, 128], strides = [1, 1, 1, 1]} : vector<1x18x18x128xf32> to vector<1x16x16x128xf32>
    %76 = tpu.concatenate %67, %68, %69, %70, %71, %72, %73, %74, %75 in 3 : vector<1x16x16x128xf32>, vector<1x16x16x128xf32>, vector<1x16x16x128xf32>, vector<1x16x16x128xf32>, vector<1x16x16x128xf32>, vector<1x16x16x128xf32>, vector<1x16x16x128xf32>, vector<1x16x16x128xf32>, vector<1x16x16x128xf32> -> vector<1x16x16x1152xf32>
    %77 = vector.shape_cast %76 : vector<1x16x16x1152xf32> to vector<256x1152xf32>
    %c1_43 = arith.constant 1 : index
    %c0_44 = arith.constant 0 : index
    %c0_45 = arith.constant 0 : index
    %78 = vector.load %arg5[%c1_43, %c0_44, %c0_45] : memref<3x1152x128xf32, #tpu.memory_space<vmem>>, vector<1x1152x128xf32>
    %79 = vector.shape_cast %78 : vector<1x1152x128xf32> to vector<1152x128xf32>
    %cst_46 = arith.constant dense<0.000000e+00> : vector<256x128xf32>
    %80 = tpu.matmul %77, %79, %cst_46 {dimension_numbers = #tpu.dot_dimension_numbers<[1], [0], [0], [1], [0, 0, 1, 1], [], []>} : vector<256x1152xf32>, vector<1152x128xf32>, vector<256x128xf32> -> vector<256x128xf32>
    %81 = vector.shape_cast %80 : vector<256x128xf32> to vector<1x16x16x128xf32>
    %82 = arith.addf %45, %81 : vector<1x16x16x128xf32>
    %c0_47 = arith.constant 0 : index
    %c0_48 = arith.constant 0 : index
    %c0_49 = arith.constant 0 : index
    %c0_50 = arith.constant 0 : index
    %83 = vector.load %arg6[%c0_47, %c0_48, %c0_49, %c0_50] : memref<1x16x16x128xf32, #tpu.memory_space<vmem>>, vector<1x16x16x128xf32>
    tpu.vector_store %arg6[%c0_47, %c0_48, %c0_49, %c0_50], %82 {strides = array<i32>} : memref<1x16x16x128xf32, #tpu.memory_space<vmem>>, vector<1x16x16x128xf32>,
    %c0_51 = arith.constant 0 : index
    %c0_52 = arith.constant 0 : index
    %c0_53 = arith.constant 0 : index
    %c0_54 = arith.constant 0 : index
    %84 = vector.load %arg6[%c0_51, %c0_52, %c0_53, %c0_54] : memref<1x16x16x128xf32, #tpu.memory_space<vmem>>, vector<1x16x16x128xf32>
    %c2 = arith.constant 2 : index
    %c0_55 = arith.constant 0 : index
    %c0_56 = arith.constant 0 : index
    %c0_57 = arith.constant 0 : index
    %85 = vector.load %arg3[%c2, %c0_55, %c0_56, %c0_57] : memref<3x1x1x128xf32, #tpu.memory_space<vmem>>, vector<1x1x1x128xf32>
    %86 = vector.shape_cast %85 : vector<1x1x1x128xf32> to vector<1x1x128xf32>
    %87 = vector.shape_cast %86 : vector<1x1x128xf32> to vector<1x1x1x128xf32>
    %88 = vector.broadcast %87 : vector<1x1x1x128xf32> to vector<1x16x16x128xf32>
    %89 = arith.mulf %84, %88 : vector<1x16x16x128xf32>
    %c2_58 = arith.constant 2 : index
    %c0_59 = arith.constant 0 : index
    %c0_60 = arith.constant 0 : index
    %c0_61 = arith.constant 0 : index
    %90 = vector.load %arg4[%c2_58, %c0_59, %c0_60, %c0_61] : memref<3x1x1x128xf32, #tpu.memory_space<vmem>>, vector<1x1x1x128xf32>
    %91 = vector.shape_cast %90 : vector<1x1x1x128xf32> to vector<1x1x128xf32>
    %92 = vector.shape_cast %91 : vector<1x1x128xf32> to vector<1x1x1x128xf32>
    %93 = vector.broadcast %92 : vector<1x1x1x128xf32> to vector<1x16x16x128xf32>
    %94 = arith.addf %89, %93 : vector<1x16x16x128xf32>
    %cst_62 = arith.constant 0.000000e+00 : f32
    %95 = vector.broadcast %cst_62 : f32 to vector<1x16x16x128xf32>
    %96 = arith.maximumf %94, %95 : vector<1x16x16x128xf32>
    %c0_i32_63 = arith.constant 0 : i32
    %97 = arith.sitofp %c0_i32_63 : i32 to f32
    %98 = vector.broadcast %97 : f32 to vector<1x1x16x128xf32>
    %99 = tpu.concatenate %98, %96 in 1 : vector<1x1x16x128xf32>, vector<1x16x16x128xf32> -> vector<1x17x16x128xf32>
    %100 = vector.broadcast %97 : f32 to vector<1x1x16x128xf32>
    %101 = tpu.concatenate %99, %100 in 1 : vector<1x17x16x128xf32>, vector<1x1x16x128xf32> -> vector<1x18x16x128xf32>
    %102 = vector.broadcast %97 : f32 to vector<1x18x1x128xf32>
    %103 = tpu.concatenate %102, %101 in 2 : vector<1x18x1x128xf32>, vector<1x18x16x128xf32> -> vector<1x18x17x128xf32>
    %104 = vector.broadcast %97 : f32 to vector<1x18x1x128xf32>
    %105 = tpu.concatenate %103, %104 in 2 : vector<1x18x17x128xf32>, vector<1x18x1x128xf32> -> vector<1x18x18x128xf32>
    %106 = vector.extract_strided_slice %105 {offsets = [0, 0, 0, 0], sizes = [1, 16, 16, 128], strides = [1, 1, 1, 1]} : vector<1x18x18x128xf32> to vector<1x16x16x128xf32>
    %107 = vector.extract_strided_slice %105 {offsets = [0, 0, 1, 0], sizes = [1, 16, 16, 128], strides = [1, 1, 1, 1]} : vector<1x18x18x128xf32> to vector<1x16x16x128xf32>
    %108 = vector.extract_strided_slice %105 {offsets = [0, 0, 2, 0], sizes = [1, 16, 16, 128], strides = [1, 1, 1, 1]} : vector<1x18x18x128xf32> to vector<1x16x16x128xf32>
    %109 = vector.extract_strided_slice %105 {offsets = [0, 1, 0, 0], sizes = [1, 16, 16, 128], strides = [1, 1, 1, 1]} : vector<1x18x18x128xf32> to vector<1x16x16x128xf32>
    %110 = vector.extract_strided_slice %105 {offsets = [0, 1, 1, 0], sizes = [1, 16, 16, 128], strides = [1, 1, 1, 1]} : vector<1x18x18x128xf32> to vector<1x16x16x128xf32>
    %111 = vector.extract_strided_slice %105 {offsets = [0, 1, 2, 0], sizes = [1, 16, 16, 128], strides = [1, 1, 1, 1]} : vector<1x18x18x128xf32> to vector<1x16x16x128xf32>
    %112 = vector.extract_strided_slice %105 {offsets = [0, 2, 0, 0], sizes = [1, 16, 16, 128], strides = [1, 1, 1, 1]} : vector<1x18x18x128xf32> to vector<1x16x16x128xf32>
    %113 = vector.extract_strided_slice %105 {offsets = [0, 2, 1, 0], sizes = [1, 16, 16, 128], strides = [1, 1, 1, 1]} : vector<1x18x18x128xf32> to vector<1x16x16x128xf32>
    %114 = vector.extract_strided_slice %105 {offsets = [0, 2, 2, 0], sizes = [1, 16, 16, 128], strides = [1, 1, 1, 1]} : vector<1x18x18x128xf32> to vector<1x16x16x128xf32>
    %115 = tpu.concatenate %106, %107, %108, %109, %110, %111, %112, %113, %114 in 3 : vector<1x16x16x128xf32>, vector<1x16x16x128xf32>, vector<1x16x16x128xf32>, vector<1x16x16x128xf32>, vector<1x16x16x128xf32>, vector<1x16x16x128xf32>, vector<1x16x16x128xf32>, vector<1x16x16x128xf32>, vector<1x16x16x128xf32> -> vector<1x16x16x1152xf32>
    %116 = vector.shape_cast %115 : vector<1x16x16x1152xf32> to vector<256x1152xf32>
    %c2_64 = arith.constant 2 : index
    %c0_65 = arith.constant 0 : index
    %c0_66 = arith.constant 0 : index
    %117 = vector.load %arg5[%c2_64, %c0_65, %c0_66] : memref<3x1152x128xf32, #tpu.memory_space<vmem>>, vector<1x1152x128xf32>
    %118 = vector.shape_cast %117 : vector<1x1152x128xf32> to vector<1152x128xf32>
    %cst_67 = arith.constant dense<0.000000e+00> : vector<256x128xf32>
    %119 = tpu.matmul %116, %118, %cst_67 {dimension_numbers = #tpu.dot_dimension_numbers<[1], [0], [0], [1], [0, 0, 1, 1], [], []>} : vector<256x1152xf32>, vector<1152x128xf32>, vector<256x128xf32> -> vector<256x128xf32>
    %120 = vector.shape_cast %119 : vector<256x128xf32> to vector<1x16x16x128xf32>
    %121 = arith.addf %84, %120 : vector<1x16x16x128xf32>
    %c0_68 = arith.constant 0 : index
    %c0_69 = arith.constant 0 : index
    %c0_70 = arith.constant 0 : index
    %c0_71 = arith.constant 0 : index
    %122 = vector.load %arg6[%c0_68, %c0_69, %c0_70, %c0_71] : memref<1x16x16x128xf32, #tpu.memory_space<vmem>>, vector<1x16x16x128xf32>
    tpu.vector_store %arg6[%c0_68, %c0_69, %c0_70, %c0_71], %121 {strides = array<i32>} : memref<1x16x16x128xf32, #tpu.memory_space<vmem>>, vector<1x16x16x128xf32>,
    return
  }
  func.func @transform_0(%arg0: i32) -> (i32, i32, i32, i32) {
    %c0_i32 = arith.constant 0 : i32
    %c0_i32_0 = arith.constant 0 : i32
    %c0_i32_1 = arith.constant 0 : i32
    %c0_i32_2 = arith.constant 0 : i32
    return %arg0, %c0_i32, %c0_i32_0, %c0_i32_1 : i32, i32, i32, i32
  }
  func.func @transform_1(%arg0: i32) -> (i32, i32) {
    %c0_i32 = arith.constant 0 : i32
    %c0_i32_0 = arith.constant 0 : i32
    %c0_i32_1 = arith.constant 0 : i32
    return %c0_i32, %c0_i32_0 : i32, i32
  }
  func.func @transform_2(%arg0: i32) -> (i32, i32, i32, i32) {
    %c0_i32 = arith.constant 0 : i32
    %c0_i32_0 = arith.constant 0 : i32
    %c0_i32_1 = arith.constant 0 : i32
    %c0_i32_2 = arith.constant 0 : i32
    %c0_i32_3 = arith.constant 0 : i32
    return %c0_i32, %c0_i32_0, %c0_i32_1, %c0_i32_2 : i32, i32, i32, i32
  }
  func.func @transform_3(%arg0: i32) -> (i32, i32, i32, i32) {
    %c0_i32 = arith.constant 0 : i32
    %c0_i32_0 = arith.constant 0 : i32
    %c0_i32_1 = arith.constant 0 : i32
    %c0_i32_2 = arith.constant 0 : i32
    %c0_i32_3 = arith.constant 0 : i32
    return %c0_i32, %c0_i32_0, %c0_i32_1, %c0_i32_2 : i32, i32, i32, i32
  }
  func.func @transform_4(%arg0: i32) -> (i32, i32, i32) {
    %c0_i32 = arith.constant 0 : i32
    %c0_i32_0 = arith.constant 0 : i32
    %c0_i32_1 = arith.constant 0 : i32
    %c0_i32_2 = arith.constant 0 : i32
    return %c0_i32, %c0_i32_0, %c0_i32_1 : i32, i32, i32
  }
  func.func @transform_5(%arg0: i32) -> (i32, i32, i32, i32) {
    %c0_i32 = arith.constant 0 : i32
    %c0_i32_0 = arith.constant 0 : i32
    %c0_i32_1 = arith.constant 0 : i32
    %c0_i32_2 = arith.constant 0 : i32
    return %arg0, %c0_i32, %c0_i32_0, %c0_i32_1 : i32, i32, i32, i32
  }
}

</mosaic_0001>

<llo_original>
// kernel: tpu_custom_call.1
$region0: #{tpu_custom_call.1}
  #allocation0 [shape = 'u32[]', space=smem, size = 0x4, offset = 0x4, fixed_abs, tag = 'smem constant byte address 0x4 - core index']
  #allocation1 [shape = 'u32[144,128]{1,0:T(1,128)}', space=vmem, size = 0x12000, scoped, tag = 'internal scratch']
  %s0 = inlined_call_operand.vmem [shape: f32[2,16,16,4], index: 0, kind: input, shape index: {}]
  %s1 = inlined_call_operand.hbm [shape: f32[4,128], index: 1, kind: input, shape index: {}]
  %s2 = inlined_call_operand.hbm [shape: f32[3,1,1,128], index: 2, kind: input, shape index: {}]
  %s3 = inlined_call_operand.hbm [shape: f32[3,1,1,128], index: 3, kind: input, shape index: {}]
  %s4 = inlined_call_operand.hbm [shape: f32[3,1152,128], index: 4, kind: input, shape index: {}]
  %s5 = inlined_call_operand.hbm [shape: f32[2,16,16,128], index: 5, kind: output, shape index: {}]
  %s6 = sld [smem:[#allocation0]]
  $region69: #{tpu_custom_call.1} parent=0
    _
  %s8 = ssub.s32 1, %s6
  %s9 = scalar_select 0, %s8, %s6
  $region1: #{tpu_custom_call.1} parent=0
    #allocation2 [shape = 'u8[2048]{0}', space=vmem, size = 0x800, scoped, tag = 'input window, operand 1, single buffered']
    #allocation3 [shape = 's32[2]{0}', space=sflag, size = 0x8, scoped, tag = 'scoped memory for tpu_custom_call.1']
    #allocation4 [shape = 's32[2]{0}', space=sflag, size = 0x8, scoped, tag = 'scoped memory for tpu_custom_call.1']
    #allocation5 [shape = 'u8[1536]{0}', space=vmem, size = 0x800, scoped, tag = 'input window, operand 2, single buffered']
    #allocation6 [shape = 's32[1]{0}', space=sflag, size = 0x4, scoped, tag = 'scoped memory for tpu_custom_call.1']
    #allocation7 [shape = 'u8[1536]{0}', space=vmem, size = 0x800, scoped, tag = 'input window, operand 3, single buffered']
    #allocation8 [shape = 'u8[1769472]{0}', space=vmem, size = 0x1b0000, scoped, tag = 'input window, operand 4, single buffered']
    #allocation9 [shape = 's32[1]{0}', space=sflag, size = 0x4, scoped, tag = 'scoped memory for tpu_custom_call.1']
    #allocation10 [shape = 'u8[262144]{0}', space=vmem, size = 0x40000, scoped, tag = 'output window, operand 0']
    %10 = vsyncpa [#allocation3], 0
    %11 = vsyncpa [#allocation6], 0
    %12 = vsyncpa [#allocation9], 0
    %13 = vsyncpa [#allocation4], 0
    %s14 = scalar_lea.sflag [#allocation4], 1
    %15 = vsyncpa %s14, 0
    loop: start=0, step=1, limit=4
    $region2: #{tpu_custom_call.1} parent=1 // loop_pre_header
      _
    $region3: #{tpu_custom_call.1} parent=1 // loop_header
      %s17 = sphi 0, %s21
      %p18 = scmp.ge.s32.totalorder %s17, 4
      %s27 = sphi 0, %s29
      %s30 = sphi 0, %s27
      %s31 = sphi 0, %s30
      %s47 = sphi 0, %s31
      %s51 = sphi 0, %s51
      %s53 = sphi 0, %s51
      %s54 = sphi 0, %s53
      %s68 = sphi 0, %s54
      %s72 = sphi 0, %s72
      %s74 = sphi 0, %s72
      %s75 = sphi 0, %s74
      %s89 = sphi 0, %s75
      %s93 = sphi 0, %s93
      %s95 = sphi 0, %s93
      %s96 = sphi 0, %s95
      %s110 = sphi 0, %s96
      %s114 = sphi 0, %s114
      %s116 = sphi 0, %s114
      %s117 = sphi 0, %s116
      %s131 = sphi 0, %s117
      %s137 = sphi 0, %s139
      %s140 = sphi 0, %s137
      %s141 = sphi 0, %s140
      %s157 = sphi 0, %s141
    $region4: #{tpu_custom_call.1} parent=1 // loop_header_branch
      %20 = sbr.rel (%p18) target = $region8
    $region5: #{tpu_custom_call.1} parent=1 // loop_body
      %s22 = ssub.s32 %s17, 1
      %s23 = ssub.s32 %s17, 2
      %s24 = sadd.s32 %s17, 1
      %s25 = ssub.s32 %s17, %s24
      %p26 = scmp.eq.s32.totalorder %s25, 0
      %s28 = sadd.s32 %s27, 1
      %s29 = scalar_select %p26, %s27, %s28
      %p32 = pneg %p26
      %p33 = scmp.eq.s32.totalorder %s17, 1
      %p34 = por %p32, %p33
      %p35 = scmp.ne.s32.totalorder %s27, %s30
      %p36 = scmp.eq.s32.totalorder %s17, 0
      %p37 = por %p35, %p36
      %p38 = scmp.ne.s32.totalorder %s27, %s30
      %p39 = scmp.eq.s32.totalorder %s22, 1
      %p40 = por %p38, %p39
      %p41 = scmp.ne.s32.totalorder %s30, %s31
      %p42 = scmp.eq.s32.totalorder %s22, 0
      %p43 = por %p41, %p42
      %p44 = scmp.ne.s32.totalorder %s30, %s31
      %p45 = scmp.eq.s32.totalorder %s23, 1
      %p46 = por %p44, %p45
      %p48 = scmp.ne.s32.totalorder %s31, %s47
      %p49 = scmp.eq.s32.totalorder %s23, 0
      %p50 = por %p48, %p49
      %s52 = sadd.s32 %s51, 1
      %p55 = scmp.eq.s32.totalorder %s17, 1
      %p56 = scmp.ne.s32.totalorder %s51, %s53
      %p57 = scmp.eq.s32.totalorder %s17, 0
      %p58 = por %p56, %p57
      %p59 = scmp.ne.s32.totalorder %s51, %s53
      %p60 = scmp.eq.s32.totalorder %s22, 1
      %p61 = por %p59, %p60
      %p62 = scmp.ne.s32.totalorder %s53, %s54
      %p63 = scmp.eq.s32.totalorder %s22, 0
      %p64 = por %p62, %p63
      %p65 = scmp.ne.s32.totalorder %s53, %s54
      %p66 = scmp.eq.s32.totalorder %s23, 1
      %p67 = por %p65, %p66
      %p69 = scmp.ne.s32.totalorder %s54, %s68
      %p70 = scmp.eq.s32.totalorder %s23, 0
      %p71 = por %p69, %p70
      %s73 = sadd.s32 %s72, 1
      %p76 = scmp.eq.s32.totalorder %s17, 1
      %p77 = scmp.ne.s32.totalorder %s72, %s74
      %p78 = scmp.eq.s32.totalorder %s17, 0
      %p79 = por %p77, %p78
      %p80 = scmp.ne.s32.totalorder %s72, %s74
      %p81 = scmp.eq.s32.totalorder %s22, 1
      %p82 = por %p80, %p81
      %p83 = scmp.ne.s32.totalorder %s74, %s75
      %p84 = scmp.eq.s32.totalorder %s22, 0
      %p85 = por %p83, %p84
      %p86 = scmp.ne.s32.totalorder %s74, %s75
      %p87 = scmp.eq.s32.totalorder %s23, 1
      %p88 = por %p86, %p87
      %p90 = scmp.ne.s32.totalorder %s75, %s89
      %p91 = scmp.eq.s32.totalorder %s23, 0
      %p92 = por %p90, %p91
      %s94 = sadd.s32 %s93, 1
      %p97 = scmp.eq.s32.totalorder %s17, 1
      %p98 = scmp.ne.s32.totalorder %s93, %s95
      %p99 = scmp.eq.s32.totalorder %s17, 0
      %p100 = por %p98, %p99
      %p101 = scmp.ne.s32.totalorder %s93, %s95
      %p102 = scmp.eq.s32.totalorder %s22, 1
      %p103 = por %p101, %p102
      %p104 = scmp.ne.s32.totalorder %s95, %s96
      %p105 = scmp.eq.s32.totalorder %s22, 0
      %p106 = por %p104, %p105
      %p107 = scmp.ne.s32.totalorder %s95, %s96
      %p108 = scmp.eq.s32.totalorder %s23, 1
      %p109 = por %p107, %p108
      %p111 = scmp.ne.s32.totalorder %s96, %s110
      %p112 = scmp.eq.s32.totalorder %s23, 0
      %p113 = por %p111, %p112
      %s115 = sadd.s32 %s114, 1
      %p118 = scmp.eq.s32.totalorder %s17, 1
      %p119 = scmp.ne.s32.totalorder %s114, %s116
      %p120 = scmp.eq.s32.totalorder %s17, 0
      %p121 = por %p119, %p120
      %p122 = scmp.ne.s32.totalorder %s114, %s116
      %p123 = scmp.eq.s32.totalorder %s22, 1
      %p124 = por %p122, %p123
      %p125 = scmp.ne.s32.totalorder %s116, %s117
      %p126 = scmp.eq.s32.totalorder %s22, 0
      %p127 = por %p125, %p126
      %p128 = scmp.ne.s32.totalorder %s116, %s117
      %p129 = scmp.eq.s32.totalorder %s23, 1
      %p130 = por %p128, %p129
      %p132 = scmp.ne.s32.totalorder %s117, %s131
      %p133 = scmp.eq.s32.totalorder %s23, 0
      %p134 = por %p132, %p133
      %s135 = ssub.s32 %s17, %s24
      %p136 = scmp.eq.s32.totalorder %s135, 0
      %s138 = sadd.s32 %s137, 1
      %s139 = scalar_select %p136, %s137, %s138
      %p142 = pneg %p136
      %p143 = scmp.eq.s32.totalorder %s17, 1
      %p144 = por %p142, %p143
      %p145 = scmp.ne.s32.totalorder %s137, %s140
      %p146 = scmp.eq.s32.totalorder %s17, 0
      %p147 = por %p145, %p146
      %p148 = scmp.ne.s32.totalorder %s137, %s140
      %p149 = scmp.eq.s32.totalorder %s22, 1
      %p150 = por %p148, %p149
      %p151 = scmp.ne.s32.totalorder %s140, %s141
      %p152 = scmp.eq.s32.totalorder %s22, 0
      %p153 = por %p151, %p152
      %p154 = scmp.ne.s32.totalorder %s140, %s141
      %p155 = scmp.eq.s32.totalorder %s23, 1
      %p156 = por %p154, %p155
      %p158 = scmp.ne.s32.totalorder %s141, %s157
      %p159 = scmp.eq.s32.totalorder %s23, 0
      %p160 = por %p158, %p159
      %p161 = scmp.le.s32.totalorder 1, %s17
      %p162 = scmp.lt.s32.totalorder %s17, 3
      %p163 = pnand %p161, %p162
      %p164 = pneg %p163
      // Predicated region
      $region9: #{tpu_custom_call.1} parent=5 // pred_check
        _
      $region10: #{tpu_custom_call.1} parent=5 // pred_check_branch
        %166 = sbr.rel (%p163) target = $region12
      $region11: #{tpu_custom_call.1} parent=5 // pred_region
        %s167 = ssub.s32 %s17, 1
        // Predicated region
        $region13: #{tpu_custom_call.1} parent=11 // pred_check
          %p168 = pneg %p64
        $region14: #{tpu_custom_call.1} parent=11 // pred_check_branch
          %170 = sbr.rel (%p168) target = $region16
        $region15: #{tpu_custom_call.1} parent=11 // pred_region
          %s172 = ssub.s32 64, 64
          %173 = vsyncadd [#allocation3], %s172
          %s175 = sshll.u32 [#allocation2], 4
          %s176 = int_to_ptr.vmem [resolvable:$true] %s175
          %178 = dma.hbm_to_vmem [thread:$0]  %s1, 64, %s176, [#allocation3]
        $region16: #{tpu_custom_call.1} parent=11 // pred_fallthru
          _
        // Predicated region
        $region17: #{tpu_custom_call.1} parent=11 // pred_check
          %p179 = pneg %p85
        $region18: #{tpu_custom_call.1} parent=11 // pred_check_branch
          %181 = sbr.rel (%p179) target = $region20
        $region19: #{tpu_custom_call.1} parent=11 // pred_region
          %s183 = ssub.s32 48, 48
          %184 = vsyncadd [#allocation6], %s183
          %s185 = sshll.u32 [#allocation5], 4
          %s186 = int_to_ptr.vmem [resolvable:$true] %s185
          %191 = dma.hbm_to_vmem [thread:$0]  %s2, 48, %s186, [#allocation6], 16, 16, 1
        $region20: #{tpu_custom_call.1} parent=11 // pred_fallthru
          _
        // Predicated region
        $region21: #{tpu_custom_call.1} parent=11 // pred_check
          %p192 = pneg %p106
        $region22: #{tpu_custom_call.1} parent=11 // pred_check_branch
          %194 = sbr.rel (%p192) target = $region24
        $region23: #{tpu_custom_call.1} parent=11 // pred_region
          %s196 = ssub.s32 48, 48
          %197 = vsyncadd [#allocation6], %s196
          %s198 = sshll.u32 [#allocation7], 4
          %s199 = int_to_ptr.vmem [resolvable:$true] %s198
          %204 = dma.hbm_to_vmem [thread:$0]  %s3, 48, %s199, [#allocation6], 16, 16, 1
        $region24: #{tpu_custom_call.1} parent=11 // pred_fallthru
          _
        // Predicated region
        $region25: #{tpu_custom_call.1} parent=11 // pred_check
          %p205 = pneg %p127
        $region26: #{tpu_custom_call.1} parent=11 // pred_check_branch
          %207 = sbr.rel (%p205) target = $region28
        $region27: #{tpu_custom_call.1} parent=11 // pred_region
          %s209 = ssub.s32 55296, 55296
          %210 = vsyncadd [#allocation9], %s209
          %s211 = sshll.u32 [#allocation8], 4
          %s212 = int_to_ptr.vmem [resolvable:$true] %s211
          %217 = dma.hbm_to_vmem [thread:$0]  %s4, 55296, %s212, [#allocation9], 128, 128, 8
        $region28: #{tpu_custom_call.1} parent=11 // pred_fallthru
          _
      $region12: #{tpu_custom_call.1} parent=5 // pred_fallthru
        _
      %p218 = scmp.lt.s32.totalorder %s17, 2
      // Predicated region
      $region29: #{tpu_custom_call.1} parent=5 // pred_check
        %p219 = pneg %p218
      $region30: #{tpu_custom_call.1} parent=5 // pred_check_branch
        %221 = sbr.rel (%p219) target = $region32
      $region31: #{tpu_custom_call.1} parent=5 // pred_region
        // Predicated region
        $region33: #{tpu_custom_call.1} parent=31 // pred_check
          %p222 = pneg %p37
        $region34: #{tpu_custom_call.1} parent=31 // pred_check_branch
          %224 = sbr.rel (%p222) target = $region36
        $region35: #{tpu_custom_call.1} parent=31 // pred_region
          %p225 = scmp.lt.s32.totalorder %s17, 1
          %s226 = scalar_select %p225, %s17, 1
          %s227 = smul.addr %s226, 32
          %s228 = smul.addr %s227, 8
          %s229 = scalar_lea.vmem %s0, %s228
        $region36: #{tpu_custom_call.1} parent=31 // pred_fallthru
          _
      $region32: #{tpu_custom_call.1} parent=5 // pred_fallthru
        _
      %p230 = scmp.le.s32.totalorder 1, %s17
      %p231 = scmp.lt.s32.totalorder %s17, 3
      %p232 = pnand %p230, %p231
      %p233 = pneg %p232
      // Predicated region
      $region37: #{tpu_custom_call.1} parent=5 // pred_check
        _
      $region38: #{tpu_custom_call.1} parent=5 // pred_check_branch
        %235 = sbr.rel (%p232) target = $region40
      $region39: #{tpu_custom_call.1} parent=5 // pred_region
        %s236 = ssub.s32 %s17, 1
        // Predicated region
        $region41: #{tpu_custom_call.1} parent=39 // pred_check
          %p237 = pneg %p64
        $region42: #{tpu_custom_call.1} parent=39 // pred_check_branch
          %239 = sbr.rel (%p237) target = $region44
        $region43: #{tpu_custom_call.1} parent=39 // pred_region
          %240 = dma.done [#allocation3], 64
        $region44: #{tpu_custom_call.1} parent=39 // pred_fallthru
          _
        // Predicated region
        $region45: #{tpu_custom_call.1} parent=39 // pred_check
          %p241 = pneg %p85
        $region46: #{tpu_custom_call.1} parent=39 // pred_check_branch
          %243 = sbr.rel (%p241) target = $region48
        $region47: #{tpu_custom_call.1} parent=39 // pred_region
          %244 = dma.done [#allocation6], 48
        $region48: #{tpu_custom_call.1} parent=39 // pred_fallthru
          _
        // Predicated region
        $region49: #{tpu_custom_call.1} parent=39 // pred_check
          %p245 = pneg %p106
        $region50: #{tpu_custom_call.1} parent=39 // pred_check_branch
          %247 = sbr.rel (%p245) target = $region52
        $region51: #{tpu_custom_call.1} parent=39 // pred_region
          %248 = dma.done [#allocation6], 48
        $region52: #{tpu_custom_call.1} parent=39 // pred_fallthru
          _
        // Predicated region
        $region53: #{tpu_custom_call.1} parent=39 // pred_check
          %p249 = pneg %p127
        $region54: #{tpu_custom_call.1} parent=39 // pred_check_branch
          %251 = sbr.rel (%p249) target = $region56
        $region55: #{tpu_custom_call.1} parent=39 // pred_region
          %252 = dma.done [#allocation9], 55296
        $region56: #{tpu_custom_call.1} parent=39 // pred_fallthru
          _
        %p253 = scmp.lt.s32.totalorder %s22, 1
        %s254 = scalar_select %p253, %s22, 1
        %s255 = smul.addr %s254, 32
        %s256 = smul.addr %s255, 8
        %s257 = scalar_lea.vmem %s0, %s256
        %p258 = pneg %p43
        %p259 = pneg %p40
        %p260 = pneg %p64
        %p261 = pneg %p61
        %p262 = pneg %p85
        %p263 = pneg %p82
        %p264 = pneg %p106
        %p265 = pneg %p103
        %p266 = pneg %p127
        %p267 = pneg %p124
        %p268 = pneg %p153
        %p269 = pneg %p150
        %s270 = sand.u32 %s140, 1
        %s271 = scalar_lea.sflag [#allocation4], %s270
        %s272 = sand.u32 %s140, 1
        %s273 = smul.addr %s272, 256
        %s274 = scalar_lea.vmem [#allocation10], %s273
        %p275 = scmp.lt.s32.totalorder %s22, 1
        %s276 = scalar_select %p275, %s22, 1
        %s277 = smul.addr %s276, 32
        %s278 = smul.addr %s277, 8
        %s279 = scalar_lea.vmem %s0, %s278
        %v280 = vld [vmem:[%s279] sm:$0xff]
        %v281 = vld [vmem:[%s279 + $0x8] sm:$0xff]
        %v282 = vld [vmem:[%s279 + $0x10] sm:$0xff]
        %v283 = vld [vmem:[%s279 + $0x18] sm:$0xff]
        %v284 = vld [vmem:[%s279 + $0x20] sm:$0xff]
        %v285 = vld [vmem:[%s279 + $0x28] sm:$0xff]
        %v286 = vld [vmem:[%s279 + $0x30] sm:$0xff]
        %v287 = vld [vmem:[%s279 + $0x38] sm:$0xff]
        %v288 = vld [vmem:[%s279 + $0x40] sm:$0xff]
        %v289 = vld [vmem:[%s279 + $0x48] sm:$0xff]
        %v290 = vld [vmem:[%s279 + $0x50] sm:$0xff]
        %v291 = vld [vmem:[%s279 + $0x58] sm:$0xff]
        %v292 = vld [vmem:[%s279 + $0x60] sm:$0xff]
        %v293 = vld [vmem:[%s279 + $0x68] sm:$0xff]
        %v294 = vld [vmem:[%s279 + $0x70] sm:$0xff]
        %v295 = vld [vmem:[%s279 + $0x78] sm:$0xff]
        %v296 = vld [vmem:[%s279 + $0x80] sm:$0xff]
        %v297 = vld [vmem:[%s279 + $0x88] sm:$0xff]
        %v298 = vld [vmem:[%s279 + $0x90] sm:$0xff]
        %v299 = vld [vmem:[%s279 + $0x98] sm:$0xff]
        %v300 = vld [vmem:[%s279 + $0xa0] sm:$0xff]
        %v301 = vld [vmem:[%s279 + $0xa8] sm:$0xff]
        %v302 = vld [vmem:[%s279 + $0xb0] sm:$0xff]
        %v303 = vld [vmem:[%s279 + $0xb8] sm:$0xff]
        %v304 = vld [vmem:[%s279 + $0xc0] sm:$0xff]
        %v305 = vld [vmem:[%s279 + $0xc8] sm:$0xff]
        %v306 = vld [vmem:[%s279 + $0xd0] sm:$0xff]
        %v307 = vld [vmem:[%s279 + $0xd8] sm:$0xff]
        %v308 = vld [vmem:[%s279 + $0xe0] sm:$0xff]
        %v309 = vld [vmem:[%s279 + $0xe8] sm:$0xff]
        %v310 = vld [vmem:[%s279 + $0xf0] sm:$0xff]
        %v311 = vld [vmem:[%s279 + $0xf8] sm:$0xff]
        %v312 = vld [vmem:[#allocation2] sm:$0xf]
        %vm313 = vcmask 31744
        %v315 = vsel %vm313, %v280, 0
        %v318 = vsel %vm313, %v281, 0
        %v321 = vsel %vm313, %v282, 0
        %v324 = vsel %vm313, %v283, 0
        %v327 = vsel %vm313, %v284, 0
        %v330 = vsel %vm313, %v285, 0
        %v333 = vsel %vm313, %v286, 0
        %v336 = vsel %vm313, %v287, 0
        %v339 = vsel %vm313, %v288, 0
        %v342 = vsel %vm313, %v289, 0
        %v345 = vsel %vm313, %v290, 0
        %v348 = vsel %vm313, %v291, 0
        %v351 = vsel %vm313, %v292, 0
        %v354 = vsel %vm313, %v293, 0
        %v357 = vsel %vm313, %v294, 0
        %v360 = vsel %vm313, %v295, 0
        %v363 = vsel %vm313, %v296, 0
        %v366 = vsel %vm313, %v297, 0
        %v369 = vsel %vm313, %v298, 0
        %v372 = vsel %vm313, %v299, 0
        %v375 = vsel %vm313, %v300, 0
        %v378 = vsel %vm313, %v301, 0
        %v381 = vsel %vm313, %v302, 0
        %v384 = vsel %vm313, %v303, 0
        %v387 = vsel %vm313, %v304, 0
        %v390 = vsel %vm313, %v305, 0
        %v393 = vsel %vm313, %v306, 0
        %v396 = vsel %vm313, %v307, 0
        %v399 = vsel %vm313, %v308, 0
        %v402 = vsel %vm313, %v309, 0
        %v405 = vsel %vm313, %v310, 0
        %v408 = vsel %vm313, %v311, 0
        %vm410 = vcmask 1043456
        %v412 = vsel %vm410, %v312, 0
        %414 = vmatprep.subr.mxu0 0.0
        %415 = vmatpush1.msra.mxu0 0.0
        %416 = vmatprep.subr.mxu0 0.0
        %417 = vmatpush1.msra.mxu0 0.0
        %418 = vmatprep.subr.mxu0 0.0
        %419 = vmatpush1.msra.mxu0 0.0
        %420 = vmatprep.subr.mxu0 0.0
        %421 = vmatpush1.msra.mxu0 0.0
        %422 = vmatprep.subr.mxu0 0.0
        %423 = vmatpush1.msra.mxu0 0.0
        %424 = vmatprep.subr.mxu0 0.0
        %425 = vmatpush1.msra.mxu0 0.0
        %426 = vmatprep.subr.mxu0 0.0
        %427 = vmatpush1.msra.mxu0 0.0
        %428 = vmatprep.subr.mxu0 0.0
        %429 = vmatpush1.msra.mxu0 0.0
        %430 = vmatprep.subr.mxu0 0.0
        %431 = vmatpush1.msra.mxu0 0.0
        %432 = vmatprep.subr.mxu0 0.0
        %433 = vmatpush1.msra.mxu0 0.0
        %434 = vmatprep.subr.mxu0 0.0
        %435 = vmatpush1.msra.mxu0 0.0
        %436 = vmatprep.subr.mxu0 0.0
        %437 = vmatpush1.msra.mxu0 0.0
        %438 = vmatprep.subr.mxu0 0.0
        %439 = vmatpush1.msra.mxu0 0.0
        %440 = vmatprep.subr.mxu0 0.0
        %441 = vmatpush1.msra.mxu0 0.0
        %442 = vmatprep.subr.mxu0 0.0
        %443 = vmatpush1.msra.mxu0 0.0
        %444 = vmatprep.subr.mxu0 0.0
        %445 = vmatpush1.msra.mxu0 %v412
        %446 = vmatprep.subr.mxu0 0.0
        %447 = vmatpush2.msra.mxu0 0.0
        %448 = vmatprep.subr.mxu0 0.0
        %449 = vmatpush2.msra.mxu0 0.0
        %450 = vmatprep.subr.mxu0 0.0
        %451 = vmatpush2.msra.mxu0 0.0
        %452 = vmatprep.subr.mxu0 0.0
        %453 = vmatpush2.msra.mxu0 0.0
        %454 = vmatprep.subr.mxu0 0.0
        %455 = vmatpush2.msra.mxu0 0.0
        %456 = vmatprep.subr.mxu0 0.0
        %457 = vmatpush2.msra.mxu0 0.0
        %458 = vmatprep.subr.mxu0 0.0
        %459 = vmatpush2.msra.mxu0 0.0
        %460 = vmatprep.subr.mxu0 0.0
        %461 = vmatpush2.msra.mxu0 0.0
        %462 = vmatprep.subr.mxu0 0.0
        %463 = vmatpush2.msra.mxu0 0.0
        %464 = vmatprep.subr.mxu0 0.0
        %465 = vmatpush2.msra.mxu0 0.0
        %466 = vmatprep.subr.mxu0 0.0
        %467 = vmatpush2.msra.mxu0 0.0
        %468 = vmatprep.subr.mxu0 0.0
        %469 = vmatpush2.msra.mxu0 0.0
        %470 = vmatprep.subr.mxu0 0.0
        %471 = vmatpush2.msra.mxu0 0.0
        %472 = vmatprep.subr.mxu0 0.0
        %473 = vmatpush2.msra.mxu0 0.0
        %474 = vmatprep.subr.mxu0 0.0
        %475 = vmatpush2.msra.mxu0 0.0
        %476 = vmatprep.subr.mxu0 0.0
        %477 = vmatpush2.msra.mxu0 0.0
        %478 = vmatprep.mubr.f32.mxu0 0.0
        %479 = vmatmul.mubr.f32.gmra.mxu0 %v315
        %v480 = vpop.f32.mrf.mxu0
        %v481 = vadd.f32 0.0, %v480
        %v482 = vpop.f32.mrf.mxu0
        %483 = vmatprep.mubr.f32.mxu0 0.0
        %484 = vmatmul.mubr.f32.gmra.mxu0 %v318
        %v485 = vpop.f32.mrf.mxu0
        %v486 = vadd.f32 0.0, %v485
        %v487 = vpop.f32.mrf.mxu0
        %488 = vmatprep.mubr.f32.mxu0 0.0
        %489 = vmatmul.mubr.f32.gmra.mxu0 %v321
        %v490 = vpop.f32.mrf.mxu0
        %v491 = vadd.f32 0.0, %v490
        %v492 = vpop.f32.mrf.mxu0
        %493 = vmatprep.mubr.f32.mxu0 0.0
        %494 = vmatmul.mubr.f32.gmra.mxu0 %v324
        %v495 = vpop.f32.mrf.mxu0
        %v496 = vadd.f32 0.0, %v495
        %v497 = vpop.f32.mrf.mxu0
        %498 = vmatprep.mubr.f32.mxu0 0.0
        %499 = vmatmul.mubr.f32.gmra.mxu0 %v327
        %v500 = vpop.f32.mrf.mxu0
        %v501 = vadd.f32 0.0, %v500
        %v502 = vpop.f32.mrf.mxu0
        %503 = vmatprep.mubr.f32.mxu0 0.0
        %504 = vmatmul.mubr.f32.gmra.mxu0 %v330
        %v505 = vpop.f32.mrf.mxu0
        %v506 = vadd.f32 0.0, %v505
        %v507 = vpop.f32.mrf.mxu0
        %508 = vmatprep.mubr.f32.mxu0 0.0
        %509 = vmatmul.mubr.f32.gmra.mxu0 %v333
        %v510 = vpop.f32.mrf.mxu0
        %v511 = vadd.f32 0.0, %v510
        %v512 = vpop.f32.mrf.mxu0
        %513 = vmatprep.mubr.f32.mxu0 0.0
        %514 = vmatmul.mubr.f32.gmra.mxu0 %v336
        %v515 = vpop.f32.mrf.mxu0
        %v516 = vadd.f32 0.0, %v515
        %v517 = vpop.f32.mrf.mxu0
        %518 = vmatprep.mubr.f32.mxu0 0.0
        %519 = vmatmul.mubr.f32.gmra.mxu0 %v339
        %v520 = vpop.f32.mrf.mxu0
        %v521 = vadd.f32 0.0, %v520
        %v522 = vpop.f32.mrf.mxu0
        %523 = vmatprep.mubr.f32.mxu0 0.0
        %524 = vmatmul.mubr.f32.gmra.mxu0 %v342
        %v525 = vpop.f32.mrf.mxu0
        %v526 = vadd.f32 0.0, %v525
        %v527 = vpop.f32.mrf.mxu0
        %528 = vmatprep.mubr.f32.mxu0 0.0
        %529 = vmatmul.mubr.f32.gmra.mxu0 %v345
        %v530 = vpop.f32.mrf.mxu0
        %v531 = vadd.f32 0.0, %v530
        %v532 = vpop.f32.mrf.mxu0
        %533 = vmatprep.mubr.f32.mxu0 0.0
        %534 = vmatmul.mubr.f32.gmra.mxu0 %v348
        %v535 = vpop.f32.mrf.mxu0
        %v536 = vadd.f32 0.0, %v535
        %v537 = vpop.f32.mrf.mxu0
        %538 = vmatprep.mubr.f32.mxu0 0.0
        %539 = vmatmul.mubr.f32.gmra.mxu0 %v351
        %v540 = vpop.f32.mrf.mxu0
        %v541 = vadd.f32 0.0, %v540
        %v542 = vpop.f32.mrf.mxu0
        %543 = vmatprep.mubr.f32.mxu0 0.0
        %544 = vmatmul.mubr.f32.gmra.mxu0 %v354
        %v545 = vpop.f32.mrf.mxu0
        %v546 = vadd.f32 0.0, %v545
        %v547 = vpop.f32.mrf.mxu0
        %548 = vmatprep.mubr.f32.mxu0 0.0
        %549 = vmatmul.mubr.f32.gmra.mxu0 %v357
        %v550 = vpop.f32.mrf.mxu0
        %v551 = vadd.f32 0.0, %v550
        %v552 = vpop.f32.mrf.mxu0
        %553 = vmatprep.mubr.f32.mxu0 0.0
        %554 = vmatmul.mubr.f32.gmra.mxu0 %v360
        %v555 = vpop.f32.mrf.mxu0
        %v556 = vadd.f32 0.0, %v555
        %v557 = vpop.f32.mrf.mxu0
        %558 = vmatprep.mubr.f32.mxu0 0.0
        %559 = vmatmul.mubr.f32.gmra.mxu0 %v363
        %v560 = vpop.f32.mrf.mxu0
        %v561 = vadd.f32 0.0, %v560
        %v562 = vpop.f32.mrf.mxu0
        %563 = vmatprep.mubr.f32.mxu0 0.0
        %564 = vmatmul.mubr.f32.gmra.mxu0 %v366
        %v565 = vpop.f32.mrf.mxu0
        %v566 = vadd.f32 0.0, %v565
        %v567 = vpop.f32.mrf.mxu0
        %568 = vmatprep.mubr.f32.mxu0 0.0
        %569 = vmatmul.mubr.f32.gmra.mxu0 %v369
        %v570 = vpop.f32.mrf.mxu0
        %v571 = vadd.f32 0.0, %v570
        %v572 = vpop.f32.mrf.mxu0
        %573 = vmatprep.mubr.f32.mxu0 0.0
        %574 = vmatmul.mubr.f32.gmra.mxu0 %v372
        %v575 = vpop.f32.mrf.mxu0
        %v576 = vadd.f32 0.0, %v575
        %v577 = vpop.f32.mrf.mxu0
        %578 = vmatprep.mubr.f32.mxu0 0.0
        %579 = vmatmul.mubr.f32.gmra.mxu0 %v375
        %v580 = vpop.f32.mrf.mxu0
        %v581 = vadd.f32 0.0, %v580
        %v582 = vpop.f32.mrf.mxu0
        %583 = vmatprep.mubr.f32.mxu0 0.0
        %584 = vmatmul.mubr.f32.gmra.mxu0 %v378
        %v585 = vpop.f32.mrf.mxu0
        %v586 = vadd.f32 0.0, %v585
        %v587 = vpop.f32.mrf.mxu0
        %588 = vmatprep.mubr.f32.mxu0 0.0
        %589 = vmatmul.mubr.f32.gmra.mxu0 %v381
        %v590 = vpop.f32.mrf.mxu0
        %v591 = vadd.f32 0.0, %v590
        %v592 = vpop.f32.mrf.mxu0
        %593 = vmatprep.mubr.f32.mxu0 0.0
        %594 = vmatmul.mubr.f32.gmra.mxu0 %v384
        %v595 = vpop.f32.mrf.mxu0
        %v596 = vadd.f32 0.0, %v595
        %v597 = vpop.f32.mrf.mxu0
        %598 = vmatprep.mubr.f32.mxu0 0.0
        %599 = vmatmul.mubr.f32.gmra.mxu0 %v387
        %v600 = vpop.f32.mrf.mxu0
        %v601 = vadd.f32 0.0, %v600
        %v602 = vpop.f32.mrf.mxu0
        %603 = vmatprep.mubr.f32.mxu0 0.0
        %604 = vmatmul.mubr.f32.gmra.mxu0 %v390
        %v605 = vpop.f32.mrf.mxu0
        %v606 = vadd.f32 0.0, %v605
        %v607 = vpop.f32.mrf.mxu0
        %608 = vmatprep.mubr.f32.mxu0 0.0
        %609 = vmatmul.mubr.f32.gmra.mxu0 %v393
        %v610 = vpop.f32.mrf.mxu0
        %v611 = vadd.f32 0.0, %v610
        %v612 = vpop.f32.mrf.mxu0
        %613 = vmatprep.mubr.f32.mxu0 0.0
        %614 = vmatmul.mubr.f32.gmra.mxu0 %v396
        %v615 = vpop.f32.mrf.mxu0
        %v616 = vadd.f32 0.0, %v615
        %v617 = vpop.f32.mrf.mxu0
        %618 = vmatprep.mubr.f32.mxu0 0.0
        %619 = vmatmul.mubr.f32.gmra.mxu0 %v399
        %v620 = vpop.f32.mrf.mxu0
        %v621 = vadd.f32 0.0, %v620
        %v622 = vpop.f32.mrf.mxu0
        %623 = vmatprep.mubr.f32.mxu0 0.0
        %624 = vmatmul.mubr.f32.gmra.mxu0 %v402
        %v625 = vpop.f32.mrf.mxu0
        %v626 = vadd.f32 0.0, %v625
        %v627 = vpop.f32.mrf.mxu0
        %628 = vmatprep.mubr.f32.mxu0 0.0
        %629 = vmatmul.mubr.f32.gmra.mxu0 %v405
        %v630 = vpop.f32.mrf.mxu0
        %v631 = vadd.f32 0.0, %v630
        %v632 = vpop.f32.mrf.mxu0
        %633 = vmatprep.mubr.f32.mxu0 0.0
        %634 = vmatmul.mubr.f32.gmra.mxu0 %v408
        %v635 = vpop.f32.mrf.mxu0
        %v636 = vadd.f32 0.0, %v635
        %v637 = vpop.f32.mrf.mxu0
        %638 = vdwg.mxu0
        %639 = vst [vmem:[%s274] sm:$0xff] %v481
        %640 = vst [vmem:[%s274 + $0x8] sm:$0xff] %v486
        %641 = vst [vmem:[%s274 + $0x10] sm:$0xff] %v491
        %642 = vst [vmem:[%s274 + $0x18] sm:$0xff] %v496
        %643 = vst [vmem:[%s274 + $0x20] sm:$0xff] %v501
        %644 = vst [vmem:[%s274 + $0x28] sm:$0xff] %v506
        %645 = vst [vmem:[%s274 + $0x30] sm:$0xff] %v511
        %646 = vst [vmem:[%s274 + $0x38] sm:$0xff] %v516
        %647 = vst [vmem:[%s274 + $0x40] sm:$0xff] %v521
        %648 = vst [vmem:[%s274 + $0x48] sm:$0xff] %v526
        %649 = vst [vmem:[%s274 + $0x50] sm:$0xff] %v531
        %650 = vst [vmem:[%s274 + $0x58] sm:$0xff] %v536
        %651 = vst [vmem:[%s274 + $0x60] sm:$0xff] %v541
        %652 = vst [vmem:[%s274 + $0x68] sm:$0xff] %v546
        %653 = vst [vmem:[%s274 + $0x70] sm:$0xff] %v551
        %654 = vst [vmem:[%s274 + $0x78] sm:$0xff] %v556
        %655 = vst [vmem:[%s274 + $0x80] sm:$0xff] %v561
        %656 = vst [vmem:[%s274 + $0x88] sm:$0xff] %v566
        %657 = vst [vmem:[%s274 + $0x90] sm:$0xff] %v571
        %658 = vst [vmem:[%s274 + $0x98] sm:$0xff] %v576
        %659 = vst [vmem:[%s274 + $0xa0] sm:$0xff] %v581
        %660 = vst [vmem:[%s274 + $0xa8] sm:$0xff] %v586
        %661 = vst [vmem:[%s274 + $0xb0] sm:$0xff] %v591
        %662 = vst [vmem:[%s274 + $0xb8] sm:$0xff] %v596
        %663 = vst [vmem:[%s274 + $0xc0] sm:$0xff] %v601
        %664 = vst [vmem:[%s274 + $0xc8] sm:$0xff] %v606
        %665 = vst [vmem:[%s274 + $0xd0] sm:$0xff] %v611
        %666 = vst [vmem:[%s274 + $0xd8] sm:$0xff] %v616
        %667 = vst [vmem:[%s274 + $0xe0] sm:$0xff] %v621
        %668 = vst [vmem:[%s274 + $0xe8] sm:$0xff] %v626
        %669 = vst [vmem:[%s274 + $0xf0] sm:$0xff] %v631
        %670 = vst [vmem:[%s274 + $0xf8] sm:$0xff] %v636
        %v671 = vld [vmem:[%s274] sm:$0xff]
        %v672 = vld [vmem:[%s274 + $0x8] sm:$0xff]
        %v673 = vld [vmem:[%s274 + $0x10] sm:$0xff]
        %v674 = vld [vmem:[%s274 + $0x18] sm:$0xff]
        %v675 = vld [vmem:[%s274 + $0x20] sm:$0xff]
        %v676 = vld [vmem:[%s274 + $0x28] sm:$0xff]
        %v677 = vld [vmem:[%s274 + $0x30] sm:$0xff]
        %v678 = vld [vmem:[%s274 + $0x38] sm:$0xff]
        %v679 = vld [vmem:[%s274 + $0x40] sm:$0xff]
        %v680 = vld [vmem:[%s274 + $0x48] sm:$0xff]
        %v681 = vld [vmem:[%s274 + $0x50] sm:$0xff]
        %v682 = vld [vmem:[%s274 + $0x58] sm:$0xff]
        %v683 = vld [vmem:[%s274 + $0x60] sm:$0xff]
        %v684 = vld [vmem:[%s274 + $0x68] sm:$0xff]
        %v685 = vld [vmem:[%s274 + $0x70] sm:$0xff]
        %v686 = vld [vmem:[%s274 + $0x78] sm:$0xff]
        %v687 = vld [vmem:[%s274 + $0x80] sm:$0xff]
        %v688 = vld [vmem:[%s274 + $0x88] sm:$0xff]
        %v689 = vld [vmem:[%s274 + $0x90] sm:$0xff]
        %v690 = vld [vmem:[%s274 + $0x98] sm:$0xff]
        %v691 = vld [vmem:[%s274 + $0xa0] sm:$0xff]
        %v692 = vld [vmem:[%s274 + $0xa8] sm:$0xff]
        %v693 = vld [vmem:[%s274 + $0xb0] sm:$0xff]
        %v694 = vld [vmem:[%s274 + $0xb8] sm:$0xff]
        %v695 = vld [vmem:[%s274 + $0xc0] sm:$0xff]
        %v696 = vld [vmem:[%s274 + $0xc8] sm:$0xff]
        %v697 = vld [vmem:[%s274 + $0xd0] sm:$0xff]
        %v698 = vld [vmem:[%s274 + $0xd8] sm:$0xff]
        %v699 = vld [vmem:[%s274 + $0xe0] sm:$0xff]
        %v700 = vld [vmem:[%s274 + $0xe8] sm:$0xff]
        %v701 = vld [vmem:[%s274 + $0xf0] sm:$0xff]
        %v702 = vld [vmem:[%s274 + $0xf8] sm:$0xff]
        %v703 = vld [vmem:[#allocation5] sm:$0x1]
        %v705 = vlaneseq
        %v706 = vshrl.u32 %v705, 7
        %v707 = vsub.s32 0, %v706
        %v708 = vrot.slane %v703, %v707
        %v710 = vmul.f32 %v671, %v708
        %v711 = vmul.f32 %v672, %v708
        %v712 = vmul.f32 %v673, %v708
        %v713 = vmul.f32 %v674, %v708
        %v714 = vmul.f32 %v675, %v708
        %v715 = vmul.f32 %v676, %v708
        %v716 = vmul.f32 %v677, %v708
        %v717 = vmul.f32 %v678, %v708
        %v718 = vmul.f32 %v679, %v708
        %v719 = vmul.f32 %v680, %v708
        %v720 = vmul.f32 %v681, %v708
        %v721 = vmul.f32 %v682, %v708
        %v722 = vmul.f32 %v683, %v708
        %v723 = vmul.f32 %v684, %v708
        %v724 = vmul.f32 %v685, %v708
        %v725 = vmul.f32 %v686, %v708
        %v726 = vmul.f32 %v687, %v708
        %v727 = vmul.f32 %v688, %v708
        %v728 = vmul.f32 %v689, %v708
        %v729 = vmul.f32 %v690, %v708
        %v730 = vmul.f32 %v691, %v708
        %v731 = vmul.f32 %v692, %v708
        %v732 = vmul.f32 %v693, %v708
        %v733 = vmul.f32 %v694, %v708
        %v734 = vmul.f32 %v695, %v708
        %v735 = vmul.f32 %v696, %v708
        %v736 = vmul.f32 %v697, %v708
        %v737 = vmul.f32 %v698, %v708
        %v738 = vmul.f32 %v699, %v708
        %v739 = vmul.f32 %v700, %v708
        %v740 = vmul.f32 %v701, %v708
        %v741 = vmul.f32 %v702, %v708
        %v742 = vld [vmem:[#allocation7] sm:$0x1]
        %v744 = vlaneseq
        %v745 = vshrl.u32 %v744, 7
        %v746 = vsub.s32 0, %v745
        %v747 = vrot.slane %v742, %v746
        %v749 = vadd.f32 %v710, %v747
        %v750 = vadd.f32 %v711, %v747
        %v751 = vadd.f32 %v712, %v747
        %v752 = vadd.f32 %v713, %v747
        %v753 = vadd.f32 %v714, %v747
        %v754 = vadd.f32 %v715, %v747
        %v755 = vadd.f32 %v716, %v747
        %v756 = vadd.f32 %v717, %v747
        %v757 = vadd.f32 %v718, %v747
        %v758 = vadd.f32 %v719, %v747
        %v759 = vadd.f32 %v720, %v747
        %v760 = vadd.f32 %v721, %v747
        %v761 = vadd.f32 %v722, %v747
        %v762 = vadd.f32 %v723, %v747
        %v763 = vadd.f32 %v724, %v747
        %v764 = vadd.f32 %v725, %v747
        %v765 = vadd.f32 %v726, %v747
        %v766 = vadd.f32 %v727, %v747
        %v767 = vadd.f32 %v728, %v747
        %v768 = vadd.f32 %v729, %v747
        %v769 = vadd.f32 %v730, %v747
        %v770 = vadd.f32 %v731, %v747
        %v771 = vadd.f32 %v732, %v747
        %v772 = vadd.f32 %v733, %v747
        %v773 = vadd.f32 %v734, %v747
        %v774 = vadd.f32 %v735, %v747
        %v775 = vadd.f32 %v736, %v747
        %v776 = vadd.f32 %v737, %v747
        %v777 = vadd.f32 %v738, %v747
        %v778 = vadd.f32 %v739, %v747
        %v779 = vadd.f32 %v740, %v747
        %v780 = vadd.f32 %v741, %v747
        %v781 = vmax.f32 %v749, 0.0
        %v782 = vmax.f32 %v750, 0.0
        %v783 = vmax.f32 %v751, 0.0
        %v784 = vmax.f32 %v752, 0.0
        %v785 = vmax.f32 %v753, 0.0
        %v786 = vmax.f32 %v754, 0.0
        %v787 = vmax.f32 %v755, 0.0
        %v788 = vmax.f32 %v756, 0.0
        %v789 = vmax.f32 %v757, 0.0
        %v790 = vmax.f32 %v758, 0.0
        %v791 = vmax.f32 %v759, 0.0
        %v792 = vmax.f32 %v760, 0.0
        %v793 = vmax.f32 %v761, 0.0
        %v794 = vmax.f32 %v762, 0.0
        %v795 = vmax.f32 %v763, 0.0
        %v796 = vmax.f32 %v764, 0.0
        %v797 = vmax.f32 %v765, 0.0
        %v798 = vmax.f32 %v766, 0.0
        %v799 = vmax.f32 %v767, 0.0
        %v800 = vmax.f32 %v768, 0.0
        %v801 = vmax.f32 %v769, 0.0
        %v802 = vmax.f32 %v770, 0.0
        %v803 = vmax.f32 %v771, 0.0
        %v804 = vmax.f32 %v772, 0.0
        %v805 = vmax.f32 %v773, 0.0
        %v806 = vmax.f32 %v774, 0.0
        %v807 = vmax.f32 %v775, 0.0
        %v808 = vmax.f32 %v776, 0.0
        %v809 = vmax.f32 %v777, 0.0
        %v810 = vmax.f32 %v778, 0.0
        %v811 = vmax.f32 %v779, 0.0
        %v812 = vmax.f32 %v780, 0.0
        %vm846 = vcmask 1040384
        %v847 = vrot.slane 0.0, 7
        %v848 = vsel %vm846, %v847, %v847
        %v849 = vrot.slane %v781, 7
        %v850 = vrot.slane %v782, 7
        %v851 = vsel %vm846, %v849, %v850
        %v852 = vrot.slane %v783, 7
        %v853 = vrot.slane %v784, 7
        %v854 = vsel %vm846, %v852, %v853
        %v855 = vrot.slane %v785, 7
        %v856 = vrot.slane %v786, 7
        %v857 = vsel %vm846, %v855, %v856
        %v858 = vrot.slane %v787, 7
        %v859 = vrot.slane %v788, 7
        %v860 = vsel %vm846, %v858, %v859
        %v861 = vrot.slane %v789, 7
        %v862 = vrot.slane %v790, 7
        %v863 = vsel %vm846, %v861, %v862
        %v864 = vrot.slane %v791, 7
        %v865 = vrot.slane %v792, 7
        %v866 = vsel %vm846, %v864, %v865
        %v867 = vrot.slane %v793, 7
        %v868 = vrot.slane %v794, 7
        %v869 = vsel %vm846, %v867, %v868
        %v870 = vrot.slane %v795, 7
        %v871 = vrot.slane %v796, 7
        %v872 = vsel %vm846, %v870, %v871
        %v873 = vrot.slane %v797, 7
        %v874 = vrot.slane %v798, 7
        %v875 = vsel %vm846, %v873, %v874
        %v876 = vrot.slane %v799, 7
        %v877 = vrot.slane %v800, 7
        %v878 = vsel %vm846, %v876, %v877
        %v879 = vrot.slane %v801, 7
        %v880 = vrot.slane %v802, 7
        %v881 = vsel %vm846, %v879, %v880
        %v882 = vrot.slane %v803, 7
        %v883 = vrot.slane %v804, 7
        %v884 = vsel %vm846, %v882, %v883
        %v885 = vrot.slane %v805, 7
        %v886 = vrot.slane %v806, 7
        %v887 = vsel %vm846, %v885, %v886
        %v888 = vrot.slane %v807, 7
        %v889 = vrot.slane %v808, 7
        %v890 = vsel %vm846, %v888, %v889
        %v891 = vrot.slane %v809, 7
        %v892 = vrot.slane %v810, 7
        %v893 = vsel %vm846, %v891, %v892
        %v894 = vrot.slane %v811, 7
        %v895 = vrot.slane %v812, 7
        %v896 = vsel %vm846, %v894, %v895
        %v947 = vsel %vm846, 0.0, %v847
        %v948 = vsel %vm846, 0.0, %v849
        %v949 = vsel %vm846, 0.0, %v852
        %v950 = vsel %vm846, 0.0, %v855
        %v951 = vsel %vm846, 0.0, %v858
        %v952 = vsel %vm846, 0.0, %v861
        %v953 = vsel %vm846, 0.0, %v864
        %v954 = vsel %vm846, 0.0, %v867
        %v955 = vsel %vm846, 0.0, %v870
        %v956 = vsel %vm846, 0.0, %v873
        %v957 = vsel %vm846, 0.0, %v876
        %v958 = vsel %vm846, 0.0, %v879
        %v959 = vsel %vm846, 0.0, %v882
        %v960 = vsel %vm846, 0.0, %v885
        %v961 = vsel %vm846, 0.0, %v888
        %v962 = vsel %vm846, 0.0, %v891
        %v963 = vsel %vm846, 0.0, %v894
        %v964 = vsel %vm846, %v847, 0.0
        %v965 = vsel %vm846, %v850, 0.0
        %v966 = vsel %vm846, %v853, 0.0
        %v967 = vsel %vm846, %v856, 0.0
        %v968 = vsel %vm846, %v859, 0.0
        %v969 = vsel %vm846, %v862, 0.0
        %v970 = vsel %vm846, %v865, 0.0
        %v971 = vsel %vm846, %v868, 0.0
        %v972 = vsel %vm846, %v871, 0.0
        %v973 = vsel %vm846, %v874, 0.0
        %v974 = vsel %vm846, %v877, 0.0
        %v975 = vsel %vm846, %v880, 0.0
        %v976 = vsel %vm846, %v883, 0.0
        %v977 = vsel %vm846, %v886, 0.0
        %v978 = vsel %vm846, %v889, 0.0
        %v979 = vsel %vm846, %v892, 0.0
        %v980 = vsel %vm846, %v895, 0.0
        %vm1013 = vcmask 1046528
        %v1014 = vrot.slane %v947, 1
        %v1015 = vrot.slane %v848, 1
        %v1016 = vsel %vm1013, %v1014, %v1015
        %v1017 = vrot.slane %v964, 1
        %v1018 = vsel %vm1013, %v1015, %v1017
        %v1019 = vrot.slane %v948, 1
        %v1020 = vrot.slane %v851, 1
        %v1021 = vsel %vm1013, %v1019, %v1020
        %v1022 = vrot.slane %v965, 1
        %v1023 = vsel %vm1013, %v1020, %v1022
        %v1024 = vrot.slane %v949, 1
        %v1025 = vrot.slane %v854, 1
        %v1026 = vsel %vm1013, %v1024, %v1025
        %v1027 = vrot.slane %v966, 1
        %v1028 = vsel %vm1013, %v1025, %v1027
        %v1029 = vrot.slane %v950, 1
        %v1030 = vrot.slane %v857, 1
        %v1031 = vsel %vm1013, %v1029, %v1030
        %v1032 = vrot.slane %v967, 1
        %v1033 = vsel %vm1013, %v1030, %v1032
        %v1034 = vrot.slane %v951, 1
        %v1035 = vrot.slane %v860, 1
        %v1036 = vsel %vm1013, %v1034, %v1035
        %v1037 = vrot.slane %v968, 1
        %v1038 = vsel %vm1013, %v1035, %v1037
        %v1039 = vrot.slane %v952, 1
        %v1040 = vrot.slane %v863, 1
        %v1041 = vsel %vm1013, %v1039, %v1040
        %v1042 = vrot.slane %v969, 1
        %v1043 = vsel %vm1013, %v1040, %v1042
        %v1044 = vrot.slane %v953, 1
        %v1045 = vrot.slane %v866, 1
        %v1046 = vsel %vm1013, %v1044, %v1045
        %v1047 = vrot.slane %v970, 1
        %v1048 = vsel %vm1013, %v1045, %v1047
        %v1049 = vrot.slane %v954, 1
        %v1050 = vrot.slane %v869, 1
        %v1051 = vsel %vm1013, %v1049, %v1050
        %v1052 = vrot.slane %v971, 1
        %v1053 = vsel %vm1013, %v1050, %v1052
        %v1054 = vrot.slane %v955, 1
        %v1055 = vrot.slane %v872, 1
        %v1056 = vsel %vm1013, %v1054, %v1055
        %v1057 = vrot.slane %v972, 1
        %v1058 = vsel %vm1013, %v1055, %v1057
        %v1059 = vrot.slane %v956, 1
        %v1060 = vrot.slane %v875, 1
        %v1061 = vsel %vm1013, %v1059, %v1060
        %v1062 = vrot.slane %v973, 1
        %v1063 = vsel %vm1013, %v1060, %v1062
        %v1064 = vrot.slane %v957, 1
        %v1065 = vrot.slane %v878, 1
        %v1066 = vsel %vm1013, %v1064, %v1065
        %v1067 = vrot.slane %v974, 1
        %v1068 = vsel %vm1013, %v1065, %v1067
        %v1069 = vrot.slane %v958, 1
        %v1070 = vrot.slane %v881, 1
        %v1071 = vsel %vm1013, %v1069, %v1070
        %v1072 = vrot.slane %v975, 1
        %v1073 = vsel %vm1013, %v1070, %v1072
        %v1074 = vrot.slane %v959, 1
        %v1075 = vrot.slane %v884, 1
        %v1076 = vsel %vm1013, %v1074, %v1075
        %v1077 = vrot.slane %v976, 1
        %v1078 = vsel %vm1013, %v1075, %v1077
        %v1079 = vrot.slane %v960, 1
        %v1080 = vrot.slane %v887, 1
        %v1081 = vsel %vm1013, %v1079, %v1080
        %v1082 = vrot.slane %v977, 1
        %v1083 = vsel %vm1013, %v1080, %v1082
        %v1084 = vrot.slane %v961, 1
        %v1085 = vrot.slane %v890, 1
        %v1086 = vsel %vm1013, %v1084, %v1085
        %v1087 = vrot.slane %v978, 1
        %v1088 = vsel %vm1013, %v1085, %v1087
        %v1089 = vrot.slane %v962, 1
        %v1090 = vrot.slane %v893, 1
        %v1091 = vsel %vm1013, %v1089, %v1090
        %v1092 = vrot.slane %v979, 1
        %v1093 = vsel %vm1013, %v1090, %v1092
        %vm1126 = vcmask 1045504
        %v1127 = vrot.slane %v947, 2
        %v1128 = vrot.slane %v848, 2
        %v1129 = vsel %vm1126, %v1127, %v1128
        %v1130 = vrot.slane %v964, 2
        %v1131 = vsel %vm1126, %v1128, %v1130
        %v1132 = vrot.slane %v948, 2
        %v1133 = vrot.slane %v851, 2
        %v1134 = vsel %vm1126, %v1132, %v1133
        %v1135 = vrot.slane %v965, 2
        %v1136 = vsel %vm1126, %v1133, %v1135
        %v1137 = vrot.slane %v949, 2
        %v1138 = vrot.slane %v854, 2
        %v1139 = vsel %vm1126, %v1137, %v1138
        %v1140 = vrot.slane %v966, 2
        %v1141 = vsel %vm1126, %v1138, %v1140
        %v1142 = vrot.slane %v950, 2
        %v1143 = vrot.slane %v857, 2
        %v1144 = vsel %vm1126, %v1142, %v1143
        %v1145 = vrot.slane %v967, 2
        %v1146 = vsel %vm1126, %v1143, %v1145
        %v1147 = vrot.slane %v951, 2
        %v1148 = vrot.slane %v860, 2
        %v1149 = vsel %vm1126, %v1147, %v1148
        %v1150 = vrot.slane %v968, 2
        %v1151 = vsel %vm1126, %v1148, %v1150
        %v1152 = vrot.slane %v952, 2
        %v1153 = vrot.slane %v863, 2
        %v1154 = vsel %vm1126, %v1152, %v1153
        %v1155 = vrot.slane %v969, 2
        %v1156 = vsel %vm1126, %v1153, %v1155
        %v1157 = vrot.slane %v953, 2
        %v1158 = vrot.slane %v866, 2
        %v1159 = vsel %vm1126, %v1157, %v1158
        %v1160 = vrot.slane %v970, 2
        %v1161 = vsel %vm1126, %v1158, %v1160
        %v1162 = vrot.slane %v954, 2
        %v1163 = vrot.slane %v869, 2
        %v1164 = vsel %vm1126, %v1162, %v1163
        %v1165 = vrot.slane %v971, 2
        %v1166 = vsel %vm1126, %v1163, %v1165
        %v1167 = vrot.slane %v955, 2
        %v1168 = vrot.slane %v872, 2
        %v1169 = vsel %vm1126, %v1167, %v1168
        %v1170 = vrot.slane %v972, 2
        %v1171 = vsel %vm1126, %v1168, %v1170
        %v1172 = vrot.slane %v956, 2
        %v1173 = vrot.slane %v875, 2
        %v1174 = vsel %vm1126, %v1172, %v1173
        %v1175 = vrot.slane %v973, 2
        %v1176 = vsel %vm1126, %v1173, %v1175
        %v1177 = vrot.slane %v957, 2
        %v1178 = vrot.slane %v878, 2
        %v1179 = vsel %vm1126, %v1177, %v1178
        %v1180 = vrot.slane %v974, 2
        %v1181 = vsel %vm1126, %v1178, %v1180
        %v1182 = vrot.slane %v958, 2
        %v1183 = vrot.slane %v881, 2
        %v1184 = vsel %vm1126, %v1182, %v1183
        %v1185 = vrot.slane %v975, 2
        %v1186 = vsel %vm1126, %v1183, %v1185
        %v1187 = vrot.slane %v959, 2
        %v1188 = vrot.slane %v884, 2
        %v1189 = vsel %vm1126, %v1187, %v1188
        %v1190 = vrot.slane %v976, 2
        %v1191 = vsel %vm1126, %v1188, %v1190
        %v1192 = vrot.slane %v960, 2
        %v1193 = vrot.slane %v887, 2
        %v1194 = vsel %vm1126, %v1192, %v1193
        %v1195 = vrot.slane %v977, 2
        %v1196 = vsel %vm1126, %v1193, %v1195
        %v1197 = vrot.slane %v961, 2
        %v1198 = vrot.slane %v890, 2
        %v1199 = vsel %vm1126, %v1197, %v1198
        %v1200 = vrot.slane %v978, 2
        %v1201 = vsel %vm1126, %v1198, %v1200
        %v1202 = vrot.slane %v962, 2
        %v1203 = vrot.slane %v893, 2
        %v1204 = vsel %vm1126, %v1202, %v1203
        %v1205 = vrot.slane %v979, 2
        %v1206 = vsel %vm1126, %v1203, %v1205
        %v1241 = vrot.slane %v963, 1
        %v1242 = vrot.slane %v896, 1
        %v1243 = vsel %vm1013, %v1241, %v1242
        %v1244 = vrot.slane %v980, 1
        %v1245 = vsel %vm1013, %v1242, %v1244
        %v1248 = vrot.slane %v963, 2
        %v1249 = vrot.slane %v896, 2
        %v1250 = vsel %vm1126, %v1248, %v1249
        %v1251 = vrot.slane %v980, 2
        %v1252 = vsel %vm1126, %v1249, %v1251
        %v1255 = vld [vmem:[#allocation8] sm:$0xff]
        %v1256 = vld [vmem:[#allocation8 + $0x8] sm:$0xff]
        %v1257 = vld [vmem:[#allocation8 + $0x10] sm:$0xff]
        %v1258 = vld [vmem:[#allocation8 + $0x18] sm:$0xff]
        %v1259 = vld [vmem:[#allocation8 + $0x20] sm:$0xff]
        %v1260 = vld [vmem:[#allocation8 + $0x28] sm:$0xff]
        %v1261 = vld [vmem:[#allocation8 + $0x30] sm:$0xff]
        %v1262 = vld [vmem:[#allocation8 + $0x38] sm:$0xff]
        %v1263 = vld [vmem:[#allocation8 + $0x40] sm:$0xff]
        %v1264 = vld [vmem:[#allocation8 + $0x48] sm:$0xff]
        %v1265 = vld [vmem:[#allocation8 + $0x50] sm:$0xff]
        %v1266 = vld [vmem:[#allocation8 + $0x58] sm:$0xff]
        %v1267 = vld [vmem:[#allocation8 + $0x60] sm:$0xff]
        %v1268 = vld [vmem:[#allocation8 + $0x68] sm:$0xff]
        %v1269 = vld [vmem:[#allocation8 + $0x70] sm:$0xff]
        %v1270 = vld [vmem:[#allocation8 + $0x78] sm:$0xff]
        %v1271 = vld [vmem:[#allocation8 + $0x80] sm:$0xff]
        %v1272 = vld [vmem:[#allocation8 + $0x88] sm:$0xff]
        %v1273 = vld [vmem:[#allocation8 + $0x90] sm:$0xff]
        %v1274 = vld [vmem:[#allocation8 + $0x98] sm:$0xff]
        %v1275 = vld [vmem:[#allocation8 + $0xa0] sm:$0xff]
        %v1276 = vld [vmem:[#allocation8 + $0xa8] sm:$0xff]
        %v1277 = vld [vmem:[#allocation8 + $0xb0] sm:$0xff]
        %v1278 = vld [vmem:[#allocation8 + $0xb8] sm:$0xff]
        %v1279 = vld [vmem:[#allocation8 + $0xc0] sm:$0xff]
        %v1280 = vld [vmem:[#allocation8 + $0xc8] sm:$0xff]
        %v1281 = vld [vmem:[#allocation8 + $0xd0] sm:$0xff]
        %v1282 = vld [vmem:[#allocation8 + $0xd8] sm:$0xff]
        %v1283 = vld [vmem:[#allocation8 + $0xe0] sm:$0xff]
        %v1284 = vld [vmem:[#allocation8 + $0xe8] sm:$0xff]
        %v1285 = vld [vmem:[#allocation8 + $0xf0] sm:$0xff]
        %v1286 = vld [vmem:[#allocation8 + $0xf8] sm:$0xff]
        %v1287 = vld [vmem:[#allocation8 + $0x100] sm:$0xff]
        %v1288 = vld [vmem:[#allocation8 + $0x108] sm:$0xff]
        %v1289 = vld [vmem:[#allocation8 + $0x110] sm:$0xff]
        %v1290 = vld [vmem:[#allocation8 + $0x118] sm:$0xff]
        %v1291 = vld [vmem:[#allocation8 + $0x120] sm:$0xff]
        %v1292 = vld [vmem:[#allocation8 + $0x128] sm:$0xff]
        %v1293 = vld [vmem:[#allocation8 + $0x130] sm:$0xff]
        %v1294 = vld [vmem:[#allocation8 + $0x138] sm:$0xff]
        %v1295 = vld [vmem:[#allocation8 + $0x140] sm:$0xff]
        %v1296 = vld [vmem:[#allocation8 + $0x148] sm:$0xff]
        %v1297 = vld [vmem:[#allocation8 + $0x150] sm:$0xff]
        %v1298 = vld [vmem:[#allocation8 + $0x158] sm:$0xff]
        %v1299 = vld [vmem:[#allocation8 + $0x160] sm:$0xff]
        %v1300 = vld [vmem:[#allocation8 + $0x168] sm:$0xff]
        %v1301 = vld [vmem:[#allocation8 + $0x170] sm:$0xff]
        %v1302 = vld [vmem:[#allocation8 + $0x178] sm:$0xff]
        %v1303 = vld [vmem:[#allocation8 + $0x180] sm:$0xff]
        %v1304 = vld [vmem:[#allocation8 + $0x188] sm:$0xff]
        %v1305 = vld [vmem:[#allocation8 + $0x190] sm:$0xff]
        %v1306 = vld [vmem:[#allocation8 + $0x198] sm:$0xff]
        %v1307 = vld [vmem:[#allocation8 + $0x1a0] sm:$0xff]
        %v1308 = vld [vmem:[#allocation8 + $0x1a8] sm:$0xff]
        %v1309 = vld [vmem:[#allocation8 + $0x1b0] sm:$0xff]
        %v1310 = vld [vmem:[#allocation8 + $0x1b8] sm:$0xff]
        %v1311 = vld [vmem:[#allocation8 + $0x1c0] sm:$0xff]
        %v1312 = vld [vmem:[#allocation8 + $0x1c8] sm:$0xff]
        %v1313 = vld [vmem:[#allocation8 + $0x1d0] sm:$0xff]
        %v1314 = vld [vmem:[#allocation8 + $0x1d8] sm:$0xff]
        %v1315 = vld [vmem:[#allocation8 + $0x1e0] sm:$0xff]
        %v1316 = vld [vmem:[#allocation8 + $0x1e8] sm:$0xff]
        %v1317 = vld [vmem:[#allocation8 + $0x1f0] sm:$0xff]
        %v1318 = vld [vmem:[#allocation8 + $0x1f8] sm:$0xff]
        %v1319 = vld [vmem:[#allocation8 + $0x200] sm:$0xff]
        %v1320 = vld [vmem:[#allocation8 + $0x208] sm:$0xff]
        %v1321 = vld [vmem:[#allocation8 + $0x210] sm:$0xff]
        %v1322 = vld [vmem:[#allocation8 + $0x218] sm:$0xff]
        %v1323 = vld [vmem:[#allocation8 + $0x220] sm:$0xff]
        %v1324 = vld [vmem:[#allocation8 + $0x228] sm:$0xff]
        %v1325 = vld [vmem:[#allocation8 + $0x230] sm:$0xff]
        %v1326 = vld [vmem:[#allocation8 + $0x238] sm:$0xff]
        %v1327 = vld [vmem:[#allocation8 + $0x240] sm:$0xff]
        %v1328 = vld [vmem:[#allocation8 + $0x248] sm:$0xff]
        %v1329 = vld [vmem:[#allocation8 + $0x250] sm:$0xff]
        %v1330 = vld [vmem:[#allocation8 + $0x258] sm:$0xff]
        %v1331 = vld [vmem:[#allocation8 + $0x260] sm:$0xff]
        %v1332 = vld [vmem:[#allocation8 + $0x268] sm:$0xff]
        %v1333 = vld [vmem:[#allocation8 + $0x270] sm:$0xff]
        %v1334 = vld [vmem:[#allocation8 + $0x278] sm:$0xff]
        %v1335 = vld [vmem:[#allocation8 + $0x280] sm:$0xff]
        %v1336 = vld [vmem:[#allocation8 + $0x288] sm:$0xff]
        %v1337 = vld [vmem:[#allocation8 + $0x290] sm:$0xff]
        %v1338 = vld [vmem:[#allocation8 + $0x298] sm:$0xff]
        %v1339 = vld [vmem:[#allocation8 + $0x2a0] sm:$0xff]
        %v1340 = vld [vmem:[#allocation8 + $0x2a8] sm:$0xff]
        %v1341 = vld [vmem:[#allocation8 + $0x2b0] sm:$0xff]
        %v1342 = vld [vmem:[#allocation8 + $0x2b8] sm:$0xff]
        %v1343 = vld [vmem:[#allocation8 + $0x2c0] sm:$0xff]
        %v1344 = vld [vmem:[#allocation8 + $0x2c8] sm:$0xff]
        %v1345 = vld [vmem:[#allocation8 + $0x2d0] sm:$0xff]
        %v1346 = vld [vmem:[#allocation8 + $0x2d8] sm:$0xff]
        %v1347 = vld [vmem:[#allocation8 + $0x2e0] sm:$0xff]
        %v1348 = vld [vmem:[#allocation8 + $0x2e8] sm:$0xff]
        %v1349 = vld [vmem:[#allocation8 + $0x2f0] sm:$0xff]
        %v1350 = vld [vmem:[#allocation8 + $0x2f8] sm:$0xff]
        %v1351 = vld [vmem:[#allocation8 + $0x300] sm:$0xff]
        %v1352 = vld [vmem:[#allocation8 + $0x308] sm:$0xff]
        %v1353 = vld [vmem:[#allocation8 + $0x310] sm:$0xff]
        %v1354 = vld [vmem:[#allocation8 + $0x318] sm:$0xff]
        %v1355 = vld [vmem:[#allocation8 + $0x320] sm:$0xff]
        %v1356 = vld [vmem:[#allocation8 + $0x328] sm:$0xff]
        %v1357 = vld [vmem:[#allocation8 + $0x330] sm:$0xff]
        %v1358 = vld [vmem:[#allocation8 + $0x338] sm:$0xff]
        %v1359 = vld [vmem:[#allocation8 + $0x340] sm:$0xff]
        %v1360 = vld [vmem:[#allocation8 + $0x348] sm:$0xff]
        %v1361 = vld [vmem:[#allocation8 + $0x350] sm:$0xff]
        %v1362 = vld [vmem:[#allocation8 + $0x358] sm:$0xff]
        %v1363 = vld [vmem:[#allocation8 + $0x360] sm:$0xff]
        %v1364 = vld [vmem:[#allocation8 + $0x368] sm:$0xff]
        %v1365 = vld [vmem:[#allocation8 + $0x370] sm:$0xff]
        %v1366 = vld [vmem:[#allocation8 + $0x378] sm:$0xff]
        %v1367 = vld [vmem:[#allocation8 + $0x380] sm:$0xff]
        %v1368 = vld [vmem:[#allocation8 + $0x388] sm:$0xff]
        %v1369 = vld [vmem:[#allocation8 + $0x390] sm:$0xff]
        %v1370 = vld [vmem:[#allocation8 + $0x398] sm:$0xff]
        %v1371 = vld [vmem:[#allocation8 + $0x3a0] sm:$0xff]
        %v1372 = vld [vmem:[#allocation8 + $0x3a8] sm:$0xff]
        %v1373 = vld [vmem:[#allocation8 + $0x3b0] sm:$0xff]
        %v1374 = vld [vmem:[#allocation8 + $0x3b8] sm:$0xff]
        %v1375 = vld [vmem:[#allocation8 + $0x3c0] sm:$0xff]
        %v1376 = vld [vmem:[#allocation8 + $0x3c8] sm:$0xff]
        %v1377 = vld [vmem:[#allocation8 + $0x3d0] sm:$0xff]
        %v1378 = vld [vmem:[#allocation8 + $0x3d8] sm:$0xff]
        %v1379 = vld [vmem:[#allocation8 + $0x3e0] sm:$0xff]
        %v1380 = vld [vmem:[#allocation8 + $0x3e8] sm:$0xff]
        %v1381 = vld [vmem:[#allocation8 + $0x3f0] sm:$0xff]
        %v1382 = vld [vmem:[#allocation8 + $0x3f8] sm:$0xff]
        %v1383 = vld [vmem:[#allocation8 + $0x400] sm:$0xff]
        %v1384 = vld [vmem:[#allocation8 + $0x408] sm:$0xff]
        %v1385 = vld [vmem:[#allocation8 + $0x410] sm:$0xff]
        %v1386 = vld [vmem:[#allocation8 + $0x418] sm:$0xff]
        %v1387 = vld [vmem:[#allocation8 + $0x420] sm:$0xff]
        %v1388 = vld [vmem:[#allocation8 + $0x428] sm:$0xff]
        %v1389 = vld [vmem:[#allocation8 + $0x430] sm:$0xff]
        %v1390 = vld [vmem:[#allocation8 + $0x438] sm:$0xff]
        %v1391 = vld [vmem:[#allocation8 + $0x440] sm:$0xff]
        %v1392 = vld [vmem:[#allocation8 + $0x448] sm:$0xff]
        %v1393 = vld [vmem:[#allocation8 + $0x450] sm:$0xff]
        %v1394 = vld [vmem:[#allocation8 + $0x458] sm:$0xff]
        %v1395 = vld [vmem:[#allocation8 + $0x460] sm:$0xff]
        %v1396 = vld [vmem:[#allocation8 + $0x468] sm:$0xff]
        %v1397 = vld [vmem:[#allocation8 + $0x470] sm:$0xff]
        %v1398 = vld [vmem:[#allocation8 + $0x478] sm:$0xff]
        %1399 = vmatprep.subr.mxu0 0.0
        %1400 = vmatpush1.msra.mxu0 %v1270
        %1401 = vmatprep.subr.mxu0 0.0
        %1402 = vmatpush1.msra.mxu0 %v1269
        %1403 = vmatprep.subr.mxu0 0.0
        %1404 = vmatpush1.msra.mxu0 %v1268
        %1405 = vmatprep.subr.mxu0 0.0
        %1406 = vmatpush1.msra.mxu0 %v1267
        %1407 = vmatprep.subr.mxu0 0.0
        %1408 = vmatpush1.msra.mxu0 %v1266
        %1409 = vmatprep.subr.mxu0 0.0
        %1410 = vmatpush1.msra.mxu0 %v1265
        %1411 = vmatprep.subr.mxu0 0.0
        %1412 = vmatpush1.msra.mxu0 %v1264
        %1413 = vmatprep.subr.mxu0 0.0
        %1414 = vmatpush1.msra.mxu0 %v1263
        %1415 = vmatprep.subr.mxu0 0.0
        %1416 = vmatpush1.msra.mxu0 %v1262
        %1417 = vmatprep.subr.mxu0 0.0
        %1418 = vmatpush1.msra.mxu0 %v1261
        %1419 = vmatprep.subr.mxu0 0.0
        %1420 = vmatpush1.msra.mxu0 %v1260
        %1421 = vmatprep.subr.mxu0 0.0
        %1422 = vmatpush1.msra.mxu0 %v1259
        %1423 = vmatprep.subr.mxu0 0.0
        %1424 = vmatpush1.msra.mxu0 %v1258
        %1425 = vmatprep.subr.mxu0 0.0
        %1426 = vmatpush1.msra.mxu0 %v1257
        %1427 = vmatprep.subr.mxu0 0.0
        %1428 = vmatpush1.msra.mxu0 %v1256
        %1429 = vmatprep.subr.mxu0 0.0
        %1430 = vmatpush1.msra.mxu0 %v1255
        %1431 = vmatprep.subr.mxu0 0.0
        %1432 = vmatpush2.msra.mxu0 %v1286
        %1433 = vmatprep.subr.mxu0 0.0
        %1434 = vmatpush2.msra.mxu0 %v1285
        %1435 = vmatprep.subr.mxu0 0.0
        %1436 = vmatpush2.msra.mxu0 %v1284
        %1437 = vmatprep.subr.mxu0 0.0
        %1438 = vmatpush2.msra.mxu0 %v1283
        %1439 = vmatprep.subr.mxu0 0.0
        %1440 = vmatpush2.msra.mxu0 %v1282
        %1441 = vmatprep.subr.mxu0 0.0
        %1442 = vmatpush2.msra.mxu0 %v1281
        %1443 = vmatprep.subr.mxu0 0.0
        %1444 = vmatpush2.msra.mxu0 %v1280
        %1445 = vmatprep.subr.mxu0 0.0
        %1446 = vmatpush2.msra.mxu0 %v1279
        %1447 = vmatprep.subr.mxu0 0.0
        %1448 = vmatpush2.msra.mxu0 %v1278
        %1449 = vmatprep.subr.mxu0 0.0
        %1450 = vmatpush2.msra.mxu0 %v1277
        %1451 = vmatprep.subr.mxu0 0.0
        %1452 = vmatpush2.msra.mxu0 %v1276
        %1453 = vmatprep.subr.mxu0 0.0
        %1454 = vmatpush2.msra.mxu0 %v1275
        %1455 = vmatprep.subr.mxu0 0.0
        %1456 = vmatpush2.msra.mxu0 %v1274
        %1457 = vmatprep.subr.mxu0 0.0
        %1458 = vmatpush2.msra.mxu0 %v1273
        %1459 = vmatprep.subr.mxu0 0.0
        %1460 = vmatpush2.msra.mxu0 %v1272
        %1461 = vmatprep.subr.mxu0 0.0
        %1462 = vmatpush2.msra.mxu0 %v1271
        %1463 = vmatprep.mubr.f32.mxu0 %v1016
        %1464 = vmatmul.mubr.f32.gmra.mxu0 %v947
        %v1465 = vpop.f32.mrf.mxu0
        %v1466 = vadd.f32 0.0, %v1465
        %v1467 = vpop.f32.mrf.mxu0
        %1468 = vmatprep.mubr.f32.mxu0 %v1018
        %1469 = vmatmul.mubr.f32.gmra.mxu0 %v848
        %v1470 = vpop.f32.mrf.mxu0
        %v1471 = vadd.f32 0.0, %v1470
        %v1472 = vpop.f32.mrf.mxu0
        %1473 = vmatprep.mubr.f32.mxu0 %v1021
        %1474 = vmatmul.mubr.f32.gmra.mxu0 %v948
        %v1475 = vpop.f32.mrf.mxu0
        %v1476 = vadd.f32 0.0, %v1475
        %v1477 = vpop.f32.mrf.mxu0
        %1478 = vmatprep.mubr.f32.mxu0 %v1023
        %1479 = vmatmul.mubr.f32.gmra.mxu0 %v851
        %v1480 = vpop.f32.mrf.mxu0
        %v1481 = vadd.f32 0.0, %v1480
        %v1482 = vpop.f32.mrf.mxu0
        %1483 = vmatprep.mubr.f32.mxu0 %v1026
        %1484 = vmatmul.mubr.f32.gmra.mxu0 %v949
        %v1485 = vpop.f32.mrf.mxu0
        %v1486 = vadd.f32 0.0, %v1485
        %v1487 = vpop.f32.mrf.mxu0
        %1488 = vmatprep.mubr.f32.mxu0 %v1028
        %1489 = vmatmul.mubr.f32.gmra.mxu0 %v854
        %v1490 = vpop.f32.mrf.mxu0
        %v1491 = vadd.f32 0.0, %v1490
        %v1492 = vpop.f32.mrf.mxu0
        %1493 = vmatprep.mubr.f32.mxu0 %v1031
        %1494 = vmatmul.mubr.f32.gmra.mxu0 %v950
        %v1495 = vpop.f32.mrf.mxu0
        %v1496 = vadd.f32 0.0, %v1495
        %v1497 = vpop.f32.mrf.mxu0
        %1498 = vmatprep.mubr.f32.mxu0 %v1033
        %1499 = vmatmul.mubr.f32.gmra.mxu0 %v857
        %v1500 = vpop.f32.mrf.mxu0
        %v1501 = vadd.f32 0.0, %v1500
        %v1502 = vpop.f32.mrf.mxu0
        %1503 = vmatprep.mubr.f32.mxu0 %v1036
        %1504 = vmatmul.mubr.f32.gmra.mxu0 %v951
        %v1505 = vpop.f32.mrf.mxu0
        %v1506 = vadd.f32 0.0, %v1505
        %v1507 = vpop.f32.mrf.mxu0
        %1508 = vmatprep.mubr.f32.mxu0 %v1038
        %1509 = vmatmul.mubr.f32.gmra.mxu0 %v860
        %v1510 = vpop.f32.mrf.mxu0
        %v1511 = vadd.f32 0.0, %v1510
        %v1512 = vpop.f32.mrf.mxu0
        %1513 = vmatprep.mubr.f32.mxu0 %v1041
        %1514 = vmatmul.mubr.f32.gmra.mxu0 %v952
        %v1515 = vpop.f32.mrf.mxu0
        %v1516 = vadd.f32 0.0, %v1515
        %v1517 = vpop.f32.mrf.mxu0
        %1518 = vmatprep.mubr.f32.mxu0 %v1043
        %1519 = vmatmul.mubr.f32.gmra.mxu0 %v863
        %v1520 = vpop.f32.mrf.mxu0
        %v1521 = vadd.f32 0.0, %v1520
        %v1522 = vpop.f32.mrf.mxu0
        %1523 = vmatprep.mubr.f32.mxu0 %v1046
        %1524 = vmatmul.mubr.f32.gmra.mxu0 %v953
        %v1525 = vpop.f32.mrf.mxu0
        %v1526 = vadd.f32 0.0, %v1525
        %v1527 = vpop.f32.mrf.mxu0
        %1528 = vmatprep.mubr.f32.mxu0 %v1048
        %1529 = vmatmul.mubr.f32.gmra.mxu0 %v866
        %v1530 = vpop.f32.mrf.mxu0
        %v1531 = vadd.f32 0.0, %v1530
        %v1532 = vpop.f32.mrf.mxu0
        %1533 = vmatprep.mubr.f32.mxu0 %v1051
        %1534 = vmatmul.mubr.f32.gmra.mxu0 %v954
        %v1535 = vpop.f32.mrf.mxu0
        %v1536 = vadd.f32 0.0, %v1535
        %v1537 = vpop.f32.mrf.mxu0
        %1538 = vmatprep.mubr.f32.mxu0 %v1053
        %1539 = vmatmul.mubr.f32.gmra.mxu0 %v869
        %v1540 = vpop.f32.mrf.mxu0
        %v1541 = vadd.f32 0.0, %v1540
        %v1542 = vpop.f32.mrf.mxu0
        %1543 = vmatprep.mubr.f32.mxu0 %v1056
        %1544 = vmatmul.mubr.f32.gmra.mxu0 %v955
        %v1545 = vpop.f32.mrf.mxu0
        %v1546 = vadd.f32 0.0, %v1545
        %v1547 = vpop.f32.mrf.mxu0
        %1548 = vmatprep.mubr.f32.mxu0 %v1058
        %1549 = vmatmul.mubr.f32.gmra.mxu0 %v872
        %v1550 = vpop.f32.mrf.mxu0
        %v1551 = vadd.f32 0.0, %v1550
        %v1552 = vpop.f32.mrf.mxu0
        %1553 = vmatprep.mubr.f32.mxu0 %v1061
        %1554 = vmatmul.mubr.f32.gmra.mxu0 %v956
        %v1555 = vpop.f32.mrf.mxu0
        %v1556 = vadd.f32 0.0, %v1555
        %v1557 = vpop.f32.mrf.mxu0
        %1558 = vmatprep.mubr.f32.mxu0 %v1063
        %1559 = vmatmul.mubr.f32.gmra.mxu0 %v875
        %v1560 = vpop.f32.mrf.mxu0
        %v1561 = vadd.f32 0.0, %v1560
        %v1562 = vpop.f32.mrf.mxu0
        %1563 = vmatprep.mubr.f32.mxu0 %v1066
        %1564 = vmatmul.mubr.f32.gmra.mxu0 %v957
        %v1565 = vpop.f32.mrf.mxu0
        %v1566 = vadd.f32 0.0, %v1565
        %v1567 = vpop.f32.mrf.mxu0
        %1568 = vmatprep.mubr.f32.mxu0 %v1068
        %1569 = vmatmul.mubr.f32.gmra.mxu0 %v878
        %v1570 = vpop.f32.mrf.mxu0
        %v1571 = vadd.f32 0.0, %v1570
        %v1572 = vpop.f32.mrf.mxu0
        %1573 = vmatprep.mubr.f32.mxu0 %v1071
        %1574 = vmatmul.mubr.f32.gmra.mxu0 %v958
        %v1575 = vpop.f32.mrf.mxu0
        %v1576 = vadd.f32 0.0, %v1575
        %v1577 = vpop.f32.mrf.mxu0
        %1578 = vmatprep.mubr.f32.mxu0 %v1073
        %1579 = vmatmul.mubr.f32.gmra.mxu0 %v881
        %v1580 = vpop.f32.mrf.mxu0
        %v1581 = vadd.f32 0.0, %v1580
        %v1582 = vpop.f32.mrf.mxu0
        %1583 = vmatprep.mubr.f32.mxu0 %v1076
        %1584 = vmatmul.mubr.f32.gmra.mxu0 %v959
        %v1585 = vpop.f32.mrf.mxu0
        %v1586 = vadd.f32 0.0, %v1585
        %v1587 = vpop.f32.mrf.mxu0
        %1588 = vmatprep.mubr.f32.mxu0 %v1078
        %1589 = vmatmul.mubr.f32.gmra.mxu0 %v884
        %v1590 = vpop.f32.mrf.mxu0
        %v1591 = vadd.f32 0.0, %v1590
        %v1592 = vpop.f32.mrf.mxu0
        %1593 = vmatprep.mubr.f32.mxu0 %v1081
        %1594 = vmatmul.mubr.f32.gmra.mxu0 %v960
        %v1595 = vpop.f32.mrf.mxu0
        %v1596 = vadd.f32 0.0, %v1595
        %v1597 = vpop.f32.mrf.mxu0
        %1598 = vmatprep.mubr.f32.mxu0 %v1083
        %1599 = vmatmul.mubr.f32.gmra.mxu0 %v887
        %v1600 = vpop.f32.mrf.mxu0
        %v1601 = vadd.f32 0.0, %v1600
        %v1602 = vpop.f32.mrf.mxu0
        %1603 = vmatprep.mubr.f32.mxu0 %v1086
        %1604 = vmatmul.mubr.f32.gmra.mxu0 %v961
        %v1605 = vpop.f32.mrf.mxu0
        %v1606 = vadd.f32 0.0, %v1605
        %v1607 = vpop.f32.mrf.mxu0
        %1608 = vmatprep.mubr.f32.mxu0 %v1088
        %1609 = vmatmul.mubr.f32.gmra.mxu0 %v890
        %v1610 = vpop.f32.mrf.mxu0
        %v1611 = vadd.f32 0.0, %v1610
        %v1612 = vpop.f32.mrf.mxu0
        %1613 = vmatprep.mubr.f32.mxu0 %v1091
        %1614 = vmatmul.mubr.f32.gmra.mxu0 %v962
        %v1615 = vpop.f32.mrf.mxu0
        %v1616 = vadd.f32 0.0, %v1615
        %v1617 = vpop.f32.mrf.mxu0
        %1618 = vmatprep.mubr.f32.mxu0 %v1093
        %1619 = vmatmul.mubr.f32.gmra.mxu0 %v893
        %v1620 = vpop.f32.mrf.mxu0
        %v1621 = vadd.f32 0.0, %v1620
        %v1622 = vpop.f32.mrf.mxu0
        %1623 = vdwg.mxu0
        %1624 = vmatprep.subr.mxu0 0.0
        %1625 = vmatpush1.msra.mxu0 %v1302
        %1626 = vmatprep.subr.mxu0 0.0
        %1627 = vmatpush1.msra.mxu0 %v1301
        %1628 = vmatprep.subr.mxu0 0.0
        %1629 = vmatpush1.msra.mxu0 %v1300
        %1630 = vmatprep.subr.mxu0 0.0
        %1631 = vmatpush1.msra.mxu0 %v1299
        %1632 = vmatprep.subr.mxu0 0.0
        %1633 = vmatpush1.msra.mxu0 %v1298
        %1634 = vmatprep.subr.mxu0 0.0
        %1635 = vmatpush1.msra.mxu0 %v1297
        %1636 = vmatprep.subr.mxu0 0.0
        %1637 = vmatpush1.msra.mxu0 %v1296
        %1638 = vmatprep.subr.mxu0 0.0
        %1639 = vmatpush1.msra.mxu0 %v1295
        %1640 = vmatprep.subr.mxu0 0.0
        %1641 = vmatpush1.msra.mxu0 %v1294
        %1642 = vmatprep.subr.mxu0 0.0
        %1643 = vmatpush1.msra.mxu0 %v1293
        %1644 = vmatprep.subr.mxu0 0.0
        %1645 = vmatpush1.msra.mxu0 %v1292
        %1646 = vmatprep.subr.mxu0 0.0
        %1647 = vmatpush1.msra.mxu0 %v1291
        %1648 = vmatprep.subr.mxu0 0.0
        %1649 = vmatpush1.msra.mxu0 %v1290
        %1650 = vmatprep.subr.mxu0 0.0
        %1651 = vmatpush1.msra.mxu0 %v1289
        %1652 = vmatprep.subr.mxu0 0.0
        %1653 = vmatpush1.msra.mxu0 %v1288
        %1654 = vmatprep.subr.mxu0 0.0
        %1655 = vmatpush1.msra.mxu0 %v1287
        %1656 = vmatprep.subr.mxu0 0.0
        %1657 = vmatpush2.msra.mxu0 %v1318
        %1658 = vmatprep.subr.mxu0 0.0
        %1659 = vmatpush2.msra.mxu0 %v1317
        %1660 = vmatprep.subr.mxu0 0.0
        %1661 = vmatpush2.msra.mxu0 %v1316
        %1662 = vmatprep.subr.mxu0 0.0
        %1663 = vmatpush2.msra.mxu0 %v1315
        %1664 = vmatprep.subr.mxu0 0.0
        %1665 = vmatpush2.msra.mxu0 %v1314
        %1666 = vmatprep.subr.mxu0 0.0
        %1667 = vmatpush2.msra.mxu0 %v1313
        %1668 = vmatprep.subr.mxu0 0.0
        %1669 = vmatpush2.msra.mxu0 %v1312
        %1670 = vmatprep.subr.mxu0 0.0
        %1671 = vmatpush2.msra.mxu0 %v1311
        %1672 = vmatprep.subr.mxu0 0.0
        %1673 = vmatpush2.msra.mxu0 %v1310
        %1674 = vmatprep.subr.mxu0 0.0
        %1675 = vmatpush2.msra.mxu0 %v1309
        %1676 = vmatprep.subr.mxu0 0.0
        %1677 = vmatpush2.msra.mxu0 %v1308
        %1678 = vmatprep.subr.mxu0 0.0
        %1679 = vmatpush2.msra.mxu0 %v1307
        %1680 = vmatprep.subr.mxu0 0.0
        %1681 = vmatpush2.msra.mxu0 %v1306
        %1682 = vmatprep.subr.mxu0 0.0
        %1683 = vmatpush2.msra.mxu0 %v1305
        %1684 = vmatprep.subr.mxu0 0.0
        %1685 = vmatpush2.msra.mxu0 %v1304
        %1686 = vmatprep.subr.mxu0 0.0
        %1687 = vmatpush2.msra.mxu0 %v1303
        %1688 = vmatprep.mubr.f32.mxu0 %v948
        %1689 = vmatmul.mubr.f32.gmra.mxu0 %v1129
        %v1690 = vpop.f32.mrf.mxu0
        %v1691 = vadd.f32 %v1466, %v1690
        %v1692 = vpop.f32.mrf.mxu0
        %1693 = vmatprep.mubr.f32.mxu0 %v851
        %1694 = vmatmul.mubr.f32.gmra.mxu0 %v1131
        %v1695 = vpop.f32.mrf.mxu0
        %v1696 = vadd.f32 %v1471, %v1695
        %v1697 = vpop.f32.mrf.mxu0
        %1698 = vmatprep.mubr.f32.mxu0 %v949
        %1699 = vmatmul.mubr.f32.gmra.mxu0 %v1134
        %v1700 = vpop.f32.mrf.mxu0
        %v1701 = vadd.f32 %v1476, %v1700
        %v1702 = vpop.f32.mrf.mxu0
        %1703 = vmatprep.mubr.f32.mxu0 %v854
        %1704 = vmatmul.mubr.f32.gmra.mxu0 %v1136
        %v1705 = vpop.f32.mrf.mxu0
        %v1706 = vadd.f32 %v1481, %v1705
        %v1707 = vpop.f32.mrf.mxu0
        %1708 = vmatprep.mubr.f32.mxu0 %v950
        %1709 = vmatmul.mubr.f32.gmra.mxu0 %v1139
        %v1710 = vpop.f32.mrf.mxu0
        %v1711 = vadd.f32 %v1486, %v1710
        %v1712 = vpop.f32.mrf.mxu0
        %1713 = vmatprep.mubr.f32.mxu0 %v857
        %1714 = vmatmul.mubr.f32.gmra.mxu0 %v1141
        %v1715 = vpop.f32.mrf.mxu0
        %v1716 = vadd.f32 %v1491, %v1715
        %v1717 = vpop.f32.mrf.mxu0
        %1718 = vmatprep.mubr.f32.mxu0 %v951
        %1719 = vmatmul.mubr.f32.gmra.mxu0 %v1144
        %v1720 = vpop.f32.mrf.mxu0
        %v1721 = vadd.f32 %v1496, %v1720
        %v1722 = vpop.f32.mrf.mxu0
        %1723 = vmatprep.mubr.f32.mxu0 %v860
        %1724 = vmatmul.mubr.f32.gmra.mxu0 %v1146
        %v1725 = vpop.f32.mrf.mxu0
        %v1726 = vadd.f32 %v1501, %v1725
        %v1727 = vpop.f32.mrf.mxu0
        %1728 = vmatprep.mubr.f32.mxu0 %v952
        %1729 = vmatmul.mubr.f32.gmra.mxu0 %v1149
        %v1730 = vpop.f32.mrf.mxu0
        %v1731 = vadd.f32 %v1506, %v1730
        %v1732 = vpop.f32.mrf.mxu0
        %1733 = vmatprep.mubr.f32.mxu0 %v863
        %1734 = vmatmul.mubr.f32.gmra.mxu0 %v1151
        %v1735 = vpop.f32.mrf.mxu0
        %v1736 = vadd.f32 %v1511, %v1735
        %v1737 = vpop.f32.mrf.mxu0
        %1738 = vmatprep.mubr.f32.mxu0 %v953
        %1739 = vmatmul.mubr.f32.gmra.mxu0 %v1154
        %v1740 = vpop.f32.mrf.mxu0
        %v1741 = vadd.f32 %v1516, %v1740
        %v1742 = vpop.f32.mrf.mxu0
        %1743 = vmatprep.mubr.f32.mxu0 %v866
        %1744 = vmatmul.mubr.f32.gmra.mxu0 %v1156
        %v1745 = vpop.f32.mrf.mxu0
        %v1746 = vadd.f32 %v1521, %v1745
        %v1747 = vpop.f32.mrf.mxu0
        %1748 = vmatprep.mubr.f32.mxu0 %v954
        %1749 = vmatmul.mubr.f32.gmra.mxu0 %v1159
        %v1750 = vpop.f32.mrf.mxu0
        %v1751 = vadd.f32 %v1526, %v1750
        %v1752 = vpop.f32.mrf.mxu0
        %1753 = vmatprep.mubr.f32.mxu0 %v869
        %1754 = vmatmul.mubr.f32.gmra.mxu0 %v1161
        %v1755 = vpop.f32.mrf.mxu0
        %v1756 = vadd.f32 %v1531, %v1755
        %v1757 = vpop.f32.mrf.mxu0
        %1758 = vmatprep.mubr.f32.mxu0 %v955
        %1759 = vmatmul.mubr.f32.gmra.mxu0 %v1164
        %v1760 = vpop.f32.mrf.mxu0
        %v1761 = vadd.f32 %v1536, %v1760
        %v1762 = vpop.f32.mrf.mxu0
        %1763 = vmatprep.mubr.f32.mxu0 %v872
        %1764 = vmatmul.mubr.f32.gmra.mxu0 %v1166
        %v1765 = vpop.f32.mrf.mxu0
        %v1766 = vadd.f32 %v1541, %v1765
        %v1767 = vpop.f32.mrf.mxu0
        %1768 = vmatprep.mubr.f32.mxu0 %v956
        %1769 = vmatmul.mubr.f32.gmra.mxu0 %v1169
        %v1770 = vpop.f32.mrf.mxu0
        %v1771 = vadd.f32 %v1546, %v1770
        %v1772 = vpop.f32.mrf.mxu0
        %1773 = vmatprep.mubr.f32.mxu0 %v875
        %1774 = vmatmul.mubr.f32.gmra.mxu0 %v1171
        %v1775 = vpop.f32.mrf.mxu0
        %v1776 = vadd.f32 %v1551, %v1775
        %v1777 = vpop.f32.mrf.mxu0
        %1778 = vmatprep.mubr.f32.mxu0 %v957
        %1779 = vmatmul.mubr.f32.gmra.mxu0 %v1174
        %v1780 = vpop.f32.mrf.mxu0
        %v1781 = vadd.f32 %v1556, %v1780
        %v1782 = vpop.f32.mrf.mxu0
        %1783 = vmatprep.mubr.f32.mxu0 %v878
        %1784 = vmatmul.mubr.f32.gmra.mxu0 %v1176
        %v1785 = vpop.f32.mrf.mxu0
        %v1786 = vadd.f32 %v1561, %v1785
        %v1787 = vpop.f32.mrf.mxu0
        %1788 = vmatprep.mubr.f32.mxu0 %v958
        %1789 = vmatmul.mubr.f32.gmra.mxu0 %v1179
        %v1790 = vpop.f32.mrf.mxu0
        %v1791 = vadd.f32 %v1566, %v1790
        %v1792 = vpop.f32.mrf.mxu0
        %1793 = vmatprep.mubr.f32.mxu0 %v881
        %1794 = vmatmul.mubr.f32.gmra.mxu0 %v1181
        %v1795 = vpop.f32.mrf.mxu0
        %v1796 = vadd.f32 %v1571, %v1795
        %v1797 = vpop.f32.mrf.mxu0
        %1798 = vmatprep.mubr.f32.mxu0 %v959
        %1799 = vmatmul.mubr.f32.gmra.mxu0 %v1184
        %v1800 = vpop.f32.mrf.mxu0
        %v1801 = vadd.f32 %v1576, %v1800
        %v1802 = vpop.f32.mrf.mxu0
        %1803 = vmatprep.mubr.f32.mxu0 %v884
        %1804 = vmatmul.mubr.f32.gmra.mxu0 %v1186
        %v1805 = vpop.f32.mrf.mxu0
        %v1806 = vadd.f32 %v1581, %v1805
        %v1807 = vpop.f32.mrf.mxu0
        %1808 = vmatprep.mubr.f32.mxu0 %v960
        %1809 = vmatmul.mubr.f32.gmra.mxu0 %v1189
        %v1810 = vpop.f32.mrf.mxu0
        %v1811 = vadd.f32 %v1586, %v1810
        %v1812 = vpop.f32.mrf.mxu0
        %1813 = vmatprep.mubr.f32.mxu0 %v887
        %1814 = vmatmul.mubr.f32.gmra.mxu0 %v1191
        %v1815 = vpop.f32.mrf.mxu0
        %v1816 = vadd.f32 %v1591, %v1815
        %v1817 = vpop.f32.mrf.mxu0
        %1818 = vmatprep.mubr.f32.mxu0 %v961
        %1819 = vmatmul.mubr.f32.gmra.mxu0 %v1194
        %v1820 = vpop.f32.mrf.mxu0
        %v1821 = vadd.f32 %v1596, %v1820
        %v1822 = vpop.f32.mrf.mxu0
        %1823 = vmatprep.mubr.f32.mxu0 %v890
        %1824 = vmatmul.mubr.f32.gmra.mxu0 %v1196
        %v1825 = vpop.f32.mrf.mxu0
        %v1826 = vadd.f32 %v1601, %v1825
        %v1827 = vpop.f32.mrf.mxu0
        %1828 = vmatprep.mubr.f32.mxu0 %v962
        %1829 = vmatmul.mubr.f32.gmra.mxu0 %v1199
        %v1830 = vpop.f32.mrf.mxu0
        %v1831 = vadd.f32 %v1606, %v1830
        %v1832 = vpop.f32.mrf.mxu0
        %1833 = vmatprep.mubr.f32.mxu0 %v893
        %1834 = vmatmul.mubr.f32.gmra.mxu0 %v1201
        %v1835 = vpop.f32.mrf.mxu0
        %v1836 = vadd.f32 %v1611, %v1835
        %v1837 = vpop.f32.mrf.mxu0
        %1838 = vmatprep.mubr.f32.mxu0 %v963
        %1839 = vmatmul.mubr.f32.gmra.mxu0 %v1204
        %v1840 = vpop.f32.mrf.mxu0
        %v1841 = vadd.f32 %v1616, %v1840
        %v1842 = vpop.f32.mrf.mxu0
        %1843 = vmatprep.mubr.f32.mxu0 %v896
        %1844 = vmatmul.mubr.f32.gmra.mxu0 %v1206
        %v1845 = vpop.f32.mrf.mxu0
        %v1846 = vadd.f32 %v1621, %v1845
        %v1847 = vpop.f32.mrf.mxu0
        %1848 = vdwg.mxu0
        %1849 = vmatprep.subr.mxu0 0.0
        %1850 = vmatpush1.msra.mxu0 %v1334
        %1851 = vmatprep.subr.mxu0 0.0
        %1852 = vmatpush1.msra.mxu0 %v1333
        %1853 = vmatprep.subr.mxu0 0.0
        %1854 = vmatpush1.msra.mxu0 %v1332
        %1855 = vmatprep.subr.mxu0 0.0
        %1856 = vmatpush1.msra.mxu0 %v1331
        %1857 = vmatprep.subr.mxu0 0.0
        %1858 = vmatpush1.msra.mxu0 %v1330
        %1859 = vmatprep.subr.mxu0 0.0
        %1860 = vmatpush1.msra.mxu0 %v1329
        %1861 = vmatprep.subr.mxu0 0.0
        %1862 = vmatpush1.msra.mxu0 %v1328
        %1863 = vmatprep.subr.mxu0 0.0
        %1864 = vmatpush1.msra.mxu0 %v1327
        %1865 = vmatprep.subr.mxu0 0.0
        %1866 = vmatpush1.msra.mxu0 %v1326
        %1867 = vmatprep.subr.mxu0 0.0
        %1868 = vmatpush1.msra.mxu0 %v1325
        %1869 = vmatprep.subr.mxu0 0.0
        %1870 = vmatpush1.msra.mxu0 %v1324
        %1871 = vmatprep.subr.mxu0 0.0
        %1872 = vmatpush1.msra.mxu0 %v1323
        %1873 = vmatprep.subr.mxu0 0.0
        %1874 = vmatpush1.msra.mxu0 %v1322
        %1875 = vmatprep.subr.mxu0 0.0
        %1876 = vmatpush1.msra.mxu0 %v1321
        %1877 = vmatprep.subr.mxu0 0.0
        %1878 = vmatpush1.msra.mxu0 %v1320
        %1879 = vmatprep.subr.mxu0 0.0
        %1880 = vmatpush1.msra.mxu0 %v1319
        %1881 = vmatprep.subr.mxu0 0.0
        %1882 = vmatpush2.msra.mxu0 %v1350
        %1883 = vmatprep.subr.mxu0 0.0
        %1884 = vmatpush2.msra.mxu0 %v1349
        %1885 = vmatprep.subr.mxu0 0.0
        %1886 = vmatpush2.msra.mxu0 %v1348
        %1887 = vmatprep.subr.mxu0 0.0
        %1888 = vmatpush2.msra.mxu0 %v1347
        %1889 = vmatprep.subr.mxu0 0.0
        %1890 = vmatpush2.msra.mxu0 %v1346
        %1891 = vmatprep.subr.mxu0 0.0
        %1892 = vmatpush2.msra.mxu0 %v1345
        %1893 = vmatprep.subr.mxu0 0.0
        %1894 = vmatpush2.msra.mxu0 %v1344
        %1895 = vmatprep.subr.mxu0 0.0
        %1896 = vmatpush2.msra.mxu0 %v1343
        %1897 = vmatprep.subr.mxu0 0.0
        %1898 = vmatpush2.msra.mxu0 %v1342
        %1899 = vmatprep.subr.mxu0 0.0
        %1900 = vmatpush2.msra.mxu0 %v1341
        %1901 = vmatprep.subr.mxu0 0.0
        %1902 = vmatpush2.msra.mxu0 %v1340
        %1903 = vmatprep.subr.mxu0 0.0
        %1904 = vmatpush2.msra.mxu0 %v1339
        %1905 = vmatprep.subr.mxu0 0.0
        %1906 = vmatpush2.msra.mxu0 %v1338
        %1907 = vmatprep.subr.mxu0 0.0
        %1908 = vmatpush2.msra.mxu0 %v1337
        %1909 = vmatprep.subr.mxu0 0.0
        %1910 = vmatpush2.msra.mxu0 %v1336
        %1911 = vmatprep.subr.mxu0 0.0
        %1912 = vmatpush2.msra.mxu0 %v1335
        %1913 = vmatprep.mubr.f32.mxu0 %v1134
        %1914 = vmatmul.mubr.f32.gmra.mxu0 %v1021
        %v1915 = vpop.f32.mrf.mxu0
        %v1916 = vadd.f32 %v1691, %v1915
        %v1917 = vpop.f32.mrf.mxu0
        %1918 = vmatprep.mubr.f32.mxu0 %v1136
        %1919 = vmatmul.mubr.f32.gmra.mxu0 %v1023
        %v1920 = vpop.f32.mrf.mxu0
        %v1921 = vadd.f32 %v1696, %v1920
        %v1922 = vpop.f32.mrf.mxu0
        %1923 = vmatprep.mubr.f32.mxu0 %v1139
        %1924 = vmatmul.mubr.f32.gmra.mxu0 %v1026
        %v1925 = vpop.f32.mrf.mxu0
        %v1926 = vadd.f32 %v1701, %v1925
        %v1927 = vpop.f32.mrf.mxu0
        %1928 = vmatprep.mubr.f32.mxu0 %v1141
        %1929 = vmatmul.mubr.f32.gmra.mxu0 %v1028
        %v1930 = vpop.f32.mrf.mxu0
        %v1931 = vadd.f32 %v1706, %v1930
        %v1932 = vpop.f32.mrf.mxu0
        %1933 = vmatprep.mubr.f32.mxu0 %v1144
        %1934 = vmatmul.mubr.f32.gmra.mxu0 %v1031
        %v1935 = vpop.f32.mrf.mxu0
        %v1936 = vadd.f32 %v1711, %v1935
        %v1937 = vpop.f32.mrf.mxu0
        %1938 = vmatprep.mubr.f32.mxu0 %v1146
        %1939 = vmatmul.mubr.f32.gmra.mxu0 %v1033
        %v1940 = vpop.f32.mrf.mxu0
        %v1941 = vadd.f32 %v1716, %v1940
        %v1942 = vpop.f32.mrf.mxu0
        %1943 = vmatprep.mubr.f32.mxu0 %v1149
        %1944 = vmatmul.mubr.f32.gmra.mxu0 %v1036
        %v1945 = vpop.f32.mrf.mxu0
        %v1946 = vadd.f32 %v1721, %v1945
        %v1947 = vpop.f32.mrf.mxu0
        %1948 = vmatprep.mubr.f32.mxu0 %v1151
        %1949 = vmatmul.mubr.f32.gmra.mxu0 %v1038
        %v1950 = vpop.f32.mrf.mxu0
        %v1951 = vadd.f32 %v1726, %v1950
        %v1952 = vpop.f32.mrf.mxu0
        %1953 = vmatprep.mubr.f32.mxu0 %v1154
        %1954 = vmatmul.mubr.f32.gmra.mxu0 %v1041
        %v1955 = vpop.f32.mrf.mxu0
        %v1956 = vadd.f32 %v1731, %v1955
        %v1957 = vpop.f32.mrf.mxu0
        %1958 = vmatprep.mubr.f32.mxu0 %v1156
        %1959 = vmatmul.mubr.f32.gmra.mxu0 %v1043
        %v1960 = vpop.f32.mrf.mxu0
        %v1961 = vadd.f32 %v1736, %v1960
        %v1962 = vpop.f32.mrf.mxu0
        %1963 = vmatprep.mubr.f32.mxu0 %v1159
        %1964 = vmatmul.mubr.f32.gmra.mxu0 %v1046
        %v1965 = vpop.f32.mrf.mxu0
        %v1966 = vadd.f32 %v1741, %v1965
        %v1967 = vpop.f32.mrf.mxu0
        %1968 = vmatprep.mubr.f32.mxu0 %v1161
        %1969 = vmatmul.mubr.f32.gmra.mxu0 %v1048
        %v1970 = vpop.f32.mrf.mxu0
        %v1971 = vadd.f32 %v1746, %v1970
        %v1972 = vpop.f32.mrf.mxu0
        %1973 = vmatprep.mubr.f32.mxu0 %v1164
        %1974 = vmatmul.mubr.f32.gmra.mxu0 %v1051
        %v1975 = vpop.f32.mrf.mxu0
        %v1976 = vadd.f32 %v1751, %v1975
        %v1977 = vpop.f32.mrf.mxu0
        %1978 = vmatprep.mubr.f32.mxu0 %v1166
        %1979 = vmatmul.mubr.f32.gmra.mxu0 %v1053
        %v1980 = vpop.f32.mrf.mxu0
        %v1981 = vadd.f32 %v1756, %v1980
        %v1982 = vpop.f32.mrf.mxu0
        %1983 = vmatprep.mubr.f32.mxu0 %v1169
        %1984 = vmatmul.mubr.f32.gmra.mxu0 %v1056
        %v1985 = vpop.f32.mrf.mxu0
        %v1986 = vadd.f32 %v1761, %v1985
        %v1987 = vpop.f32.mrf.mxu0
        %1988 = vmatprep.mubr.f32.mxu0 %v1171
        %1989 = vmatmul.mubr.f32.gmra.mxu0 %v1058
        %v1990 = vpop.f32.mrf.mxu0
        %v1991 = vadd.f32 %v1766, %v1990
        %v1992 = vpop.f32.mrf.mxu0
        %1993 = vmatprep.mubr.f32.mxu0 %v1174
        %1994 = vmatmul.mubr.f32.gmra.mxu0 %v1061
        %v1995 = vpop.f32.mrf.mxu0
        %v1996 = vadd.f32 %v1771, %v1995
        %v1997 = vpop.f32.mrf.mxu0
        %1998 = vmatprep.mubr.f32.mxu0 %v1176
        %1999 = vmatmul.mubr.f32.gmra.mxu0 %v1063
        %v2000 = vpop.f32.mrf.mxu0
        %v2001 = vadd.f32 %v1776, %v2000
        %v2002 = vpop.f32.mrf.mxu0
        %2003 = vmatprep.mubr.f32.mxu0 %v1179
        %2004 = vmatmul.mubr.f32.gmra.mxu0 %v1066
        %v2005 = vpop.f32.mrf.mxu0
        %v2006 = vadd.f32 %v1781, %v2005
        %v2007 = vpop.f32.mrf.mxu0
        %2008 = vmatprep.mubr.f32.mxu0 %v1181
        %2009 = vmatmul.mubr.f32.gmra.mxu0 %v1068
        %v2010 = vpop.f32.mrf.mxu0
        %v2011 = vadd.f32 %v1786, %v2010
        %v2012 = vpop.f32.mrf.mxu0
        %2013 = vmatprep.mubr.f32.mxu0 %v1184
        %2014 = vmatmul.mubr.f32.gmra.mxu0 %v1071
        %v2015 = vpop.f32.mrf.mxu0
        %v2016 = vadd.f32 %v1791, %v2015
        %v2017 = vpop.f32.mrf.mxu0
        %2018 = vmatprep.mubr.f32.mxu0 %v1186
        %2019 = vmatmul.mubr.f32.gmra.mxu0 %v1073
        %v2020 = vpop.f32.mrf.mxu0
        %v2021 = vadd.f32 %v1796, %v2020
        %v2022 = vpop.f32.mrf.mxu0
        %2023 = vmatprep.mubr.f32.mxu0 %v1189
        %2024 = vmatmul.mubr.f32.gmra.mxu0 %v1076
        %v2025 = vpop.f32.mrf.mxu0
        %v2026 = vadd.f32 %v1801, %v2025
        %v2027 = vpop.f32.mrf.mxu0
        %2028 = vmatprep.mubr.f32.mxu0 %v1191
        %2029 = vmatmul.mubr.f32.gmra.mxu0 %v1078
        %v2030 = vpop.f32.mrf.mxu0
        %v2031 = vadd.f32 %v1806, %v2030
        %v2032 = vpop.f32.mrf.mxu0
        %2033 = vmatprep.mubr.f32.mxu0 %v1194
        %2034 = vmatmul.mubr.f32.gmra.mxu0 %v1081
        %v2035 = vpop.f32.mrf.mxu0
        %v2036 = vadd.f32 %v1811, %v2035
        %v2037 = vpop.f32.mrf.mxu0
        %2038 = vmatprep.mubr.f32.mxu0 %v1196
        %2039 = vmatmul.mubr.f32.gmra.mxu0 %v1083
        %v2040 = vpop.f32.mrf.mxu0
        %v2041 = vadd.f32 %v1816, %v2040
        %v2042 = vpop.f32.mrf.mxu0
        %2043 = vmatprep.mubr.f32.mxu0 %v1199
        %2044 = vmatmul.mubr.f32.gmra.mxu0 %v1086
        %v2045 = vpop.f32.mrf.mxu0
        %v2046 = vadd.f32 %v1821, %v2045
        %v2047 = vpop.f32.mrf.mxu0
        %2048 = vmatprep.mubr.f32.mxu0 %v1201
        %2049 = vmatmul.mubr.f32.gmra.mxu0 %v1088
        %v2050 = vpop.f32.mrf.mxu0
        %v2051 = vadd.f32 %v1826, %v2050
        %v2052 = vpop.f32.mrf.mxu0
        %2053 = vmatprep.mubr.f32.mxu0 %v1204
        %2054 = vmatmul.mubr.f32.gmra.mxu0 %v1091
        %v2055 = vpop.f32.mrf.mxu0
        %v2056 = vadd.f32 %v1831, %v2055
        %v2057 = vpop.f32.mrf.mxu0
        %2058 = vmatprep.mubr.f32.mxu0 %v1206
        %2059 = vmatmul.mubr.f32.gmra.mxu0 %v1093
        %v2060 = vpop.f32.mrf.mxu0
        %v2061 = vadd.f32 %v1836, %v2060
        %v2062 = vpop.f32.mrf.mxu0
        %2063 = vmatprep.mubr.f32.mxu0 %v1250
        %2064 = vmatmul.mubr.f32.gmra.mxu0 %v1243
        %v2065 = vpop.f32.mrf.mxu0
        %v2066 = vadd.f32 %v1841, %v2065
        %v2067 = vpop.f32.mrf.mxu0
        %2068 = vmatprep.mubr.f32.mxu0 %v1252
        %2069 = vmatmul.mubr.f32.gmra.mxu0 %v1245
        %v2070 = vpop.f32.mrf.mxu0
        %v2071 = vadd.f32 %v1846, %v2070
        %v2072 = vpop.f32.mrf.mxu0
        %2073 = vdwg.mxu0
        %2074 = vmatprep.subr.mxu0 0.0
        %2075 = vmatpush1.msra.mxu0 %v1366
        %2076 = vmatprep.subr.mxu0 0.0
        %2077 = vmatpush1.msra.mxu0 %v1365
        %2078 = vmatprep.subr.mxu0 0.0
        %2079 = vmatpush1.msra.mxu0 %v1364
        %2080 = vmatprep.subr.mxu0 0.0
        %2081 = vmatpush1.msra.mxu0 %v1363
        %2082 = vmatprep.subr.mxu0 0.0
        %2083 = vmatpush1.msra.mxu0 %v1362
        %2084 = vmatprep.subr.mxu0 0.0
        %2085 = vmatpush1.msra.mxu0 %v1361
        %2086 = vmatprep.subr.mxu0 0.0
        %2087 = vmatpush1.msra.mxu0 %v1360
        %2088 = vmatprep.subr.mxu0 0.0
        %2089 = vmatpush1.msra.mxu0 %v1359
        %2090 = vmatprep.subr.mxu0 0.0
        %2091 = vmatpush1.msra.mxu0 %v1358
        %2092 = vmatprep.subr.mxu0 0.0
        %2093 = vmatpush1.msra.mxu0 %v1357
        %2094 = vmatprep.subr.mxu0 0.0
        %2095 = vmatpush1.msra.mxu0 %v1356
        %2096 = vmatprep.subr.mxu0 0.0
        %2097 = vmatpush1.msra.mxu0 %v1355
        %2098 = vmatprep.subr.mxu0 0.0
        %2099 = vmatpush1.msra.mxu0 %v1354
        %2100 = vmatprep.subr.mxu0 0.0
        %2101 = vmatpush1.msra.mxu0 %v1353
        %2102 = vmatprep.subr.mxu0 0.0
        %2103 = vmatpush1.msra.mxu0 %v1352
        %2104 = vmatprep.subr.mxu0 0.0
        %2105 = vmatpush1.msra.mxu0 %v1351
        %2106 = vmatprep.subr.mxu0 0.0
        %2107 = vmatpush2.msra.mxu0 %v1382
        %2108 = vmatprep.subr.mxu0 0.0
        %2109 = vmatpush2.msra.mxu0 %v1381
        %2110 = vmatprep.subr.mxu0 0.0
        %2111 = vmatpush2.msra.mxu0 %v1380
        %2112 = vmatprep.subr.mxu0 0.0
        %2113 = vmatpush2.msra.mxu0 %v1379
        %2114 = vmatprep.subr.mxu0 0.0
        %2115 = vmatpush2.msra.mxu0 %v1378
        %2116 = vmatprep.subr.mxu0 0.0
        %2117 = vmatpush2.msra.mxu0 %v1377
        %2118 = vmatprep.subr.mxu0 0.0
        %2119 = vmatpush2.msra.mxu0 %v1376
        %2120 = vmatprep.subr.mxu0 0.0
        %2121 = vmatpush2.msra.mxu0 %v1375
        %2122 = vmatprep.subr.mxu0 0.0
        %2123 = vmatpush2.msra.mxu0 %v1374
        %2124 = vmatprep.subr.mxu0 0.0
        %2125 = vmatpush2.msra.mxu0 %v1373
        %2126 = vmatprep.subr.mxu0 0.0
        %2127 = vmatpush2.msra.mxu0 %v1372
        %2128 = vmatprep.subr.mxu0 0.0
        %2129 = vmatpush2.msra.mxu0 %v1371
        %2130 = vmatprep.subr.mxu0 0.0
        %2131 = vmatpush2.msra.mxu0 %v1370
        %2132 = vmatprep.subr.mxu0 0.0
        %2133 = vmatpush2.msra.mxu0 %v1369
        %2134 = vmatprep.subr.mxu0 0.0
        %2135 = vmatpush2.msra.mxu0 %v1368
        %2136 = vmatprep.subr.mxu0 0.0
        %2137 = vmatpush2.msra.mxu0 %v1367
        %2138 = vmatprep.mubr.f32.mxu0 %v1026
        %2139 = vmatmul.mubr.f32.gmra.mxu0 %v949
        %v2140 = vpop.f32.mrf.mxu0
        %v2141 = vadd.f32 %v1916, %v2140
        %v2142 = vpop.f32.mrf.mxu0
        %2143 = vmatprep.mubr.f32.mxu0 %v1028
        %2144 = vmatmul.mubr.f32.gmra.mxu0 %v854
        %v2145 = vpop.f32.mrf.mxu0
        %v2146 = vadd.f32 %v1921, %v2145
        %v2147 = vpop.f32.mrf.mxu0
        %2148 = vmatprep.mubr.f32.mxu0 %v1031
        %2149 = vmatmul.mubr.f32.gmra.mxu0 %v950
        %v2150 = vpop.f32.mrf.mxu0
        %v2151 = vadd.f32 %v1926, %v2150
        %v2152 = vpop.f32.mrf.mxu0
        %2153 = vmatprep.mubr.f32.mxu0 %v1033
        %2154 = vmatmul.mubr.f32.gmra.mxu0 %v857
        %v2155 = vpop.f32.mrf.mxu0
        %v2156 = vadd.f32 %v1931, %v2155
        %v2157 = vpop.f32.mrf.mxu0
        %2158 = vmatprep.mubr.f32.mxu0 %v1036
        %2159 = vmatmul.mubr.f32.gmra.mxu0 %v951
        %v2160 = vpop.f32.mrf.mxu0
        %v2161 = vadd.f32 %v1936, %v2160
        %v2162 = vpop.f32.mrf.mxu0
        %2163 = vmatprep.mubr.f32.mxu0 %v1038
        %2164 = vmatmul.mubr.f32.gmra.mxu0 %v860
        %v2165 = vpop.f32.mrf.mxu0
        %v2166 = vadd.f32 %v1941, %v2165
        %v2167 = vpop.f32.mrf.mxu0
        %2168 = vmatprep.mubr.f32.mxu0 %v1041
        %2169 = vmatmul.mubr.f32.gmra.mxu0 %v952
        %v2170 = vpop.f32.mrf.mxu0
        %v2171 = vadd.f32 %v1946, %v2170
        %v2172 = vpop.f32.mrf.mxu0
        %2173 = vmatprep.mubr.f32.mxu0 %v1043
        %2174 = vmatmul.mubr.f32.gmra.mxu0 %v863
        %v2175 = vpop.f32.mrf.mxu0
        %v2176 = vadd.f32 %v1951, %v2175
        %v2177 = vpop.f32.mrf.mxu0
        %2178 = vmatprep.mubr.f32.mxu0 %v1046
        %2179 = vmatmul.mubr.f32.gmra.mxu0 %v953
        %v2180 = vpop.f32.mrf.mxu0
        %v2181 = vadd.f32 %v1956, %v2180
        %v2182 = vpop.f32.mrf.mxu0
        %2183 = vmatprep.mubr.f32.mxu0 %v1048
        %2184 = vmatmul.mubr.f32.gmra.mxu0 %v866
        %v2185 = vpop.f32.mrf.mxu0
        %v2186 = vadd.f32 %v1961, %v2185
        %v2187 = vpop.f32.mrf.mxu0
        %2188 = vmatprep.mubr.f32.mxu0 %v1051
        %2189 = vmatmul.mubr.f32.gmra.mxu0 %v954
        %v2190 = vpop.f32.mrf.mxu0
        %v2191 = vadd.f32 %v1966, %v2190
        %v2192 = vpop.f32.mrf.mxu0
        %2193 = vmatprep.mubr.f32.mxu0 %v1053
        %2194 = vmatmul.mubr.f32.gmra.mxu0 %v869
        %v2195 = vpop.f32.mrf.mxu0
        %v2196 = vadd.f32 %v1971, %v2195
        %v2197 = vpop.f32.mrf.mxu0
        %2198 = vmatprep.mubr.f32.mxu0 %v1056
        %2199 = vmatmul.mubr.f32.gmra.mxu0 %v955
        %v2200 = vpop.f32.mrf.mxu0
        %v2201 = vadd.f32 %v1976, %v2200
        %v2202 = vpop.f32.mrf.mxu0
        %2203 = vmatprep.mubr.f32.mxu0 %v1058
        %2204 = vmatmul.mubr.f32.gmra.mxu0 %v872
        %v2205 = vpop.f32.mrf.mxu0
        %v2206 = vadd.f32 %v1981, %v2205
        %v2207 = vpop.f32.mrf.mxu0
        %2208 = vmatprep.mubr.f32.mxu0 %v1061
        %2209 = vmatmul.mubr.f32.gmra.mxu0 %v956
        %v2210 = vpop.f32.mrf.mxu0
        %v2211 = vadd.f32 %v1986, %v2210
        %v2212 = vpop.f32.mrf.mxu0
        %2213 = vmatprep.mubr.f32.mxu0 %v1063
        %2214 = vmatmul.mubr.f32.gmra.mxu0 %v875
        %v2215 = vpop.f32.mrf.mxu0
        %v2216 = vadd.f32 %v1991, %v2215
        %v2217 = vpop.f32.mrf.mxu0
        %2218 = vmatprep.mubr.f32.mxu0 %v1066
        %2219 = vmatmul.mubr.f32.gmra.mxu0 %v957
        %v2220 = vpop.f32.mrf.mxu0
        %v2221 = vadd.f32 %v1996, %v2220
        %v2222 = vpop.f32.mrf.mxu0
        %2223 = vmatprep.mubr.f32.mxu0 %v1068
        %2224 = vmatmul.mubr.f32.gmra.mxu0 %v878
        %v2225 = vpop.f32.mrf.mxu0
        %v2226 = vadd.f32 %v2001, %v2225
        %v2227 = vpop.f32.mrf.mxu0
        %2228 = vmatprep.mubr.f32.mxu0 %v1071
        %2229 = vmatmul.mubr.f32.gmra.mxu0 %v958
        %v2230 = vpop.f32.mrf.mxu0
        %v2231 = vadd.f32 %v2006, %v2230
        %v2232 = vpop.f32.mrf.mxu0
        %2233 = vmatprep.mubr.f32.mxu0 %v1073
        %2234 = vmatmul.mubr.f32.gmra.mxu0 %v881
        %v2235 = vpop.f32.mrf.mxu0
        %v2236 = vadd.f32 %v2011, %v2235
        %v2237 = vpop.f32.mrf.mxu0
        %2238 = vmatprep.mubr.f32.mxu0 %v1076
        %2239 = vmatmul.mubr.f32.gmra.mxu0 %v959
        %v2240 = vpop.f32.mrf.mxu0
        %v2241 = vadd.f32 %v2016, %v2240
        %v2242 = vpop.f32.mrf.mxu0
        %2243 = vmatprep.mubr.f32.mxu0 %v1078
        %2244 = vmatmul.mubr.f32.gmra.mxu0 %v884
        %v2245 = vpop.f32.mrf.mxu0
        %v2246 = vadd.f32 %v2021, %v2245
        %v2247 = vpop.f32.mrf.mxu0
        %2248 = vmatprep.mubr.f32.mxu0 %v1081
        %2249 = vmatmul.mubr.f32.gmra.mxu0 %v960
        %v2250 = vpop.f32.mrf.mxu0
        %v2251 = vadd.f32 %v2026, %v2250
        %v2252 = vpop.f32.mrf.mxu0
        %2253 = vmatprep.mubr.f32.mxu0 %v1083
        %2254 = vmatmul.mubr.f32.gmra.mxu0 %v887
        %v2255 = vpop.f32.mrf.mxu0
        %v2256 = vadd.f32 %v2031, %v2255
        %v2257 = vpop.f32.mrf.mxu0
        %2258 = vmatprep.mubr.f32.mxu0 %v1086
        %2259 = vmatmul.mubr.f32.gmra.mxu0 %v961
        %v2260 = vpop.f32.mrf.mxu0
        %v2261 = vadd.f32 %v2036, %v2260
        %v2262 = vpop.f32.mrf.mxu0
        %2263 = vmatprep.mubr.f32.mxu0 %v1088
        %2264 = vmatmul.mubr.f32.gmra.mxu0 %v890
        %v2265 = vpop.f32.mrf.mxu0
        %v2266 = vadd.f32 %v2041, %v2265
        %v2267 = vpop.f32.mrf.mxu0
        %2268 = vmatprep.mubr.f32.mxu0 %v1091
        %2269 = vmatmul.mubr.f32.gmra.mxu0 %v962
        %v2270 = vpop.f32.mrf.mxu0
        %v2271 = vadd.f32 %v2046, %v2270
        %v2272 = vpop.f32.mrf.mxu0
        %2273 = vmatprep.mubr.f32.mxu0 %v1093
        %2274 = vmatmul.mubr.f32.gmra.mxu0 %v893
        %v2275 = vpop.f32.mrf.mxu0
        %v2276 = vadd.f32 %v2051, %v2275
        %v2277 = vpop.f32.mrf.mxu0
        %2278 = vmatprep.mubr.f32.mxu0 %v1243
        %2279 = vmatmul.mubr.f32.gmra.mxu0 %v963
        %v2280 = vpop.f32.mrf.mxu0
        %v2281 = vadd.f32 %v2056, %v2280
        %v2282 = vpop.f32.mrf.mxu0
        %2283 = vmatprep.mubr.f32.mxu0 %v1245
        %2284 = vmatmul.mubr.f32.gmra.mxu0 %v896
        %v2285 = vpop.f32.mrf.mxu0
        %v2286 = vadd.f32 %v2061, %v2285
        %v2287 = vpop.f32.mrf.mxu0
        %2288 = vmatprep.mubr.f32.mxu0 %v1016
        %2289 = vmatmul.mubr.f32.gmra.mxu0 %v947
        %v2290 = vpop.f32.mrf.mxu0
        %v2291 = vadd.f32 %v2066, %v2290
        %v2292 = vpop.f32.mrf.mxu0
        %2293 = vmatprep.mubr.f32.mxu0 %v1018
        %2294 = vmatmul.mubr.f32.gmra.mxu0 %v848
        %v2295 = vpop.f32.mrf.mxu0
        %v2296 = vadd.f32 %v2071, %v2295
        %v2297 = vpop.f32.mrf.mxu0
        %2298 = vdwg.mxu0
        %2299 = vmatprep.subr.mxu0 0.0
        %2300 = vmatpush1.msra.mxu0 %v1398
        %2301 = vmatprep.subr.mxu0 0.0
        %2302 = vmatpush1.msra.mxu0 %v1397
        %2303 = vmatprep.subr.mxu0 0.0
        %2304 = vmatpush1.msra.mxu0 %v1396
        %2305 = vmatprep.subr.mxu0 0.0
        %2306 = vmatpush1.msra.mxu0 %v1395
        %2307 = vmatprep.subr.mxu0 0.0
        %2308 = vmatpush1.msra.mxu0 %v1394
        %2309 = vmatprep.subr.mxu0 0.0
        %2310 = vmatpush1.msra.mxu0 %v1393
        %2311 = vmatprep.subr.mxu0 0.0
        %2312 = vmatpush1.msra.mxu0 %v1392
        %2313 = vmatprep.subr.mxu0 0.0
        %2314 = vmatpush1.msra.mxu0 %v1391
        %2315 = vmatprep.subr.mxu0 0.0
        %2316 = vmatpush1.msra.mxu0 %v1390
        %2317 = vmatprep.subr.mxu0 0.0
        %2318 = vmatpush1.msra.mxu0 %v1389
        %2319 = vmatprep.subr.mxu0 0.0
        %2320 = vmatpush1.msra.mxu0 %v1388
        %2321 = vmatprep.subr.mxu0 0.0
        %2322 = vmatpush1.msra.mxu0 %v1387
        %2323 = vmatprep.subr.mxu0 0.0
        %2324 = vmatpush1.msra.mxu0 %v1386
        %2325 = vmatprep.subr.mxu0 0.0
        %2326 = vmatpush1.msra.mxu0 %v1385
        %2327 = vmatprep.subr.mxu0 0.0
        %2328 = vmatpush1.msra.mxu0 %v1384
        %2329 = vmatprep.subr.mxu0 0.0
        %2330 = vmatpush1.msra.mxu0 %v1383
        %2331 = vmatprep.subr.mxu0 0.0
        %2332 = vmatpush2.msra.mxu0 0.0
        %2333 = vmatprep.subr.mxu0 0.0
        %2334 = vmatpush2.msra.mxu0 0.0
        %2335 = vmatprep.subr.mxu0 0.0
        %2336 = vmatpush2.msra.mxu0 0.0
        %2337 = vmatprep.subr.mxu0 0.0
        %2338 = vmatpush2.msra.mxu0 0.0
        %2339 = vmatprep.subr.mxu0 0.0
        %2340 = vmatpush2.msra.mxu0 0.0
        %2341 = vmatprep.subr.mxu0 0.0
        %2342 = vmatpush2.msra.mxu0 0.0
        %2343 = vmatprep.subr.mxu0 0.0
        %2344 = vmatpush2.msra.mxu0 0.0
        %2345 = vmatprep.subr.mxu0 0.0
        %2346 = vmatpush2.msra.mxu0 0.0
        %2347 = vmatprep.subr.mxu0 0.0
        %2348 = vmatpush2.msra.mxu0 0.0
        %2349 = vmatprep.subr.mxu0 0.0
        %2350 = vmatpush2.msra.mxu0 0.0
        %2351 = vmatprep.subr.mxu0 0.0
        %2352 = vmatpush2.msra.mxu0 0.0
        %2353 = vmatprep.subr.mxu0 0.0
        %2354 = vmatpush2.msra.mxu0 0.0
        %2355 = vmatprep.subr.mxu0 0.0
        %2356 = vmatpush2.msra.mxu0 0.0
        %2357 = vmatprep.subr.mxu0 0.0
        %2358 = vmatpush2.msra.mxu0 0.0
        %2359 = vmatprep.subr.mxu0 0.0
        %2360 = vmatpush2.msra.mxu0 0.0
        %2361 = vmatprep.subr.mxu0 0.0
        %2362 = vmatpush2.msra.mxu0 0.0
        %2363 = vmatprep.mubr.f32.mxu0 0.0
        %2364 = vmatmul.mubr.f32.gmra.mxu0 %v1139
        %v2365 = vpop.f32.mrf.mxu0
        %v2366 = vadd.f32 %v2141, %v2365
        %v2367 = vpop.f32.mrf.mxu0
        %2368 = vmatprep.mubr.f32.mxu0 0.0
        %2369 = vmatmul.mubr.f32.gmra.mxu0 %v1141
        %v2370 = vpop.f32.mrf.mxu0
        %v2371 = vadd.f32 %v2146, %v2370
        %v2372 = vpop.f32.mrf.mxu0
        %2373 = vmatprep.mubr.f32.mxu0 0.0
        %2374 = vmatmul.mubr.f32.gmra.mxu0 %v1144
        %v2375 = vpop.f32.mrf.mxu0
        %v2376 = vadd.f32 %v2151, %v2375
        %v2377 = vpop.f32.mrf.mxu0
        %2378 = vmatprep.mubr.f32.mxu0 0.0
        %2379 = vmatmul.mubr.f32.gmra.mxu0 %v1146
        %v2380 = vpop.f32.mrf.mxu0
        %v2381 = vadd.f32 %v2156, %v2380
        %v2382 = vpop.f32.mrf.mxu0
        %2383 = vmatprep.mubr.f32.mxu0 0.0
        %2384 = vmatmul.mubr.f32.gmra.mxu0 %v1149
        %v2385 = vpop.f32.mrf.mxu0
        %v2386 = vadd.f32 %v2161, %v2385
        %v2387 = vpop.f32.mrf.mxu0
        %2388 = vmatprep.mubr.f32.mxu0 0.0
        %2389 = vmatmul.mubr.f32.gmra.mxu0 %v1151
        %v2390 = vpop.f32.mrf.mxu0
        %v2391 = vadd.f32 %v2166, %v2390
        %v2392 = vpop.f32.mrf.mxu0
        %2393 = vmatprep.mubr.f32.mxu0 0.0
        %2394 = vmatmul.mubr.f32.gmra.mxu0 %v1154
        %v2395 = vpop.f32.mrf.mxu0
        %v2396 = vadd.f32 %v2171, %v2395
        %v2397 = vpop.f32.mrf.mxu0
        %2398 = vmatprep.mubr.f32.mxu0 0.0
        %2399 = vmatmul.mubr.f32.gmra.mxu0 %v1156
        %v2400 = vpop.f32.mrf.mxu0
        %v2401 = vadd.f32 %v2176, %v2400
        %v2402 = vpop.f32.mrf.mxu0
        %2403 = vmatprep.mubr.f32.mxu0 0.0
        %2404 = vmatmul.mubr.f32.gmra.mxu0 %v1159
        %v2405 = vpop.f32.mrf.mxu0
        %v2406 = vadd.f32 %v2181, %v2405
        %v2407 = vpop.f32.mrf.mxu0
        %2408 = vmatprep.mubr.f32.mxu0 0.0
        %2409 = vmatmul.mubr.f32.gmra.mxu0 %v1161
        %v2410 = vpop.f32.mrf.mxu0
        %v2411 = vadd.f32 %v2186, %v2410
        %v2412 = vpop.f32.mrf.mxu0
        %2413 = vmatprep.mubr.f32.mxu0 0.0
        %2414 = vmatmul.mubr.f32.gmra.mxu0 %v1164
        %v2415 = vpop.f32.mrf.mxu0
        %v2416 = vadd.f32 %v2191, %v2415
        %v2417 = vpop.f32.mrf.mxu0
        %2418 = vmatprep.mubr.f32.mxu0 0.0
        %2419 = vmatmul.mubr.f32.gmra.mxu0 %v1166
        %v2420 = vpop.f32.mrf.mxu0
        %v2421 = vadd.f32 %v2196, %v2420
        %v2422 = vpop.f32.mrf.mxu0
        %2423 = vmatprep.mubr.f32.mxu0 0.0
        %2424 = vmatmul.mubr.f32.gmra.mxu0 %v1169
        %v2425 = vpop.f32.mrf.mxu0
        %v2426 = vadd.f32 %v2201, %v2425
        %v2427 = vpop.f32.mrf.mxu0
        %2428 = vmatprep.mubr.f32.mxu0 0.0
        %2429 = vmatmul.mubr.f32.gmra.mxu0 %v1171
        %v2430 = vpop.f32.mrf.mxu0
        %v2431 = vadd.f32 %v2206, %v2430
        %v2432 = vpop.f32.mrf.mxu0
        %2433 = vmatprep.mubr.f32.mxu0 0.0
        %2434 = vmatmul.mubr.f32.gmra.mxu0 %v1174
        %v2435 = vpop.f32.mrf.mxu0
        %v2436 = vadd.f32 %v2211, %v2435
        %v2437 = vpop.f32.mrf.mxu0
        %2438 = vmatprep.mubr.f32.mxu0 0.0
        %2439 = vmatmul.mubr.f32.gmra.mxu0 %v1176
        %v2440 = vpop.f32.mrf.mxu0
        %v2441 = vadd.f32 %v2216, %v2440
        %v2442 = vpop.f32.mrf.mxu0
        %2443 = vmatprep.mubr.f32.mxu0 0.0
        %2444 = vmatmul.mubr.f32.gmra.mxu0 %v1179
        %v2445 = vpop.f32.mrf.mxu0
        %v2446 = vadd.f32 %v2221, %v2445
        %v2447 = vpop.f32.mrf.mxu0
        %2448 = vmatprep.mubr.f32.mxu0 0.0
        %2449 = vmatmul.mubr.f32.gmra.mxu0 %v1181
        %v2450 = vpop.f32.mrf.mxu0
        %v2451 = vadd.f32 %v2226, %v2450
        %v2452 = vpop.f32.mrf.mxu0
        %2453 = vmatprep.mubr.f32.mxu0 0.0
        %2454 = vmatmul.mubr.f32.gmra.mxu0 %v1184
        %v2455 = vpop.f32.mrf.mxu0
        %v2456 = vadd.f32 %v2231, %v2455
        %v2457 = vpop.f32.mrf.mxu0
        %2458 = vmatprep.mubr.f32.mxu0 0.0
        %2459 = vmatmul.mubr.f32.gmra.mxu0 %v1186
        %v2460 = vpop.f32.mrf.mxu0
        %v2461 = vadd.f32 %v2236, %v2460
        %v2462 = vpop.f32.mrf.mxu0
        %2463 = vmatprep.mubr.f32.mxu0 0.0
        %2464 = vmatmul.mubr.f32.gmra.mxu0 %v1189
        %v2465 = vpop.f32.mrf.mxu0
        %v2466 = vadd.f32 %v2241, %v2465
        %v2467 = vpop.f32.mrf.mxu0
        %2468 = vmatprep.mubr.f32.mxu0 0.0
        %2469 = vmatmul.mubr.f32.gmra.mxu0 %v1191
        %v2470 = vpop.f32.mrf.mxu0
        %v2471 = vadd.f32 %v2246, %v2470
        %v2472 = vpop.f32.mrf.mxu0
        %2473 = vmatprep.mubr.f32.mxu0 0.0
        %2474 = vmatmul.mubr.f32.gmra.mxu0 %v1194
        %v2475 = vpop.f32.mrf.mxu0
        %v2476 = vadd.f32 %v2251, %v2475
        %v2477 = vpop.f32.mrf.mxu0
        %2478 = vmatprep.mubr.f32.mxu0 0.0
        %2479 = vmatmul.mubr.f32.gmra.mxu0 %v1196
        %v2480 = vpop.f32.mrf.mxu0
        %v2481 = vadd.f32 %v2256, %v2480
        %v2482 = vpop.f32.mrf.mxu0
        %2483 = vmatprep.mubr.f32.mxu0 0.0
        %2484 = vmatmul.mubr.f32.gmra.mxu0 %v1199
        %v2485 = vpop.f32.mrf.mxu0
        %v2486 = vadd.f32 %v2261, %v2485
        %v2487 = vpop.f32.mrf.mxu0
        %2488 = vmatprep.mubr.f32.mxu0 0.0
        %2489 = vmatmul.mubr.f32.gmra.mxu0 %v1201
        %v2490 = vpop.f32.mrf.mxu0
        %v2491 = vadd.f32 %v2266, %v2490
        %v2492 = vpop.f32.mrf.mxu0
        %2493 = vmatprep.mubr.f32.mxu0 0.0
        %2494 = vmatmul.mubr.f32.gmra.mxu0 %v1204
        %v2495 = vpop.f32.mrf.mxu0
        %v2496 = vadd.f32 %v2271, %v2495
        %v2497 = vpop.f32.mrf.mxu0
        %2498 = vmatprep.mubr.f32.mxu0 0.0
        %2499 = vmatmul.mubr.f32.gmra.mxu0 %v1206
        %v2500 = vpop.f32.mrf.mxu0
        %v2501 = vadd.f32 %v2276, %v2500
        %v2502 = vpop.f32.mrf.mxu0
        %2503 = vmatprep.mubr.f32.mxu0 0.0
        %2504 = vmatmul.mubr.f32.gmra.mxu0 %v1250
        %v2505 = vpop.f32.mrf.mxu0
        %v2506 = vadd.f32 %v2281, %v2505
        %v2507 = vpop.f32.mrf.mxu0
        %2508 = vmatprep.mubr.f32.mxu0 0.0
        %2509 = vmatmul.mubr.f32.gmra.mxu0 %v1252
        %v2510 = vpop.f32.mrf.mxu0
        %v2511 = vadd.f32 %v2286, %v2510
        %v2512 = vpop.f32.mrf.mxu0
        %2513 = vmatprep.mubr.f32.mxu0 0.0
        %2514 = vmatmul.mubr.f32.gmra.mxu0 %v1129
        %v2515 = vpop.f32.mrf.mxu0
        %v2516 = vadd.f32 %v2291, %v2515
        %v2517 = vpop.f32.mrf.mxu0
        %2518 = vmatprep.mubr.f32.mxu0 0.0
        %2519 = vmatmul.mubr.f32.gmra.mxu0 %v1131
        %v2520 = vpop.f32.mrf.mxu0
        %v2521 = vadd.f32 %v2296, %v2520
        %v2522 = vpop.f32.mrf.mxu0
        %2523 = vdwg.mxu0
        %v2524 = vadd.f32 %v671, %v2366
        %v2525 = vadd.f32 %v672, %v2371
        %v2526 = vadd.f32 %v673, %v2376
        %v2527 = vadd.f32 %v674, %v2381
        %v2528 = vadd.f32 %v675, %v2386
        %v2529 = vadd.f32 %v676, %v2391
        %v2530 = vadd.f32 %v677, %v2396
        %v2531 = vadd.f32 %v678, %v2401
        %v2532 = vadd.f32 %v679, %v2406
        %v2533 = vadd.f32 %v680, %v2411
        %v2534 = vadd.f32 %v681, %v2416
        %v2535 = vadd.f32 %v682, %v2421
        %v2536 = vadd.f32 %v683, %v2426
        %v2537 = vadd.f32 %v684, %v2431
        %v2538 = vadd.f32 %v685, %v2436
        %v2539 = vadd.f32 %v686, %v2441
        %v2540 = vadd.f32 %v687, %v2446
        %v2541 = vadd.f32 %v688, %v2451
        %v2542 = vadd.f32 %v689, %v2456
        %v2543 = vadd.f32 %v690, %v2461
        %v2544 = vadd.f32 %v691, %v2466
        %v2545 = vadd.f32 %v692, %v2471
        %v2546 = vadd.f32 %v693, %v2476
        %v2547 = vadd.f32 %v694, %v2481
        %v2548 = vadd.f32 %v695, %v2486
        %v2549 = vadd.f32 %v696, %v2491
        %v2550 = vadd.f32 %v697, %v2496
        %v2551 = vadd.f32 %v698, %v2501
        %v2552 = vadd.f32 %v699, %v2506
        %v2553 = vadd.f32 %v700, %v2511
        %v2554 = vadd.f32 %v701, %v2516
        %v2555 = vadd.f32 %v702, %v2521
        %2556 = vst [vmem:[%s274] sm:$0xff] %v2524
        %2557 = vst [vmem:[%s274 + $0x8] sm:$0xff] %v2525
        %2558 = vst [vmem:[%s274 + $0x10] sm:$0xff] %v2526
        %2559 = vst [vmem:[%s274 + $0x18] sm:$0xff] %v2527
        %2560 = vst [vmem:[%s274 + $0x20] sm:$0xff] %v2528
        %2561 = vst [vmem:[%s274 + $0x28] sm:$0xff] %v2529
        %2562 = vst [vmem:[%s274 + $0x30] sm:$0xff] %v2530
        %2563 = vst [vmem:[%s274 + $0x38] sm:$0xff] %v2531
        %2564 = vst [vmem:[%s274 + $0x40] sm:$0xff] %v2532
        %2565 = vst [vmem:[%s274 + $0x48] sm:$0xff] %v2533
        %2566 = vst [vmem:[%s274 + $0x50] sm:$0xff] %v2534
        %2567 = vst [vmem:[%s274 + $0x58] sm:$0xff] %v2535
        %2568 = vst [vmem:[%s274 + $0x60] sm:$0xff] %v2536
        %2569 = vst [vmem:[%s274 + $0x68] sm:$0xff] %v2537
        %2570 = vst [vmem:[%s274 + $0x70] sm:$0xff] %v2538
        %2571 = vst [vmem:[%s274 + $0x78] sm:$0xff] %v2539
        %2572 = vst [vmem:[%s274 + $0x80] sm:$0xff] %v2540
        %2573 = vst [vmem:[%s274 + $0x88] sm:$0xff] %v2541
        %2574 = vst [vmem:[%s274 + $0x90] sm:$0xff] %v2542
        %2575 = vst [vmem:[%s274 + $0x98] sm:$0xff] %v2543
        %2576 = vst [vmem:[%s274 + $0xa0] sm:$0xff] %v2544
        %2577 = vst [vmem:[%s274 + $0xa8] sm:$0xff] %v2545
        %2578 = vst [vmem:[%s274 + $0xb0] sm:$0xff] %v2546
        %2579 = vst [vmem:[%s274 + $0xb8] sm:$0xff] %v2547
        %2580 = vst [vmem:[%s274 + $0xc0] sm:$0xff] %v2548
        %2581 = vst [vmem:[%s274 + $0xc8] sm:$0xff] %v2549
        %2582 = vst [vmem:[%s274 + $0xd0] sm:$0xff] %v2550
        %2583 = vst [vmem:[%s274 + $0xd8] sm:$0xff] %v2551
        %2584 = vst [vmem:[%s274 + $0xe0] sm:$0xff] %v2552
        %2585 = vst [vmem:[%s274 + $0xe8] sm:$0xff] %v2553
        %2586 = vst [vmem:[%s274 + $0xf0] sm:$0xff] %v2554
        %2587 = vst [vmem:[%s274 + $0xf8] sm:$0xff] %v2555
        %v2588 = vld [vmem:[%s274] sm:$0xff]
        %v2589 = vld [vmem:[%s274 + $0x8] sm:$0xff]
        %v2590 = vld [vmem:[%s274 + $0x10] sm:$0xff]
        %v2591 = vld [vmem:[%s274 + $0x18] sm:$0xff]
        %v2592 = vld [vmem:[%s274 + $0x20] sm:$0xff]
        %v2593 = vld [vmem:[%s274 + $0x28] sm:$0xff]
        %v2594 = vld [vmem:[%s274 + $0x30] sm:$0xff]
        %v2595 = vld [vmem:[%s274 + $0x38] sm:$0xff]
        %v2596 = vld [vmem:[%s274 + $0x40] sm:$0xff]
        %v2597 = vld [vmem:[%s274 + $0x48] sm:$0xff]
        %v2598 = vld [vmem:[%s274 + $0x50] sm:$0xff]
        %v2599 = vld [vmem:[%s274 + $0x58] sm:$0xff]
        %v2600 = vld [vmem:[%s274 + $0x60] sm:$0xff]
        %v2601 = vld [vmem:[%s274 + $0x68] sm:$0xff]
        %v2602 = vld [vmem:[%s274 + $0x70] sm:$0xff]
        %v2603 = vld [vmem:[%s274 + $0x78] sm:$0xff]
        %v2604 = vld [vmem:[%s274 + $0x80] sm:$0xff]
        %v2605 = vld [vmem:[%s274 + $0x88] sm:$0xff]
        %v2606 = vld [vmem:[%s274 + $0x90] sm:$0xff]
        %v2607 = vld [vmem:[%s274 + $0x98] sm:$0xff]
        %v2608 = vld [vmem:[%s274 + $0xa0] sm:$0xff]
        %v2609 = vld [vmem:[%s274 + $0xa8] sm:$0xff]
        %v2610 = vld [vmem:[%s274 + $0xb0] sm:$0xff]
        %v2611 = vld [vmem:[%s274 + $0xb8] sm:$0xff]
        %v2612 = vld [vmem:[%s274 + $0xc0] sm:$0xff]
        %v2613 = vld [vmem:[%s274 + $0xc8] sm:$0xff]
        %v2614 = vld [vmem:[%s274 + $0xd0] sm:$0xff]
        %v2615 = vld [vmem:[%s274 + $0xd8] sm:$0xff]
        %v2616 = vld [vmem:[%s274 + $0xe0] sm:$0xff]
        %v2617 = vld [vmem:[%s274 + $0xe8] sm:$0xff]
        %v2618 = vld [vmem:[%s274 + $0xf0] sm:$0xff]
        %v2619 = vld [vmem:[%s274 + $0xf8] sm:$0xff]
        %s2620 = scalar_lea.vmem [#allocation5], 1
        %v2621 = vld [vmem:[%s2620] sm:$0x1]
        %v2623 = vlaneseq
        %v2624 = vshrl.u32 %v2623, 7
        %v2625 = vsub.s32 0, %v2624
        %v2626 = vrot.slane %v2621, %v2625
        %v2628 = vmul.f32 %v2588, %v2626
        %v2629 = vmul.f32 %v2589, %v2626
        %v2630 = vmul.f32 %v2590, %v2626
        %v2631 = vmul.f32 %v2591, %v2626
        %v2632 = vmul.f32 %v2592, %v2626
        %v2633 = vmul.f32 %v2593, %v2626
        %v2634 = vmul.f32 %v2594, %v2626
        %v2635 = vmul.f32 %v2595, %v2626
        %v2636 = vmul.f32 %v2596, %v2626
        %v2637 = vmul.f32 %v2597, %v2626
        %v2638 = vmul.f32 %v2598, %v2626
        %v2639 = vmul.f32 %v2599, %v2626
        %v2640 = vmul.f32 %v2600, %v2626
        %v2641 = vmul.f32 %v2601, %v2626
        %v2642 = vmul.f32 %v2602, %v2626
        %v2643 = vmul.f32 %v2603, %v2626
        %v2644 = vmul.f32 %v2604, %v2626
        %v2645 = vmul.f32 %v2605, %v2626
        %v2646 = vmul.f32 %v2606, %v2626
        %v2647 = vmul.f32 %v2607, %v2626
        %v2648 = vmul.f32 %v2608, %v2626
        %v2649 = vmul.f32 %v2609, %v2626
        %v2650 = vmul.f32 %v2610, %v2626
        %v2651 = vmul.f32 %v2611, %v2626
        %v2652 = vmul.f32 %v2612, %v2626
        %v2653 = vmul.f32 %v2613, %v2626
        %v2654 = vmul.f32 %v2614, %v2626
        %v2655 = vmul.f32 %v2615, %v2626
        %v2656 = vmul.f32 %v2616, %v2626
        %v2657 = vmul.f32 %v2617, %v2626
        %v2658 = vmul.f32 %v2618, %v2626
        %v2659 = vmul.f32 %v2619, %v2626
        %s2660 = scalar_lea.vmem [#allocation7], 1
        %v2661 = vld [vmem:[%s2660] sm:$0x1]
        %v2663 = vlaneseq
        %v2664 = vshrl.u32 %v2663, 7
        %v2665 = vsub.s32 0, %v2664
        %v2666 = vrot.slane %v2661, %v2665
        %v2668 = vadd.f32 %v2628, %v2666
        %v2669 = vadd.f32 %v2629, %v2666
        %v2670 = vadd.f32 %v2630, %v2666
        %v2671 = vadd.f32 %v2631, %v2666
        %v2672 = vadd.f32 %v2632, %v2666
        %v2673 = vadd.f32 %v2633, %v2666
        %v2674 = vadd.f32 %v2634, %v2666
        %v2675 = vadd.f32 %v2635, %v2666
        %v2676 = vadd.f32 %v2636, %v2666
        %v2677 = vadd.f32 %v2637, %v2666
        %v2678 = vadd.f32 %v2638, %v2666
        %v2679 = vadd.f32 %v2639, %v2666
        %v2680 = vadd.f32 %v2640, %v2666
        %v2681 = vadd.f32 %v2641, %v2666
        %v2682 = vadd.f32 %v2642, %v2666
        %v2683 = vadd.f32 %v2643, %v2666
        %v2684 = vadd.f32 %v2644, %v2666
        %v2685 = vadd.f32 %v2645, %v2666
        %v2686 = vadd.f32 %v2646, %v2666
        %v2687 = vadd.f32 %v2647, %v2666
        %v2688 = vadd.f32 %v2648, %v2666
        %v2689 = vadd.f32 %v2649, %v2666
        %v2690 = vadd.f32 %v2650, %v2666
        %v2691 = vadd.f32 %v2651, %v2666
        %v2692 = vadd.f32 %v2652, %v2666
        %v2693 = vadd.f32 %v2653, %v2666
        %v2694 = vadd.f32 %v2654, %v2666
        %v2695 = vadd.f32 %v2655, %v2666
        %v2696 = vadd.f32 %v2656, %v2666
        %v2697 = vadd.f32 %v2657, %v2666
        %v2698 = vadd.f32 %v2658, %v2666
        %v2699 = vadd.f32 %v2659, %v2666
        %v2700 = vmax.f32 %v2668, 0.0
        %v2701 = vmax.f32 %v2669, 0.0
        %v2702 = vmax.f32 %v2670, 0.0
        %v2703 = vmax.f32 %v2671, 0.0
        %v2704 = vmax.f32 %v2672, 0.0
        %v2705 = vmax.f32 %v2673, 0.0
        %v2706 = vmax.f32 %v2674, 0.0
        %v2707 = vmax.f32 %v2675, 0.0
        %v2708 = vmax.f32 %v2676, 0.0
        %v2709 = vmax.f32 %v2677, 0.0
        %v2710 = vmax.f32 %v2678, 0.0
        %v2711 = vmax.f32 %v2679, 0.0
        %v2712 = vmax.f32 %v2680, 0.0
        %v2713 = vmax.f32 %v2681, 0.0
        %v2714 = vmax.f32 %v2682, 0.0
        %v2715 = vmax.f32 %v2683, 0.0
        %v2716 = vmax.f32 %v2684, 0.0
        %v2717 = vmax.f32 %v2685, 0.0
        %v2718 = vmax.f32 %v2686, 0.0
        %v2719 = vmax.f32 %v2687, 0.0
        %v2720 = vmax.f32 %v2688, 0.0
        %v2721 = vmax.f32 %v2689, 0.0
        %v2722 = vmax.f32 %v2690, 0.0
        %v2723 = vmax.f32 %v2691, 0.0
        %v2724 = vmax.f32 %v2692, 0.0
        %v2725 = vmax.f32 %v2693, 0.0
        %v2726 = vmax.f32 %v2694, 0.0
        %v2727 = vmax.f32 %v2695, 0.0
        %v2728 = vmax.f32 %v2696, 0.0
        %v2729 = vmax.f32 %v2697, 0.0
        %v2730 = vmax.f32 %v2698, 0.0
        %v2731 = vmax.f32 %v2699, 0.0
        %v2764 = vrot.slane %v2700, 7
        %v2765 = vrot.slane %v2701, 7
        %v2766 = vsel %vm846, %v2764, %v2765
        %v2767 = vrot.slane %v2702, 7
        %v2768 = vrot.slane %v2703, 7
        %v2769 = vsel %vm846, %v2767, %v2768
        %v2770 = vrot.slane %v2704, 7
        %v2771 = vrot.slane %v2705, 7
        %v2772 = vsel %vm846, %v2770, %v2771
        %v2773 = vrot.slane %v2706, 7
        %v2774 = vrot.slane %v2707, 7
        %v2775 = vsel %vm846, %v2773, %v2774
        %v2776 = vrot.slane %v2708, 7
        %v2777 = vrot.slane %v2709, 7
        %v2778 = vsel %vm846, %v2776, %v2777
        %v2779 = vrot.slane %v2710, 7
        %v2780 = vrot.slane %v2711, 7
        %v2781 = vsel %vm846, %v2779, %v2780
        %v2782 = vrot.slane %v2712, 7
        %v2783 = vrot.slane %v2713, 7
        %v2784 = vsel %vm846, %v2782, %v2783
        %v2785 = vrot.slane %v2714, 7
        %v2786 = vrot.slane %v2715, 7
        %v2787 = vsel %vm846, %v2785, %v2786
        %v2788 = vrot.slane %v2716, 7
        %v2789 = vrot.slane %v2717, 7
        %v2790 = vsel %vm846, %v2788, %v2789
        %v2791 = vrot.slane %v2718, 7
        %v2792 = vrot.slane %v2719, 7
        %v2793 = vsel %vm846, %v2791, %v2792
        %v2794 = vrot.slane %v2720, 7
        %v2795 = vrot.slane %v2721, 7
        %v2796 = vsel %vm846, %v2794, %v2795
        %v2797 = vrot.slane %v2722, 7
        %v2798 = vrot.slane %v2723, 7
        %v2799 = vsel %vm846, %v2797, %v2798
        %v2800 = vrot.slane %v2724, 7
        %v2801 = vrot.slane %v2725, 7
        %v2802 = vsel %vm846, %v2800, %v2801
        %v2803 = vrot.slane %v2726, 7
        %v2804 = vrot.slane %v2727, 7
        %v2805 = vsel %vm846, %v2803, %v2804
        %v2806 = vrot.slane %v2728, 7
        %v2807 = vrot.slane %v2729, 7
        %v2808 = vsel %vm846, %v2806, %v2807
        %v2809 = vrot.slane %v2730, 7
        %v2810 = vrot.slane %v2731, 7
        %v2811 = vsel %vm846, %v2809, %v2810
        %v2860 = vsel %vm846, 0.0, %v2764
        %v2861 = vsel %vm846, 0.0, %v2767
        %v2862 = vsel %vm846, 0.0, %v2770
        %v2863 = vsel %vm846, 0.0, %v2773
        %v2864 = vsel %vm846, 0.0, %v2776
        %v2865 = vsel %vm846, 0.0, %v2779
        %v2866 = vsel %vm846, 0.0, %v2782
        %v2867 = vsel %vm846, 0.0, %v2785
        %v2868 = vsel %vm846, 0.0, %v2788
        %v2869 = vsel %vm846, 0.0, %v2791
        %v2870 = vsel %vm846, 0.0, %v2794
        %v2871 = vsel %vm846, 0.0, %v2797
        %v2872 = vsel %vm846, 0.0, %v2800
        %v2873 = vsel %vm846, 0.0, %v2803
        %v2874 = vsel %vm846, 0.0, %v2806
        %v2875 = vsel %vm846, 0.0, %v2809
        %v2876 = vsel %vm846, %v2765, 0.0
        %v2877 = vsel %vm846, %v2768, 0.0
        %v2878 = vsel %vm846, %v2771, 0.0
        %v2879 = vsel %vm846, %v2774, 0.0
        %v2880 = vsel %vm846, %v2777, 0.0
        %v2881 = vsel %vm846, %v2780, 0.0
        %v2882 = vsel %vm846, %v2783, 0.0
        %v2883 = vsel %vm846, %v2786, 0.0
        %v2884 = vsel %vm846, %v2789, 0.0
        %v2885 = vsel %vm846, %v2792, 0.0
        %v2886 = vsel %vm846, %v2795, 0.0
        %v2887 = vsel %vm846, %v2798, 0.0
        %v2888 = vsel %vm846, %v2801, 0.0
        %v2889 = vsel %vm846, %v2804, 0.0
        %v2890 = vsel %vm846, %v2807, 0.0
        %v2891 = vsel %vm846, %v2810, 0.0
        %v2922 = vrot.slane %v2860, 1
        %v2923 = vrot.slane %v2766, 1
        %v2924 = vsel %vm1013, %v2922, %v2923
        %v2925 = vrot.slane %v2876, 1
        %v2926 = vsel %vm1013, %v2923, %v2925
        %v2927 = vrot.slane %v2861, 1
        %v2928 = vrot.slane %v2769, 1
        %v2929 = vsel %vm1013, %v2927, %v2928
        %v2930 = vrot.slane %v2877, 1
        %v2931 = vsel %vm1013, %v2928, %v2930
        %v2932 = vrot.slane %v2862, 1
        %v2933 = vrot.slane %v2772, 1
        %v2934 = vsel %vm1013, %v2932, %v2933
        %v2935 = vrot.slane %v2878, 1
        %v2936 = vsel %vm1013, %v2933, %v2935
        %v2937 = vrot.slane %v2863, 1
        %v2938 = vrot.slane %v2775, 1
        %v2939 = vsel %vm1013, %v2937, %v2938
        %v2940 = vrot.slane %v2879, 1
        %v2941 = vsel %vm1013, %v2938, %v2940
        %v2942 = vrot.slane %v2864, 1
        %v2943 = vrot.slane %v2778, 1
        %v2944 = vsel %vm1013, %v2942, %v2943
        %v2945 = vrot.slane %v2880, 1
        %v2946 = vsel %vm1013, %v2943, %v2945
        %v2947 = vrot.slane %v2865, 1
        %v2948 = vrot.slane %v2781, 1
        %v2949 = vsel %vm1013, %v2947, %v2948
        %v2950 = vrot.slane %v2881, 1
        %v2951 = vsel %vm1013, %v2948, %v2950
        %v2952 = vrot.slane %v2866, 1
        %v2953 = vrot.slane %v2784, 1
        %v2954 = vsel %vm1013, %v2952, %v2953
        %v2955 = vrot.slane %v2882, 1
        %v2956 = vsel %vm1013, %v2953, %v2955
        %v2957 = vrot.slane %v2867, 1
        %v2958 = vrot.slane %v2787, 1
        %v2959 = vsel %vm1013, %v2957, %v2958
        %v2960 = vrot.slane %v2883, 1
        %v2961 = vsel %vm1013, %v2958, %v2960
        %v2962 = vrot.slane %v2868, 1
        %v2963 = vrot.slane %v2790, 1
        %v2964 = vsel %vm1013, %v2962, %v2963
        %v2965 = vrot.slane %v2884, 1
        %v2966 = vsel %vm1013, %v2963, %v2965
        %v2967 = vrot.slane %v2869, 1
        %v2968 = vrot.slane %v2793, 1
        %v2969 = vsel %vm1013, %v2967, %v2968
        %v2970 = vrot.slane %v2885, 1
        %v2971 = vsel %vm1013, %v2968, %v2970
        %v2972 = vrot.slane %v2870, 1
        %v2973 = vrot.slane %v2796, 1
        %v2974 = vsel %vm1013, %v2972, %v2973
        %v2975 = vrot.slane %v2886, 1
        %v2976 = vsel %vm1013, %v2973, %v2975
        %v2977 = vrot.slane %v2871, 1
        %v2978 = vrot.slane %v2799, 1
        %v2979 = vsel %vm1013, %v2977, %v2978
        %v2980 = vrot.slane %v2887, 1
        %v2981 = vsel %vm1013, %v2978, %v2980
        %v2982 = vrot.slane %v2872, 1
        %v2983 = vrot.slane %v2802, 1
        %v2984 = vsel %vm1013, %v2982, %v2983
        %v2985 = vrot.slane %v2888, 1
        %v2986 = vsel %vm1013, %v2983, %v2985
        %v2987 = vrot.slane %v2873, 1
        %v2988 = vrot.slane %v2805, 1
        %v2989 = vsel %vm1013, %v2987, %v2988
        %v2990 = vrot.slane %v2889, 1
        %v2991 = vsel %vm1013, %v2988, %v2990
        %v2992 = vrot.slane %v2874, 1
        %v2993 = vrot.slane %v2808, 1
        %v2994 = vsel %vm1013, %v2992, %v2993
        %v2995 = vrot.slane %v2890, 1
        %v2996 = vsel %vm1013, %v2993, %v2995
        %v3027 = vrot.slane %v2860, 2
        %v3028 = vrot.slane %v2766, 2
        %v3029 = vsel %vm1126, %v3027, %v3028
        %v3030 = vrot.slane %v2876, 2
        %v3031 = vsel %vm1126, %v3028, %v3030
        %v3032 = vrot.slane %v2861, 2
        %v3033 = vrot.slane %v2769, 2
        %v3034 = vsel %vm1126, %v3032, %v3033
        %v3035 = vrot.slane %v2877, 2
        %v3036 = vsel %vm1126, %v3033, %v3035
        %v3037 = vrot.slane %v2862, 2
        %v3038 = vrot.slane %v2772, 2
        %v3039 = vsel %vm1126, %v3037, %v3038
        %v3040 = vrot.slane %v2878, 2
        %v3041 = vsel %vm1126, %v3038, %v3040
        %v3042 = vrot.slane %v2863, 2
        %v3043 = vrot.slane %v2775, 2
        %v3044 = vsel %vm1126, %v3042, %v3043
        %v3045 = vrot.slane %v2879, 2
        %v3046 = vsel %vm1126, %v3043, %v3045
        %v3047 = vrot.slane %v2864, 2
        %v3048 = vrot.slane %v2778, 2
        %v3049 = vsel %vm1126, %v3047, %v3048
        %v3050 = vrot.slane %v2880, 2
        %v3051 = vsel %vm1126, %v3048, %v3050
        %v3052 = vrot.slane %v2865, 2
        %v3053 = vrot.slane %v2781, 2
        %v3054 = vsel %vm1126, %v3052, %v3053
        %v3055 = vrot.slane %v2881, 2
        %v3056 = vsel %vm1126, %v3053, %v3055
        %v3057 = vrot.slane %v2866, 2
        %v3058 = vrot.slane %v2784, 2
        %v3059 = vsel %vm1126, %v3057, %v3058
        %v3060 = vrot.slane %v2882, 2
        %v3061 = vsel %vm1126, %v3058, %v3060
        %v3062 = vrot.slane %v2867, 2
        %v3063 = vrot.slane %v2787, 2
        %v3064 = vsel %vm1126, %v3062, %v3063
        %v3065 = vrot.slane %v2883, 2
        %v3066 = vsel %vm1126, %v3063, %v3065
        %v3067 = vrot.slane %v2868, 2
        %v3068 = vrot.slane %v2790, 2
        %v3069 = vsel %vm1126, %v3067, %v3068
        %v3070 = vrot.slane %v2884, 2
        %v3071 = vsel %vm1126, %v3068, %v3070
        %v3072 = vrot.slane %v2869, 2
        %v3073 = vrot.slane %v2793, 2
        %v3074 = vsel %vm1126, %v3072, %v3073
        %v3075 = vrot.slane %v2885, 2
        %v3076 = vsel %vm1126, %v3073, %v3075
        %v3077 = vrot.slane %v2870, 2
        %v3078 = vrot.slane %v2796, 2
        %v3079 = vsel %vm1126, %v3077, %v3078
        %v3080 = vrot.slane %v2886, 2
        %v3081 = vsel %vm1126, %v3078, %v3080
        %v3082 = vrot.slane %v2871, 2
        %v3083 = vrot.slane %v2799, 2
        %v3084 = vsel %vm1126, %v3082, %v3083
        %v3085 = vrot.slane %v2887, 2
        %v3086 = vsel %vm1126, %v3083, %v3085
        %v3087 = vrot.slane %v2872, 2
        %v3088 = vrot.slane %v2802, 2
        %v3089 = vsel %vm1126, %v3087, %v3088
        %v3090 = vrot.slane %v2888, 2
        %v3091 = vsel %vm1126, %v3088, %v3090
        %v3092 = vrot.slane %v2873, 2
        %v3093 = vrot.slane %v2805, 2
        %v3094 = vsel %vm1126, %v3092, %v3093
        %v3095 = vrot.slane %v2889, 2
        %v3096 = vsel %vm1126, %v3093, %v3095
        %v3097 = vrot.slane %v2874, 2
        %v3098 = vrot.slane %v2808, 2
        %v3099 = vsel %vm1126, %v3097, %v3098
        %v3100 = vrot.slane %v2890, 2
        %v3101 = vsel %vm1126, %v3098, %v3100
        %v3134 = vrot.slane %v2875, 1
        %v3135 = vrot.slane %v2811, 1
        %v3136 = vsel %vm1013, %v3134, %v3135
        %v3137 = vrot.slane %v2891, 1
        %v3138 = vsel %vm1013, %v3135, %v3137
        %v3141 = vrot.slane %v2875, 2
        %v3142 = vrot.slane %v2811, 2
        %v3143 = vsel %vm1126, %v3141, %v3142
        %v3144 = vrot.slane %v2891, 2
        %v3145 = vsel %vm1126, %v3142, %v3144
        %s3148 = scalar_lea.vmem [#allocation8], 1152
        %v3149 = vld [vmem:[%s3148] sm:$0xff]
        %v3150 = vld [vmem:[%s3148 + $0x8] sm:$0xff]
        %v3151 = vld [vmem:[%s3148 + $0x10] sm:$0xff]
        %v3152 = vld [vmem:[%s3148 + $0x18] sm:$0xff]
        %v3153 = vld [vmem:[%s3148 + $0x20] sm:$0xff]
        %v3154 = vld [vmem:[%s3148 + $0x28] sm:$0xff]
        %v3155 = vld [vmem:[%s3148 + $0x30] sm:$0xff]
        %v3156 = vld [vmem:[%s3148 + $0x38] sm:$0xff]
        %v3157 = vld [vmem:[%s3148 + $0x40] sm:$0xff]
        %v3158 = vld [vmem:[%s3148 + $0x48] sm:$0xff]
        %v3159 = vld [vmem:[%s3148 + $0x50] sm:$0xff]
        %v3160 = vld [vmem:[%s3148 + $0x58] sm:$0xff]
        %v3161 = vld [vmem:[%s3148 + $0x60] sm:$0xff]
        %v3162 = vld [vmem:[%s3148 + $0x68] sm:$0xff]
        %v3163 = vld [vmem:[%s3148 + $0x70] sm:$0xff]
        %v3164 = vld [vmem:[%s3148 + $0x78] sm:$0xff]
        %v3165 = vld [vmem:[%s3148 + $0x80] sm:$0xff]
        %v3166 = vld [vmem:[%s3148 + $0x88] sm:$0xff]
        %v3167 = vld [vmem:[%s3148 + $0x90] sm:$0xff]
        %v3168 = vld [vmem:[%s3148 + $0x98] sm:$0xff]
        %v3169 = vld [vmem:[%s3148 + $0xa0] sm:$0xff]
        %v3170 = vld [vmem:[%s3148 + $0xa8] sm:$0xff]
        %v3171 = vld [vmem:[%s3148 + $0xb0] sm:$0xff]
        %v3172 = vld [vmem:[%s3148 + $0xb8] sm:$0xff]
        %v3173 = vld [vmem:[%s3148 + $0xc0] sm:$0xff]
        %v3174 = vld [vmem:[%s3148 + $0xc8] sm:$0xff]
        %v3175 = vld [vmem:[%s3148 + $0xd0] sm:$0xff]
        %v3176 = vld [vmem:[%s3148 + $0xd8] sm:$0xff]
        %v3177 = vld [vmem:[%s3148 + $0xe0] sm:$0xff]
        %v3178 = vld [vmem:[%s3148 + $0xe8] sm:$0xff]
        %v3179 = vld [vmem:[%s3148 + $0xf0] sm:$0xff]
        %v3180 = vld [vmem:[%s3148 + $0xf8] sm:$0xff]
        %v3181 = vld [vmem:[%s3148 + $0x100] sm:$0xff]
        %v3182 = vld [vmem:[%s3148 + $0x108] sm:$0xff]
        %v3183 = vld [vmem:[%s3148 + $0x110] sm:$0xff]
        %v3184 = vld [vmem:[%s3148 + $0x118] sm:$0xff]
        %v3185 = vld [vmem:[%s3148 + $0x120] sm:$0xff]
        %v3186 = vld [vmem:[%s3148 + $0x128] sm:$0xff]
        %v3187 = vld [vmem:[%s3148 + $0x130] sm:$0xff]
        %v3188 = vld [vmem:[%s3148 + $0x138] sm:$0xff]
        %v3189 = vld [vmem:[%s3148 + $0x140] sm:$0xff]
        %v3190 = vld [vmem:[%s3148 + $0x148] sm:$0xff]
        %v3191 = vld [vmem:[%s3148 + $0x150] sm:$0xff]
        %v3192 = vld [vmem:[%s3148 + $0x158] sm:$0xff]
        %v3193 = vld [vmem:[%s3148 + $0x160] sm:$0xff]
        %v3194 = vld [vmem:[%s3148 + $0x168] sm:$0xff]
        %v3195 = vld [vmem:[%s3148 + $0x170] sm:$0xff]
        %v3196 = vld [vmem:[%s3148 + $0x178] sm:$0xff]
        %v3197 = vld [vmem:[%s3148 + $0x180] sm:$0xff]
        %v3198 = vld [vmem:[%s3148 + $0x188] sm:$0xff]
        %v3199 = vld [vmem:[%s3148 + $0x190] sm:$0xff]
        %v3200 = vld [vmem:[%s3148 + $0x198] sm:$0xff]
        %v3201 = vld [vmem:[%s3148 + $0x1a0] sm:$0xff]
        %v3202 = vld [vmem:[%s3148 + $0x1a8] sm:$0xff]
        %v3203 = vld [vmem:[%s3148 + $0x1b0] sm:$0xff]
        %v3204 = vld [vmem:[%s3148 + $0x1b8] sm:$0xff]
        %v3205 = vld [vmem:[%s3148 + $0x1c0] sm:$0xff]
        %v3206 = vld [vmem:[%s3148 + $0x1c8] sm:$0xff]
        %v3207 = vld [vmem:[%s3148 + $0x1d0] sm:$0xff]
        %v3208 = vld [vmem:[%s3148 + $0x1d8] sm:$0xff]
        %v3209 = vld [vmem:[%s3148 + $0x1e0] sm:$0xff]
        %v3210 = vld [vmem:[%s3148 + $0x1e8] sm:$0xff]
        %v3211 = vld [vmem:[%s3148 + $0x1f0] sm:$0xff]
        %v3212 = vld [vmem:[%s3148 + $0x1f8] sm:$0xff]
        %v3213 = vld [vmem:[%s3148 + $0x200] sm:$0xff]
        %v3214 = vld [vmem:[%s3148 + $0x208] sm:$0xff]
        %v3215 = vld [vmem:[%s3148 + $0x210] sm:$0xff]
        %v3216 = vld [vmem:[%s3148 + $0x218] sm:$0xff]
        %v3217 = vld [vmem:[%s3148 + $0x220] sm:$0xff]
        %v3218 = vld [vmem:[%s3148 + $0x228] sm:$0xff]
        %v3219 = vld [vmem:[%s3148 + $0x230] sm:$0xff]
        %v3220 = vld [vmem:[%s3148 + $0x238] sm:$0xff]
        %v3221 = vld [vmem:[%s3148 + $0x240] sm:$0xff]
        %v3222 = vld [vmem:[%s3148 + $0x248] sm:$0xff]
        %v3223 = vld [vmem:[%s3148 + $0x250] sm:$0xff]
        %v3224 = vld [vmem:[%s3148 + $0x258] sm:$0xff]
        %v3225 = vld [vmem:[%s3148 + $0x260] sm:$0xff]
        %v3226 = vld [vmem:[%s3148 + $0x268] sm:$0xff]
        %v3227 = vld [vmem:[%s3148 + $0x270] sm:$0xff]
        %v3228 = vld [vmem:[%s3148 + $0x278] sm:$0xff]
        %v3229 = vld [vmem:[%s3148 + $0x280] sm:$0xff]
        %v3230 = vld [vmem:[%s3148 + $0x288] sm:$0xff]
        %v3231 = vld [vmem:[%s3148 + $0x290] sm:$0xff]
        %v3232 = vld [vmem:[%s3148 + $0x298] sm:$0xff]
        %v3233 = vld [vmem:[%s3148 + $0x2a0] sm:$0xff]
        %v3234 = vld [vmem:[%s3148 + $0x2a8] sm:$0xff]
        %v3235 = vld [vmem:[%s3148 + $0x2b0] sm:$0xff]
        %v3236 = vld [vmem:[%s3148 + $0x2b8] sm:$0xff]
        %v3237 = vld [vmem:[%s3148 + $0x2c0] sm:$0xff]
        %v3238 = vld [vmem:[%s3148 + $0x2c8] sm:$0xff]
        %v3239 = vld [vmem:[%s3148 + $0x2d0] sm:$0xff]
        %v3240 = vld [vmem:[%s3148 + $0x2d8] sm:$0xff]
        %v3241 = vld [vmem:[%s3148 + $0x2e0] sm:$0xff]
        %v3242 = vld [vmem:[%s3148 + $0x2e8] sm:$0xff]
        %v3243 = vld [vmem:[%s3148 + $0x2f0] sm:$0xff]
        %v3244 = vld [vmem:[%s3148 + $0x2f8] sm:$0xff]
        %v3245 = vld [vmem:[%s3148 + $0x300] sm:$0xff]
        %v3246 = vld [vmem:[%s3148 + $0x308] sm:$0xff]
        %v3247 = vld [vmem:[%s3148 + $0x310] sm:$0xff]
        %v3248 = vld [vmem:[%s3148 + $0x318] sm:$0xff]
        %v3249 = vld [vmem:[%s3148 + $0x320] sm:$0xff]
        %v3250 = vld [vmem:[%s3148 + $0x328] sm:$0xff]
        %v3251 = vld [vmem:[%s3148 + $0x330] sm:$0xff]
        %v3252 = vld [vmem:[%s3148 + $0x338] sm:$0xff]
        %v3253 = vld [vmem:[%s3148 + $0x340] sm:$0xff]
        %v3254 = vld [vmem:[%s3148 + $0x348] sm:$0xff]
        %v3255 = vld [vmem:[%s3148 + $0x350] sm:$0xff]
        %v3256 = vld [vmem:[%s3148 + $0x358] sm:$0xff]
        %v3257 = vld [vmem:[%s3148 + $0x360] sm:$0xff]
        %v3258 = vld [vmem:[%s3148 + $0x368] sm:$0xff]
        %v3259 = vld [vmem:[%s3148 + $0x370] sm:$0xff]
        %v3260 = vld [vmem:[%s3148 + $0x378] sm:$0xff]
        %v3261 = vld [vmem:[%s3148 + $0x380] sm:$0xff]
        %v3262 = vld [vmem:[%s3148 + $0x388] sm:$0xff]
        %v3263 = vld [vmem:[%s3148 + $0x390] sm:$0xff]
        %v3264 = vld [vmem:[%s3148 + $0x398] sm:$0xff]
        %v3265 = vld [vmem:[%s3148 + $0x3a0] sm:$0xff]
        %v3266 = vld [vmem:[%s3148 + $0x3a8] sm:$0xff]
        %v3267 = vld [vmem:[%s3148 + $0x3b0] sm:$0xff]
        %v3268 = vld [vmem:[%s3148 + $0x3b8] sm:$0xff]
        %v3269 = vld [vmem:[%s3148 + $0x3c0] sm:$0xff]
        %v3270 = vld [vmem:[%s3148 + $0x3c8] sm:$0xff]
        %v3271 = vld [vmem:[%s3148 + $0x3d0] sm:$0xff]
        %v3272 = vld [vmem:[%s3148 + $0x3d8] sm:$0xff]
        %v3273 = vld [vmem:[%s3148 + $0x3e0] sm:$0xff]
        %v3274 = vld [vmem:[%s3148 + $0x3e8] sm:$0xff]
        %v3275 = vld [vmem:[%s3148 + $0x3f0] sm:$0xff]
        %v3276 = vld [vmem:[%s3148 + $0x3f8] sm:$0xff]
        %v3277 = vld [vmem:[%s3148 + $0x400] sm:$0xff]
        %v3278 = vld [vmem:[%s3148 + $0x408] sm:$0xff]
        %v3279 = vld [vmem:[%s3148 + $0x410] sm:$0xff]
        %v3280 = vld [vmem:[%s3148 + $0x418] sm:$0xff]
        %v3281 = vld [vmem:[%s3148 + $0x420] sm:$0xff]
        %v3282 = vld [vmem:[%s3148 + $0x428] sm:$0xff]
        %v3283 = vld [vmem:[%s3148 + $0x430] sm:$0xff]
        %v3284 = vld [vmem:[%s3148 + $0x438] sm:$0xff]
        %v3285 = vld [vmem:[%s3148 + $0x440] sm:$0xff]
        %v3286 = vld [vmem:[%s3148 + $0x448] sm:$0xff]
        %v3287 = vld [vmem:[%s3148 + $0x450] sm:$0xff]
        %v3288 = vld [vmem:[%s3148 + $0x458] sm:$0xff]
        %v3289 = vld [vmem:[%s3148 + $0x460] sm:$0xff]
        %v3290 = vld [vmem:[%s3148 + $0x468] sm:$0xff]
        %v3291 = vld [vmem:[%s3148 + $0x470] sm:$0xff]
        %v3292 = vld [vmem:[%s3148 + $0x478] sm:$0xff]
        %3293 = vmatprep.subr.mxu0 0.0
        %3294 = vmatpush1.msra.mxu0 %v3164
        %3295 = vmatprep.subr.mxu0 0.0
        %3296 = vmatpush1.msra.mxu0 %v3163
        %3297 = vmatprep.subr.mxu0 0.0
        %3298 = vmatpush1.msra.mxu0 %v3162
        %3299 = vmatprep.subr.mxu0 0.0
        %3300 = vmatpush1.msra.mxu0 %v3161
        %3301 = vmatprep.subr.mxu0 0.0
        %3302 = vmatpush1.msra.mxu0 %v3160
        %3303 = vmatprep.subr.mxu0 0.0
        %3304 = vmatpush1.msra.mxu0 %v3159
        %3305 = vmatprep.subr.mxu0 0.0
        %3306 = vmatpush1.msra.mxu0 %v3158
        %3307 = vmatprep.subr.mxu0 0.0
        %3308 = vmatpush1.msra.mxu0 %v3157
        %3309 = vmatprep.subr.mxu0 0.0
        %3310 = vmatpush1.msra.mxu0 %v3156
        %3311 = vmatprep.subr.mxu0 0.0
        %3312 = vmatpush1.msra.mxu0 %v3155
        %3313 = vmatprep.subr.mxu0 0.0
        %3314 = vmatpush1.msra.mxu0 %v3154
        %3315 = vmatprep.subr.mxu0 0.0
        %3316 = vmatpush1.msra.mxu0 %v3153
        %3317 = vmatprep.subr.mxu0 0.0
        %3318 = vmatpush1.msra.mxu0 %v3152
        %3319 = vmatprep.subr.mxu0 0.0
        %3320 = vmatpush1.msra.mxu0 %v3151
        %3321 = vmatprep.subr.mxu0 0.0
        %3322 = vmatpush1.msra.mxu0 %v3150
        %3323 = vmatprep.subr.mxu0 0.0
        %3324 = vmatpush1.msra.mxu0 %v3149
        %3325 = vmatprep.subr.mxu0 0.0
        %3326 = vmatpush2.msra.mxu0 %v3180
        %3327 = vmatprep.subr.mxu0 0.0
        %3328 = vmatpush2.msra.mxu0 %v3179
        %3329 = vmatprep.subr.mxu0 0.0
        %3330 = vmatpush2.msra.mxu0 %v3178
        %3331 = vmatprep.subr.mxu0 0.0
        %3332 = vmatpush2.msra.mxu0 %v3177
        %3333 = vmatprep.subr.mxu0 0.0
        %3334 = vmatpush2.msra.mxu0 %v3176
        %3335 = vmatprep.subr.mxu0 0.0
        %3336 = vmatpush2.msra.mxu0 %v3175
        %3337 = vmatprep.subr.mxu0 0.0
        %3338 = vmatpush2.msra.mxu0 %v3174
        %3339 = vmatprep.subr.mxu0 0.0
        %3340 = vmatpush2.msra.mxu0 %v3173
        %3341 = vmatprep.subr.mxu0 0.0
        %3342 = vmatpush2.msra.mxu0 %v3172
        %3343 = vmatprep.subr.mxu0 0.0
        %3344 = vmatpush2.msra.mxu0 %v3171
        %3345 = vmatprep.subr.mxu0 0.0
        %3346 = vmatpush2.msra.mxu0 %v3170
        %3347 = vmatprep.subr.mxu0 0.0
        %3348 = vmatpush2.msra.mxu0 %v3169
        %3349 = vmatprep.subr.mxu0 0.0
        %3350 = vmatpush2.msra.mxu0 %v3168
        %3351 = vmatprep.subr.mxu0 0.0
        %3352 = vmatpush2.msra.mxu0 %v3167
        %3353 = vmatprep.subr.mxu0 0.0
        %3354 = vmatpush2.msra.mxu0 %v3166
        %3355 = vmatprep.subr.mxu0 0.0
        %3356 = vmatpush2.msra.mxu0 %v3165
        %3357 = vmatprep.mubr.f32.mxu0 %v1016
        %3358 = vmatmul.mubr.f32.gmra.mxu0 %v947
        %v3359 = vpop.f32.mrf.mxu0
        %v3360 = vadd.f32 0.0, %v3359
        %v3361 = vpop.f32.mrf.mxu0
        %3362 = vmatprep.mubr.f32.mxu0 %v1018
        %3363 = vmatmul.mubr.f32.gmra.mxu0 %v848
        %v3364 = vpop.f32.mrf.mxu0
        %v3365 = vadd.f32 0.0, %v3364
        %v3366 = vpop.f32.mrf.mxu0
        %3367 = vmatprep.mubr.f32.mxu0 %v2924
        %3368 = vmatmul.mubr.f32.gmra.mxu0 %v2860
        %v3369 = vpop.f32.mrf.mxu0
        %v3370 = vadd.f32 0.0, %v3369
        %v3371 = vpop.f32.mrf.mxu0
        %3372 = vmatprep.mubr.f32.mxu0 %v2926
        %3373 = vmatmul.mubr.f32.gmra.mxu0 %v2766
        %v3374 = vpop.f32.mrf.mxu0
        %v3375 = vadd.f32 0.0, %v3374
        %v3376 = vpop.f32.mrf.mxu0
        %3377 = vmatprep.mubr.f32.mxu0 %v2929
        %3378 = vmatmul.mubr.f32.gmra.mxu0 %v2861
        %v3379 = vpop.f32.mrf.mxu0
        %v3380 = vadd.f32 0.0, %v3379
        %v3381 = vpop.f32.mrf.mxu0
        %3382 = vmatprep.mubr.f32.mxu0 %v2931
        %3383 = vmatmul.mubr.f32.gmra.mxu0 %v2769
        %v3384 = vpop.f32.mrf.mxu0
        %v3385 = vadd.f32 0.0, %v3384
        %v3386 = vpop.f32.mrf.mxu0
        %3387 = vmatprep.mubr.f32.mxu0 %v2934
        %3388 = vmatmul.mubr.f32.gmra.mxu0 %v2862
        %v3389 = vpop.f32.mrf.mxu0
        %v3390 = vadd.f32 0.0, %v3389
        %v3391 = vpop.f32.mrf.mxu0
        %3392 = vmatprep.mubr.f32.mxu0 %v2936
        %3393 = vmatmul.mubr.f32.gmra.mxu0 %v2772
        %v3394 = vpop.f32.mrf.mxu0
        %v3395 = vadd.f32 0.0, %v3394
        %v3396 = vpop.f32.mrf.mxu0
        %3397 = vmatprep.mubr.f32.mxu0 %v2939
        %3398 = vmatmul.mubr.f32.gmra.mxu0 %v2863
        %v3399 = vpop.f32.mrf.mxu0
        %v3400 = vadd.f32 0.0, %v3399
        %v3401 = vpop.f32.mrf.mxu0
        %3402 = vmatprep.mubr.f32.mxu0 %v2941
        %3403 = vmatmul.mubr.f32.gmra.mxu0 %v2775
        %v3404 = vpop.f32.mrf.mxu0
        %v3405 = vadd.f32 0.0, %v3404
        %v3406 = vpop.f32.mrf.mxu0
        %3407 = vmatprep.mubr.f32.mxu0 %v2944
        %3408 = vmatmul.mubr.f32.gmra.mxu0 %v2864
        %v3409 = vpop.f32.mrf.mxu0
        %v3410 = vadd.f32 0.0, %v3409
        %v3411 = vpop.f32.mrf.mxu0
        %3412 = vmatprep.mubr.f32.mxu0 %v2946
        %3413 = vmatmul.mubr.f32.gmra.mxu0 %v2778
        %v3414 = vpop.f32.mrf.mxu0
        %v3415 = vadd.f32 0.0, %v3414
        %v3416 = vpop.f32.mrf.mxu0
        %3417 = vmatprep.mubr.f32.mxu0 %v2949
        %3418 = vmatmul.mubr.f32.gmra.mxu0 %v2865
        %v3419 = vpop.f32.mrf.mxu0
        %v3420 = vadd.f32 0.0, %v3419
        %v3421 = vpop.f32.mrf.mxu0
        %3422 = vmatprep.mubr.f32.mxu0 %v2951
        %3423 = vmatmul.mubr.f32.gmra.mxu0 %v2781
        %v3424 = vpop.f32.mrf.mxu0
        %v3425 = vadd.f32 0.0, %v3424
        %v3426 = vpop.f32.mrf.mxu0
        %3427 = vmatprep.mubr.f32.mxu0 %v2954
        %3428 = vmatmul.mubr.f32.gmra.mxu0 %v2866
        %v3429 = vpop.f32.mrf.mxu0
        %v3430 = vadd.f32 0.0, %v3429
        %v3431 = vpop.f32.mrf.mxu0
        %3432 = vmatprep.mubr.f32.mxu0 %v2956
        %3433 = vmatmul.mubr.f32.gmra.mxu0 %v2784
        %v3434 = vpop.f32.mrf.mxu0
        %v3435 = vadd.f32 0.0, %v3434
        %v3436 = vpop.f32.mrf.mxu0
        %3437 = vmatprep.mubr.f32.mxu0 %v2959
        %3438 = vmatmul.mubr.f32.gmra.mxu0 %v2867
        %v3439 = vpop.f32.mrf.mxu0
        %v3440 = vadd.f32 0.0, %v3439
        %v3441 = vpop.f32.mrf.mxu0
        %3442 = vmatprep.mubr.f32.mxu0 %v2961
        %3443 = vmatmul.mubr.f32.gmra.mxu0 %v2787
        %v3444 = vpop.f32.mrf.mxu0
        %v3445 = vadd.f32 0.0, %v3444
        %v3446 = vpop.f32.mrf.mxu0
        %3447 = vmatprep.mubr.f32.mxu0 %v2964
        %3448 = vmatmul.mubr.f32.gmra.mxu0 %v2868
        %v3449 = vpop.f32.mrf.mxu0
        %v3450 = vadd.f32 0.0, %v3449
        %v3451 = vpop.f32.mrf.mxu0
        %3452 = vmatprep.mubr.f32.mxu0 %v2966
        %3453 = vmatmul.mubr.f32.gmra.mxu0 %v2790
        %v3454 = vpop.f32.mrf.mxu0
        %v3455 = vadd.f32 0.0, %v3454
        %v3456 = vpop.f32.mrf.mxu0
        %3457 = vmatprep.mubr.f32.mxu0 %v2969
        %3458 = vmatmul.mubr.f32.gmra.mxu0 %v2869
        %v3459 = vpop.f32.mrf.mxu0
        %v3460 = vadd.f32 0.0, %v3459
        %v3461 = vpop.f32.mrf.mxu0
        %3462 = vmatprep.mubr.f32.mxu0 %v2971
        %3463 = vmatmul.mubr.f32.gmra.mxu0 %v2793
        %v3464 = vpop.f32.mrf.mxu0
        %v3465 = vadd.f32 0.0, %v3464
        %v3466 = vpop.f32.mrf.mxu0
        %3467 = vmatprep.mubr.f32.mxu0 %v2974
        %3468 = vmatmul.mubr.f32.gmra.mxu0 %v2870
        %v3469 = vpop.f32.mrf.mxu0
        %v3470 = vadd.f32 0.0, %v3469
        %v3471 = vpop.f32.mrf.mxu0
        %3472 = vmatprep.mubr.f32.mxu0 %v2976
        %3473 = vmatmul.mubr.f32.gmra.mxu0 %v2796
        %v3474 = vpop.f32.mrf.mxu0
        %v3475 = vadd.f32 0.0, %v3474
        %v3476 = vpop.f32.mrf.mxu0
        %3477 = vmatprep.mubr.f32.mxu0 %v2979
        %3478 = vmatmul.mubr.f32.gmra.mxu0 %v2871
        %v3479 = vpop.f32.mrf.mxu0
        %v3480 = vadd.f32 0.0, %v3479
        %v3481 = vpop.f32.mrf.mxu0
        %3482 = vmatprep.mubr.f32.mxu0 %v2981
        %3483 = vmatmul.mubr.f32.gmra.mxu0 %v2799
        %v3484 = vpop.f32.mrf.mxu0
        %v3485 = vadd.f32 0.0, %v3484
        %v3486 = vpop.f32.mrf.mxu0
        %3487 = vmatprep.mubr.f32.mxu0 %v2984
        %3488 = vmatmul.mubr.f32.gmra.mxu0 %v2872
        %v3489 = vpop.f32.mrf.mxu0
        %v3490 = vadd.f32 0.0, %v3489
        %v3491 = vpop.f32.mrf.mxu0
        %3492 = vmatprep.mubr.f32.mxu0 %v2986
        %3493 = vmatmul.mubr.f32.gmra.mxu0 %v2802
        %v3494 = vpop.f32.mrf.mxu0
        %v3495 = vadd.f32 0.0, %v3494
        %v3496 = vpop.f32.mrf.mxu0
        %3497 = vmatprep.mubr.f32.mxu0 %v2989
        %3498 = vmatmul.mubr.f32.gmra.mxu0 %v2873
        %v3499 = vpop.f32.mrf.mxu0
        %v3500 = vadd.f32 0.0, %v3499
        %v3501 = vpop.f32.mrf.mxu0
        %3502 = vmatprep.mubr.f32.mxu0 %v2991
        %3503 = vmatmul.mubr.f32.gmra.mxu0 %v2805
        %v3504 = vpop.f32.mrf.mxu0
        %v3505 = vadd.f32 0.0, %v3504
        %v3506 = vpop.f32.mrf.mxu0
        %3507 = vmatprep.mubr.f32.mxu0 %v2994
        %3508 = vmatmul.mubr.f32.gmra.mxu0 %v2874
        %v3509 = vpop.f32.mrf.mxu0
        %v3510 = vadd.f32 0.0, %v3509
        %v3511 = vpop.f32.mrf.mxu0
        %3512 = vmatprep.mubr.f32.mxu0 %v2996
        %3513 = vmatmul.mubr.f32.gmra.mxu0 %v2808
        %v3514 = vpop.f32.mrf.mxu0
        %v3515 = vadd.f32 0.0, %v3514
        %v3516 = vpop.f32.mrf.mxu0
        %3517 = vdwg.mxu0
        %3518 = vmatprep.subr.mxu0 0.0
        %3519 = vmatpush1.msra.mxu0 %v3196
        %3520 = vmatprep.subr.mxu0 0.0
        %3521 = vmatpush1.msra.mxu0 %v3195
        %3522 = vmatprep.subr.mxu0 0.0
        %3523 = vmatpush1.msra.mxu0 %v3194
        %3524 = vmatprep.subr.mxu0 0.0
        %3525 = vmatpush1.msra.mxu0 %v3193
        %3526 = vmatprep.subr.mxu0 0.0
        %3527 = vmatpush1.msra.mxu0 %v3192
        %3528 = vmatprep.subr.mxu0 0.0
        %3529 = vmatpush1.msra.mxu0 %v3191
        %3530 = vmatprep.subr.mxu0 0.0
        %3531 = vmatpush1.msra.mxu0 %v3190
        %3532 = vmatprep.subr.mxu0 0.0
        %3533 = vmatpush1.msra.mxu0 %v3189
        %3534 = vmatprep.subr.mxu0 0.0
        %3535 = vmatpush1.msra.mxu0 %v3188
        %3536 = vmatprep.subr.mxu0 0.0
        %3537 = vmatpush1.msra.mxu0 %v3187
        %3538 = vmatprep.subr.mxu0 0.0
        %3539 = vmatpush1.msra.mxu0 %v3186
        %3540 = vmatprep.subr.mxu0 0.0
        %3541 = vmatpush1.msra.mxu0 %v3185
        %3542 = vmatprep.subr.mxu0 0.0
        %3543 = vmatpush1.msra.mxu0 %v3184
        %3544 = vmatprep.subr.mxu0 0.0
        %3545 = vmatpush1.msra.mxu0 %v3183
        %3546 = vmatprep.subr.mxu0 0.0
        %3547 = vmatpush1.msra.mxu0 %v3182
        %3548 = vmatprep.subr.mxu0 0.0
        %3549 = vmatpush1.msra.mxu0 %v3181
        %3550 = vmatprep.subr.mxu0 0.0
        %3551 = vmatpush2.msra.mxu0 %v3212
        %3552 = vmatprep.subr.mxu0 0.0
        %3553 = vmatpush2.msra.mxu0 %v3211
        %3554 = vmatprep.subr.mxu0 0.0
        %3555 = vmatpush2.msra.mxu0 %v3210
        %3556 = vmatprep.subr.mxu0 0.0
        %3557 = vmatpush2.msra.mxu0 %v3209
        %3558 = vmatprep.subr.mxu0 0.0
        %3559 = vmatpush2.msra.mxu0 %v3208
        %3560 = vmatprep.subr.mxu0 0.0
        %3561 = vmatpush2.msra.mxu0 %v3207
        %3562 = vmatprep.subr.mxu0 0.0
        %3563 = vmatpush2.msra.mxu0 %v3206
        %3564 = vmatprep.subr.mxu0 0.0
        %3565 = vmatpush2.msra.mxu0 %v3205
        %3566 = vmatprep.subr.mxu0 0.0
        %3567 = vmatpush2.msra.mxu0 %v3204
        %3568 = vmatprep.subr.mxu0 0.0
        %3569 = vmatpush2.msra.mxu0 %v3203
        %3570 = vmatprep.subr.mxu0 0.0
        %3571 = vmatpush2.msra.mxu0 %v3202
        %3572 = vmatprep.subr.mxu0 0.0
        %3573 = vmatpush2.msra.mxu0 %v3201
        %3574 = vmatprep.subr.mxu0 0.0
        %3575 = vmatpush2.msra.mxu0 %v3200
        %3576 = vmatprep.subr.mxu0 0.0
        %3577 = vmatpush2.msra.mxu0 %v3199
        %3578 = vmatprep.subr.mxu0 0.0
        %3579 = vmatpush2.msra.mxu0 %v3198
        %3580 = vmatprep.subr.mxu0 0.0
        %3581 = vmatpush2.msra.mxu0 %v3197
        %3582 = vmatprep.mubr.f32.mxu0 %v2860
        %3583 = vmatmul.mubr.f32.gmra.mxu0 %v1129
        %v3584 = vpop.f32.mrf.mxu0
        %v3585 = vadd.f32 %v3360, %v3584
        %v3586 = vpop.f32.mrf.mxu0
        %3587 = vmatprep.mubr.f32.mxu0 %v2766
        %3588 = vmatmul.mubr.f32.gmra.mxu0 %v1131
        %v3589 = vpop.f32.mrf.mxu0
        %v3590 = vadd.f32 %v3365, %v3589
        %v3591 = vpop.f32.mrf.mxu0
        %3592 = vmatprep.mubr.f32.mxu0 %v2861
        %3593 = vmatmul.mubr.f32.gmra.mxu0 %v3029
        %v3594 = vpop.f32.mrf.mxu0
        %v3595 = vadd.f32 %v3370, %v3594
        %v3596 = vpop.f32.mrf.mxu0
        %3597 = vmatprep.mubr.f32.mxu0 %v2769
        %3598 = vmatmul.mubr.f32.gmra.mxu0 %v3031
        %v3599 = vpop.f32.mrf.mxu0
        %v3600 = vadd.f32 %v3375, %v3599
        %v3601 = vpop.f32.mrf.mxu0
        %3602 = vmatprep.mubr.f32.mxu0 %v2862
        %3603 = vmatmul.mubr.f32.gmra.mxu0 %v3034
        %v3604 = vpop.f32.mrf.mxu0
        %v3605 = vadd.f32 %v3380, %v3604
        %v3606 = vpop.f32.mrf.mxu0
        %3607 = vmatprep.mubr.f32.mxu0 %v2772
        %3608 = vmatmul.mubr.f32.gmra.mxu0 %v3036
        %v3609 = vpop.f32.mrf.mxu0
        %v3610 = vadd.f32 %v3385, %v3609
        %v3611 = vpop.f32.mrf.mxu0
        %3612 = vmatprep.mubr.f32.mxu0 %v2863
        %3613 = vmatmul.mubr.f32.gmra.mxu0 %v3039
        %v3614 = vpop.f32.mrf.mxu0
        %v3615 = vadd.f32 %v3390, %v3614
        %v3616 = vpop.f32.mrf.mxu0
        %3617 = vmatprep.mubr.f32.mxu0 %v2775
        %3618 = vmatmul.mubr.f32.gmra.mxu0 %v3041
        %v3619 = vpop.f32.mrf.mxu0
        %v3620 = vadd.f32 %v3395, %v3619
        %v3621 = vpop.f32.mrf.mxu0
        %3622 = vmatprep.mubr.f32.mxu0 %v2864
        %3623 = vmatmul.mubr.f32.gmra.mxu0 %v3044
        %v3624 = vpop.f32.mrf.mxu0
        %v3625 = vadd.f32 %v3400, %v3624
        %v3626 = vpop.f32.mrf.mxu0
        %3627 = vmatprep.mubr.f32.mxu0 %v2778
        %3628 = vmatmul.mubr.f32.gmra.mxu0 %v3046
        %v3629 = vpop.f32.mrf.mxu0
        %v3630 = vadd.f32 %v3405, %v3629
        %v3631 = vpop.f32.mrf.mxu0
        %3632 = vmatprep.mubr.f32.mxu0 %v2865
        %3633 = vmatmul.mubr.f32.gmra.mxu0 %v3049
        %v3634 = vpop.f32.mrf.mxu0
        %v3635 = vadd.f32 %v3410, %v3634
        %v3636 = vpop.f32.mrf.mxu0
        %3637 = vmatprep.mubr.f32.mxu0 %v2781
        %3638 = vmatmul.mubr.f32.gmra.mxu0 %v3051
        %v3639 = vpop.f32.mrf.mxu0
        %v3640 = vadd.f32 %v3415, %v3639
        %v3641 = vpop.f32.mrf.mxu0
        %3642 = vmatprep.mubr.f32.mxu0 %v2866
        %3643 = vmatmul.mubr.f32.gmra.mxu0 %v3054
        %v3644 = vpop.f32.mrf.mxu0
        %v3645 = vadd.f32 %v3420, %v3644
        %v3646 = vpop.f32.mrf.mxu0
        %3647 = vmatprep.mubr.f32.mxu0 %v2784
        %3648 = vmatmul.mubr.f32.gmra.mxu0 %v3056
        %v3649 = vpop.f32.mrf.mxu0
        %v3650 = vadd.f32 %v3425, %v3649
        %v3651 = vpop.f32.mrf.mxu0
        %3652 = vmatprep.mubr.f32.mxu0 %v2867
        %3653 = vmatmul.mubr.f32.gmra.mxu0 %v3059
        %v3654 = vpop.f32.mrf.mxu0
        %v3655 = vadd.f32 %v3430, %v3654
        %v3656 = vpop.f32.mrf.mxu0
        %3657 = vmatprep.mubr.f32.mxu0 %v2787
        %3658 = vmatmul.mubr.f32.gmra.mxu0 %v3061
        %v3659 = vpop.f32.mrf.mxu0
        %v3660 = vadd.f32 %v3435, %v3659
        %v3661 = vpop.f32.mrf.mxu0
        %3662 = vmatprep.mubr.f32.mxu0 %v2868
        %3663 = vmatmul.mubr.f32.gmra.mxu0 %v3064
        %v3664 = vpop.f32.mrf.mxu0
        %v3665 = vadd.f32 %v3440, %v3664
        %v3666 = vpop.f32.mrf.mxu0
        %3667 = vmatprep.mubr.f32.mxu0 %v2790
        %3668 = vmatmul.mubr.f32.gmra.mxu0 %v3066
        %v3669 = vpop.f32.mrf.mxu0
        %v3670 = vadd.f32 %v3445, %v3669
        %v3671 = vpop.f32.mrf.mxu0
        %3672 = vmatprep.mubr.f32.mxu0 %v2869
        %3673 = vmatmul.mubr.f32.gmra.mxu0 %v3069
        %v3674 = vpop.f32.mrf.mxu0
        %v3675 = vadd.f32 %v3450, %v3674
        %v3676 = vpop.f32.mrf.mxu0
        %3677 = vmatprep.mubr.f32.mxu0 %v2793
        %3678 = vmatmul.mubr.f32.gmra.mxu0 %v3071
        %v3679 = vpop.f32.mrf.mxu0
        %v3680 = vadd.f32 %v3455, %v3679
        %v3681 = vpop.f32.mrf.mxu0
        %3682 = vmatprep.mubr.f32.mxu0 %v2870
        %3683 = vmatmul.mubr.f32.gmra.mxu0 %v3074
        %v3684 = vpop.f32.mrf.mxu0
        %v3685 = vadd.f32 %v3460, %v3684
        %v3686 = vpop.f32.mrf.mxu0
        %3687 = vmatprep.mubr.f32.mxu0 %v2796
        %3688 = vmatmul.mubr.f32.gmra.mxu0 %v3076
        %v3689 = vpop.f32.mrf.mxu0
        %v3690 = vadd.f32 %v3465, %v3689
        %v3691 = vpop.f32.mrf.mxu0
        %3692 = vmatprep.mubr.f32.mxu0 %v2871
        %3693 = vmatmul.mubr.f32.gmra.mxu0 %v3079
        %v3694 = vpop.f32.mrf.mxu0
        %v3695 = vadd.f32 %v3470, %v3694
        %v3696 = vpop.f32.mrf.mxu0
        %3697 = vmatprep.mubr.f32.mxu0 %v2799
        %3698 = vmatmul.mubr.f32.gmra.mxu0 %v3081
        %v3699 = vpop.f32.mrf.mxu0
        %v3700 = vadd.f32 %v3475, %v3699
        %v3701 = vpop.f32.mrf.mxu0
        %3702 = vmatprep.mubr.f32.mxu0 %v2872
        %3703 = vmatmul.mubr.f32.gmra.mxu0 %v3084
        %v3704 = vpop.f32.mrf.mxu0
        %v3705 = vadd.f32 %v3480, %v3704
        %v3706 = vpop.f32.mrf.mxu0
        %3707 = vmatprep.mubr.f32.mxu0 %v2802
        %3708 = vmatmul.mubr.f32.gmra.mxu0 %v3086
        %v3709 = vpop.f32.mrf.mxu0
        %v3710 = vadd.f32 %v3485, %v3709
        %v3711 = vpop.f32.mrf.mxu0
        %3712 = vmatprep.mubr.f32.mxu0 %v2873
        %3713 = vmatmul.mubr.f32.gmra.mxu0 %v3089
        %v3714 = vpop.f32.mrf.mxu0
        %v3715 = vadd.f32 %v3490, %v3714
        %v3716 = vpop.f32.mrf.mxu0
        %3717 = vmatprep.mubr.f32.mxu0 %v2805
        %3718 = vmatmul.mubr.f32.gmra.mxu0 %v3091
        %v3719 = vpop.f32.mrf.mxu0
        %v3720 = vadd.f32 %v3495, %v3719
        %v3721 = vpop.f32.mrf.mxu0
        %3722 = vmatprep.mubr.f32.mxu0 %v2874
        %3723 = vmatmul.mubr.f32.gmra.mxu0 %v3094
        %v3724 = vpop.f32.mrf.mxu0
        %v3725 = vadd.f32 %v3500, %v3724
        %v3726 = vpop.f32.mrf.mxu0
        %3727 = vmatprep.mubr.f32.mxu0 %v2808
        %3728 = vmatmul.mubr.f32.gmra.mxu0 %v3096
        %v3729 = vpop.f32.mrf.mxu0
        %v3730 = vadd.f32 %v3505, %v3729
        %v3731 = vpop.f32.mrf.mxu0
        %3732 = vmatprep.mubr.f32.mxu0 %v2875
        %3733 = vmatmul.mubr.f32.gmra.mxu0 %v3099
        %v3734 = vpop.f32.mrf.mxu0
        %v3735 = vadd.f32 %v3510, %v3734
        %v3736 = vpop.f32.mrf.mxu0
        %3737 = vmatprep.mubr.f32.mxu0 %v2811
        %3738 = vmatmul.mubr.f32.gmra.mxu0 %v3101
        %v3739 = vpop.f32.mrf.mxu0
        %v3740 = vadd.f32 %v3515, %v3739
        %v3741 = vpop.f32.mrf.mxu0
        %3742 = vdwg.mxu0
        %3743 = vmatprep.subr.mxu0 0.0
        %3744 = vmatpush1.msra.mxu0 %v3228
        %3745 = vmatprep.subr.mxu0 0.0
        %3746 = vmatpush1.msra.mxu0 %v3227
        %3747 = vmatprep.subr.mxu0 0.0
        %3748 = vmatpush1.msra.mxu0 %v3226
        %3749 = vmatprep.subr.mxu0 0.0
        %3750 = vmatpush1.msra.mxu0 %v3225
        %3751 = vmatprep.subr.mxu0 0.0
        %3752 = vmatpush1.msra.mxu0 %v3224
        %3753 = vmatprep.subr.mxu0 0.0
        %3754 = vmatpush1.msra.mxu0 %v3223
        %3755 = vmatprep.subr.mxu0 0.0
        %3756 = vmatpush1.msra.mxu0 %v3222
        %3757 = vmatprep.subr.mxu0 0.0
        %3758 = vmatpush1.msra.mxu0 %v3221
        %3759 = vmatprep.subr.mxu0 0.0
        %3760 = vmatpush1.msra.mxu0 %v3220
        %3761 = vmatprep.subr.mxu0 0.0
        %3762 = vmatpush1.msra.mxu0 %v3219
        %3763 = vmatprep.subr.mxu0 0.0
        %3764 = vmatpush1.msra.mxu0 %v3218
        %3765 = vmatprep.subr.mxu0 0.0
        %3766 = vmatpush1.msra.mxu0 %v3217
        %3767 = vmatprep.subr.mxu0 0.0
        %3768 = vmatpush1.msra.mxu0 %v3216
        %3769 = vmatprep.subr.mxu0 0.0
        %3770 = vmatpush1.msra.mxu0 %v3215
        %3771 = vmatprep.subr.mxu0 0.0
        %3772 = vmatpush1.msra.mxu0 %v3214
        %3773 = vmatprep.subr.mxu0 0.0
        %3774 = vmatpush1.msra.mxu0 %v3213
        %3775 = vmatprep.subr.mxu0 0.0
        %3776 = vmatpush2.msra.mxu0 %v3244
        %3777 = vmatprep.subr.mxu0 0.0
        %3778 = vmatpush2.msra.mxu0 %v3243
        %3779 = vmatprep.subr.mxu0 0.0
        %3780 = vmatpush2.msra.mxu0 %v3242
        %3781 = vmatprep.subr.mxu0 0.0
        %3782 = vmatpush2.msra.mxu0 %v3241
        %3783 = vmatprep.subr.mxu0 0.0
        %3784 = vmatpush2.msra.mxu0 %v3240
        %3785 = vmatprep.subr.mxu0 0.0
        %3786 = vmatpush2.msra.mxu0 %v3239
        %3787 = vmatprep.subr.mxu0 0.0
        %3788 = vmatpush2.msra.mxu0 %v3238
        %3789 = vmatprep.subr.mxu0 0.0
        %3790 = vmatpush2.msra.mxu0 %v3237
        %3791 = vmatprep.subr.mxu0 0.0
        %3792 = vmatpush2.msra.mxu0 %v3236
        %3793 = vmatprep.subr.mxu0 0.0
        %3794 = vmatpush2.msra.mxu0 %v3235
        %3795 = vmatprep.subr.mxu0 0.0
        %3796 = vmatpush2.msra.mxu0 %v3234
        %3797 = vmatprep.subr.mxu0 0.0
        %3798 = vmatpush2.msra.mxu0 %v3233
        %3799 = vmatprep.subr.mxu0 0.0
        %3800 = vmatpush2.msra.mxu0 %v3232
        %3801 = vmatprep.subr.mxu0 0.0
        %3802 = vmatpush2.msra.mxu0 %v3231
        %3803 = vmatprep.subr.mxu0 0.0
        %3804 = vmatpush2.msra.mxu0 %v3230
        %3805 = vmatprep.subr.mxu0 0.0
        %3806 = vmatpush2.msra.mxu0 %v3229
        %3807 = vmatprep.mubr.f32.mxu0 %v3029
        %3808 = vmatmul.mubr.f32.gmra.mxu0 %v2924
        %v3809 = vpop.f32.mrf.mxu0
        %v3810 = vadd.f32 %v3585, %v3809
        %v3811 = vpop.f32.mrf.mxu0
        %3812 = vmatprep.mubr.f32.mxu0 %v3031
        %3813 = vmatmul.mubr.f32.gmra.mxu0 %v2926
        %v3814 = vpop.f32.mrf.mxu0
        %v3815 = vadd.f32 %v3590, %v3814
        %v3816 = vpop.f32.mrf.mxu0
        %3817 = vmatprep.mubr.f32.mxu0 %v3034
        %3818 = vmatmul.mubr.f32.gmra.mxu0 %v2929
        %v3819 = vpop.f32.mrf.mxu0
        %v3820 = vadd.f32 %v3595, %v3819
        %v3821 = vpop.f32.mrf.mxu0
        %3822 = vmatprep.mubr.f32.mxu0 %v3036
        %3823 = vmatmul.mubr.f32.gmra.mxu0 %v2931
        %v3824 = vpop.f32.mrf.mxu0
        %v3825 = vadd.f32 %v3600, %v3824
        %v3826 = vpop.f32.mrf.mxu0
        %3827 = vmatprep.mubr.f32.mxu0 %v3039
        %3828 = vmatmul.mubr.f32.gmra.mxu0 %v2934
        %v3829 = vpop.f32.mrf.mxu0
        %v3830 = vadd.f32 %v3605, %v3829
        %v3831 = vpop.f32.mrf.mxu0
        %3832 = vmatprep.mubr.f32.mxu0 %v3041
        %3833 = vmatmul.mubr.f32.gmra.mxu0 %v2936
        %v3834 = vpop.f32.mrf.mxu0
        %v3835 = vadd.f32 %v3610, %v3834
        %v3836 = vpop.f32.mrf.mxu0
        %3837 = vmatprep.mubr.f32.mxu0 %v3044
        %3838 = vmatmul.mubr.f32.gmra.mxu0 %v2939
        %v3839 = vpop.f32.mrf.mxu0
        %v3840 = vadd.f32 %v3615, %v3839
        %v3841 = vpop.f32.mrf.mxu0
        %3842 = vmatprep.mubr.f32.mxu0 %v3046
        %3843 = vmatmul.mubr.f32.gmra.mxu0 %v2941
        %v3844 = vpop.f32.mrf.mxu0
        %v3845 = vadd.f32 %v3620, %v3844
        %v3846 = vpop.f32.mrf.mxu0
        %3847 = vmatprep.mubr.f32.mxu0 %v3049
        %3848 = vmatmul.mubr.f32.gmra.mxu0 %v2944
        %v3849 = vpop.f32.mrf.mxu0
        %v3850 = vadd.f32 %v3625, %v3849
        %v3851 = vpop.f32.mrf.mxu0
        %3852 = vmatprep.mubr.f32.mxu0 %v3051
        %3853 = vmatmul.mubr.f32.gmra.mxu0 %v2946
        %v3854 = vpop.f32.mrf.mxu0
        %v3855 = vadd.f32 %v3630, %v3854
        %v3856 = vpop.f32.mrf.mxu0
        %3857 = vmatprep.mubr.f32.mxu0 %v3054
        %3858 = vmatmul.mubr.f32.gmra.mxu0 %v2949
        %v3859 = vpop.f32.mrf.mxu0
        %v3860 = vadd.f32 %v3635, %v3859
        %v3861 = vpop.f32.mrf.mxu0
        %3862 = vmatprep.mubr.f32.mxu0 %v3056
        %3863 = vmatmul.mubr.f32.gmra.mxu0 %v2951
        %v3864 = vpop.f32.mrf.mxu0
        %v3865 = vadd.f32 %v3640, %v3864
        %v3866 = vpop.f32.mrf.mxu0
        %3867 = vmatprep.mubr.f32.mxu0 %v3059
        %3868 = vmatmul.mubr.f32.gmra.mxu0 %v2954
        %v3869 = vpop.f32.mrf.mxu0
        %v3870 = vadd.f32 %v3645, %v3869
        %v3871 = vpop.f32.mrf.mxu0
        %3872 = vmatprep.mubr.f32.mxu0 %v3061
        %3873 = vmatmul.mubr.f32.gmra.mxu0 %v2956
        %v3874 = vpop.f32.mrf.mxu0
        %v3875 = vadd.f32 %v3650, %v3874
        %v3876 = vpop.f32.mrf.mxu0
        %3877 = vmatprep.mubr.f32.mxu0 %v3064
        %3878 = vmatmul.mubr.f32.gmra.mxu0 %v2959
        %v3879 = vpop.f32.mrf.mxu0
        %v3880 = vadd.f32 %v3655, %v3879
        %v3881 = vpop.f32.mrf.mxu0
        %3882 = vmatprep.mubr.f32.mxu0 %v3066
        %3883 = vmatmul.mubr.f32.gmra.mxu0 %v2961
        %v3884 = vpop.f32.mrf.mxu0
        %v3885 = vadd.f32 %v3660, %v3884
        %v3886 = vpop.f32.mrf.mxu0
        %3887 = vmatprep.mubr.f32.mxu0 %v3069
        %3888 = vmatmul.mubr.f32.gmra.mxu0 %v2964
        %v3889 = vpop.f32.mrf.mxu0
        %v3890 = vadd.f32 %v3665, %v3889
        %v3891 = vpop.f32.mrf.mxu0
        %3892 = vmatprep.mubr.f32.mxu0 %v3071
        %3893 = vmatmul.mubr.f32.gmra.mxu0 %v2966
        %v3894 = vpop.f32.mrf.mxu0
        %v3895 = vadd.f32 %v3670, %v3894
        %v3896 = vpop.f32.mrf.mxu0
        %3897 = vmatprep.mubr.f32.mxu0 %v3074
        %3898 = vmatmul.mubr.f32.gmra.mxu0 %v2969
        %v3899 = vpop.f32.mrf.mxu0
        %v3900 = vadd.f32 %v3675, %v3899
        %v3901 = vpop.f32.mrf.mxu0
        %3902 = vmatprep.mubr.f32.mxu0 %v3076
        %3903 = vmatmul.mubr.f32.gmra.mxu0 %v2971
        %v3904 = vpop.f32.mrf.mxu0
        %v3905 = vadd.f32 %v3680, %v3904
        %v3906 = vpop.f32.mrf.mxu0
        %3907 = vmatprep.mubr.f32.mxu0 %v3079
        %3908 = vmatmul.mubr.f32.gmra.mxu0 %v2974
        %v3909 = vpop.f32.mrf.mxu0
        %v3910 = vadd.f32 %v3685, %v3909
        %v3911 = vpop.f32.mrf.mxu0
        %3912 = vmatprep.mubr.f32.mxu0 %v3081
        %3913 = vmatmul.mubr.f32.gmra.mxu0 %v2976
        %v3914 = vpop.f32.mrf.mxu0
        %v3915 = vadd.f32 %v3690, %v3914
        %v3916 = vpop.f32.mrf.mxu0
        %3917 = vmatprep.mubr.f32.mxu0 %v3084
        %3918 = vmatmul.mubr.f32.gmra.mxu0 %v2979
        %v3919 = vpop.f32.mrf.mxu0
        %v3920 = vadd.f32 %v3695, %v3919
        %v3921 = vpop.f32.mrf.mxu0
        %3922 = vmatprep.mubr.f32.mxu0 %v3086
        %3923 = vmatmul.mubr.f32.gmra.mxu0 %v2981
        %v3924 = vpop.f32.mrf.mxu0
        %v3925 = vadd.f32 %v3700, %v3924
        %v3926 = vpop.f32.mrf.mxu0
        %3927 = vmatprep.mubr.f32.mxu0 %v3089
        %3928 = vmatmul.mubr.f32.gmra.mxu0 %v2984
        %v3929 = vpop.f32.mrf.mxu0
        %v3930 = vadd.f32 %v3705, %v3929
        %v3931 = vpop.f32.mrf.mxu0
        %3932 = vmatprep.mubr.f32.mxu0 %v3091
        %3933 = vmatmul.mubr.f32.gmra.mxu0 %v2986
        %v3934 = vpop.f32.mrf.mxu0
        %v3935 = vadd.f32 %v3710, %v3934
        %v3936 = vpop.f32.mrf.mxu0
        %3937 = vmatprep.mubr.f32.mxu0 %v3094
        %3938 = vmatmul.mubr.f32.gmra.mxu0 %v2989
        %v3939 = vpop.f32.mrf.mxu0
        %v3940 = vadd.f32 %v3715, %v3939
        %v3941 = vpop.f32.mrf.mxu0
        %3942 = vmatprep.mubr.f32.mxu0 %v3096
        %3943 = vmatmul.mubr.f32.gmra.mxu0 %v2991
        %v3944 = vpop.f32.mrf.mxu0
        %v3945 = vadd.f32 %v3720, %v3944
        %v3946 = vpop.f32.mrf.mxu0
        %3947 = vmatprep.mubr.f32.mxu0 %v3099
        %3948 = vmatmul.mubr.f32.gmra.mxu0 %v2994
        %v3949 = vpop.f32.mrf.mxu0
        %v3950 = vadd.f32 %v3725, %v3949
        %v3951 = vpop.f32.mrf.mxu0
        %3952 = vmatprep.mubr.f32.mxu0 %v3101
        %3953 = vmatmul.mubr.f32.gmra.mxu0 %v2996
        %v3954 = vpop.f32.mrf.mxu0
        %v3955 = vadd.f32 %v3730, %v3954
        %v3956 = vpop.f32.mrf.mxu0
        %3957 = vmatprep.mubr.f32.mxu0 %v3143
        %3958 = vmatmul.mubr.f32.gmra.mxu0 %v3136
        %v3959 = vpop.f32.mrf.mxu0
        %v3960 = vadd.f32 %v3735, %v3959
        %v3961 = vpop.f32.mrf.mxu0
        %3962 = vmatprep.mubr.f32.mxu0 %v3145
        %3963 = vmatmul.mubr.f32.gmra.mxu0 %v3138
        %v3964 = vpop.f32.mrf.mxu0
        %v3965 = vadd.f32 %v3740, %v3964
        %v3966 = vpop.f32.mrf.mxu0
        %3967 = vdwg.mxu0
        %3968 = vmatprep.subr.mxu0 0.0
        %3969 = vmatpush1.msra.mxu0 %v3260
        %3970 = vmatprep.subr.mxu0 0.0
        %3971 = vmatpush1.msra.mxu0 %v3259
        %3972 = vmatprep.subr.mxu0 0.0
        %3973 = vmatpush1.msra.mxu0 %v3258
        %3974 = vmatprep.subr.mxu0 0.0
        %3975 = vmatpush1.msra.mxu0 %v3257
        %3976 = vmatprep.subr.mxu0 0.0
        %3977 = vmatpush1.msra.mxu0 %v3256
        %3978 = vmatprep.subr.mxu0 0.0
        %3979 = vmatpush1.msra.mxu0 %v3255
        %3980 = vmatprep.subr.mxu0 0.0
        %3981 = vmatpush1.msra.mxu0 %v3254
        %3982 = vmatprep.subr.mxu0 0.0
        %3983 = vmatpush1.msra.mxu0 %v3253
        %3984 = vmatprep.subr.mxu0 0.0
        %3985 = vmatpush1.msra.mxu0 %v3252
        %3986 = vmatprep.subr.mxu0 0.0
        %3987 = vmatpush1.msra.mxu0 %v3251
        %3988 = vmatprep.subr.mxu0 0.0
        %3989 = vmatpush1.msra.mxu0 %v3250
        %3990 = vmatprep.subr.mxu0 0.0
        %3991 = vmatpush1.msra.mxu0 %v3249
        %3992 = vmatprep.subr.mxu0 0.0
        %3993 = vmatpush1.msra.mxu0 %v3248
        %3994 = vmatprep.subr.mxu0 0.0
        %3995 = vmatpush1.msra.mxu0 %v3247
        %3996 = vmatprep.subr.mxu0 0.0
        %3997 = vmatpush1.msra.mxu0 %v3246
        %3998 = vmatprep.subr.mxu0 0.0
        %3999 = vmatpush1.msra.mxu0 %v3245
        %4000 = vmatprep.subr.mxu0 0.0
        %4001 = vmatpush2.msra.mxu0 %v3276
        %4002 = vmatprep.subr.mxu0 0.0
        %4003 = vmatpush2.msra.mxu0 %v3275
        %4004 = vmatprep.subr.mxu0 0.0
        %4005 = vmatpush2.msra.mxu0 %v3274
        %4006 = vmatprep.subr.mxu0 0.0
        %4007 = vmatpush2.msra.mxu0 %v3273
        %4008 = vmatprep.subr.mxu0 0.0
        %4009 = vmatpush2.msra.mxu0 %v3272
        %4010 = vmatprep.subr.mxu0 0.0
        %4011 = vmatpush2.msra.mxu0 %v3271
        %4012 = vmatprep.subr.mxu0 0.0
        %4013 = vmatpush2.msra.mxu0 %v3270
        %4014 = vmatprep.subr.mxu0 0.0
        %4015 = vmatpush2.msra.mxu0 %v3269
        %4016 = vmatprep.subr.mxu0 0.0
        %4017 = vmatpush2.msra.mxu0 %v3268
        %4018 = vmatprep.subr.mxu0 0.0
        %4019 = vmatpush2.msra.mxu0 %v3267
        %4020 = vmatprep.subr.mxu0 0.0
        %4021 = vmatpush2.msra.mxu0 %v3266
        %4022 = vmatprep.subr.mxu0 0.0
        %4023 = vmatpush2.msra.mxu0 %v3265
        %4024 = vmatprep.subr.mxu0 0.0
        %4025 = vmatpush2.msra.mxu0 %v3264
        %4026 = vmatprep.subr.mxu0 0.0
        %4027 = vmatpush2.msra.mxu0 %v3263
        %4028 = vmatprep.subr.mxu0 0.0
        %4029 = vmatpush2.msra.mxu0 %v3262
        %4030 = vmatprep.subr.mxu0 0.0
        %4031 = vmatpush2.msra.mxu0 %v3261
        %4032 = vmatprep.mubr.f32.mxu0 %v2929
        %4033 = vmatmul.mubr.f32.gmra.mxu0 %v2861
        %v4034 = vpop.f32.mrf.mxu0
        %v4035 = vadd.f32 %v3810, %v4034
        %v4036 = vpop.f32.mrf.mxu0
        %4037 = vmatprep.mubr.f32.mxu0 %v2931
        %4038 = vmatmul.mubr.f32.gmra.mxu0 %v2769
        %v4039 = vpop.f32.mrf.mxu0
        %v4040 = vadd.f32 %v3815, %v4039
        %v4041 = vpop.f32.mrf.mxu0
        %4042 = vmatprep.mubr.f32.mxu0 %v2934
        %4043 = vmatmul.mubr.f32.gmra.mxu0 %v2862
        %v4044 = vpop.f32.mrf.mxu0
        %v4045 = vadd.f32 %v3820, %v4044
        %v4046 = vpop.f32.mrf.mxu0
        %4047 = vmatprep.mubr.f32.mxu0 %v2936
        %4048 = vmatmul.mubr.f32.gmra.mxu0 %v2772
        %v4049 = vpop.f32.mrf.mxu0
        %v4050 = vadd.f32 %v3825, %v4049
        %v4051 = vpop.f32.mrf.mxu0
        %4052 = vmatprep.mubr.f32.mxu0 %v2939
        %4053 = vmatmul.mubr.f32.gmra.mxu0 %v2863
        %v4054 = vpop.f32.mrf.mxu0
        %v4055 = vadd.f32 %v3830, %v4054
        %v4056 = vpop.f32.mrf.mxu0
        %4057 = vmatprep.mubr.f32.mxu0 %v2941
        %4058 = vmatmul.mubr.f32.gmra.mxu0 %v2775
        %v4059 = vpop.f32.mrf.mxu0
        %v4060 = vadd.f32 %v3835, %v4059
        %v4061 = vpop.f32.mrf.mxu0
        %4062 = vmatprep.mubr.f32.mxu0 %v2944
        %4063 = vmatmul.mubr.f32.gmra.mxu0 %v2864
        %v4064 = vpop.f32.mrf.mxu0
        %v4065 = vadd.f32 %v3840, %v4064
        %v4066 = vpop.f32.mrf.mxu0
        %4067 = vmatprep.mubr.f32.mxu0 %v2946
        %4068 = vmatmul.mubr.f32.gmra.mxu0 %v2778
        %v4069 = vpop.f32.mrf.mxu0
        %v4070 = vadd.f32 %v3845, %v4069
        %v4071 = vpop.f32.mrf.mxu0
        %4072 = vmatprep.mubr.f32.mxu0 %v2949
        %4073 = vmatmul.mubr.f32.gmra.mxu0 %v2865
        %v4074 = vpop.f32.mrf.mxu0
        %v4075 = vadd.f32 %v3850, %v4074
        %v4076 = vpop.f32.mrf.mxu0
        %4077 = vmatprep.mubr.f32.mxu0 %v2951
        %4078 = vmatmul.mubr.f32.gmra.mxu0 %v2781
        %v4079 = vpop.f32.mrf.mxu0
        %v4080 = vadd.f32 %v3855, %v4079
        %v4081 = vpop.f32.mrf.mxu0
        %4082 = vmatprep.mubr.f32.mxu0 %v2954
        %4083 = vmatmul.mubr.f32.gmra.mxu0 %v2866
        %v4084 = vpop.f32.mrf.mxu0
        %v4085 = vadd.f32 %v3860, %v4084
        %v4086 = vpop.f32.mrf.mxu0
        %4087 = vmatprep.mubr.f32.mxu0 %v2956
        %4088 = vmatmul.mubr.f32.gmra.mxu0 %v2784
        %v4089 = vpop.f32.mrf.mxu0
        %v4090 = vadd.f32 %v3865, %v4089
        %v4091 = vpop.f32.mrf.mxu0
        %4092 = vmatprep.mubr.f32.mxu0 %v2959
        %4093 = vmatmul.mubr.f32.gmra.mxu0 %v2867
        %v4094 = vpop.f32.mrf.mxu0
        %v4095 = vadd.f32 %v3870, %v4094
        %v4096 = vpop.f32.mrf.mxu0
        %4097 = vmatprep.mubr.f32.mxu0 %v2961
        %4098 = vmatmul.mubr.f32.gmra.mxu0 %v2787
        %v4099 = vpop.f32.mrf.mxu0
        %v4100 = vadd.f32 %v3875, %v4099
        %v4101 = vpop.f32.mrf.mxu0
        %4102 = vmatprep.mubr.f32.mxu0 %v2964
        %4103 = vmatmul.mubr.f32.gmra.mxu0 %v2868
        %v4104 = vpop.f32.mrf.mxu0
        %v4105 = vadd.f32 %v3880, %v4104
        %v4106 = vpop.f32.mrf.mxu0
        %4107 = vmatprep.mubr.f32.mxu0 %v2966
        %4108 = vmatmul.mubr.f32.gmra.mxu0 %v2790
        %v4109 = vpop.f32.mrf.mxu0
        %v4110 = vadd.f32 %v3885, %v4109
        %v4111 = vpop.f32.mrf.mxu0
        %4112 = vmatprep.mubr.f32.mxu0 %v2969
        %4113 = vmatmul.mubr.f32.gmra.mxu0 %v2869
        %v4114 = vpop.f32.mrf.mxu0
        %v4115 = vadd.f32 %v3890, %v4114
        %v4116 = vpop.f32.mrf.mxu0
        %4117 = vmatprep.mubr.f32.mxu0 %v2971
        %4118 = vmatmul.mubr.f32.gmra.mxu0 %v2793
        %v4119 = vpop.f32.mrf.mxu0
        %v4120 = vadd.f32 %v3895, %v4119
        %v4121 = vpop.f32.mrf.mxu0
        %4122 = vmatprep.mubr.f32.mxu0 %v2974
        %4123 = vmatmul.mubr.f32.gmra.mxu0 %v2870
        %v4124 = vpop.f32.mrf.mxu0
        %v4125 = vadd.f32 %v3900, %v4124
        %v4126 = vpop.f32.mrf.mxu0
        %4127 = vmatprep.mubr.f32.mxu0 %v2976
        %4128 = vmatmul.mubr.f32.gmra.mxu0 %v2796
        %v4129 = vpop.f32.mrf.mxu0
        %v4130 = vadd.f32 %v3905, %v4129
        %v4131 = vpop.f32.mrf.mxu0
        %4132 = vmatprep.mubr.f32.mxu0 %v2979
        %4133 = vmatmul.mubr.f32.gmra.mxu0 %v2871
        %v4134 = vpop.f32.mrf.mxu0
        %v4135 = vadd.f32 %v3910, %v4134
        %v4136 = vpop.f32.mrf.mxu0
        %4137 = vmatprep.mubr.f32.mxu0 %v2981
        %4138 = vmatmul.mubr.f32.gmra.mxu0 %v2799
        %v4139 = vpop.f32.mrf.mxu0
        %v4140 = vadd.f32 %v3915, %v4139
        %v4141 = vpop.f32.mrf.mxu0
        %4142 = vmatprep.mubr.f32.mxu0 %v2984
        %4143 = vmatmul.mubr.f32.gmra.mxu0 %v2872
        %v4144 = vpop.f32.mrf.mxu0
        %v4145 = vadd.f32 %v3920, %v4144
        %v4146 = vpop.f32.mrf.mxu0
        %4147 = vmatprep.mubr.f32.mxu0 %v2986
        %4148 = vmatmul.mubr.f32.gmra.mxu0 %v2802
        %v4149 = vpop.f32.mrf.mxu0
        %v4150 = vadd.f32 %v3925, %v4149
        %v4151 = vpop.f32.mrf.mxu0
        %4152 = vmatprep.mubr.f32.mxu0 %v2989
        %4153 = vmatmul.mubr.f32.gmra.mxu0 %v2873
        %v4154 = vpop.f32.mrf.mxu0
        %v4155 = vadd.f32 %v3930, %v4154
        %v4156 = vpop.f32.mrf.mxu0
        %4157 = vmatprep.mubr.f32.mxu0 %v2991
        %4158 = vmatmul.mubr.f32.gmra.mxu0 %v2805
        %v4159 = vpop.f32.mrf.mxu0
        %v4160 = vadd.f32 %v3935, %v4159
        %v4161 = vpop.f32.mrf.mxu0
        %4162 = vmatprep.mubr.f32.mxu0 %v2994
        %4163 = vmatmul.mubr.f32.gmra.mxu0 %v2874
        %v4164 = vpop.f32.mrf.mxu0
        %v4165 = vadd.f32 %v3940, %v4164
        %v4166 = vpop.f32.mrf.mxu0
        %4167 = vmatprep.mubr.f32.mxu0 %v2996
        %4168 = vmatmul.mubr.f32.gmra.mxu0 %v2808
        %v4169 = vpop.f32.mrf.mxu0
        %v4170 = vadd.f32 %v3945, %v4169
        %v4171 = vpop.f32.mrf.mxu0
        %4172 = vmatprep.mubr.f32.mxu0 %v3136
        %4173 = vmatmul.mubr.f32.gmra.mxu0 %v2875
        %v4174 = vpop.f32.mrf.mxu0
        %v4175 = vadd.f32 %v3950, %v4174
        %v4176 = vpop.f32.mrf.mxu0
        %4177 = vmatprep.mubr.f32.mxu0 %v3138
        %4178 = vmatmul.mubr.f32.gmra.mxu0 %v2811
        %v4179 = vpop.f32.mrf.mxu0
        %v4180 = vadd.f32 %v3955, %v4179
        %v4181 = vpop.f32.mrf.mxu0
        %4182 = vmatprep.mubr.f32.mxu0 %v1016
        %4183 = vmatmul.mubr.f32.gmra.mxu0 %v947
        %v4184 = vpop.f32.mrf.mxu0
        %v4185 = vadd.f32 %v3960, %v4184
        %v4186 = vpop.f32.mrf.mxu0
        %4187 = vmatprep.mubr.f32.mxu0 %v1018
        %4188 = vmatmul.mubr.f32.gmra.mxu0 %v848
        %v4189 = vpop.f32.mrf.mxu0
        %v4190 = vadd.f32 %v3965, %v4189
        %v4191 = vpop.f32.mrf.mxu0
        %4192 = vdwg.mxu0
        %4193 = vmatprep.subr.mxu0 0.0
        %4194 = vmatpush1.msra.mxu0 %v3292
        %4195 = vmatprep.subr.mxu0 0.0
        %4196 = vmatpush1.msra.mxu0 %v3291
        %4197 = vmatprep.subr.mxu0 0.0
        %4198 = vmatpush1.msra.mxu0 %v3290
        %4199 = vmatprep.subr.mxu0 0.0
        %4200 = vmatpush1.msra.mxu0 %v3289
        %4201 = vmatprep.subr.mxu0 0.0
        %4202 = vmatpush1.msra.mxu0 %v3288
        %4203 = vmatprep.subr.mxu0 0.0
        %4204 = vmatpush1.msra.mxu0 %v3287
        %4205 = vmatprep.subr.mxu0 0.0
        %4206 = vmatpush1.msra.mxu0 %v3286
        %4207 = vmatprep.subr.mxu0 0.0
        %4208 = vmatpush1.msra.mxu0 %v3285
        %4209 = vmatprep.subr.mxu0 0.0
        %4210 = vmatpush1.msra.mxu0 %v3284
        %4211 = vmatprep.subr.mxu0 0.0
        %4212 = vmatpush1.msra.mxu0 %v3283
        %4213 = vmatprep.subr.mxu0 0.0
        %4214 = vmatpush1.msra.mxu0 %v3282
        %4215 = vmatprep.subr.mxu0 0.0
        %4216 = vmatpush1.msra.mxu0 %v3281
        %4217 = vmatprep.subr.mxu0 0.0
        %4218 = vmatpush1.msra.mxu0 %v3280
        %4219 = vmatprep.subr.mxu0 0.0
        %4220 = vmatpush1.msra.mxu0 %v3279
        %4221 = vmatprep.subr.mxu0 0.0
        %4222 = vmatpush1.msra.mxu0 %v3278
        %4223 = vmatprep.subr.mxu0 0.0
        %4224 = vmatpush1.msra.mxu0 %v3277
        %4225 = vmatprep.subr.mxu0 0.0
        %4226 = vmatpush2.msra.mxu0 0.0
        %4227 = vmatprep.subr.mxu0 0.0
        %4228 = vmatpush2.msra.mxu0 0.0
        %4229 = vmatprep.subr.mxu0 0.0
        %4230 = vmatpush2.msra.mxu0 0.0
        %4231 = vmatprep.subr.mxu0 0.0
        %4232 = vmatpush2.msra.mxu0 0.0
        %4233 = vmatprep.subr.mxu0 0.0
        %4234 = vmatpush2.msra.mxu0 0.0
        %4235 = vmatprep.subr.mxu0 0.0
        %4236 = vmatpush2.msra.mxu0 0.0
        %4237 = vmatprep.subr.mxu0 0.0
        %4238 = vmatpush2.msra.mxu0 0.0
        %4239 = vmatprep.subr.mxu0 0.0
        %4240 = vmatpush2.msra.mxu0 0.0
        %4241 = vmatprep.subr.mxu0 0.0
        %4242 = vmatpush2.msra.mxu0 0.0
        %4243 = vmatprep.subr.mxu0 0.0
        %4244 = vmatpush2.msra.mxu0 0.0
        %4245 = vmatprep.subr.mxu0 0.0
        %4246 = vmatpush2.msra.mxu0 0.0
        %4247 = vmatprep.subr.mxu0 0.0
        %4248 = vmatpush2.msra.mxu0 0.0
        %4249 = vmatprep.subr.mxu0 0.0
        %4250 = vmatpush2.msra.mxu0 0.0
        %4251 = vmatprep.subr.mxu0 0.0
        %4252 = vmatpush2.msra.mxu0 0.0
        %4253 = vmatprep.subr.mxu0 0.0
        %4254 = vmatpush2.msra.mxu0 0.0
        %4255 = vmatprep.subr.mxu0 0.0
        %4256 = vmatpush2.msra.mxu0 0.0
        %4257 = vmatprep.mubr.f32.mxu0 0.0
        %4258 = vmatmul.mubr.f32.gmra.mxu0 %v3034
        %v4259 = vpop.f32.mrf.mxu0
        %v4260 = vadd.f32 %v4035, %v4259
        %v4261 = vpop.f32.mrf.mxu0
        %4262 = vmatprep.mubr.f32.mxu0 0.0
        %4263 = vmatmul.mubr.f32.gmra.mxu0 %v3036
        %v4264 = vpop.f32.mrf.mxu0
        %v4265 = vadd.f32 %v4040, %v4264
        %v4266 = vpop.f32.mrf.mxu0
        %4267 = vmatprep.mubr.f32.mxu0 0.0
        %4268 = vmatmul.mubr.f32.gmra.mxu0 %v3039
        %v4269 = vpop.f32.mrf.mxu0
        %v4270 = vadd.f32 %v4045, %v4269
        %v4271 = vpop.f32.mrf.mxu0
        %4272 = vmatprep.mubr.f32.mxu0 0.0
        %4273 = vmatmul.mubr.f32.gmra.mxu0 %v3041
        %v4274 = vpop.f32.mrf.mxu0
        %v4275 = vadd.f32 %v4050, %v4274
        %v4276 = vpop.f32.mrf.mxu0
        %4277 = vmatprep.mubr.f32.mxu0 0.0
        %4278 = vmatmul.mubr.f32.gmra.mxu0 %v3044
        %v4279 = vpop.f32.mrf.mxu0
        %v4280 = vadd.f32 %v4055, %v4279
        %v4281 = vpop.f32.mrf.mxu0
        %4282 = vmatprep.mubr.f32.mxu0 0.0
        %4283 = vmatmul.mubr.f32.gmra.mxu0 %v3046
        %v4284 = vpop.f32.mrf.mxu0
        %v4285 = vadd.f32 %v4060, %v4284
        %v4286 = vpop.f32.mrf.mxu0
        %4287 = vmatprep.mubr.f32.mxu0 0.0
        %4288 = vmatmul.mubr.f32.gmra.mxu0 %v3049
        %v4289 = vpop.f32.mrf.mxu0
        %v4290 = vadd.f32 %v4065, %v4289
        %v4291 = vpop.f32.mrf.mxu0
        %4292 = vmatprep.mubr.f32.mxu0 0.0
        %4293 = vmatmul.mubr.f32.gmra.mxu0 %v3051
        %v4294 = vpop.f32.mrf.mxu0
        %v4295 = vadd.f32 %v4070, %v4294
        %v4296 = vpop.f32.mrf.mxu0
        %4297 = vmatprep.mubr.f32.mxu0 0.0
        %4298 = vmatmul.mubr.f32.gmra.mxu0 %v3054
        %v4299 = vpop.f32.mrf.mxu0
        %v4300 = vadd.f32 %v4075, %v4299
        %v4301 = vpop.f32.mrf.mxu0
        %4302 = vmatprep.mubr.f32.mxu0 0.0
        %4303 = vmatmul.mubr.f32.gmra.mxu0 %v3056
        %v4304 = vpop.f32.mrf.mxu0
        %v4305 = vadd.f32 %v4080, %v4304
        %v4306 = vpop.f32.mrf.mxu0
        %4307 = vmatprep.mubr.f32.mxu0 0.0
        %4308 = vmatmul.mubr.f32.gmra.mxu0 %v3059
        %v4309 = vpop.f32.mrf.mxu0
        %v4310 = vadd.f32 %v4085, %v4309
        %v4311 = vpop.f32.mrf.mxu0
        %4312 = vmatprep.mubr.f32.mxu0 0.0
        %4313 = vmatmul.mubr.f32.gmra.mxu0 %v3061
        %v4314 = vpop.f32.mrf.mxu0
        %v4315 = vadd.f32 %v4090, %v4314
        %v4316 = vpop.f32.mrf.mxu0
        %4317 = vmatprep.mubr.f32.mxu0 0.0
        %4318 = vmatmul.mubr.f32.gmra.mxu0 %v3064
        %v4319 = vpop.f32.mrf.mxu0
        %v4320 = vadd.f32 %v4095, %v4319
        %v4321 = vpop.f32.mrf.mxu0
        %4322 = vmatprep.mubr.f32.mxu0 0.0
        %4323 = vmatmul.mubr.f32.gmra.mxu0 %v3066
        %v4324 = vpop.f32.mrf.mxu0
        %v4325 = vadd.f32 %v4100, %v4324
        %v4326 = vpop.f32.mrf.mxu0
        %4327 = vmatprep.mubr.f32.mxu0 0.0
        %4328 = vmatmul.mubr.f32.gmra.mxu0 %v3069
        %v4329 = vpop.f32.mrf.mxu0
        %v4330 = vadd.f32 %v4105, %v4329
        %v4331 = vpop.f32.mrf.mxu0
        %4332 = vmatprep.mubr.f32.mxu0 0.0
        %4333 = vmatmul.mubr.f32.gmra.mxu0 %v3071
        %v4334 = vpop.f32.mrf.mxu0
        %v4335 = vadd.f32 %v4110, %v4334
        %v4336 = vpop.f32.mrf.mxu0
        %4337 = vmatprep.mubr.f32.mxu0 0.0
        %4338 = vmatmul.mubr.f32.gmra.mxu0 %v3074
        %v4339 = vpop.f32.mrf.mxu0
        %v4340 = vadd.f32 %v4115, %v4339
        %v4341 = vpop.f32.mrf.mxu0
        %4342 = vmatprep.mubr.f32.mxu0 0.0
        %4343 = vmatmul.mubr.f32.gmra.mxu0 %v3076
        %v4344 = vpop.f32.mrf.mxu0
        %v4345 = vadd.f32 %v4120, %v4344
        %v4346 = vpop.f32.mrf.mxu0
        %4347 = vmatprep.mubr.f32.mxu0 0.0
        %4348 = vmatmul.mubr.f32.gmra.mxu0 %v3079
        %v4349 = vpop.f32.mrf.mxu0
        %v4350 = vadd.f32 %v4125, %v4349
        %v4351 = vpop.f32.mrf.mxu0
        %4352 = vmatprep.mubr.f32.mxu0 0.0
        %4353 = vmatmul.mubr.f32.gmra.mxu0 %v3081
        %v4354 = vpop.f32.mrf.mxu0
        %v4355 = vadd.f32 %v4130, %v4354
        %v4356 = vpop.f32.mrf.mxu0
        %4357 = vmatprep.mubr.f32.mxu0 0.0
        %4358 = vmatmul.mubr.f32.gmra.mxu0 %v3084
        %v4359 = vpop.f32.mrf.mxu0
        %v4360 = vadd.f32 %v4135, %v4359
        %v4361 = vpop.f32.mrf.mxu0
        %4362 = vmatprep.mubr.f32.mxu0 0.0
        %4363 = vmatmul.mubr.f32.gmra.mxu0 %v3086
        %v4364 = vpop.f32.mrf.mxu0
        %v4365 = vadd.f32 %v4140, %v4364
        %v4366 = vpop.f32.mrf.mxu0
        %4367 = vmatprep.mubr.f32.mxu0 0.0
        %4368 = vmatmul.mubr.f32.gmra.mxu0 %v3089
        %v4369 = vpop.f32.mrf.mxu0
        %v4370 = vadd.f32 %v4145, %v4369
        %v4371 = vpop.f32.mrf.mxu0
        %4372 = vmatprep.mubr.f32.mxu0 0.0
        %4373 = vmatmul.mubr.f32.gmra.mxu0 %v3091
        %v4374 = vpop.f32.mrf.mxu0
        %v4375 = vadd.f32 %v4150, %v4374
        %v4376 = vpop.f32.mrf.mxu0
        %4377 = vmatprep.mubr.f32.mxu0 0.0
        %4378 = vmatmul.mubr.f32.gmra.mxu0 %v3094
        %v4379 = vpop.f32.mrf.mxu0
        %v4380 = vadd.f32 %v4155, %v4379
        %v4381 = vpop.f32.mrf.mxu0
        %4382 = vmatprep.mubr.f32.mxu0 0.0
        %4383 = vmatmul.mubr.f32.gmra.mxu0 %v3096
        %v4384 = vpop.f32.mrf.mxu0
        %v4385 = vadd.f32 %v4160, %v4384
        %v4386 = vpop.f32.mrf.mxu0
        %4387 = vmatprep.mubr.f32.mxu0 0.0
        %4388 = vmatmul.mubr.f32.gmra.mxu0 %v3099
        %v4389 = vpop.f32.mrf.mxu0
        %v4390 = vadd.f32 %v4165, %v4389
        %v4391 = vpop.f32.mrf.mxu0
        %4392 = vmatprep.mubr.f32.mxu0 0.0
        %4393 = vmatmul.mubr.f32.gmra.mxu0 %v3101
        %v4394 = vpop.f32.mrf.mxu0
        %v4395 = vadd.f32 %v4170, %v4394
        %v4396 = vpop.f32.mrf.mxu0
        %4397 = vmatprep.mubr.f32.mxu0 0.0
        %4398 = vmatmul.mubr.f32.gmra.mxu0 %v3143
        %v4399 = vpop.f32.mrf.mxu0
        %v4400 = vadd.f32 %v4175, %v4399
        %v4401 = vpop.f32.mrf.mxu0
        %4402 = vmatprep.mubr.f32.mxu0 0.0
        %4403 = vmatmul.mubr.f32.gmra.mxu0 %v3145
        %v4404 = vpop.f32.mrf.mxu0
        %v4405 = vadd.f32 %v4180, %v4404
        %v4406 = vpop.f32.mrf.mxu0
        %4407 = vmatprep.mubr.f32.mxu0 0.0
        %4408 = vmatmul.mubr.f32.gmra.mxu0 %v1129
        %v4409 = vpop.f32.mrf.mxu0
        %v4410 = vadd.f32 %v4185, %v4409
        %v4411 = vpop.f32.mrf.mxu0
        %4412 = vmatprep.mubr.f32.mxu0 0.0
        %4413 = vmatmul.mubr.f32.gmra.mxu0 %v1131
        %v4414 = vpop.f32.mrf.mxu0
        %v4415 = vadd.f32 %v4190, %v4414
        %v4416 = vpop.f32.mrf.mxu0
        %4417 = vdwg.mxu0
        %v4418 = vadd.f32 %v2588, %v4260
        %v4419 = vadd.f32 %v2589, %v4265
        %v4420 = vadd.f32 %v2590, %v4270
        %v4421 = vadd.f32 %v2591, %v4275
        %v4422 = vadd.f32 %v2592, %v4280
        %v4423 = vadd.f32 %v2593, %v4285
        %v4424 = vadd.f32 %v2594, %v4290
        %v4425 = vadd.f32 %v2595, %v4295
        %v4426 = vadd.f32 %v2596, %v4300
        %v4427 = vadd.f32 %v2597, %v4305
        %v4428 = vadd.f32 %v2598, %v4310
        %v4429 = vadd.f32 %v2599, %v4315
        %v4430 = vadd.f32 %v2600, %v4320
        %v4431 = vadd.f32 %v2601, %v4325
        %v4432 = vadd.f32 %v2602, %v4330
        %v4433 = vadd.f32 %v2603, %v4335
        %v4434 = vadd.f32 %v2604, %v4340
        %v4435 = vadd.f32 %v2605, %v4345
        %v4436 = vadd.f32 %v2606, %v4350
        %v4437 = vadd.f32 %v2607, %v4355
        %v4438 = vadd.f32 %v2608, %v4360
        %v4439 = vadd.f32 %v2609, %v4365
        %v4440 = vadd.f32 %v2610, %v4370
        %v4441 = vadd.f32 %v2611, %v4375
        %v4442 = vadd.f32 %v2612, %v4380
        %v4443 = vadd.f32 %v2613, %v4385
        %v4444 = vadd.f32 %v2614, %v4390
        %v4445 = vadd.f32 %v2615, %v4395
        %v4446 = vadd.f32 %v2616, %v4400
        %v4447 = vadd.f32 %v2617, %v4405
        %v4448 = vadd.f32 %v2618, %v4410
        %v4449 = vadd.f32 %v2619, %v4415
        %4450 = vst [vmem:[%s274] sm:$0xff] %v4418
        %4451 = vst [vmem:[%s274 + $0x8] sm:$0xff] %v4419
        %4452 = vst [vmem:[%s274 + $0x10] sm:$0xff] %v4420
        %4453 = vst [vmem:[%s274 + $0x18] sm:$0xff] %v4421
        %4454 = vst [vmem:[%s274 + $0x20] sm:$0xff] %v4422
        %4455 = vst [vmem:[%s274 + $0x28] sm:$0xff] %v4423
        %4456 = vst [vmem:[%s274 + $0x30] sm:$0xff] %v4424
        %4457 = vst [vmem:[%s274 + $0x38] sm:$0xff] %v4425
        %4458 = vst [vmem:[%s274 + $0x40] sm:$0xff] %v4426
        %4459 = vst [vmem:[%s274 + $0x48] sm:$0xff] %v4427
        %4460 = vst [vmem:[%s274 + $0x50] sm:$0xff] %v4428
        %4461 = vst [vmem:[%s274 + $0x58] sm:$0xff] %v4429
        %4462 = vst [vmem:[%s274 + $0x60] sm:$0xff] %v4430
        %4463 = vst [vmem:[%s274 + $0x68] sm:$0xff] %v4431
        %4464 = vst [vmem:[%s274 + $0x70] sm:$0xff] %v4432
        %4465 = vst [vmem:[%s274 + $0x78] sm:$0xff] %v4433
        %4466 = vst [vmem:[%s274 + $0x80] sm:$0xff] %v4434
        %4467 = vst [vmem:[%s274 + $0x88] sm:$0xff] %v4435
        %4468 = vst [vmem:[%s274 + $0x90] sm:$0xff] %v4436
        %4469 = vst [vmem:[%s274 + $0x98] sm:$0xff] %v4437
        %4470 = vst [vmem:[%s274 + $0xa0] sm:$0xff] %v4438
        %4471 = vst [vmem:[%s274 + $0xa8] sm:$0xff] %v4439
        %4472 = vst [vmem:[%s274 + $0xb0] sm:$0xff] %v4440
        %4473 = vst [vmem:[%s274 + $0xb8] sm:$0xff] %v4441
        %4474 = vst [vmem:[%s274 + $0xc0] sm:$0xff] %v4442
        %4475 = vst [vmem:[%s274 + $0xc8] sm:$0xff] %v4443
        %4476 = vst [vmem:[%s274 + $0xd0] sm:$0xff] %v4444
        %4477 = vst [vmem:[%s274 + $0xd8] sm:$0xff] %v4445
        %4478 = vst [vmem:[%s274 + $0xe0] sm:$0xff] %v4446
        %4479 = vst [vmem:[%s274 + $0xe8] sm:$0xff] %v4447
        %4480 = vst [vmem:[%s274 + $0xf0] sm:$0xff] %v4448
        %4481 = vst [vmem:[%s274 + $0xf8] sm:$0xff] %v4449
        %v4482 = vld [vmem:[%s274] sm:$0xff]
        %v4483 = vld [vmem:[%s274 + $0x8] sm:$0xff]
        %v4484 = vld [vmem:[%s274 + $0x10] sm:$0xff]
        %v4485 = vld [vmem:[%s274 + $0x18] sm:$0xff]
        %v4486 = vld [vmem:[%s274 + $0x20] sm:$0xff]
        %v4487 = vld [vmem:[%s274 + $0x28] sm:$0xff]
        %v4488 = vld [vmem:[%s274 + $0x30] sm:$0xff]
        %v4489 = vld [vmem:[%s274 + $0x38] sm:$0xff]
        %v4490 = vld [vmem:[%s274 + $0x40] sm:$0xff]
        %v4491 = vld [vmem:[%s274 + $0x48] sm:$0xff]
        %v4492 = vld [vmem:[%s274 + $0x50] sm:$0xff]
        %v4493 = vld [vmem:[%s274 + $0x58] sm:$0xff]
        %v4494 = vld [vmem:[%s274 + $0x60] sm:$0xff]
        %v4495 = vld [vmem:[%s274 + $0x68] sm:$0xff]
        %v4496 = vld [vmem:[%s274 + $0x70] sm:$0xff]
        %v4497 = vld [vmem:[%s274 + $0x78] sm:$0xff]
        %v4498 = vld [vmem:[%s274 + $0x80] sm:$0xff]
        %v4499 = vld [vmem:[%s274 + $0x88] sm:$0xff]
        %v4500 = vld [vmem:[%s274 + $0x90] sm:$0xff]
        %v4501 = vld [vmem:[%s274 + $0x98] sm:$0xff]
        %v4502 = vld [vmem:[%s274 + $0xa0] sm:$0xff]
        %v4503 = vld [vmem:[%s274 + $0xa8] sm:$0xff]
        %v4504 = vld [vmem:[%s274 + $0xb0] sm:$0xff]
        %v4505 = vld [vmem:[%s274 + $0xb8] sm:$0xff]
        %v4506 = vld [vmem:[%s274 + $0xc0] sm:$0xff]
        %v4507 = vld [vmem:[%s274 + $0xc8] sm:$0xff]
        %v4508 = vld [vmem:[%s274 + $0xd0] sm:$0xff]
        %v4509 = vld [vmem:[%s274 + $0xd8] sm:$0xff]
        %v4510 = vld [vmem:[%s274 + $0xe0] sm:$0xff]
        %v4511 = vld [vmem:[%s274 + $0xe8] sm:$0xff]
        %v4512 = vld [vmem:[%s274 + $0xf0] sm:$0xff]
        %v4513 = vld [vmem:[%s274 + $0xf8] sm:$0xff]
        %s4514 = scalar_lea.vmem [#allocation5], 2
        %v4515 = vld [vmem:[%s4514] sm:$0x1]
        %v4517 = vlaneseq
        %v4518 = vshrl.u32 %v4517, 7
        %v4519 = vsub.s32 0, %v4518
        %v4520 = vrot.slane %v4515, %v4519
        %v4522 = vmul.f32 %v4482, %v4520
        %v4523 = vmul.f32 %v4483, %v4520
        %v4524 = vmul.f32 %v4484, %v4520
        %v4525 = vmul.f32 %v4485, %v4520
        %v4526 = vmul.f32 %v4486, %v4520
        %v4527 = vmul.f32 %v4487, %v4520
        %v4528 = vmul.f32 %v4488, %v4520
        %v4529 = vmul.f32 %v4489, %v4520
        %v4530 = vmul.f32 %v4490, %v4520
        %v4531 = vmul.f32 %v4491, %v4520
        %v4532 = vmul.f32 %v4492, %v4520
        %v4533 = vmul.f32 %v4493, %v4520
        %v4534 = vmul.f32 %v4494, %v4520
        %v4535 = vmul.f32 %v4495, %v4520
        %v4536 = vmul.f32 %v4496, %v4520
        %v4537 = vmul.f32 %v4497, %v4520
        %v4538 = vmul.f32 %v4498, %v4520
        %v4539 = vmul.f32 %v4499, %v4520
        %v4540 = vmul.f32 %v4500, %v4520
        %v4541 = vmul.f32 %v4501, %v4520
        %v4542 = vmul.f32 %v4502, %v4520
        %v4543 = vmul.f32 %v4503, %v4520
        %v4544 = vmul.f32 %v4504, %v4520
        %v4545 = vmul.f32 %v4505, %v4520
        %v4546 = vmul.f32 %v4506, %v4520
        %v4547 = vmul.f32 %v4507, %v4520
        %v4548 = vmul.f32 %v4508, %v4520
        %v4549 = vmul.f32 %v4509, %v4520
        %v4550 = vmul.f32 %v4510, %v4520
        %v4551 = vmul.f32 %v4511, %v4520
        %v4552 = vmul.f32 %v4512, %v4520
        %v4553 = vmul.f32 %v4513, %v4520
        %s4554 = scalar_lea.vmem [#allocation7], 2
        %v4555 = vld [vmem:[%s4554] sm:$0x1]
        %v4557 = vlaneseq
        %v4558 = vshrl.u32 %v4557, 7
        %v4559 = vsub.s32 0, %v4558
        %v4560 = vrot.slane %v4555, %v4559
        %v4562 = vadd.f32 %v4522, %v4560
        %v4563 = vadd.f32 %v4523, %v4560
        %v4564 = vadd.f32 %v4524, %v4560
        %v4565 = vadd.f32 %v4525, %v4560
        %v4566 = vadd.f32 %v4526, %v4560
        %v4567 = vadd.f32 %v4527, %v4560
        %v4568 = vadd.f32 %v4528, %v4560
        %v4569 = vadd.f32 %v4529, %v4560
        %v4570 = vadd.f32 %v4530, %v4560
        %v4571 = vadd.f32 %v4531, %v4560
        %v4572 = vadd.f32 %v4532, %v4560
        %v4573 = vadd.f32 %v4533, %v4560
        %v4574 = vadd.f32 %v4534, %v4560
        %v4575 = vadd.f32 %v4535, %v4560
        %v4576 = vadd.f32 %v4536, %v4560
        %v4577 = vadd.f32 %v4537, %v4560
        %v4578 = vadd.f32 %v4538, %v4560
        %v4579 = vadd.f32 %v4539, %v4560
        %v4580 = vadd.f32 %v4540, %v4560
        %v4581 = vadd.f32 %v4541, %v4560
        %v4582 = vadd.f32 %v4542, %v4560
        %v4583 = vadd.f32 %v4543, %v4560
        %v4584 = vadd.f32 %v4544, %v4560
        %v4585 = vadd.f32 %v4545, %v4560
        %v4586 = vadd.f32 %v4546, %v4560
        %v4587 = vadd.f32 %v4547, %v4560
        %v4588 = vadd.f32 %v4548, %v4560
        %v4589 = vadd.f32 %v4549, %v4560
        %v4590 = vadd.f32 %v4550, %v4560
        %v4591 = vadd.f32 %v4551, %v4560
        %v4592 = vadd.f32 %v4552, %v4560
        %v4593 = vadd.f32 %v4553, %v4560
        %v4594 = vmax.f32 %v4562, 0.0
        %v4595 = vmax.f32 %v4563, 0.0
        %v4596 = vmax.f32 %v4564, 0.0
        %v4597 = vmax.f32 %v4565, 0.0
        %v4598 = vmax.f32 %v4566, 0.0
        %v4599 = vmax.f32 %v4567, 0.0
        %v4600 = vmax.f32 %v4568, 0.0
        %v4601 = vmax.f32 %v4569, 0.0
        %v4602 = vmax.f32 %v4570, 0.0
        %v4603 = vmax.f32 %v4571, 0.0
        %v4604 = vmax.f32 %v4572, 0.0
        %v4605 = vmax.f32 %v4573, 0.0
        %v4606 = vmax.f32 %v4574, 0.0
        %v4607 = vmax.f32 %v4575, 0.0
        %v4608 = vmax.f32 %v4576, 0.0
        %v4609 = vmax.f32 %v4577, 0.0
        %v4610 = vmax.f32 %v4578, 0.0
        %v4611 = vmax.f32 %v4579, 0.0
        %v4612 = vmax.f32 %v4580, 0.0
        %v4613 = vmax.f32 %v4581, 0.0
        %v4614 = vmax.f32 %v4582, 0.0
        %v4615 = vmax.f32 %v4583, 0.0
        %v4616 = vmax.f32 %v4584, 0.0
        %v4617 = vmax.f32 %v4585, 0.0
        %v4618 = vmax.f32 %v4586, 0.0
        %v4619 = vmax.f32 %v4587, 0.0
        %v4620 = vmax.f32 %v4588, 0.0
        %v4621 = vmax.f32 %v4589, 0.0
        %v4622 = vmax.f32 %v4590, 0.0
        %v4623 = vmax.f32 %v4591, 0.0
        %v4624 = vmax.f32 %v4592, 0.0
        %v4625 = vmax.f32 %v4593, 0.0
        %v4658 = vrot.slane %v4594, 7
        %v4659 = vrot.slane %v4595, 7
        %v4660 = vsel %vm846, %v4658, %v4659
        %v4661 = vrot.slane %v4596, 7
        %v4662 = vrot.slane %v4597, 7
        %v4663 = vsel %vm846, %v4661, %v4662
        %v4664 = vrot.slane %v4598, 7
        %v4665 = vrot.slane %v4599, 7
        %v4666 = vsel %vm846, %v4664, %v4665
        %v4667 = vrot.slane %v4600, 7
        %v4668 = vrot.slane %v4601, 7
        %v4669 = vsel %vm846, %v4667, %v4668
        %v4670 = vrot.slane %v4602, 7
        %v4671 = vrot.slane %v4603, 7
        %v4672 = vsel %vm846, %v4670, %v4671
        %v4673 = vrot.slane %v4604, 7
        %v4674 = vrot.slane %v4605, 7
        %v4675 = vsel %vm846, %v4673, %v4674
        %v4676 = vrot.slane %v4606, 7
        %v4677 = vrot.slane %v4607, 7
        %v4678 = vsel %vm846, %v4676, %v4677
        %v4679 = vrot.slane %v4608, 7
        %v4680 = vrot.slane %v4609, 7
        %v4681 = vsel %vm846, %v4679, %v4680
        %v4682 = vrot.slane %v4610, 7
        %v4683 = vrot.slane %v4611, 7
        %v4684 = vsel %vm846, %v4682, %v4683
        %v4685 = vrot.slane %v4612, 7
        %v4686 = vrot.slane %v4613, 7
        %v4687 = vsel %vm846, %v4685, %v4686
        %v4688 = vrot.slane %v4614, 7
        %v4689 = vrot.slane %v4615, 7
        %v4690 = vsel %vm846, %v4688, %v4689
        %v4691 = vrot.slane %v4616, 7
        %v4692 = vrot.slane %v4617, 7
        %v4693 = vsel %vm846, %v4691, %v4692
        %v4694 = vrot.slane %v4618, 7
        %v4695 = vrot.slane %v4619, 7
        %v4696 = vsel %vm846, %v4694, %v4695
        %v4697 = vrot.slane %v4620, 7
        %v4698 = vrot.slane %v4621, 7
        %v4699 = vsel %vm846, %v4697, %v4698
        %v4700 = vrot.slane %v4622, 7
        %v4701 = vrot.slane %v4623, 7
        %v4702 = vsel %vm846, %v4700, %v4701
        %v4703 = vrot.slane %v4624, 7
        %v4704 = vrot.slane %v4625, 7
        %v4705 = vsel %vm846, %v4703, %v4704
        %v4754 = vsel %vm846, 0.0, %v4658
        %v4755 = vsel %vm846, 0.0, %v4661
        %v4756 = vsel %vm846, 0.0, %v4664
        %v4757 = vsel %vm846, 0.0, %v4667
        %v4758 = vsel %vm846, 0.0, %v4670
        %v4759 = vsel %vm846, 0.0, %v4673
        %v4760 = vsel %vm846, 0.0, %v4676
        %v4761 = vsel %vm846, 0.0, %v4679
        %v4762 = vsel %vm846, 0.0, %v4682
        %v4763 = vsel %vm846, 0.0, %v4685
        %v4764 = vsel %vm846, 0.0, %v4688
        %v4765 = vsel %vm846, 0.0, %v4691
        %v4766 = vsel %vm846, 0.0, %v4694
        %v4767 = vsel %vm846, 0.0, %v4697
        %v4768 = vsel %vm846, 0.0, %v4700
        %v4769 = vsel %vm846, 0.0, %v4703
        %v4770 = vsel %vm846, %v4659, 0.0
        %v4771 = vsel %vm846, %v4662, 0.0
        %v4772 = vsel %vm846, %v4665, 0.0
        %v4773 = vsel %vm846, %v4668, 0.0
        %v4774 = vsel %vm846, %v4671, 0.0
        %v4775 = vsel %vm846, %v4674, 0.0
        %v4776 = vsel %vm846, %v4677, 0.0
        %v4777 = vsel %vm846, %v4680, 0.0
        %v4778 = vsel %vm846, %v4683, 0.0
        %v4779 = vsel %vm846, %v4686, 0.0
        %v4780 = vsel %vm846, %v4689, 0.0
        %v4781 = vsel %vm846, %v4692, 0.0
        %v4782 = vsel %vm846, %v4695, 0.0
        %v4783 = vsel %vm846, %v4698, 0.0
        %v4784 = vsel %vm846, %v4701, 0.0
        %v4785 = vsel %vm846, %v4704, 0.0
        %v4816 = vrot.slane %v4754, 1
        %v4817 = vrot.slane %v4660, 1
        %v4818 = vsel %vm1013, %v4816, %v4817
        %v4819 = vrot.slane %v4770, 1
        %v4820 = vsel %vm1013, %v4817, %v4819
        %v4821 = vrot.slane %v4755, 1
        %v4822 = vrot.slane %v4663, 1
        %v4823 = vsel %vm1013, %v4821, %v4822
        %v4824 = vrot.slane %v4771, 1
        %v4825 = vsel %vm1013, %v4822, %v4824
        %v4826 = vrot.slane %v4756, 1
        %v4827 = vrot.slane %v4666, 1
        %v4828 = vsel %vm1013, %v4826, %v4827
        %v4829 = vrot.slane %v4772, 1
        %v4830 = vsel %vm1013, %v4827, %v4829
        %v4831 = vrot.slane %v4757, 1
        %v4832 = vrot.slane %v4669, 1
        %v4833 = vsel %vm1013, %v4831, %v4832
        %v4834 = vrot.slane %v4773, 1
        %v4835 = vsel %vm1013, %v4832, %v4834
        %v4836 = vrot.slane %v4758, 1
        %v4837 = vrot.slane %v4672, 1
        %v4838 = vsel %vm1013, %v4836, %v4837
        %v4839 = vrot.slane %v4774, 1
        %v4840 = vsel %vm1013, %v4837, %v4839
        %v4841 = vrot.slane %v4759, 1
        %v4842 = vrot.slane %v4675, 1
        %v4843 = vsel %vm1013, %v4841, %v4842
        %v4844 = vrot.slane %v4775, 1
        %v4845 = vsel %vm1013, %v4842, %v4844
        %v4846 = vrot.slane %v4760, 1
        %v4847 = vrot.slane %v4678, 1
        %v4848 = vsel %vm1013, %v4846, %v4847
        %v4849 = vrot.slane %v4776, 1
        %v4850 = vsel %vm1013, %v4847, %v4849
        %v4851 = vrot.slane %v4761, 1
        %v4852 = vrot.slane %v4681, 1
        %v4853 = vsel %vm1013, %v4851, %v4852
        %v4854 = vrot.slane %v4777, 1
        %v4855 = vsel %vm1013, %v4852, %v4854
        %v4856 = vrot.slane %v4762, 1
        %v4857 = vrot.slane %v4684, 1
        %v4858 = vsel %vm1013, %v4856, %v4857
        %v4859 = vrot.slane %v4778, 1
        %v4860 = vsel %vm1013, %v4857, %v4859
        %v4861 = vrot.slane %v4763, 1
        %v4862 = vrot.slane %v4687, 1
        %v4863 = vsel %vm1013, %v4861, %v4862
        %v4864 = vrot.slane %v4779, 1
        %v4865 = vsel %vm1013, %v4862, %v4864
        %v4866 = vrot.slane %v4764, 1
        %v4867 = vrot.slane %v4690, 1
        %v4868 = vsel %vm1013, %v4866, %v4867
        %v4869 = vrot.slane %v4780, 1
        %v4870 = vsel %vm1013, %v4867, %v4869
        %v4871 = vrot.slane %v4765, 1
        %v4872 = vrot.slane %v4693, 1
        %v4873 = vsel %vm1013, %v4871, %v4872
        %v4874 = vrot.slane %v4781, 1
        %v4875 = vsel %vm1013, %v4872, %v4874
        %v4876 = vrot.slane %v4766, 1
        %v4877 = vrot.slane %v4696, 1
        %v4878 = vsel %vm1013, %v4876, %v4877
        %v4879 = vrot.slane %v4782, 1
        %v4880 = vsel %vm1013, %v4877, %v4879
        %v4881 = vrot.slane %v4767, 1
        %v4882 = vrot.slane %v4699, 1
        %v4883 = vsel %vm1013, %v4881, %v4882
        %v4884 = vrot.slane %v4783, 1
        %v4885 = vsel %vm1013, %v4882, %v4884
        %v4886 = vrot.slane %v4768, 1
        %v4887 = vrot.slane %v4702, 1
        %v4888 = vsel %vm1013, %v4886, %v4887
        %v4889 = vrot.slane %v4784, 1
        %v4890 = vsel %vm1013, %v4887, %v4889
        %v4921 = vrot.slane %v4754, 2
        %v4922 = vrot.slane %v4660, 2
        %v4923 = vsel %vm1126, %v4921, %v4922
        %v4924 = vrot.slane %v4770, 2
        %v4925 = vsel %vm1126, %v4922, %v4924
        %v4926 = vrot.slane %v4755, 2
        %v4927 = vrot.slane %v4663, 2
        %v4928 = vsel %vm1126, %v4926, %v4927
        %v4929 = vrot.slane %v4771, 2
        %v4930 = vsel %vm1126, %v4927, %v4929
        %v4931 = vrot.slane %v4756, 2
        %v4932 = vrot.slane %v4666, 2
        %v4933 = vsel %vm1126, %v4931, %v4932
        %v4934 = vrot.slane %v4772, 2
        %v4935 = vsel %vm1126, %v4932, %v4934
        %v4936 = vrot.slane %v4757, 2
        %v4937 = vrot.slane %v4669, 2
        %v4938 = vsel %vm1126, %v4936, %v4937
        %v4939 = vrot.slane %v4773, 2
        %v4940 = vsel %vm1126, %v4937, %v4939
        %v4941 = vrot.slane %v4758, 2
        %v4942 = vrot.slane %v4672, 2
        %v4943 = vsel %vm1126, %v4941, %v4942
        %v4944 = vrot.slane %v4774, 2
        %v4945 = vsel %vm1126, %v4942, %v4944
        %v4946 = vrot.slane %v4759, 2
        %v4947 = vrot.slane %v4675, 2
        %v4948 = vsel %vm1126, %v4946, %v4947
        %v4949 = vrot.slane %v4775, 2
        %v4950 = vsel %vm1126, %v4947, %v4949
        %v4951 = vrot.slane %v4760, 2
        %v4952 = vrot.slane %v4678, 2
        %v4953 = vsel %vm1126, %v4951, %v4952
        %v4954 = vrot.slane %v4776, 2
        %v4955 = vsel %vm1126, %v4952, %v4954
        %v4956 = vrot.slane %v4761, 2
        %v4957 = vrot.slane %v4681, 2
        %v4958 = vsel %vm1126, %v4956, %v4957
        %v4959 = vrot.slane %v4777, 2
        %v4960 = vsel %vm1126, %v4957, %v4959
        %v4961 = vrot.slane %v4762, 2
        %v4962 = vrot.slane %v4684, 2
        %v4963 = vsel %vm1126, %v4961, %v4962
        %v4964 = vrot.slane %v4778, 2
        %v4965 = vsel %vm1126, %v4962, %v4964
        %v4966 = vrot.slane %v4763, 2
        %v4967 = vrot.slane %v4687, 2
        %v4968 = vsel %vm1126, %v4966, %v4967
        %v4969 = vrot.slane %v4779, 2
        %v4970 = vsel %vm1126, %v4967, %v4969
        %v4971 = vrot.slane %v4764, 2
        %v4972 = vrot.slane %v4690, 2
        %v4973 = vsel %vm1126, %v4971, %v4972
        %v4974 = vrot.slane %v4780, 2
        %v4975 = vsel %vm1126, %v4972, %v4974
        %v4976 = vrot.slane %v4765, 2
        %v4977 = vrot.slane %v4693, 2
        %v4978 = vsel %vm1126, %v4976, %v4977
        %v4979 = vrot.slane %v4781, 2
        %v4980 = vsel %vm1126, %v4977, %v4979
        %v4981 = vrot.slane %v4766, 2
        %v4982 = vrot.slane %v4696, 2
        %v4983 = vsel %vm1126, %v4981, %v4982
        %v4984 = vrot.slane %v4782, 2
        %v4985 = vsel %vm1126, %v4982, %v4984
        %v4986 = vrot.slane %v4767, 2
        %v4987 = vrot.slane %v4699, 2
        %v4988 = vsel %vm1126, %v4986, %v4987
        %v4989 = vrot.slane %v4783, 2
        %v4990 = vsel %vm1126, %v4987, %v4989
        %v4991 = vrot.slane %v4768, 2
        %v4992 = vrot.slane %v4702, 2
        %v4993 = vsel %vm1126, %v4991, %v4992
        %v4994 = vrot.slane %v4784, 2
        %v4995 = vsel %vm1126, %v4992, %v4994
        %v5028 = vrot.slane %v4769, 1
        %v5029 = vrot.slane %v4705, 1
        %v5030 = vsel %vm1013, %v5028, %v5029
        %v5031 = vrot.slane %v4785, 1
        %v5032 = vsel %vm1013, %v5029, %v5031
        %v5035 = vrot.slane %v4769, 2
        %v5036 = vrot.slane %v4705, 2
        %v5037 = vsel %vm1126, %v5035, %v5036
        %v5038 = vrot.slane %v4785, 2
        %v5039 = vsel %vm1126, %v5036, %v5038
        %s5042 = scalar_lea.vmem [#allocation8], 2304
        %v5043 = vld [vmem:[%s5042] sm:$0xff]
        %v5044 = vld [vmem:[%s5042 + $0x8] sm:$0xff]
        %v5045 = vld [vmem:[%s5042 + $0x10] sm:$0xff]
        %v5046 = vld [vmem:[%s5042 + $0x18] sm:$0xff]
        %v5047 = vld [vmem:[%s5042 + $0x20] sm:$0xff]
        %v5048 = vld [vmem:[%s5042 + $0x28] sm:$0xff]
        %v5049 = vld [vmem:[%s5042 + $0x30] sm:$0xff]
        %v5050 = vld [vmem:[%s5042 + $0x38] sm:$0xff]
        %v5051 = vld [vmem:[%s5042 + $0x40] sm:$0xff]
        %v5052 = vld [vmem:[%s5042 + $0x48] sm:$0xff]
        %v5053 = vld [vmem:[%s5042 + $0x50] sm:$0xff]
        %v5054 = vld [vmem:[%s5042 + $0x58] sm:$0xff]
        %v5055 = vld [vmem:[%s5042 + $0x60] sm:$0xff]
        %v5056 = vld [vmem:[%s5042 + $0x68] sm:$0xff]
        %v5057 = vld [vmem:[%s5042 + $0x70] sm:$0xff]
        %v5058 = vld [vmem:[%s5042 + $0x78] sm:$0xff]
        %v5059 = vld [vmem:[%s5042 + $0x80] sm:$0xff]
        %v5060 = vld [vmem:[%s5042 + $0x88] sm:$0xff]
        %v5061 = vld [vmem:[%s5042 + $0x90] sm:$0xff]
        %v5062 = vld [vmem:[%s5042 + $0x98] sm:$0xff]
        %v5063 = vld [vmem:[%s5042 + $0xa0] sm:$0xff]
        %v5064 = vld [vmem:[%s5042 + $0xa8] sm:$0xff]
        %v5065 = vld [vmem:[%s5042 + $0xb0] sm:$0xff]
        %v5066 = vld [vmem:[%s5042 + $0xb8] sm:$0xff]
        %v5067 = vld [vmem:[%s5042 + $0xc0] sm:$0xff]
        %v5068 = vld [vmem:[%s5042 + $0xc8] sm:$0xff]
        %v5069 = vld [vmem:[%s5042 + $0xd0] sm:$0xff]
        %v5070 = vld [vmem:[%s5042 + $0xd8] sm:$0xff]
        %v5071 = vld [vmem:[%s5042 + $0xe0] sm:$0xff]
        %v5072 = vld [vmem:[%s5042 + $0xe8] sm:$0xff]
        %v5073 = vld [vmem:[%s5042 + $0xf0] sm:$0xff]
        %v5074 = vld [vmem:[%s5042 + $0xf8] sm:$0xff]
        %v5075 = vld [vmem:[%s5042 + $0x100] sm:$0xff]
        %v5076 = vld [vmem:[%s5042 + $0x108] sm:$0xff]
        %v5077 = vld [vmem:[%s5042 + $0x110] sm:$0xff]
        %v5078 = vld [vmem:[%s5042 + $0x118] sm:$0xff]
        %v5079 = vld [vmem:[%s5042 + $0x120] sm:$0xff]
        %v5080 = vld [vmem:[%s5042 + $0x128] sm:$0xff]
        %v5081 = vld [vmem:[%s5042 + $0x130] sm:$0xff]
        %v5082 = vld [vmem:[%s5042 + $0x138] sm:$0xff]
        %v5083 = vld [vmem:[%s5042 + $0x140] sm:$0xff]
        %v5084 = vld [vmem:[%s5042 + $0x148] sm:$0xff]
        %v5085 = vld [vmem:[%s5042 + $0x150] sm:$0xff]
        %v5086 = vld [vmem:[%s5042 + $0x158] sm:$0xff]
        %v5087 = vld [vmem:[%s5042 + $0x160] sm:$0xff]
        %v5088 = vld [vmem:[%s5042 + $0x168] sm:$0xff]
        %v5089 = vld [vmem:[%s5042 + $0x170] sm:$0xff]
        %v5090 = vld [vmem:[%s5042 + $0x178] sm:$0xff]
        %v5091 = vld [vmem:[%s5042 + $0x180] sm:$0xff]
        %v5092 = vld [vmem:[%s5042 + $0x188] sm:$0xff]
        %v5093 = vld [vmem:[%s5042 + $0x190] sm:$0xff]
        %v5094 = vld [vmem:[%s5042 + $0x198] sm:$0xff]
        %v5095 = vld [vmem:[%s5042 + $0x1a0] sm:$0xff]
        %v5096 = vld [vmem:[%s5042 + $0x1a8] sm:$0xff]
        %v5097 = vld [vmem:[%s5042 + $0x1b0] sm:$0xff]
        %v5098 = vld [vmem:[%s5042 + $0x1b8] sm:$0xff]
        %v5099 = vld [vmem:[%s5042 + $0x1c0] sm:$0xff]
        %v5100 = vld [vmem:[%s5042 + $0x1c8] sm:$0xff]
        %v5101 = vld [vmem:[%s5042 + $0x1d0] sm:$0xff]
        %v5102 = vld [vmem:[%s5042 + $0x1d8] sm:$0xff]
        %v5103 = vld [vmem:[%s5042 + $0x1e0] sm:$0xff]
        %v5104 = vld [vmem:[%s5042 + $0x1e8] sm:$0xff]
        %v5105 = vld [vmem:[%s5042 + $0x1f0] sm:$0xff]
        %v5106 = vld [vmem:[%s5042 + $0x1f8] sm:$0xff]
        %v5107 = vld [vmem:[%s5042 + $0x200] sm:$0xff]
        %v5108 = vld [vmem:[%s5042 + $0x208] sm:$0xff]
        %v5109 = vld [vmem:[%s5042 + $0x210] sm:$0xff]
        %v5110 = vld [vmem:[%s5042 + $0x218] sm:$0xff]
        %v5111 = vld [vmem:[%s5042 + $0x220] sm:$0xff]
        %v5112 = vld [vmem:[%s5042 + $0x228] sm:$0xff]
        %v5113 = vld [vmem:[%s5042 + $0x230] sm:$0xff]
        %v5114 = vld [vmem:[%s5042 + $0x238] sm:$0xff]
        %v5115 = vld [vmem:[%s5042 + $0x240] sm:$0xff]
        %v5116 = vld [vmem:[%s5042 + $0x248] sm:$0xff]
        %v5117 = vld [vmem:[%s5042 + $0x250] sm:$0xff]
        %v5118 = vld [vmem:[%s5042 + $0x258] sm:$0xff]
        %v5119 = vld [vmem:[%s5042 + $0x260] sm:$0xff]
        %v5120 = vld [vmem:[%s5042 + $0x268] sm:$0xff]
        %v5121 = vld [vmem:[%s5042 + $0x270] sm:$0xff]
        %v5122 = vld [vmem:[%s5042 + $0x278] sm:$0xff]
        %v5123 = vld [vmem:[%s5042 + $0x280] sm:$0xff]
        %v5124 = vld [vmem:[%s5042 + $0x288] sm:$0xff]
        %v5125 = vld [vmem:[%s5042 + $0x290] sm:$0xff]
        %v5126 = vld [vmem:[%s5042 + $0x298] sm:$0xff]
        %v5127 = vld [vmem:[%s5042 + $0x2a0] sm:$0xff]
        %v5128 = vld [vmem:[%s5042 + $0x2a8] sm:$0xff]
        %v5129 = vld [vmem:[%s5042 + $0x2b0] sm:$0xff]
        %v5130 = vld [vmem:[%s5042 + $0x2b8] sm:$0xff]
        %v5131 = vld [vmem:[%s5042 + $0x2c0] sm:$0xff]
        %v5132 = vld [vmem:[%s5042 + $0x2c8] sm:$0xff]
        %v5133 = vld [vmem:[%s5042 + $0x2d0] sm:$0xff]
        %v5134 = vld [vmem:[%s5042 + $0x2d8] sm:$0xff]
        %v5135 = vld [vmem:[%s5042 + $0x2e0] sm:$0xff]
        %v5136 = vld [vmem:[%s5042 + $0x2e8] sm:$0xff]
        %v5137 = vld [vmem:[%s5042 + $0x2f0] sm:$0xff]
        %v5138 = vld [vmem:[%s5042 + $0x2f8] sm:$0xff]
        %v5139 = vld [vmem:[%s5042 + $0x300] sm:$0xff]
        %v5140 = vld [vmem:[%s5042 + $0x308] sm:$0xff]
        %v5141 = vld [vmem:[%s5042 + $0x310] sm:$0xff]
        %v5142 = vld [vmem:[%s5042 + $0x318] sm:$0xff]
        %v5143 = vld [vmem:[%s5042 + $0x320] sm:$0xff]
        %v5144 = vld [vmem:[%s5042 + $0x328] sm:$0xff]
        %v5145 = vld [vmem:[%s5042 + $0x330] sm:$0xff]
        %v5146 = vld [vmem:[%s5042 + $0x338] sm:$0xff]
        %v5147 = vld [vmem:[%s5042 + $0x340] sm:$0xff]
        %v5148 = vld [vmem:[%s5042 + $0x348] sm:$0xff]
        %v5149 = vld [vmem:[%s5042 + $0x350] sm:$0xff]
        %v5150 = vld [vmem:[%s5042 + $0x358] sm:$0xff]
        %v5151 = vld [vmem:[%s5042 + $0x360] sm:$0xff]
        %v5152 = vld [vmem:[%s5042 + $0x368] sm:$0xff]
        %v5153 = vld [vmem:[%s5042 + $0x370] sm:$0xff]
        %v5154 = vld [vmem:[%s5042 + $0x378] sm:$0xff]
        %v5155 = vld [vmem:[%s5042 + $0x380] sm:$0xff]
        %v5156 = vld [vmem:[%s5042 + $0x388] sm:$0xff]
        %v5157 = vld [vmem:[%s5042 + $0x390] sm:$0xff]
        %v5158 = vld [vmem:[%s5042 + $0x398] sm:$0xff]
        %v5159 = vld [vmem:[%s5042 + $0x3a0] sm:$0xff]
        %v5160 = vld [vmem:[%s5042 + $0x3a8] sm:$0xff]
        %v5161 = vld [vmem:[%s5042 + $0x3b0] sm:$0xff]
        %v5162 = vld [vmem:[%s5042 + $0x3b8] sm:$0xff]
        %v5163 = vld [vmem:[%s5042 + $0x3c0] sm:$0xff]
        %v5164 = vld [vmem:[%s5042 + $0x3c8] sm:$0xff]
        %v5165 = vld [vmem:[%s5042 + $0x3d0] sm:$0xff]
        %v5166 = vld [vmem:[%s5042 + $0x3d8] sm:$0xff]
        %v5167 = vld [vmem:[%s5042 + $0x3e0] sm:$0xff]
        %v5168 = vld [vmem:[%s5042 + $0x3e8] sm:$0xff]
        %v5169 = vld [vmem:[%s5042 + $0x3f0] sm:$0xff]
        %v5170 = vld [vmem:[%s5042 + $0x3f8] sm:$0xff]
        %v5171 = vld [vmem:[%s5042 + $0x400] sm:$0xff]
        %v5172 = vld [vmem:[%s5042 + $0x408] sm:$0xff]
        %v5173 = vld [vmem:[%s5042 + $0x410] sm:$0xff]
        %v5174 = vld [vmem:[%s5042 + $0x418] sm:$0xff]
        %v5175 = vld [vmem:[%s5042 + $0x420] sm:$0xff]
        %v5176 = vld [vmem:[%s5042 + $0x428] sm:$0xff]
        %v5177 = vld [vmem:[%s5042 + $0x430] sm:$0xff]
        %v5178 = vld [vmem:[%s5042 + $0x438] sm:$0xff]
        %v5179 = vld [vmem:[%s5042 + $0x440] sm:$0xff]
        %v5180 = vld [vmem:[%s5042 + $0x448] sm:$0xff]
        %v5181 = vld [vmem:[%s5042 + $0x450] sm:$0xff]
        %v5182 = vld [vmem:[%s5042 + $0x458] sm:$0xff]
        %v5183 = vld [vmem:[%s5042 + $0x460] sm:$0xff]
        %v5184 = vld [vmem:[%s5042 + $0x468] sm:$0xff]
        %v5185 = vld [vmem:[%s5042 + $0x470] sm:$0xff]
        %v5186 = vld [vmem:[%s5042 + $0x478] sm:$0xff]
        %5187 = vmatprep.subr.mxu0 0.0
        %5188 = vmatpush1.msra.mxu0 %v5058
        %5189 = vmatprep.subr.mxu0 0.0
        %5190 = vmatpush1.msra.mxu0 %v5057
        %5191 = vmatprep.subr.mxu0 0.0
        %5192 = vmatpush1.msra.mxu0 %v5056
        %5193 = vmatprep.subr.mxu0 0.0
        %5194 = vmatpush1.msra.mxu0 %v5055
        %5195 = vmatprep.subr.mxu0 0.0
        %5196 = vmatpush1.msra.mxu0 %v5054
        %5197 = vmatprep.subr.mxu0 0.0
        %5198 = vmatpush1.msra.mxu0 %v5053
        %5199 = vmatprep.subr.mxu0 0.0
        %5200 = vmatpush1.msra.mxu0 %v5052
        %5201 = vmatprep.subr.mxu0 0.0
        %5202 = vmatpush1.msra.mxu0 %v5051
        %5203 = vmatprep.subr.mxu0 0.0
        %5204 = vmatpush1.msra.mxu0 %v5050
        %5205 = vmatprep.subr.mxu0 0.0
        %5206 = vmatpush1.msra.mxu0 %v5049
        %5207 = vmatprep.subr.mxu0 0.0
        %5208 = vmatpush1.msra.mxu0 %v5048
        %5209 = vmatprep.subr.mxu0 0.0
        %5210 = vmatpush1.msra.mxu0 %v5047
        %5211 = vmatprep.subr.mxu0 0.0
        %5212 = vmatpush1.msra.mxu0 %v5046
        %5213 = vmatprep.subr.mxu0 0.0
        %5214 = vmatpush1.msra.mxu0 %v5045
        %5215 = vmatprep.subr.mxu0 0.0
        %5216 = vmatpush1.msra.mxu0 %v5044
        %5217 = vmatprep.subr.mxu0 0.0
        %5218 = vmatpush1.msra.mxu0 %v5043
        %5219 = vmatprep.subr.mxu0 0.0
        %5220 = vmatpush2.msra.mxu0 %v5074
        %5221 = vmatprep.subr.mxu0 0.0
        %5222 = vmatpush2.msra.mxu0 %v5073
        %5223 = vmatprep.subr.mxu0 0.0
        %5224 = vmatpush2.msra.mxu0 %v5072
        %5225 = vmatprep.subr.mxu0 0.0
        %5226 = vmatpush2.msra.mxu0 %v5071
        %5227 = vmatprep.subr.mxu0 0.0
        %5228 = vmatpush2.msra.mxu0 %v5070
        %5229 = vmatprep.subr.mxu0 0.0
        %5230 = vmatpush2.msra.mxu0 %v5069
        %5231 = vmatprep.subr.mxu0 0.0
        %5232 = vmatpush2.msra.mxu0 %v5068
        %5233 = vmatprep.subr.mxu0 0.0
        %5234 = vmatpush2.msra.mxu0 %v5067
        %5235 = vmatprep.subr.mxu0 0.0
        %5236 = vmatpush2.msra.mxu0 %v5066
        %5237 = vmatprep.subr.mxu0 0.0
        %5238 = vmatpush2.msra.mxu0 %v5065
        %5239 = vmatprep.subr.mxu0 0.0
        %5240 = vmatpush2.msra.mxu0 %v5064
        %5241 = vmatprep.subr.mxu0 0.0
        %5242 = vmatpush2.msra.mxu0 %v5063
        %5243 = vmatprep.subr.mxu0 0.0
        %5244 = vmatpush2.msra.mxu0 %v5062
        %5245 = vmatprep.subr.mxu0 0.0
        %5246 = vmatpush2.msra.mxu0 %v5061
        %5247 = vmatprep.subr.mxu0 0.0
        %5248 = vmatpush2.msra.mxu0 %v5060
        %5249 = vmatprep.subr.mxu0 0.0
        %5250 = vmatpush2.msra.mxu0 %v5059
        %5251 = vmatprep.mubr.f32.mxu0 %v1016
        %5252 = vmatmul.mubr.f32.gmra.mxu0 %v947
        %v5253 = vpop.f32.mrf.mxu0
        %v5254 = vadd.f32 0.0, %v5253
        %v5255 = vpop.f32.mrf.mxu0
        %5256 = vmatprep.mubr.f32.mxu0 %v1018
        %5257 = vmatmul.mubr.f32.gmra.mxu0 %v848
        %v5258 = vpop.f32.mrf.mxu0
        %v5259 = vadd.f32 0.0, %v5258
        %v5260 = vpop.f32.mrf.mxu0
        %5261 = vmatprep.mubr.f32.mxu0 %v4818
        %5262 = vmatmul.mubr.f32.gmra.mxu0 %v4754
        %v5263 = vpop.f32.mrf.mxu0
        %v5264 = vadd.f32 0.0, %v5263
        %v5265 = vpop.f32.mrf.mxu0
        %5266 = vmatprep.mubr.f32.mxu0 %v4820
        %5267 = vmatmul.mubr.f32.gmra.mxu0 %v4660
        %v5268 = vpop.f32.mrf.mxu0
        %v5269 = vadd.f32 0.0, %v5268
        %v5270 = vpop.f32.mrf.mxu0
        %5271 = vmatprep.mubr.f32.mxu0 %v4823
        %5272 = vmatmul.mubr.f32.gmra.mxu0 %v4755
        %v5273 = vpop.f32.mrf.mxu0
        %v5274 = vadd.f32 0.0, %v5273
        %v5275 = vpop.f32.mrf.mxu0
        %5276 = vmatprep.mubr.f32.mxu0 %v4825
        %5277 = vmatmul.mubr.f32.gmra.mxu0 %v4663
        %v5278 = vpop.f32.mrf.mxu0
        %v5279 = vadd.f32 0.0, %v5278
        %v5280 = vpop.f32.mrf.mxu0
        %5281 = vmatprep.mubr.f32.mxu0 %v4828
        %5282 = vmatmul.mubr.f32.gmra.mxu0 %v4756
        %v5283 = vpop.f32.mrf.mxu0
        %v5284 = vadd.f32 0.0, %v5283
        %v5285 = vpop.f32.mrf.mxu0
        %5286 = vmatprep.mubr.f32.mxu0 %v4830
        %5287 = vmatmul.mubr.f32.gmra.mxu0 %v4666
        %v5288 = vpop.f32.mrf.mxu0
        %v5289 = vadd.f32 0.0, %v5288
        %v5290 = vpop.f32.mrf.mxu0
        %5291 = vmatprep.mubr.f32.mxu0 %v4833
        %5292 = vmatmul.mubr.f32.gmra.mxu0 %v4757
        %v5293 = vpop.f32.mrf.mxu0
        %v5294 = vadd.f32 0.0, %v5293
        %v5295 = vpop.f32.mrf.mxu0
        %5296 = vmatprep.mubr.f32.mxu0 %v4835
        %5297 = vmatmul.mubr.f32.gmra.mxu0 %v4669
        %v5298 = vpop.f32.mrf.mxu0
        %v5299 = vadd.f32 0.0, %v5298
        %v5300 = vpop.f32.mrf.mxu0
        %5301 = vmatprep.mubr.f32.mxu0 %v4838
        %5302 = vmatmul.mubr.f32.gmra.mxu0 %v4758
        %v5303 = vpop.f32.mrf.mxu0
        %v5304 = vadd.f32 0.0, %v5303
        %v5305 = vpop.f32.mrf.mxu0
        %5306 = vmatprep.mubr.f32.mxu0 %v4840
        %5307 = vmatmul.mubr.f32.gmra.mxu0 %v4672
        %v5308 = vpop.f32.mrf.mxu0
        %v5309 = vadd.f32 0.0, %v5308
        %v5310 = vpop.f32.mrf.mxu0
        %5311 = vmatprep.mubr.f32.mxu0 %v4843
        %5312 = vmatmul.mubr.f32.gmra.mxu0 %v4759
        %v5313 = vpop.f32.mrf.mxu0
        %v5314 = vadd.f32 0.0, %v5313
        %v5315 = vpop.f32.mrf.mxu0
        %5316 = vmatprep.mubr.f32.mxu0 %v4845
        %5317 = vmatmul.mubr.f32.gmra.mxu0 %v4675
        %v5318 = vpop.f32.mrf.mxu0
        %v5319 = vadd.f32 0.0, %v5318
        %v5320 = vpop.f32.mrf.mxu0
        %5321 = vmatprep.mubr.f32.mxu0 %v4848
        %5322 = vmatmul.mubr.f32.gmra.mxu0 %v4760
        %v5323 = vpop.f32.mrf.mxu0
        %v5324 = vadd.f32 0.0, %v5323
        %v5325 = vpop.f32.mrf.mxu0
        %5326 = vmatprep.mubr.f32.mxu0 %v4850
        %5327 = vmatmul.mubr.f32.gmra.mxu0 %v4678
        %v5328 = vpop.f32.mrf.mxu0
        %v5329 = vadd.f32 0.0, %v5328
        %v5330 = vpop.f32.mrf.mxu0
        %5331 = vmatprep.mubr.f32.mxu0 %v4853
        %5332 = vmatmul.mubr.f32.gmra.mxu0 %v4761
        %v5333 = vpop.f32.mrf.mxu0
        %v5334 = vadd.f32 0.0, %v5333
        %v5335 = vpop.f32.mrf.mxu0
        %5336 = vmatprep.mubr.f32.mxu0 %v4855
        %5337 = vmatmul.mubr.f32.gmra.mxu0 %v4681
        %v5338 = vpop.f32.mrf.mxu0
        %v5339 = vadd.f32 0.0, %v5338
        %v5340 = vpop.f32.mrf.mxu0
        %5341 = vmatprep.mubr.f32.mxu0 %v4858
        %5342 = vmatmul.mubr.f32.gmra.mxu0 %v4762
        %v5343 = vpop.f32.mrf.mxu0
        %v5344 = vadd.f32 0.0, %v5343
        %v5345 = vpop.f32.mrf.mxu0
        %5346 = vmatprep.mubr.f32.mxu0 %v4860
        %5347 = vmatmul.mubr.f32.gmra.mxu0 %v4684
        %v5348 = vpop.f32.mrf.mxu0
        %v5349 = vadd.f32 0.0, %v5348
        %v5350 = vpop.f32.mrf.mxu0
        %5351 = vmatprep.mubr.f32.mxu0 %v4863
        %5352 = vmatmul.mubr.f32.gmra.mxu0 %v4763
        %v5353 = vpop.f32.mrf.mxu0
        %v5354 = vadd.f32 0.0, %v5353
        %v5355 = vpop.f32.mrf.mxu0
        %5356 = vmatprep.mubr.f32.mxu0 %v4865
        %5357 = vmatmul.mubr.f32.gmra.mxu0 %v4687
        %v5358 = vpop.f32.mrf.mxu0
        %v5359 = vadd.f32 0.0, %v5358
        %v5360 = vpop.f32.mrf.mxu0
        %5361 = vmatprep.mubr.f32.mxu0 %v4868
        %5362 = vmatmul.mubr.f32.gmra.mxu0 %v4764
        %v5363 = vpop.f32.mrf.mxu0
        %v5364 = vadd.f32 0.0, %v5363
        %v5365 = vpop.f32.mrf.mxu0
        %5366 = vmatprep.mubr.f32.mxu0 %v4870
        %5367 = vmatmul.mubr.f32.gmra.mxu0 %v4690
        %v5368 = vpop.f32.mrf.mxu0
        %v5369 = vadd.f32 0.0, %v5368
        %v5370 = vpop.f32.mrf.mxu0
        %5371 = vmatprep.mubr.f32.mxu0 %v4873
        %5372 = vmatmul.mubr.f32.gmra.mxu0 %v4765
        %v5373 = vpop.f32.mrf.mxu0
        %v5374 = vadd.f32 0.0, %v5373
        %v5375 = vpop.f32.mrf.mxu0
        %5376 = vmatprep.mubr.f32.mxu0 %v4875
        %5377 = vmatmul.mubr.f32.gmra.mxu0 %v4693
        %v5378 = vpop.f32.mrf.mxu0
        %v5379 = vadd.f32 0.0, %v5378
        %v5380 = vpop.f32.mrf.mxu0
        %5381 = vmatprep.mubr.f32.mxu0 %v4878
        %5382 = vmatmul.mubr.f32.gmra.mxu0 %v4766
        %v5383 = vpop.f32.mrf.mxu0
        %v5384 = vadd.f32 0.0, %v5383
        %v5385 = vpop.f32.mrf.mxu0
        %5386 = vmatprep.mubr.f32.mxu0 %v4880
        %5387 = vmatmul.mubr.f32.gmra.mxu0 %v4696
        %v5388 = vpop.f32.mrf.mxu0
        %v5389 = vadd.f32 0.0, %v5388
        %v5390 = vpop.f32.mrf.mxu0
        %5391 = vmatprep.mubr.f32.mxu0 %v4883
        %5392 = vmatmul.mubr.f32.gmra.mxu0 %v4767
        %v5393 = vpop.f32.mrf.mxu0
        %v5394 = vadd.f32 0.0, %v5393
        %v5395 = vpop.f32.mrf.mxu0
        %5396 = vmatprep.mubr.f32.mxu0 %v4885
        %5397 = vmatmul.mubr.f32.gmra.mxu0 %v4699
        %v5398 = vpop.f32.mrf.mxu0
        %v5399 = vadd.f32 0.0, %v5398
        %v5400 = vpop.f32.mrf.mxu0
        %5401 = vmatprep.mubr.f32.mxu0 %v4888
        %5402 = vmatmul.mubr.f32.gmra.mxu0 %v4768
        %v5403 = vpop.f32.mrf.mxu0
        %v5404 = vadd.f32 0.0, %v5403
        %v5405 = vpop.f32.mrf.mxu0
        %5406 = vmatprep.mubr.f32.mxu0 %v4890
        %5407 = vmatmul.mubr.f32.gmra.mxu0 %v4702
        %v5408 = vpop.f32.mrf.mxu0
        %v5409 = vadd.f32 0.0, %v5408
        %v5410 = vpop.f32.mrf.mxu0
        %5411 = vdwg.mxu0
        %5412 = vmatprep.subr.mxu0 0.0
        %5413 = vmatpush1.msra.mxu0 %v5090
        %5414 = vmatprep.subr.mxu0 0.0
        %5415 = vmatpush1.msra.mxu0 %v5089
        %5416 = vmatprep.subr.mxu0 0.0
        %5417 = vmatpush1.msra.mxu0 %v5088
        %5418 = vmatprep.subr.mxu0 0.0
        %5419 = vmatpush1.msra.mxu0 %v5087
        %5420 = vmatprep.subr.mxu0 0.0
        %5421 = vmatpush1.msra.mxu0 %v5086
        %5422 = vmatprep.subr.mxu0 0.0
        %5423 = vmatpush1.msra.mxu0 %v5085
        %5424 = vmatprep.subr.mxu0 0.0
        %5425 = vmatpush1.msra.mxu0 %v5084
        %5426 = vmatprep.subr.mxu0 0.0
        %5427 = vmatpush1.msra.mxu0 %v5083
        %5428 = vmatprep.subr.mxu0 0.0
        %5429 = vmatpush1.msra.mxu0 %v5082
        %5430 = vmatprep.subr.mxu0 0.0
        %5431 = vmatpush1.msra.mxu0 %v5081
        %5432 = vmatprep.subr.mxu0 0.0
        %5433 = vmatpush1.msra.mxu0 %v5080
        %5434 = vmatprep.subr.mxu0 0.0
        %5435 = vmatpush1.msra.mxu0 %v5079
        %5436 = vmatprep.subr.mxu0 0.0
        %5437 = vmatpush1.msra.mxu0 %v5078
        %5438 = vmatprep.subr.mxu0 0.0
        %5439 = vmatpush1.msra.mxu0 %v5077
        %5440 = vmatprep.subr.mxu0 0.0
        %5441 = vmatpush1.msra.mxu0 %v5076
        %5442 = vmatprep.subr.mxu0 0.0
        %5443 = vmatpush1.msra.mxu0 %v5075
        %5444 = vmatprep.subr.mxu0 0.0
        %5445 = vmatpush2.msra.mxu0 %v5106
        %5446 = vmatprep.subr.mxu0 0.0
        %5447 = vmatpush2.msra.mxu0 %v5105
        %5448 = vmatprep.subr.mxu0 0.0
        %5449 = vmatpush2.msra.mxu0 %v5104
        %5450 = vmatprep.subr.mxu0 0.0
        %5451 = vmatpush2.msra.mxu0 %v5103
        %5452 = vmatprep.subr.mxu0 0.0
        %5453 = vmatpush2.msra.mxu0 %v5102
        %5454 = vmatprep.subr.mxu0 0.0
        %5455 = vmatpush2.msra.mxu0 %v5101
        %5456 = vmatprep.subr.mxu0 0.0
        %5457 = vmatpush2.msra.mxu0 %v5100
        %5458 = vmatprep.subr.mxu0 0.0
        %5459 = vmatpush2.msra.mxu0 %v5099
        %5460 = vmatprep.subr.mxu0 0.0
        %5461 = vmatpush2.msra.mxu0 %v5098
        %5462 = vmatprep.subr.mxu0 0.0
        %5463 = vmatpush2.msra.mxu0 %v5097
        %5464 = vmatprep.subr.mxu0 0.0
        %5465 = vmatpush2.msra.mxu0 %v5096
        %5466 = vmatprep.subr.mxu0 0.0
        %5467 = vmatpush2.msra.mxu0 %v5095
        %5468 = vmatprep.subr.mxu0 0.0
        %5469 = vmatpush2.msra.mxu0 %v5094
        %5470 = vmatprep.subr.mxu0 0.0
        %5471 = vmatpush2.msra.mxu0 %v5093
        %5472 = vmatprep.subr.mxu0 0.0
        %5473 = vmatpush2.msra.mxu0 %v5092
        %5474 = vmatprep.subr.mxu0 0.0
        %5475 = vmatpush2.msra.mxu0 %v5091
        %5476 = vmatprep.mubr.f32.mxu0 %v4754
        %5477 = vmatmul.mubr.f32.gmra.mxu0 %v1129
        %v5478 = vpop.f32.mrf.mxu0
        %v5479 = vadd.f32 %v5254, %v5478
        %v5480 = vpop.f32.mrf.mxu0
        %5481 = vmatprep.mubr.f32.mxu0 %v4660
        %5482 = vmatmul.mubr.f32.gmra.mxu0 %v1131
        %v5483 = vpop.f32.mrf.mxu0
        %v5484 = vadd.f32 %v5259, %v5483
        %v5485 = vpop.f32.mrf.mxu0
        %5486 = vmatprep.mubr.f32.mxu0 %v4755
        %5487 = vmatmul.mubr.f32.gmra.mxu0 %v4923
        %v5488 = vpop.f32.mrf.mxu0
        %v5489 = vadd.f32 %v5264, %v5488
        %v5490 = vpop.f32.mrf.mxu0
        %5491 = vmatprep.mubr.f32.mxu0 %v4663
        %5492 = vmatmul.mubr.f32.gmra.mxu0 %v4925
        %v5493 = vpop.f32.mrf.mxu0
        %v5494 = vadd.f32 %v5269, %v5493
        %v5495 = vpop.f32.mrf.mxu0
        %5496 = vmatprep.mubr.f32.mxu0 %v4756
        %5497 = vmatmul.mubr.f32.gmra.mxu0 %v4928
        %v5498 = vpop.f32.mrf.mxu0
        %v5499 = vadd.f32 %v5274, %v5498
        %v5500 = vpop.f32.mrf.mxu0
        %5501 = vmatprep.mubr.f32.mxu0 %v4666
        %5502 = vmatmul.mubr.f32.gmra.mxu0 %v4930
        %v5503 = vpop.f32.mrf.mxu0
        %v5504 = vadd.f32 %v5279, %v5503
        %v5505 = vpop.f32.mrf.mxu0
        %5506 = vmatprep.mubr.f32.mxu0 %v4757
        %5507 = vmatmul.mubr.f32.gmra.mxu0 %v4933
        %v5508 = vpop.f32.mrf.mxu0
        %v5509 = vadd.f32 %v5284, %v5508
        %v5510 = vpop.f32.mrf.mxu0
        %5511 = vmatprep.mubr.f32.mxu0 %v4669
        %5512 = vmatmul.mubr.f32.gmra.mxu0 %v4935
        %v5513 = vpop.f32.mrf.mxu0
        %v5514 = vadd.f32 %v5289, %v5513
        %v5515 = vpop.f32.mrf.mxu0
        %5516 = vmatprep.mubr.f32.mxu0 %v4758
        %5517 = vmatmul.mubr.f32.gmra.mxu0 %v4938
        %v5518 = vpop.f32.mrf.mxu0
        %v5519 = vadd.f32 %v5294, %v5518
        %v5520 = vpop.f32.mrf.mxu0
        %5521 = vmatprep.mubr.f32.mxu0 %v4672
        %5522 = vmatmul.mubr.f32.gmra.mxu0 %v4940
        %v5523 = vpop.f32.mrf.mxu0
        %v5524 = vadd.f32 %v5299, %v5523
        %v5525 = vpop.f32.mrf.mxu0
        %5526 = vmatprep.mubr.f32.mxu0 %v4759
        %5527 = vmatmul.mubr.f32.gmra.mxu0 %v4943
        %v5528 = vpop.f32.mrf.mxu0
        %v5529 = vadd.f32 %v5304, %v5528
        %v5530 = vpop.f32.mrf.mxu0
        %5531 = vmatprep.mubr.f32.mxu0 %v4675
        %5532 = vmatmul.mubr.f32.gmra.mxu0 %v4945
        %v5533 = vpop.f32.mrf.mxu0
        %v5534 = vadd.f32 %v5309, %v5533
        %v5535 = vpop.f32.mrf.mxu0
        %5536 = vmatprep.mubr.f32.mxu0 %v4760
        %5537 = vmatmul.mubr.f32.gmra.mxu0 %v4948
        %v5538 = vpop.f32.mrf.mxu0
        %v5539 = vadd.f32 %v5314, %v5538
        %v5540 = vpop.f32.mrf.mxu0
        %5541 = vmatprep.mubr.f32.mxu0 %v4678
        %5542 = vmatmul.mubr.f32.gmra.mxu0 %v4950
        %v5543 = vpop.f32.mrf.mxu0
        %v5544 = vadd.f32 %v5319, %v5543
        %v5545 = vpop.f32.mrf.mxu0
        %5546 = vmatprep.mubr.f32.mxu0 %v4761
        %5547 = vmatmul.mubr.f32.gmra.mxu0 %v4953
        %v5548 = vpop.f32.mrf.mxu0
        %v5549 = vadd.f32 %v5324, %v5548
        %v5550 = vpop.f32.mrf.mxu0
        %5551 = vmatprep.mubr.f32.mxu0 %v4681
        %5552 = vmatmul.mubr.f32.gmra.mxu0 %v4955
        %v5553 = vpop.f32.mrf.mxu0
        %v5554 = vadd.f32 %v5329, %v5553
        %v5555 = vpop.f32.mrf.mxu0
        %5556 = vmatprep.mubr.f32.mxu0 %v4762
        %5557 = vmatmul.mubr.f32.gmra.mxu0 %v4958
        %v5558 = vpop.f32.mrf.mxu0
        %v5559 = vadd.f32 %v5334, %v5558
        %v5560 = vpop.f32.mrf.mxu0
        %5561 = vmatprep.mubr.f32.mxu0 %v4684
        %5562 = vmatmul.mubr.f32.gmra.mxu0 %v4960
        %v5563 = vpop.f32.mrf.mxu0
        %v5564 = vadd.f32 %v5339, %v5563
        %v5565 = vpop.f32.mrf.mxu0
        %5566 = vmatprep.mubr.f32.mxu0 %v4763
        %5567 = vmatmul.mubr.f32.gmra.mxu0 %v4963
        %v5568 = vpop.f32.mrf.mxu0
        %v5569 = vadd.f32 %v5344, %v5568
        %v5570 = vpop.f32.mrf.mxu0
        %5571 = vmatprep.mubr.f32.mxu0 %v4687
        %5572 = vmatmul.mubr.f32.gmra.mxu0 %v4965
        %v5573 = vpop.f32.mrf.mxu0
        %v5574 = vadd.f32 %v5349, %v5573
        %v5575 = vpop.f32.mrf.mxu0
        %5576 = vmatprep.mubr.f32.mxu0 %v4764
        %5577 = vmatmul.mubr.f32.gmra.mxu0 %v4968
        %v5578 = vpop.f32.mrf.mxu0
        %v5579 = vadd.f32 %v5354, %v5578
        %v5580 = vpop.f32.mrf.mxu0
        %5581 = vmatprep.mubr.f32.mxu0 %v4690
        %5582 = vmatmul.mubr.f32.gmra.mxu0 %v4970
        %v5583 = vpop.f32.mrf.mxu0
        %v5584 = vadd.f32 %v5359, %v5583
        %v5585 = vpop.f32.mrf.mxu0
        %5586 = vmatprep.mubr.f32.mxu0 %v4765
        %5587 = vmatmul.mubr.f32.gmra.mxu0 %v4973
        %v5588 = vpop.f32.mrf.mxu0
        %v5589 = vadd.f32 %v5364, %v5588
        %v5590 = vpop.f32.mrf.mxu0
        %5591 = vmatprep.mubr.f32.mxu0 %v4693
        %5592 = vmatmul.mubr.f32.gmra.mxu0 %v4975
        %v5593 = vpop.f32.mrf.mxu0
        %v5594 = vadd.f32 %v5369, %v5593
        %v5595 = vpop.f32.mrf.mxu0
        %5596 = vmatprep.mubr.f32.mxu0 %v4766
        %5597 = vmatmul.mubr.f32.gmra.mxu0 %v4978
        %v5598 = vpop.f32.mrf.mxu0
        %v5599 = vadd.f32 %v5374, %v5598
        %v5600 = vpop.f32.mrf.mxu0
        %5601 = vmatprep.mubr.f32.mxu0 %v4696
        %5602 = vmatmul.mubr.f32.gmra.mxu0 %v4980
        %v5603 = vpop.f32.mrf.mxu0
        %v5604 = vadd.f32 %v5379, %v5603
        %v5605 = vpop.f32.mrf.mxu0
        %5606 = vmatprep.mubr.f32.mxu0 %v4767
        %5607 = vmatmul.mubr.f32.gmra.mxu0 %v4983
        %v5608 = vpop.f32.mrf.mxu0
        %v5609 = vadd.f32 %v5384, %v5608
        %v5610 = vpop.f32.mrf.mxu0
        %5611 = vmatprep.mubr.f32.mxu0 %v4699
        %5612 = vmatmul.mubr.f32.gmra.mxu0 %v4985
        %v5613 = vpop.f32.mrf.mxu0
        %v5614 = vadd.f32 %v5389, %v5613
        %v5615 = vpop.f32.mrf.mxu0
        %5616 = vmatprep.mubr.f32.mxu0 %v4768
        %5617 = vmatmul.mubr.f32.gmra.mxu0 %v4988
        %v5618 = vpop.f32.mrf.mxu0
        %v5619 = vadd.f32 %v5394, %v5618
        %v5620 = vpop.f32.mrf.mxu0
        %5621 = vmatprep.mubr.f32.mxu0 %v4702
        %5622 = vmatmul.mubr.f32.gmra.mxu0 %v4990
        %v5623 = vpop.f32.mrf.mxu0
        %v5624 = vadd.f32 %v5399, %v5623
        %v5625 = vpop.f32.mrf.mxu0
        %5626 = vmatprep.mubr.f32.mxu0 %v4769
        %5627 = vmatmul.mubr.f32.gmra.mxu0 %v4993
        %v5628 = vpop.f32.mrf.mxu0
        %v5629 = vadd.f32 %v5404, %v5628
        %v5630 = vpop.f32.mrf.mxu0
        %5631 = vmatprep.mubr.f32.mxu0 %v4705
        %5632 = vmatmul.mubr.f32.gmra.mxu0 %v4995
        %v5633 = vpop.f32.mrf.mxu0
        %v5634 = vadd.f32 %v5409, %v5633
        %v5635 = vpop.f32.mrf.mxu0
        %5636 = vdwg.mxu0
        %5637 = vmatprep.subr.mxu0 0.0
        %5638 = vmatpush1.msra.mxu0 %v5122
        %5639 = vmatprep.subr.mxu0 0.0
        %5640 = vmatpush1.msra.mxu0 %v5121
        %5641 = vmatprep.subr.mxu0 0.0
        %5642 = vmatpush1.msra.mxu0 %v5120
        %5643 = vmatprep.subr.mxu0 0.0
        %5644 = vmatpush1.msra.mxu0 %v5119
        %5645 = vmatprep.subr.mxu0 0.0
        %5646 = vmatpush1.msra.mxu0 %v5118
        %5647 = vmatprep.subr.mxu0 0.0
        %5648 = vmatpush1.msra.mxu0 %v5117
        %5649 = vmatprep.subr.mxu0 0.0
        %5650 = vmatpush1.msra.mxu0 %v5116
        %5651 = vmatprep.subr.mxu0 0.0
        %5652 = vmatpush1.msra.mxu0 %v5115
        %5653 = vmatprep.subr.mxu0 0.0
        %5654 = vmatpush1.msra.mxu0 %v5114
        %5655 = vmatprep.subr.mxu0 0.0
        %5656 = vmatpush1.msra.mxu0 %v5113
        %5657 = vmatprep.subr.mxu0 0.0
        %5658 = vmatpush1.msra.mxu0 %v5112
        %5659 = vmatprep.subr.mxu0 0.0
        %5660 = vmatpush1.msra.mxu0 %v5111
        %5661 = vmatprep.subr.mxu0 0.0
        %5662 = vmatpush1.msra.mxu0 %v5110
        %5663 = vmatprep.subr.mxu0 0.0
        %5664 = vmatpush1.msra.mxu0 %v5109
        %5665 = vmatprep.subr.mxu0 0.0
        %5666 = vmatpush1.msra.mxu0 %v5108
        %5667 = vmatprep.subr.mxu0 0.0
        %5668 = vmatpush1.msra.mxu0 %v5107
        %5669 = vmatprep.subr.mxu0 0.0
        %5670 = vmatpush2.msra.mxu0 %v5138
        %5671 = vmatprep.subr.mxu0 0.0
        %5672 = vmatpush2.msra.mxu0 %v5137
        %5673 = vmatprep.subr.mxu0 0.0
        %5674 = vmatpush2.msra.mxu0 %v5136
        %5675 = vmatprep.subr.mxu0 0.0
        %5676 = vmatpush2.msra.mxu0 %v5135
        %5677 = vmatprep.subr.mxu0 0.0
        %5678 = vmatpush2.msra.mxu0 %v5134
        %5679 = vmatprep.subr.mxu0 0.0
        %5680 = vmatpush2.msra.mxu0 %v5133
        %5681 = vmatprep.subr.mxu0 0.0
        %5682 = vmatpush2.msra.mxu0 %v5132
        %5683 = vmatprep.subr.mxu0 0.0
        %5684 = vmatpush2.msra.mxu0 %v5131
        %5685 = vmatprep.subr.mxu0 0.0
        %5686 = vmatpush2.msra.mxu0 %v5130
        %5687 = vmatprep.subr.mxu0 0.0
        %5688 = vmatpush2.msra.mxu0 %v5129
        %5689 = vmatprep.subr.mxu0 0.0
        %5690 = vmatpush2.msra.mxu0 %v5128
        %5691 = vmatprep.subr.mxu0 0.0
        %5692 = vmatpush2.msra.mxu0 %v5127
        %5693 = vmatprep.subr.mxu0 0.0
        %5694 = vmatpush2.msra.mxu0 %v5126
        %5695 = vmatprep.subr.mxu0 0.0
        %5696 = vmatpush2.msra.mxu0 %v5125
        %5697 = vmatprep.subr.mxu0 0.0
        %5698 = vmatpush2.msra.mxu0 %v5124
        %5699 = vmatprep.subr.mxu0 0.0
        %5700 = vmatpush2.msra.mxu0 %v5123
        %5701 = vmatprep.mubr.f32.mxu0 %v4923
        %5702 = vmatmul.mubr.f32.gmra.mxu0 %v4818
        %v5703 = vpop.f32.mrf.mxu0
        %v5704 = vadd.f32 %v5479, %v5703
        %v5705 = vpop.f32.mrf.mxu0
        %5706 = vmatprep.mubr.f32.mxu0 %v4925
        %5707 = vmatmul.mubr.f32.gmra.mxu0 %v4820
        %v5708 = vpop.f32.mrf.mxu0
        %v5709 = vadd.f32 %v5484, %v5708
        %v5710 = vpop.f32.mrf.mxu0
        %5711 = vmatprep.mubr.f32.mxu0 %v4928
        %5712 = vmatmul.mubr.f32.gmra.mxu0 %v4823
        %v5713 = vpop.f32.mrf.mxu0
        %v5714 = vadd.f32 %v5489, %v5713
        %v5715 = vpop.f32.mrf.mxu0
        %5716 = vmatprep.mubr.f32.mxu0 %v4930
        %5717 = vmatmul.mubr.f32.gmra.mxu0 %v4825
        %v5718 = vpop.f32.mrf.mxu0
        %v5719 = vadd.f32 %v5494, %v5718
        %v5720 = vpop.f32.mrf.mxu0
        %5721 = vmatprep.mubr.f32.mxu0 %v4933
        %5722 = vmatmul.mubr.f32.gmra.mxu0 %v4828
        %v5723 = vpop.f32.mrf.mxu0
        %v5724 = vadd.f32 %v5499, %v5723
        %v5725 = vpop.f32.mrf.mxu0
        %5726 = vmatprep.mubr.f32.mxu0 %v4935
        %5727 = vmatmul.mubr.f32.gmra.mxu0 %v4830
        %v5728 = vpop.f32.mrf.mxu0
        %v5729 = vadd.f32 %v5504, %v5728
        %v5730 = vpop.f32.mrf.mxu0
        %5731 = vmatprep.mubr.f32.mxu0 %v4938
        %5732 = vmatmul.mubr.f32.gmra.mxu0 %v4833
        %v5733 = vpop.f32.mrf.mxu0
        %v5734 = vadd.f32 %v5509, %v5733
        %v5735 = vpop.f32.mrf.mxu0
        %5736 = vmatprep.mubr.f32.mxu0 %v4940
        %5737 = vmatmul.mubr.f32.gmra.mxu0 %v4835
        %v5738 = vpop.f32.mrf.mxu0
        %v5739 = vadd.f32 %v5514, %v5738
        %v5740 = vpop.f32.mrf.mxu0
        %5741 = vmatprep.mubr.f32.mxu0 %v4943
        %5742 = vmatmul.mubr.f32.gmra.mxu0 %v4838
        %v5743 = vpop.f32.mrf.mxu0
        %v5744 = vadd.f32 %v5519, %v5743
        %v5745 = vpop.f32.mrf.mxu0
        %5746 = vmatprep.mubr.f32.mxu0 %v4945
        %5747 = vmatmul.mubr.f32.gmra.mxu0 %v4840
        %v5748 = vpop.f32.mrf.mxu0
        %v5749 = vadd.f32 %v5524, %v5748
        %v5750 = vpop.f32.mrf.mxu0
        %5751 = vmatprep.mubr.f32.mxu0 %v4948
        %5752 = vmatmul.mubr.f32.gmra.mxu0 %v4843
        %v5753 = vpop.f32.mrf.mxu0
        %v5754 = vadd.f32 %v5529, %v5753
        %v5755 = vpop.f32.mrf.mxu0
        %5756 = vmatprep.mubr.f32.mxu0 %v4950
        %5757 = vmatmul.mubr.f32.gmra.mxu0 %v4845
        %v5758 = vpop.f32.mrf.mxu0
        %v5759 = vadd.f32 %v5534, %v5758
        %v5760 = vpop.f32.mrf.mxu0
        %5761 = vmatprep.mubr.f32.mxu0 %v4953
        %5762 = vmatmul.mubr.f32.gmra.mxu0 %v4848
        %v5763 = vpop.f32.mrf.mxu0
        %v5764 = vadd.f32 %v5539, %v5763
        %v5765 = vpop.f32.mrf.mxu0
        %5766 = vmatprep.mubr.f32.mxu0 %v4955
        %5767 = vmatmul.mubr.f32.gmra.mxu0 %v4850
        %v5768 = vpop.f32.mrf.mxu0
        %v5769 = vadd.f32 %v5544, %v5768
        %v5770 = vpop.f32.mrf.mxu0
        %5771 = vmatprep.mubr.f32.mxu0 %v4958
        %5772 = vmatmul.mubr.f32.gmra.mxu0 %v4853
        %v5773 = vpop.f32.mrf.mxu0
        %v5774 = vadd.f32 %v5549, %v5773
        %v5775 = vpop.f32.mrf.mxu0
        %5776 = vmatprep.mubr.f32.mxu0 %v4960
        %5777 = vmatmul.mubr.f32.gmra.mxu0 %v4855
        %v5778 = vpop.f32.mrf.mxu0
        %v5779 = vadd.f32 %v5554, %v5778
        %v5780 = vpop.f32.mrf.mxu0
        %5781 = vmatprep.mubr.f32.mxu0 %v4963
        %5782 = vmatmul.mubr.f32.gmra.mxu0 %v4858
        %v5783 = vpop.f32.mrf.mxu0
        %v5784 = vadd.f32 %v5559, %v5783
        %v5785 = vpop.f32.mrf.mxu0
        %5786 = vmatprep.mubr.f32.mxu0 %v4965
        %5787 = vmatmul.mubr.f32.gmra.mxu0 %v4860
        %v5788 = vpop.f32.mrf.mxu0
        %v5789 = vadd.f32 %v5564, %v5788
        %v5790 = vpop.f32.mrf.mxu0
        %5791 = vmatprep.mubr.f32.mxu0 %v4968
        %5792 = vmatmul.mubr.f32.gmra.mxu0 %v4863
        %v5793 = vpop.f32.mrf.mxu0
        %v5794 = vadd.f32 %v5569, %v5793
        %v5795 = vpop.f32.mrf.mxu0
        %5796 = vmatprep.mubr.f32.mxu0 %v4970
        %5797 = vmatmul.mubr.f32.gmra.mxu0 %v4865
        %v5798 = vpop.f32.mrf.mxu0
        %v5799 = vadd.f32 %v5574, %v5798
        %v5800 = vpop.f32.mrf.mxu0
        %5801 = vmatprep.mubr.f32.mxu0 %v4973
        %5802 = vmatmul.mubr.f32.gmra.mxu0 %v4868
        %v5803 = vpop.f32.mrf.mxu0
        %v5804 = vadd.f32 %v5579, %v5803
        %v5805 = vpop.f32.mrf.mxu0
        %5806 = vmatprep.mubr.f32.mxu0 %v4975
        %5807 = vmatmul.mubr.f32.gmra.mxu0 %v4870
        %v5808 = vpop.f32.mrf.mxu0
        %v5809 = vadd.f32 %v5584, %v5808
        %v5810 = vpop.f32.mrf.mxu0
        %5811 = vmatprep.mubr.f32.mxu0 %v4978
        %5812 = vmatmul.mubr.f32.gmra.mxu0 %v4873
        %v5813 = vpop.f32.mrf.mxu0
        %v5814 = vadd.f32 %v5589, %v5813
        %v5815 = vpop.f32.mrf.mxu0
        %5816 = vmatprep.mubr.f32.mxu0 %v4980
        %5817 = vmatmul.mubr.f32.gmra.mxu0 %v4875
        %v5818 = vpop.f32.mrf.mxu0
        %v5819 = vadd.f32 %v5594, %v5818
        %v5820 = vpop.f32.mrf.mxu0
        %5821 = vmatprep.mubr.f32.mxu0 %v4983
        %5822 = vmatmul.mubr.f32.gmra.mxu0 %v4878
        %v5823 = vpop.f32.mrf.mxu0
        %v5824 = vadd.f32 %v5599, %v5823
        %v5825 = vpop.f32.mrf.mxu0
        %5826 = vmatprep.mubr.f32.mxu0 %v4985
        %5827 = vmatmul.mubr.f32.gmra.mxu0 %v4880
        %v5828 = vpop.f32.mrf.mxu0
        %v5829 = vadd.f32 %v5604, %v5828
        %v5830 = vpop.f32.mrf.mxu0
        %5831 = vmatprep.mubr.f32.mxu0 %v4988
        %5832 = vmatmul.mubr.f32.gmra.mxu0 %v4883
        %v5833 = vpop.f32.mrf.mxu0
        %v5834 = vadd.f32 %v5609, %v5833
        %v5835 = vpop.f32.mrf.mxu0
        %5836 = vmatprep.mubr.f32.mxu0 %v4990
        %5837 = vmatmul.mubr.f32.gmra.mxu0 %v4885
        %v5838 = vpop.f32.mrf.mxu0
        %v5839 = vadd.f32 %v5614, %v5838
        %v5840 = vpop.f32.mrf.mxu0
        %5841 = vmatprep.mubr.f32.mxu0 %v4993
        %5842 = vmatmul.mubr.f32.gmra.mxu0 %v4888
        %v5843 = vpop.f32.mrf.mxu0
        %v5844 = vadd.f32 %v5619, %v5843
        %v5845 = vpop.f32.mrf.mxu0
        %5846 = vmatprep.mubr.f32.mxu0 %v4995
        %5847 = vmatmul.mubr.f32.gmra.mxu0 %v4890
        %v5848 = vpop.f32.mrf.mxu0
        %v5849 = vadd.f32 %v5624, %v5848
        %v5850 = vpop.f32.mrf.mxu0
        %5851 = vmatprep.mubr.f32.mxu0 %v5037
        %5852 = vmatmul.mubr.f32.gmra.mxu0 %v5030
        %v5853 = vpop.f32.mrf.mxu0
        %v5854 = vadd.f32 %v5629, %v5853
        %v5855 = vpop.f32.mrf.mxu0
        %5856 = vmatprep.mubr.f32.mxu0 %v5039
        %5857 = vmatmul.mubr.f32.gmra.mxu0 %v5032
        %v5858 = vpop.f32.mrf.mxu0
        %v5859 = vadd.f32 %v5634, %v5858
        %v5860 = vpop.f32.mrf.mxu0
        %5861 = vdwg.mxu0
        %5862 = vmatprep.subr.mxu0 0.0
        %5863 = vmatpush1.msra.mxu0 %v5154
        %5864 = vmatprep.subr.mxu0 0.0
        %5865 = vmatpush1.msra.mxu0 %v5153
        %5866 = vmatprep.subr.mxu0 0.0
        %5867 = vmatpush1.msra.mxu0 %v5152
        %5868 = vmatprep.subr.mxu0 0.0
        %5869 = vmatpush1.msra.mxu0 %v5151
        %5870 = vmatprep.subr.mxu0 0.0
        %5871 = vmatpush1.msra.mxu0 %v5150
        %5872 = vmatprep.subr.mxu0 0.0
        %5873 = vmatpush1.msra.mxu0 %v5149
        %5874 = vmatprep.subr.mxu0 0.0
        %5875 = vmatpush1.msra.mxu0 %v5148
        %5876 = vmatprep.subr.mxu0 0.0
        %5877 = vmatpush1.msra.mxu0 %v5147
        %5878 = vmatprep.subr.mxu0 0.0
        %5879 = vmatpush1.msra.mxu0 %v5146
        %5880 = vmatprep.subr.mxu0 0.0
        %5881 = vmatpush1.msra.mxu0 %v5145
        %5882 = vmatprep.subr.mxu0 0.0
        %5883 = vmatpush1.msra.mxu0 %v5144
        %5884 = vmatprep.subr.mxu0 0.0
        %5885 = vmatpush1.msra.mxu0 %v5143
        %5886 = vmatprep.subr.mxu0 0.0
        %5887 = vmatpush1.msra.mxu0 %v5142
        %5888 = vmatprep.subr.mxu0 0.0
        %5889 = vmatpush1.msra.mxu0 %v5141
        %5890 = vmatprep.subr.mxu0 0.0
        %5891 = vmatpush1.msra.mxu0 %v5140
        %5892 = vmatprep.subr.mxu0 0.0
        %5893 = vmatpush1.msra.mxu0 %v5139
        %5894 = vmatprep.subr.mxu0 0.0
        %5895 = vmatpush2.msra.mxu0 %v5170
        %5896 = vmatprep.subr.mxu0 0.0
        %5897 = vmatpush2.msra.mxu0 %v5169
        %5898 = vmatprep.subr.mxu0 0.0
        %5899 = vmatpush2.msra.mxu0 %v5168
        %5900 = vmatprep.subr.mxu0 0.0
        %5901 = vmatpush2.msra.mxu0 %v5167
        %5902 = vmatprep.subr.mxu0 0.0
        %5903 = vmatpush2.msra.mxu0 %v5166
        %5904 = vmatprep.subr.mxu0 0.0
        %5905 = vmatpush2.msra.mxu0 %v5165
        %5906 = vmatprep.subr.mxu0 0.0
        %5907 = vmatpush2.msra.mxu0 %v5164
        %5908 = vmatprep.subr.mxu0 0.0
        %5909 = vmatpush2.msra.mxu0 %v5163
        %5910 = vmatprep.subr.mxu0 0.0
        %5911 = vmatpush2.msra.mxu0 %v5162
        %5912 = vmatprep.subr.mxu0 0.0
        %5913 = vmatpush2.msra.mxu0 %v5161
        %5914 = vmatprep.subr.mxu0 0.0
        %5915 = vmatpush2.msra.mxu0 %v5160
        %5916 = vmatprep.subr.mxu0 0.0
        %5917 = vmatpush2.msra.mxu0 %v5159
        %5918 = vmatprep.subr.mxu0 0.0
        %5919 = vmatpush2.msra.mxu0 %v5158
        %5920 = vmatprep.subr.mxu0 0.0
        %5921 = vmatpush2.msra.mxu0 %v5157
        %5922 = vmatprep.subr.mxu0 0.0
        %5923 = vmatpush2.msra.mxu0 %v5156
        %5924 = vmatprep.subr.mxu0 0.0
        %5925 = vmatpush2.msra.mxu0 %v5155
        %5926 = vmatprep.mubr.f32.mxu0 %v4823
        %5927 = vmatmul.mubr.f32.gmra.mxu0 %v4755
        %v5928 = vpop.f32.mrf.mxu0
        %v5929 = vadd.f32 %v5704, %v5928
        %v5930 = vpop.f32.mrf.mxu0
        %5931 = vmatprep.mubr.f32.mxu0 %v4825
        %5932 = vmatmul.mubr.f32.gmra.mxu0 %v4663
        %v5933 = vpop.f32.mrf.mxu0
        %v5934 = vadd.f32 %v5709, %v5933
        %v5935 = vpop.f32.mrf.mxu0
        %5936 = vmatprep.mubr.f32.mxu0 %v4828
        %5937 = vmatmul.mubr.f32.gmra.mxu0 %v4756
        %v5938 = vpop.f32.mrf.mxu0
        %v5939 = vadd.f32 %v5714, %v5938
        %v5940 = vpop.f32.mrf.mxu0
        %5941 = vmatprep.mubr.f32.mxu0 %v4830
        %5942 = vmatmul.mubr.f32.gmra.mxu0 %v4666
        %v5943 = vpop.f32.mrf.mxu0
        %v5944 = vadd.f32 %v5719, %v5943
        %v5945 = vpop.f32.mrf.mxu0
        %5946 = vmatprep.mubr.f32.mxu0 %v4833
        %5947 = vmatmul.mubr.f32.gmra.mxu0 %v4757
        %v5948 = vpop.f32.mrf.mxu0
        %v5949 = vadd.f32 %v5724, %v5948
        %v5950 = vpop.f32.mrf.mxu0
        %5951 = vmatprep.mubr.f32.mxu0 %v4835
        %5952 = vmatmul.mubr.f32.gmra.mxu0 %v4669
        %v5953 = vpop.f32.mrf.mxu0
        %v5954 = vadd.f32 %v5729, %v5953
        %v5955 = vpop.f32.mrf.mxu0
        %5956 = vmatprep.mubr.f32.mxu0 %v4838
        %5957 = vmatmul.mubr.f32.gmra.mxu0 %v4758
        %v5958 = vpop.f32.mrf.mxu0
        %v5959 = vadd.f32 %v5734, %v5958
        %v5960 = vpop.f32.mrf.mxu0
        %5961 = vmatprep.mubr.f32.mxu0 %v4840
        %5962 = vmatmul.mubr.f32.gmra.mxu0 %v4672
        %v5963 = vpop.f32.mrf.mxu0
        %v5964 = vadd.f32 %v5739, %v5963
        %v5965 = vpop.f32.mrf.mxu0
        %5966 = vmatprep.mubr.f32.mxu0 %v4843
        %5967 = vmatmul.mubr.f32.gmra.mxu0 %v4759
        %v5968 = vpop.f32.mrf.mxu0
        %v5969 = vadd.f32 %v5744, %v5968
        %v5970 = vpop.f32.mrf.mxu0
        %5971 = vmatprep.mubr.f32.mxu0 %v4845
        %5972 = vmatmul.mubr.f32.gmra.mxu0 %v4675
        %v5973 = vpop.f32.mrf.mxu0
        %v5974 = vadd.f32 %v5749, %v5973
        %v5975 = vpop.f32.mrf.mxu0
        %5976 = vmatprep.mubr.f32.mxu0 %v4848
        %5977 = vmatmul.mubr.f32.gmra.mxu0 %v4760
        %v5978 = vpop.f32.mrf.mxu0
        %v5979 = vadd.f32 %v5754, %v5978
        %v5980 = vpop.f32.mrf.mxu0
        %5981 = vmatprep.mubr.f32.mxu0 %v4850
        %5982 = vmatmul.mubr.f32.gmra.mxu0 %v4678
        %v5983 = vpop.f32.mrf.mxu0
        %v5984 = vadd.f32 %v5759, %v5983
        %v5985 = vpop.f32.mrf.mxu0
        %5986 = vmatprep.mubr.f32.mxu0 %v4853
        %5987 = vmatmul.mubr.f32.gmra.mxu0 %v4761
        %v5988 = vpop.f32.mrf.mxu0
        %v5989 = vadd.f32 %v5764, %v5988
        %v5990 = vpop.f32.mrf.mxu0
        %5991 = vmatprep.mubr.f32.mxu0 %v4855
        %5992 = vmatmul.mubr.f32.gmra.mxu0 %v4681
        %v5993 = vpop.f32.mrf.mxu0
        %v5994 = vadd.f32 %v5769, %v5993
        %v5995 = vpop.f32.mrf.mxu0
        %5996 = vmatprep.mubr.f32.mxu0 %v4858
        %5997 = vmatmul.mubr.f32.gmra.mxu0 %v4762
        %v5998 = vpop.f32.mrf.mxu0
        %v5999 = vadd.f32 %v5774, %v5998
        %v6000 = vpop.f32.mrf.mxu0
        %6001 = vmatprep.mubr.f32.mxu0 %v4860
        %6002 = vmatmul.mubr.f32.gmra.mxu0 %v4684
        %v6003 = vpop.f32.mrf.mxu0
        %v6004 = vadd.f32 %v5779, %v6003
        %v6005 = vpop.f32.mrf.mxu0
        %6006 = vmatprep.mubr.f32.mxu0 %v4863
        %6007 = vmatmul.mubr.f32.gmra.mxu0 %v4763
        %v6008 = vpop.f32.mrf.mxu0
        %v6009 = vadd.f32 %v5784, %v6008
        %v6010 = vpop.f32.mrf.mxu0
        %6011 = vmatprep.mubr.f32.mxu0 %v4865
        %6012 = vmatmul.mubr.f32.gmra.mxu0 %v4687
        %v6013 = vpop.f32.mrf.mxu0
        %v6014 = vadd.f32 %v5789, %v6013
        %v6015 = vpop.f32.mrf.mxu0
        %6016 = vmatprep.mubr.f32.mxu0 %v4868
        %6017 = vmatmul.mubr.f32.gmra.mxu0 %v4764
        %v6018 = vpop.f32.mrf.mxu0
        %v6019 = vadd.f32 %v5794, %v6018
        %v6020 = vpop.f32.mrf.mxu0
        %6021 = vmatprep.mubr.f32.mxu0 %v4870
        %6022 = vmatmul.mubr.f32.gmra.mxu0 %v4690
        %v6023 = vpop.f32.mrf.mxu0
        %v6024 = vadd.f32 %v5799, %v6023
        %v6025 = vpop.f32.mrf.mxu0
        %6026 = vmatprep.mubr.f32.mxu0 %v4873
        %6027 = vmatmul.mubr.f32.gmra.mxu0 %v4765
        %v6028 = vpop.f32.mrf.mxu0
        %v6029 = vadd.f32 %v5804, %v6028
        %v6030 = vpop.f32.mrf.mxu0
        %6031 = vmatprep.mubr.f32.mxu0 %v4875
        %6032 = vmatmul.mubr.f32.gmra.mxu0 %v4693
        %v6033 = vpop.f32.mrf.mxu0
        %v6034 = vadd.f32 %v5809, %v6033
        %v6035 = vpop.f32.mrf.mxu0
        %6036 = vmatprep.mubr.f32.mxu0 %v4878
        %6037 = vmatmul.mubr.f32.gmra.mxu0 %v4766
        %v6038 = vpop.f32.mrf.mxu0
        %v6039 = vadd.f32 %v5814, %v6038
        %v6040 = vpop.f32.mrf.mxu0
        %6041 = vmatprep.mubr.f32.mxu0 %v4880
        %6042 = vmatmul.mubr.f32.gmra.mxu0 %v4696
        %v6043 = vpop.f32.mrf.mxu0
        %v6044 = vadd.f32 %v5819, %v6043
        %v6045 = vpop.f32.mrf.mxu0
        %6046 = vmatprep.mubr.f32.mxu0 %v4883
        %6047 = vmatmul.mubr.f32.gmra.mxu0 %v4767
        %v6048 = vpop.f32.mrf.mxu0
        %v6049 = vadd.f32 %v5824, %v6048
        %v6050 = vpop.f32.mrf.mxu0
        %6051 = vmatprep.mubr.f32.mxu0 %v4885
        %6052 = vmatmul.mubr.f32.gmra.mxu0 %v4699
        %v6053 = vpop.f32.mrf.mxu0
        %v6054 = vadd.f32 %v5829, %v6053
        %v6055 = vpop.f32.mrf.mxu0
        %6056 = vmatprep.mubr.f32.mxu0 %v4888
        %6057 = vmatmul.mubr.f32.gmra.mxu0 %v4768
        %v6058 = vpop.f32.mrf.mxu0
        %v6059 = vadd.f32 %v5834, %v6058
        %v6060 = vpop.f32.mrf.mxu0
        %6061 = vmatprep.mubr.f32.mxu0 %v4890
        %6062 = vmatmul.mubr.f32.gmra.mxu0 %v4702
        %v6063 = vpop.f32.mrf.mxu0
        %v6064 = vadd.f32 %v5839, %v6063
        %v6065 = vpop.f32.mrf.mxu0
        %6066 = vmatprep.mubr.f32.mxu0 %v5030
        %6067 = vmatmul.mubr.f32.gmra.mxu0 %v4769
        %v6068 = vpop.f32.mrf.mxu0
        %v6069 = vadd.f32 %v5844, %v6068
        %v6070 = vpop.f32.mrf.mxu0
        %6071 = vmatprep.mubr.f32.mxu0 %v5032
        %6072 = vmatmul.mubr.f32.gmra.mxu0 %v4705
        %v6073 = vpop.f32.mrf.mxu0
        %v6074 = vadd.f32 %v5849, %v6073
        %v6075 = vpop.f32.mrf.mxu0
        %6076 = vmatprep.mubr.f32.mxu0 %v1016
        %6077 = vmatmul.mubr.f32.gmra.mxu0 %v947
        %v6078 = vpop.f32.mrf.mxu0
        %v6079 = vadd.f32 %v5854, %v6078
        %v6080 = vpop.f32.mrf.mxu0
        %6081 = vmatprep.mubr.f32.mxu0 %v1018
        %6082 = vmatmul.mubr.f32.gmra.mxu0 %v848
        %v6083 = vpop.f32.mrf.mxu0
        %v6084 = vadd.f32 %v5859, %v6083
        %v6085 = vpop.f32.mrf.mxu0
        %6086 = vdwg.mxu0
        %6087 = vmatprep.subr.mxu0 0.0
        %6088 = vmatpush1.msra.mxu0 %v5186
        %6089 = vmatprep.subr.mxu0 0.0
        %6090 = vmatpush1.msra.mxu0 %v5185
        %6091 = vmatprep.subr.mxu0 0.0
        %6092 = vmatpush1.msra.mxu0 %v5184
        %6093 = vmatprep.subr.mxu0 0.0
        %6094 = vmatpush1.msra.mxu0 %v5183
        %6095 = vmatprep.subr.mxu0 0.0
        %6096 = vmatpush1.msra.mxu0 %v5182
        %6097 = vmatprep.subr.mxu0 0.0
        %6098 = vmatpush1.msra.mxu0 %v5181
        %6099 = vmatprep.subr.mxu0 0.0
        %6100 = vmatpush1.msra.mxu0 %v5180
        %6101 = vmatprep.subr.mxu0 0.0
        %6102 = vmatpush1.msra.mxu0 %v5179
        %6103 = vmatprep.subr.mxu0 0.0
        %6104 = vmatpush1.msra.mxu0 %v5178
        %6105 = vmatprep.subr.mxu0 0.0
        %6106 = vmatpush1.msra.mxu0 %v5177
        %6107 = vmatprep.subr.mxu0 0.0
        %6108 = vmatpush1.msra.mxu0 %v5176
        %6109 = vmatprep.subr.mxu0 0.0
        %6110 = vmatpush1.msra.mxu0 %v5175
        %6111 = vmatprep.subr.mxu0 0.0
        %6112 = vmatpush1.msra.mxu0 %v5174
        %6113 = vmatprep.subr.mxu0 0.0
        %6114 = vmatpush1.msra.mxu0 %v5173
        %6115 = vmatprep.subr.mxu0 0.0
        %6116 = vmatpush1.msra.mxu0 %v5172
        %6117 = vmatprep.subr.mxu0 0.0
        %6118 = vmatpush1.msra.mxu0 %v5171
        %6119 = vmatprep.subr.mxu0 0.0
        %6120 = vmatpush2.msra.mxu0 0.0
        %6121 = vmatprep.subr.mxu0 0.0
        %6122 = vmatpush2.msra.mxu0 0.0
        %6123 = vmatprep.subr.mxu0 0.0
        %6124 = vmatpush2.msra.mxu0 0.0
        %6125 = vmatprep.subr.mxu0 0.0
        %6126 = vmatpush2.msra.mxu0 0.0
        %6127 = vmatprep.subr.mxu0 0.0
        %6128 = vmatpush2.msra.mxu0 0.0
        %6129 = vmatprep.subr.mxu0 0.0
        %6130 = vmatpush2.msra.mxu0 0.0
        %6131 = vmatprep.subr.mxu0 0.0
        %6132 = vmatpush2.msra.mxu0 0.0
        %6133 = vmatprep.subr.mxu0 0.0
        %6134 = vmatpush2.msra.mxu0 0.0
        %6135 = vmatprep.subr.mxu0 0.0
        %6136 = vmatpush2.msra.mxu0 0.0
        %6137 = vmatprep.subr.mxu0 0.0
        %6138 = vmatpush2.msra.mxu0 0.0
        %6139 = vmatprep.subr.mxu0 0.0
        %6140 = vmatpush2.msra.mxu0 0.0
        %6141 = vmatprep.subr.mxu0 0.0
        %6142 = vmatpush2.msra.mxu0 0.0
        %6143 = vmatprep.subr.mxu0 0.0
        %6144 = vmatpush2.msra.mxu0 0.0
        %6145 = vmatprep.subr.mxu0 0.0
        %6146 = vmatpush2.msra.mxu0 0.0
        %6147 = vmatprep.subr.mxu0 0.0
        %6148 = vmatpush2.msra.mxu0 0.0
        %6149 = vmatprep.subr.mxu0 0.0
        %6150 = vmatpush2.msra.mxu0 0.0
        %6151 = vmatprep.mubr.f32.mxu0 0.0
        %6152 = vmatmul.mubr.f32.gmra.mxu0 %v4928
        %v6153 = vpop.f32.mrf.mxu0
        %v6154 = vadd.f32 %v5929, %v6153
        %v6155 = vpop.f32.mrf.mxu0
        %6156 = vmatprep.mubr.f32.mxu0 0.0
        %6157 = vmatmul.mubr.f32.gmra.mxu0 %v4930
        %v6158 = vpop.f32.mrf.mxu0
        %v6159 = vadd.f32 %v5934, %v6158
        %v6160 = vpop.f32.mrf.mxu0
        %6161 = vmatprep.mubr.f32.mxu0 0.0
        %6162 = vmatmul.mubr.f32.gmra.mxu0 %v4933
        %v6163 = vpop.f32.mrf.mxu0
        %v6164 = vadd.f32 %v5939, %v6163
        %v6165 = vpop.f32.mrf.mxu0
        %6166 = vmatprep.mubr.f32.mxu0 0.0
        %6167 = vmatmul.mubr.f32.gmra.mxu0 %v4935
        %v6168 = vpop.f32.mrf.mxu0
        %v6169 = vadd.f32 %v5944, %v6168
        %v6170 = vpop.f32.mrf.mxu0
        %6171 = vmatprep.mubr.f32.mxu0 0.0
        %6172 = vmatmul.mubr.f32.gmra.mxu0 %v4938
        %v6173 = vpop.f32.mrf.mxu0
        %v6174 = vadd.f32 %v5949, %v6173
        %v6175 = vpop.f32.mrf.mxu0
        %6176 = vmatprep.mubr.f32.mxu0 0.0
        %6177 = vmatmul.mubr.f32.gmra.mxu0 %v4940
        %v6178 = vpop.f32.mrf.mxu0
        %v6179 = vadd.f32 %v5954, %v6178
        %v6180 = vpop.f32.mrf.mxu0
        %6181 = vmatprep.mubr.f32.mxu0 0.0
        %6182 = vmatmul.mubr.f32.gmra.mxu0 %v4943
        %v6183 = vpop.f32.mrf.mxu0
        %v6184 = vadd.f32 %v5959, %v6183
        %v6185 = vpop.f32.mrf.mxu0
        %6186 = vmatprep.mubr.f32.mxu0 0.0
        %6187 = vmatmul.mubr.f32.gmra.mxu0 %v4945
        %v6188 = vpop.f32.mrf.mxu0
        %v6189 = vadd.f32 %v5964, %v6188
        %v6190 = vpop.f32.mrf.mxu0
        %6191 = vmatprep.mubr.f32.mxu0 0.0
        %6192 = vmatmul.mubr.f32.gmra.mxu0 %v4948
        %v6193 = vpop.f32.mrf.mxu0
        %v6194 = vadd.f32 %v5969, %v6193
        %v6195 = vpop.f32.mrf.mxu0
        %6196 = vmatprep.mubr.f32.mxu0 0.0
        %6197 = vmatmul.mubr.f32.gmra.mxu0 %v4950
        %v6198 = vpop.f32.mrf.mxu0
        %v6199 = vadd.f32 %v5974, %v6198
        %v6200 = vpop.f32.mrf.mxu0
        %6201 = vmatprep.mubr.f32.mxu0 0.0
        %6202 = vmatmul.mubr.f32.gmra.mxu0 %v4953
        %v6203 = vpop.f32.mrf.mxu0
        %v6204 = vadd.f32 %v5979, %v6203
        %v6205 = vpop.f32.mrf.mxu0
        %6206 = vmatprep.mubr.f32.mxu0 0.0
        %6207 = vmatmul.mubr.f32.gmra.mxu0 %v4955
        %v6208 = vpop.f32.mrf.mxu0
        %v6209 = vadd.f32 %v5984, %v6208
        %v6210 = vpop.f32.mrf.mxu0
        %6211 = vmatprep.mubr.f32.mxu0 0.0
        %6212 = vmatmul.mubr.f32.gmra.mxu0 %v4958
        %v6213 = vpop.f32.mrf.mxu0
        %v6214 = vadd.f32 %v5989, %v6213
        %v6215 = vpop.f32.mrf.mxu0
        %6216 = vmatprep.mubr.f32.mxu0 0.0
        %6217 = vmatmul.mubr.f32.gmra.mxu0 %v4960
        %v6218 = vpop.f32.mrf.mxu0
        %v6219 = vadd.f32 %v5994, %v6218
        %v6220 = vpop.f32.mrf.mxu0
        %6221 = vmatprep.mubr.f32.mxu0 0.0
        %6222 = vmatmul.mubr.f32.gmra.mxu0 %v4963
        %v6223 = vpop.f32.mrf.mxu0
        %v6224 = vadd.f32 %v5999, %v6223
        %v6225 = vpop.f32.mrf.mxu0
        %6226 = vmatprep.mubr.f32.mxu0 0.0
        %6227 = vmatmul.mubr.f32.gmra.mxu0 %v4965
        %v6228 = vpop.f32.mrf.mxu0
        %v6229 = vadd.f32 %v6004, %v6228
        %v6230 = vpop.f32.mrf.mxu0
        %6231 = vmatprep.mubr.f32.mxu0 0.0
        %6232 = vmatmul.mubr.f32.gmra.mxu0 %v4968
        %v6233 = vpop.f32.mrf.mxu0
        %v6234 = vadd.f32 %v6009, %v6233
        %v6235 = vpop.f32.mrf.mxu0
        %6236 = vmatprep.mubr.f32.mxu0 0.0
        %6237 = vmatmul.mubr.f32.gmra.mxu0 %v4970
        %v6238 = vpop.f32.mrf.mxu0
        %v6239 = vadd.f32 %v6014, %v6238
        %v6240 = vpop.f32.mrf.mxu0
        %6241 = vmatprep.mubr.f32.mxu0 0.0
        %6242 = vmatmul.mubr.f32.gmra.mxu0 %v4973
        %v6243 = vpop.f32.mrf.mxu0
        %v6244 = vadd.f32 %v6019, %v6243
        %v6245 = vpop.f32.mrf.mxu0
        %6246 = vmatprep.mubr.f32.mxu0 0.0
        %6247 = vmatmul.mubr.f32.gmra.mxu0 %v4975
        %v6248 = vpop.f32.mrf.mxu0
        %v6249 = vadd.f32 %v6024, %v6248
        %v6250 = vpop.f32.mrf.mxu0
        %6251 = vmatprep.mubr.f32.mxu0 0.0
        %6252 = vmatmul.mubr.f32.gmra.mxu0 %v4978
        %v6253 = vpop.f32.mrf.mxu0
        %v6254 = vadd.f32 %v6029, %v6253
        %v6255 = vpop.f32.mrf.mxu0
        %6256 = vmatprep.mubr.f32.mxu0 0.0
        %6257 = vmatmul.mubr.f32.gmra.mxu0 %v4980
        %v6258 = vpop.f32.mrf.mxu0
        %v6259 = vadd.f32 %v6034, %v6258
        %v6260 = vpop.f32.mrf.mxu0
        %6261 = vmatprep.mubr.f32.mxu0 0.0
        %6262 = vmatmul.mubr.f32.gmra.mxu0 %v4983
        %v6263 = vpop.f32.mrf.mxu0
        %v6264 = vadd.f32 %v6039, %v6263
        %v6265 = vpop.f32.mrf.mxu0
        %6266 = vmatprep.mubr.f32.mxu0 0.0
        %6267 = vmatmul.mubr.f32.gmra.mxu0 %v4985
        %v6268 = vpop.f32.mrf.mxu0
        %v6269 = vadd.f32 %v6044, %v6268
        %v6270 = vpop.f32.mrf.mxu0
        %6271 = vmatprep.mubr.f32.mxu0 0.0
        %6272 = vmatmul.mubr.f32.gmra.mxu0 %v4988
        %v6273 = vpop.f32.mrf.mxu0
        %v6274 = vadd.f32 %v6049, %v6273
        %v6275 = vpop.f32.mrf.mxu0
        %6276 = vmatprep.mubr.f32.mxu0 0.0
        %6277 = vmatmul.mubr.f32.gmra.mxu0 %v4990
        %v6278 = vpop.f32.mrf.mxu0
        %v6279 = vadd.f32 %v6054, %v6278
        %v6280 = vpop.f32.mrf.mxu0
        %6281 = vmatprep.mubr.f32.mxu0 0.0
        %6282 = vmatmul.mubr.f32.gmra.mxu0 %v4993
        %v6283 = vpop.f32.mrf.mxu0
        %v6284 = vadd.f32 %v6059, %v6283
        %v6285 = vpop.f32.mrf.mxu0
        %6286 = vmatprep.mubr.f32.mxu0 0.0
        %6287 = vmatmul.mubr.f32.gmra.mxu0 %v4995
        %v6288 = vpop.f32.mrf.mxu0
        %v6289 = vadd.f32 %v6064, %v6288
        %v6290 = vpop.f32.mrf.mxu0
        %6291 = vmatprep.mubr.f32.mxu0 0.0
        %6292 = vmatmul.mubr.f32.gmra.mxu0 %v5037
        %v6293 = vpop.f32.mrf.mxu0
        %v6294 = vadd.f32 %v6069, %v6293
        %v6295 = vpop.f32.mrf.mxu0
        %6296 = vmatprep.mubr.f32.mxu0 0.0
        %6297 = vmatmul.mubr.f32.gmra.mxu0 %v5039
        %v6298 = vpop.f32.mrf.mxu0
        %v6299 = vadd.f32 %v6074, %v6298
        %v6300 = vpop.f32.mrf.mxu0
        %6301 = vmatprep.mubr.f32.mxu0 0.0
        %6302 = vmatmul.mubr.f32.gmra.mxu0 %v1129
        %v6303 = vpop.f32.mrf.mxu0
        %v6304 = vadd.f32 %v6079, %v6303
        %v6305 = vpop.f32.mrf.mxu0
        %6306 = vmatprep.mubr.f32.mxu0 0.0
        %6307 = vmatmul.mubr.f32.gmra.mxu0 %v1131
        %v6308 = vpop.f32.mrf.mxu0
        %v6309 = vadd.f32 %v6084, %v6308
        %v6310 = vpop.f32.mrf.mxu0
        %6311 = vdwg.mxu0
        %v6312 = vadd.f32 %v4482, %v6154
        %v6313 = vadd.f32 %v4483, %v6159
        %v6314 = vadd.f32 %v4484, %v6164
        %v6315 = vadd.f32 %v4485, %v6169
        %v6316 = vadd.f32 %v4486, %v6174
        %v6317 = vadd.f32 %v4487, %v6179
        %v6318 = vadd.f32 %v4488, %v6184
        %v6319 = vadd.f32 %v4489, %v6189
        %v6320 = vadd.f32 %v4490, %v6194
        %v6321 = vadd.f32 %v4491, %v6199
        %v6322 = vadd.f32 %v4492, %v6204
        %v6323 = vadd.f32 %v4493, %v6209
        %v6324 = vadd.f32 %v4494, %v6214
        %v6325 = vadd.f32 %v4495, %v6219
        %v6326 = vadd.f32 %v4496, %v6224
        %v6327 = vadd.f32 %v4497, %v6229
        %v6328 = vadd.f32 %v4498, %v6234
        %v6329 = vadd.f32 %v4499, %v6239
        %v6330 = vadd.f32 %v4500, %v6244
        %v6331 = vadd.f32 %v4501, %v6249
        %v6332 = vadd.f32 %v4502, %v6254
        %v6333 = vadd.f32 %v4503, %v6259
        %v6334 = vadd.f32 %v4504, %v6264
        %v6335 = vadd.f32 %v4505, %v6269
        %v6336 = vadd.f32 %v4506, %v6274
        %v6337 = vadd.f32 %v4507, %v6279
        %v6338 = vadd.f32 %v4508, %v6284
        %v6339 = vadd.f32 %v4509, %v6289
        %v6340 = vadd.f32 %v4510, %v6294
        %v6341 = vadd.f32 %v4511, %v6299
        %v6342 = vadd.f32 %v4512, %v6304
        %v6343 = vadd.f32 %v4513, %v6309
        %6344 = vst [vmem:[%s274] sm:$0xff] %v6312
        %6345 = vst [vmem:[%s274 + $0x8] sm:$0xff] %v6313
        %6346 = vst [vmem:[%s274 + $0x10] sm:$0xff] %v6314
        %6347 = vst [vmem:[%s274 + $0x18] sm:$0xff] %v6315
        %6348 = vst [vmem:[%s274 + $0x20] sm:$0xff] %v6316
        %6349 = vst [vmem:[%s274 + $0x28] sm:$0xff] %v6317
        %6350 = vst [vmem:[%s274 + $0x30] sm:$0xff] %v6318
        %6351 = vst [vmem:[%s274 + $0x38] sm:$0xff] %v6319
        %6352 = vst [vmem:[%s274 + $0x40] sm:$0xff] %v6320
        %6353 = vst [vmem:[%s274 + $0x48] sm:$0xff] %v6321
        %6354 = vst [vmem:[%s274 + $0x50] sm:$0xff] %v6322
        %6355 = vst [vmem:[%s274 + $0x58] sm:$0xff] %v6323
        %6356 = vst [vmem:[%s274 + $0x60] sm:$0xff] %v6324
        %6357 = vst [vmem:[%s274 + $0x68] sm:$0xff] %v6325
        %6358 = vst [vmem:[%s274 + $0x70] sm:$0xff] %v6326
        %6359 = vst [vmem:[%s274 + $0x78] sm:$0xff] %v6327
        %6360 = vst [vmem:[%s274 + $0x80] sm:$0xff] %v6328
        %6361 = vst [vmem:[%s274 + $0x88] sm:$0xff] %v6329
        %6362 = vst [vmem:[%s274 + $0x90] sm:$0xff] %v6330
        %6363 = vst [vmem:[%s274 + $0x98] sm:$0xff] %v6331
        %6364 = vst [vmem:[%s274 + $0xa0] sm:$0xff] %v6332
        %6365 = vst [vmem:[%s274 + $0xa8] sm:$0xff] %v6333
        %6366 = vst [vmem:[%s274 + $0xb0] sm:$0xff] %v6334
        %6367 = vst [vmem:[%s274 + $0xb8] sm:$0xff] %v6335
        %6368 = vst [vmem:[%s274 + $0xc0] sm:$0xff] %v6336
        %6369 = vst [vmem:[%s274 + $0xc8] sm:$0xff] %v6337
        %6370 = vst [vmem:[%s274 + $0xd0] sm:$0xff] %v6338
        %6371 = vst [vmem:[%s274 + $0xd8] sm:$0xff] %v6339
        %6372 = vst [vmem:[%s274 + $0xe0] sm:$0xff] %v6340
        %6373 = vst [vmem:[%s274 + $0xe8] sm:$0xff] %v6341
        %6374 = vst [vmem:[%s274 + $0xf0] sm:$0xff] %v6342
        %6375 = vst [vmem:[%s274 + $0xf8] sm:$0xff] %v6343
        %s6376 = sand.u32 %s140, 1
        %s6377 = scalar_lea.sflag [#allocation4], %s6376
        %s6378 = sand.u32 %s140, 1
        %s6379 = smul.addr %s6378, 256
        %s6380 = scalar_lea.vmem [#allocation10], %s6379
        // Predicated region
        $region57: #{tpu_custom_call.1} parent=39 // pred_check
          %p6381 = pneg %p150
        $region58: #{tpu_custom_call.1} parent=39 // pred_check_branch
          %6383 = sbr.rel (%p6381) target = $region60
        $region59: #{tpu_custom_call.1} parent=39 // pred_region
          %s6385 = ssub.s32 4096, 4096
          %6386 = vsyncadd %s6377, %s6385
          %s6387 = smul.addr %s22, 32
          %s6388 = smul.addr %s6387, 128
          %s6389 = scalar_lea.hbm %s5, %s6388
          %s6390 = sshll.u32 %s6380, 4
          %s6391 = int_to_ptr.vmem [resolvable:$true] %s6390
          %6396 = dma.vmem_to_hbm [thread:$0]  %s6391, 4096, %s6389, %s6377, 128, 128, 8
        $region60: #{tpu_custom_call.1} parent=39 // pred_fallthru
          _
      $region40: #{tpu_custom_call.1} parent=5 // pred_fallthru
        _
      %p6397 = scmp.le.s32.totalorder 2, %s17
      // Predicated region
      $region61: #{tpu_custom_call.1} parent=5 // pred_check
        %p6398 = pneg %p6397
      $region62: #{tpu_custom_call.1} parent=5 // pred_check_branch
        %6400 = sbr.rel (%p6398) target = $region64
      $region63: #{tpu_custom_call.1} parent=5 // pred_region
        %s6401 = ssub.s32 %s17, 2
        // Predicated region
        $region65: #{tpu_custom_call.1} parent=63 // pred_check
          %p6402 = pneg %p156
        $region66: #{tpu_custom_call.1} parent=63 // pred_check_branch
          %6404 = sbr.rel (%p6402) target = $region68
        $region67: #{tpu_custom_call.1} parent=63 // pred_region
          %s6405 = sand.u32 %s141, 1
          %s6406 = scalar_lea.sflag [#allocation4], %s6405
          %s6407 = sand.u32 %s141, 1
          %s6408 = smul.addr %s6407, 256
          %s6409 = scalar_lea.vmem [#allocation10], %s6408
          %6410 = dma.done %s6406, 4096
        $region68: #{tpu_custom_call.1} parent=63 // pred_fallthru
          _
      $region64: #{tpu_custom_call.1} parent=5 // pred_fallthru
        _
    $region6: #{tpu_custom_call.1} parent=1 // loop_footer
      %s21 = sadd.s32 1, %s17
    $region7: #{tpu_custom_call.1} parent=1 // loop_footer_branch
      %16 = sbr.rel target = $region3
    $region8: #{tpu_custom_call.1} parent=1 // loop_exit
      _
    %6411 = vsyncpa [#allocation3], 1
    %s6412 = scalar_lea.sflag [#allocation3], 1
    %6413 = vsyncpa %s6412, 1
    %6414 = vsyncpa [#allocation6], 1
    %6415 = vsyncpa [#allocation9], 1
    %6416 = vsyncpa [#allocation4], 1
    %s6417 = scalar_lea.sflag [#allocation4], 1
    %6418 = vsyncpa %s6417, 1

</llo_original>
